<compile_context>
chip_gen: v6e
topology: v6e:2x2x1
jax: 0.10.0
libtpu: 0.0.40
codegen_flags: <defaults>
</compile_context>

<pallas_src>
import functools

import jax
import jax.numpy as jnp
from jax import lax
from jax.experimental import pallas as pl
from jax.experimental.pallas import tpu as pltpu

LANE = 128
_STEP_OVERHEAD_S = 0.35e-6     # fixed per-grid-step cost (pipeline bookkeeping)
_HBM_BW = 1.2e12               # nominal HBM bandwidth, only for tile scoring


def _round_up(x, m):
    return ((x + m - 1) // m) * m


@functools.lru_cache(maxsize=None)
def _vmem_budget():
    """Generation-aware VMEM budget (bytes) for tiles / resident blocks."""
    cap = None
    try:
        cap = getattr(pltpu.get_tpu_info(), "vmem_capacity_bytes", None)
    except Exception:
        cap = None
    if not cap:
        cap = 64 * 1024 * 1024            # conservative: v7x per-TensorCore size
    # ~25% headroom for compiler scratch; cap ~100 MiB on 128 MiB parts
    return min(int(cap) * 3 // 4, 100 * 1024 * 1024)


def _best_tiling(n_pad, c_feat, c_out_pad, out_itemsize, budget):
    """Cost-model search for the tiled aggregation kernel.

    Returns (cost_seconds, tm, tk, feat_resident)."""
    tks = sorted({t for t in (n_pad, 4096, 2048, 1024, 512, 384, 256, 128)
                  if t <= n_pad and n_pad % t == 0}, reverse=True)
    best = None
    for tm in (1024, 512, 384, 256, 128):
        if tm > n_pad or n_pad % tm != 0:
            continue
        if n_pad >= 256 and n_pad // tm < 2:
            continue                      # keep >=2 row tiles for v7x megacore
        for tk in tks:
            for resident in (True, False):
                vmem = (2 * tm * tk * 2                       # adj double-buffer
                        + 2 * c_feat * c_out_pad * 2          # weight (bf16)
                        + 4 * c_out_pad * 4                   # bias
                        + tm * c_feat * 4                     # f32 accumulator
                        + 2 * tm * c_out_pad * out_itemsize)  # output buffers
                vmem += (2 * n_pad * c_feat * 2 if resident
                         else 2 * tk * c_feat * 2)            # feature block
                if vmem > budget:
                    continue
                steps = (n_pad // tm) * (n_pad // tk)
                hbm = (n_pad * n_pad * 2
                       + (1 if resident else n_pad // tm) * n_pad * c_feat * 2
                       + n_pad * c_out_pad * out_itemsize)
                cost = steps * _STEP_OVERHEAD_S + hbm / _HBM_BW
                if best is None or cost < best[0]:
                    best = (cost, tm, tk, resident)
    if best is None:                      # budget too small: minimal legal tiling
        best = (float("inf"), 128, 128, False)
    return best


def _choose_n_pad(n, c_hint, budget):
    """Padded node count: trade adjacency padding waste vs larger tiles."""
    if n <= 128:
        return 128
    best = None
    for mult in (128, 256, 384, 512, 1024):
        n_pad = _round_up(n, mult)
        cost = _best_tiling(n_pad, c_hint, c_hint, 2, budget)[0]
        if best is None or cost < best[1]:
            best = (n_pad, cost)
    return best[0]


def _pick_tm_rows(n_pad, c_in_pad, c_out_pad, budget):
    """Row tile for the hoisted X @ W matmul."""
    for t in (1024, 512, 384, 256, 128):
        if t > n_pad or n_pad % t != 0:
            continue
        if n_pad >= 256 and n_pad // t < 2:
            continue
        vmem = (2 * t * c_in_pad * 2 + 2 * c_in_pad * c_out_pad * 2
                + 2 * t * c_out_pad * 2)
        if vmem <= budget:
            return t
    return 128


# ----------------------------------------------------------------------------
# Kernel 1: row-tiled X @ W (hoisted feature transform), bf16 in/out, f32 MXU acc.
# ----------------------------------------------------------------------------
def _xw_kernel(x_ref, w_ref, o_ref):
    o_ref[...] = jnp.dot(x_ref[...], w_ref[...],
                         preferred_element_type=jnp.float32).astype(o_ref.dtype)


def xw_matmul(x_bf16, w_bf16, *, budget):
    n_pad, c_in_pad = x_bf16.shape
    c_out_pad = w_bf16.shape[1]
    tm = _pick_tm_rows(n_pad, c_in_pad, c_out_pad, budget)
    return pl.pallas_call(
        _xw_kernel,
        out_shape=jax.ShapeDtypeStruct((n_pad, c_out_pad), jnp.bfloat16),
        grid=(n_pad // tm,),
        in_specs=[pl.BlockSpec((tm, c_in_pad), lambda i: (i, 0)),
                  pl.BlockSpec((c_in_pad, c_out_pad), lambda i: (0, 0))],
        out_specs=pl.BlockSpec((tm, c_out_pad), lambda i: (i, 0)),
        compiler_params=pltpu.CompilerParams(
            dimension_semantics=("parallel",),
            vmem_limit_bytes=budget),
    )(x_bf16, w_bf16)


# ----------------------------------------------------------------------------
# Kernel 2 (tiled fallback): acc += A_tile @ F_tile (bf16 x bf16 -> f32);
# epilogue at last reduction step: optional (acc @ W), + bias (BN folded),
# ReLU, cast, lane-dense store.
# ----------------------------------------------------------------------------
def _gcn_agg_kernel(adj_ref, feat_ref, w_ref, b_ref, o_ref, acc_ref, *,
                    tk, feat_resident, apply_w, apply_relu):
    k = pl.program_id(1)

    @pl.when(k == 0)
    def _():
        acc_ref[...] = jnp.zeros_like(acc_ref)

    if feat_resident:
        # features are VMEM-resident (full-extent block); slice the k-th panel
        start = pl.multiple_of(k * tk, tk)
        feat = feat_ref[pl.ds(start, tk), :]
    else:
        feat = feat_ref[...]
    acc_ref[...] += jnp.dot(adj_ref[...], feat,
                            preferred_element_type=jnp.float32)

    @pl.when(k == pl.num_programs(1) - 1)
    def _():
        out = acc_ref[...]
        if apply_w:
            # NOTE: acc is cast to bf16 before the epilogue matmul (MXU fast
            # path); acceptable for the bf16 activation stream.
            out = jnp.dot(out.astype(jnp.bfloat16), w_ref[...],
                          preferred_element_type=jnp.float32)
        out = out + b_ref[...]            # bias (BatchNorm already folded in)
        if apply_relu:
            out = jnp.maximum(out, 0.0)   # ReLU; dropout = identity in eval
        o_ref[...] = out.astype(o_ref.dtype)


def gcn_layer(adj_bf16, x_pad, w, b, *, apply_relu, out_dtype, budget):
    """One GCNConv (+ folded BN / ReLU) on padded, lane-dense tensors."""
    n_pad = adj_bf16.shape[0]
    c_in, c_out = w.shape
    c_in_pad = x_pad.shape[1]
    c_out_pad = _round_up(c_out, LANE)

    w_pad = jnp.zeros((c_in_pad, c_out_pad), jnp.float32).at[:c_in, :c_out].set(w)
    b_pad = jnp.zeros((1, c_out_pad), jnp.float32).at[0, :c_out].set(b)

    if c_in_pad <= c_out_pad:
        # Aggregate raw X (narrower); fold W into the row-tile epilogue.
        feat = x_pad
        w_arg = w_pad.astype(jnp.bfloat16)
        apply_w = True
    else:
        # Hoist X @ W once; aggregation then contracts over the narrower c_out.
        feat = xw_matmul(x_pad, w_pad.astype(jnp.bfloat16), budget=budget)
        w_arg = jnp.zeros((1, c_out_pad), jnp.bfloat16)   # unused dummy
        apply_w = False

    c_feat = feat.shape[1]
    itemsize = jnp.dtype(out_dtype).itemsize
    _, tm, tk, feat_resident = _best_tiling(n_pad, c_feat, c_out_pad, itemsize,
                                            budget)
    grid = (n_pad // tm, n_pad // tk)

    feat_spec = (pl.BlockSpec((n_pad, c_feat), lambda i, k: (0, 0))
                 if feat_resident else
                 pl.BlockSpec((tk, c_feat), lambda i, k: (k, 0)))

    flops = 2 * n_pad * n_pad * c_feat
    if apply_w:
        flops += 2 * n_pad * c_feat * c_out_pad
    feat_bytes = (1 if feat_resident else grid[0]) * n_pad * c_feat * 2
    bytes_accessed = (n_pad * n_pad * 2 + feat_bytes
                      + n_pad * c_out_pad * itemsize)

    kernel = functools.partial(_gcn_agg_kernel, tk=tk,
                               feat_resident=feat_resident,
                               apply_w=apply_w, apply_relu=apply_relu)
    return pl.pallas_call(
        kernel,
        out_shape=jax.ShapeDtypeStruct((n_pad, c_out_pad), out_dtype),
        grid=grid,
        in_specs=[
            pl.BlockSpec((tm, tk), lambda i, k: (i, k)),        # A_norm tile
            feat_spec,                                          # features
            pl.BlockSpec(w_arg.shape, lambda i, k: (0, 0)),     # W (or dummy)
            pl.BlockSpec((1, c_out_pad), lambda i, k: (0, 0)),  # bias
        ],
        out_specs=pl.BlockSpec((tm, c_out_pad), lambda i, k: (i, 0)),
        scratch_shapes=[pltpu.VMEM((tm, c_feat), jnp.float32)],
        compiler_params=pltpu.CompilerParams(
            dimension_semantics=("parallel", "arbitrary"),
            vmem_limit_bytes=budget),
        cost_estimate=pl.CostEstimate(flops=flops, transcendentals=0,
                                      bytes_accessed=bytes_accessed),
    )(adj_bf16, feat, w_arg, b_pad)


# ----------------------------------------------------------------------------
# Kernel 3 (fused): whole layer stack in one pallas_call.  Grid iterates
# layers; A_norm is DMA'd once (constant block index) and stays VMEM-resident;
# activations live in a VMEM scratch across grid steps.
# ----------------------------------------------------------------------------
def _gcn_fused_kernel(adj_ref, z0_ref, w_ref, b_ref, o_ref, h_ref):
    l = pl.program_id(0)

    @pl.when(l == 0)
    def _():
        h_ref[...] = z0_ref[...]                     # layer-0 X @ W0 (hoisted)

    @pl.when(l > 0)
    def _():
        h_ref[...] = jnp.dot(h_ref[...], w_ref[0],
                             preferred_element_type=jnp.float32
                             ).astype(h_ref.dtype)   # H_{l-1} @ W_l

    out = jnp.dot(adj_ref[...], h_ref[...],
                  preferred_element_type=jnp.float32) + b_ref[0]
    # next layer's input (ignored after the final step); dropout = identity
    h_ref[...] = jnp.maximum(out, 0.0).astype(h_ref.dtype)
    # constant output block index: only the last step's value is written to HBM,
    # and the last layer has no ReLU by construction.
    o_ref[...] = out.astype(o_ref.dtype)


def _fused_vmem_bytes(n_pad, c_mid):
    return (2 * n_pad * n_pad * 2          # adjacency (conservatively x2 buffers)
            + 2 * n_pad * c_mid * 2        # X @ W0
            + 2 * c_mid * c_mid * 2        # per-layer weight slice
            + n_pad * c_mid * 2            # h scratch
            + 2 * n_pad * c_mid * 4        # f32 output buffers
            + 3 * n_pad * c_mid * 4)       # headroom for f32 temporaries


def gcn_fused(adj_bf16, z0_bf16, w_stack, b_stack, *, out_dtype, budget):
    n_pad, c_mid = z0_bf16.shape
    num_layers = b_stack.shape[0]
    return pl.pallas_call(
        _gcn_fused_kernel,
        out_shape=jax.ShapeDtypeStruct((n_pad, c_mid), out_dtype),
        grid=(num_layers,),
        in_specs=[
            pl.BlockSpec((n_pad, n_pad), lambda l: (0, 0)),        # A: DMA'd once
            pl.BlockSpec((n_pad, c_mid), lambda l: (0, 0)),        # X @ W0
            pl.BlockSpec((1, c_mid, c_mid), lambda l: (l, 0, 0)),  # W_l (slot 0 unused)
            pl.BlockSpec((1, 1, c_mid), lambda l: (l, 0, 0)),      # b_l (BN folded)
        ],
        out_specs=pl.BlockSpec((n_pad, c_mid), lambda l: (0, 0)),
        scratch_shapes=[pltpu.VMEM((n_pad, c_mid), jnp.bfloat16)],
        compiler_params=pltpu.CompilerParams(
            dimension_semantics=("arbitrary",),
            vmem_limit_bytes=budget),
    )(adj_bf16, z0_bf16, w_stack, b_stack)


# ----------------------------------------------------------------------------
# Glue: symmetric-normalized dense adjacency, built at padded size, bf16 once.
# (PyG gcn_norm semantics: duplicate edges sum; self-loops added where missing.)
# ----------------------------------------------------------------------------
def normalized_adjacency_bf16(edge_index, num_nodes, n_pad):
    """Padded rows/cols are exactly zero.  Cacheable per graph."""
    src, dst = edge_index[0], edge_index[1]
    a = jnp.zeros((n_pad, n_pad), jnp.float32)
    a = a.at[dst, src].add(1.0)                              # message flow j -> i
    idx = jnp.arange(num_nodes)
    diag = a[idx, idx]
    a = a.at[idx, idx].set(jnp.where(diag > 0.0, diag, 1.0))  # remaining self-loops
    deg = jnp.sum(a, axis=1)
    dinv = jnp.where(deg > 0.0, lax.rsqrt(deg), 0.0)
    return ((dinv[:, None] * a) * dinv[None, :]).astype(jnp.bfloat16)


# ----------------------------------------------------------------------------
# GCNEncoder parameters + forward
# ----------------------------------------------------------------------------
def init_params(key, in_channels, hidden_channels, out_channels, num_layers=4):
    dims = ([in_channels] + [hidden_channels] * (num_layers - 1) +
            [out_channels])
    params = {"convs": [], "bns": []}
    for li in range(num_layers):
        c_in, c_out = dims[li], dims[li + 1]
        key, wk = jax.random.split(key)
        limit = jnp.sqrt(6.0 / (c_in + c_out))     # glorot-uniform (PyG GCNConv)
        w = jax.random.uniform(wk, (c_in, c_out), jnp.float32, -limit, limit)
        b = jnp.zeros((c_out,), jnp.float32)
        params["convs"].append((w, b))
    for _ in range(num_layers - 1):
        c = hidden_channels
        key, gk, bk = jax.random.split(key, 3)
        gamma = 1.0 + 0.1 * jax.random.normal(gk, (c,), jnp.float32)
        beta = 0.1 * jax.random.normal(bk, (c,), jnp.float32)
        running_mean = jnp.zeros((c,), jnp.float32)
        running_var = jnp.ones((c,), jnp.float32)
        params["bns"].append((gamma, beta, running_mean, running_var))
    return params


def _fold_bn(params, eps):
    """Fold inference BatchNorm into each hidden conv's weight / bias."""
    num_layers = len(params["convs"])
    folded = []
    for li in range(num_layers):
        w, b = params["convs"][li]
        if li < num_layers - 1:
            gamma, beta, rm, rv = params["bns"][li]
            scale = gamma * lax.rsqrt(rv + eps)
            w = w * scale[None, :]
            b = b * scale + (beta - rm * scale)
        folded.append((w, b))
    return folded


def gcn_encoder_apply(params, x, adj_bf16, eps=1e-5, force_tiled=False):
    """Layer stack on a precomputed padded bf16 normalized adjacency."""
    n, c_in = x.shape
    n_pad = adj_bf16.shape[0]
    budget = _vmem_budget()
    folded = _fold_bn(params, eps)
    num_layers = len(folded)
    out_channels = folded[-1][0].shape[1]

    c_in_pad = _round_up(c_in, LANE)
    x_pad = (jnp.zeros((n_pad, c_in_pad), jnp.float32)
             .at[:n, :c_in].set(x)).astype(jnp.bfloat16)

    # widest padded channel dim produced by any layer
    c_mid = max(_round_up(wl.shape[1], LANE) for wl, _ in folded)

    if not force_tiled and _fused_vmem_bytes(n_pad, c_mid) <= budget:
        # ---- fused path: A_norm resident in VMEM across the whole stack ----
        w0, b0 = folded[0]
        w0_pad = (jnp.zeros((c_in_pad, c_mid), jnp.float32)
                  .at[:c_in, :w0.shape[1]].set(w0)).astype(jnp.bfloat16)
        z0 = xw_matmul(x_pad, w0_pad, budget=budget)          # hoisted X @ W0

        w_stack = jnp.zeros((num_layers, c_mid, c_mid), jnp.float32)
        b_stack = jnp.zeros((num_layers, 1, c_mid), jnp.float32)
        b_stack = b_stack.at[0, 0, :b0.shape[0]].set(b0)
        for li in range(1, num_layers):
            wl, bl = folded[li]
            w_stack = w_stack.at[li, :wl.shape[0], :wl.shape[1]].set(wl)
            b_stack = b_stack.at[li, 0, :bl.shape[0]].set(bl)

        out = gcn_fused(adj_bf16, z0, w_stack.astype(jnp.bfloat16), b_stack,
                        out_dtype=jnp.float32, budget=budget)
        return out[:n, :out_channels]

    # ---- tiled fallback: one pallas_call per layer (scales past VMEM) ----
    h = x_pad
    for li in range(num_layers - 1):
        wl, bl = folded[li]
        h = gcn_layer(adj_bf16, h, wl, bl, apply_relu=True,
                      out_dtype=jnp.bfloat16, budget=budget)
    wl, bl = folded[-1]
    out = gcn_layer(adj_bf16, h, wl, bl, apply_relu=False,
                    out_dtype=jnp.float32, budget=budget)
    return out[:n, :out_channels]


def gcn_encoder_forward(params, x, edge_index, eps=1e-5, force_tiled=False):
    n = x.shape[0]
    dims = ([params["convs"][0][0].shape[0]] +
            [w.shape[1] for w, _ in params["convs"]])
    c_hint = max(_round_up(d, LANE) for d in dims)
    n_pad = _choose_n_pad(n, c_hint, _vmem_budget())
    adj_bf16 = normalized_adjacency_bf16(edge_index, n, n_pad)
    return gcn_encoder_apply(params, x, adj_bf16, eps=eps,
                             force_tiled=force_tiled)


# ----------------------------------------------------------------------------
# Demo
# ----------------------------------------------------------------------------
if __name__ == "__main__":
    key = jax.random.PRNGKey(0)

    num_nodes = 600          # pads to 768
    in_channels = 8          # pads to 128
    hidden_channels = 192    # pads to 256
    out_channels = 16        # pads to 128
    num_layers = 4

    key, xk, pk = jax.random.split(key, 3)
    x = jax.random.normal(xk, (num_nodes, in_channels), jnp.float32)

    # undirected ring graph -> edge_index of shape (2, 2*num_nodes)
    idx = jnp.arange(num_nodes)
    nxt = (idx + 1) % num_nodes
    src = jnp.concatenate([idx, nxt])
    dst = jnp.concatenate([nxt, idx])
    edge_index = jnp.stack([src, dst], axis=0).astype(jnp.int32)

    params = init_params(pk, in_channels, hidden_channels, out_channels,
                         num_layers)

    fused_fwd = jax.jit(functools.partial(gcn_encoder_forward,
                                          force_tiled=False))
    tiled_fwd = jax.jit(functools.partial(gcn_encoder_forward,
                                          force_tiled=True))

    out_fused = fused_fwd(params, x, edge_index)
    out_tiled = tiled_fwd(params, x, edge_index)
    jax.block_until_ready((out_fused, out_tiled))

    assert out_fused.shape == (num_nodes, out_channels)
    assert out_tiled.shape == (num_nodes, out_channels)
    assert bool(jnp.all(jnp.isfinite(out_fused)))
    assert bool(jnp.all(jnp.isfinite(out_tiled)))
    # fused and per-layer paths use the same bf16/f32 recipe; only the matmul
    # association order differs, so they must agree closely.
    assert float(jnp.max(jnp.abs(out_fused - out_tiled))) < 5e-2
    print("KERNEL_OK")
</pallas_src>

<mosaic_0001>
module attributes {stable_mosaic.version = 11 : i64} {
  func.func private @main(%arg0: i32) attributes {dimension_semantics = [#tpu.dimension_semantics<core_parallel>], iteration_bounds = array<i64: 2>, tpu.core_type = #tpu.core_type<sc_scalar_subcore>, window_params = []} {
    return
  }
}

module attributes {stable_mosaic.version = 11 : i64} {
  func.func private @main(%arg0: i32) attributes {dimension_semantics = [#tpu.dimension_semantics<core_parallel>], iteration_bounds = array<i64: 2>, tpu.core_type = #tpu.core_type<sc_scalar_subcore>, window_params = []} {
    return
  }
}

module attributes {stable_mosaic.version = 11 : i64} {
  func.func @_xw_kernel(%arg0: i32, %arg1: memref<384x128xbf16, #tpu.memory_space<vmem>>, %arg2: memref<128x256xbf16, #tpu.memory_space<vmem>>, %arg3: memref<384x256xbf16, #tpu.memory_space<vmem>>) attributes {dimension_semantics = [#tpu.dimension_semantics<parallel>], iteration_bounds = array<i64: 2>, scalar_prefetch = 0 : i64, scratch_operands = 0 : i64, tpu.core_type = #tpu.core_type<tc>, window_params = [{transform_indices = @transform_0, window_bounds = array<i64: 384, 128>}, {pipeline_mode = #tpu.pipeline_mode<synchronous>, transform_indices = @transform_1, window_bounds = array<i64: 128, 256>}, {transform_indices = @transform_2, window_bounds = array<i64: 384, 256>}]} {
    %c0 = arith.constant 0 : index
    %c0_0 = arith.constant 0 : index
    %0 = vector.load %arg1[%c0, %c0_0] : memref<384x128xbf16, #tpu.memory_space<vmem>>, vector<384x128xbf16>
    %c0_1 = arith.constant 0 : index
    %c0_2 = arith.constant 0 : index
    %1 = vector.load %arg2[%c0_1, %c0_2] : memref<128x256xbf16, #tpu.memory_space<vmem>>, vector<128x256xbf16>
    %cst = arith.constant dense<0.000000e+00> : vector<384x256xf32>
    %2 = tpu.matmul %0, %1, %cst {dimension_numbers = #tpu.dot_dimension_numbers<[1], [0], [0], [1], [0, 0, 1, 1], [], []>} : vector<384x128xbf16>, vector<128x256xbf16>, vector<384x256xf32> -> vector<384x256xf32>
    %3 = arith.truncf %2 : vector<384x256xf32> to vector<384x256xbf16>
    %c0_3 = arith.constant 0 : index
    %c0_4 = arith.constant 0 : index
    %4 = vector.load %arg3[%c0_3, %c0_4] : memref<384x256xbf16, #tpu.memory_space<vmem>>, vector<384x256xbf16>
    tpu.vector_store %arg3[%c0_3, %c0_4], %3 {strides = array<i32>} : memref<384x256xbf16, #tpu.memory_space<vmem>>, vector<384x256xbf16>,
    return
  }
  func.func @transform_0(%arg0: i32) -> (i32, i32) {
    %c0_i32 = arith.constant 0 : i32
    %c0_i32_0 = arith.constant 0 : i32
    return %arg0, %c0_i32 : i32, i32
  }
  func.func @transform_1(%arg0: i32) -> (i32, i32) {
    %c0_i32 = arith.constant 0 : i32
    %c0_i32_0 = arith.constant 0 : i32
    %c0_i32_1 = arith.constant 0 : i32
    return %c0_i32, %c0_i32_0 : i32, i32
  }
  func.func @transform_2(%arg0: i32) -> (i32, i32) {
    %c0_i32 = arith.constant 0 : i32
    %c0_i32_0 = arith.constant 0 : i32
    return %arg0, %c0_i32 : i32, i32
  }
}

module attributes {stable_mosaic.version = 11 : i64} {
  func.func @_gcn_fused_kernel(%arg0: i32, %arg1: memref<768x768xbf16, #tpu.memory_space<vmem>>, %arg2: memref<768x256xbf16, #tpu.memory_space<vmem>>, %arg3: memref<1x256x256xbf16, #tpu.memory_space<vmem>>, %arg4: memref<1x1x256xf32, #tpu.memory_space<vmem>>, %arg5: memref<768x256xf32, #tpu.memory_space<vmem>>, %arg6: memref<768x256xbf16, #tpu.memory_space<vmem>>) attributes {dimension_semantics = [#tpu.dimension_semantics<arbitrary>], iteration_bounds = array<i64: 4>, scalar_prefetch = 0 : i64, scratch_operands = 1 : i64, tpu.core_type = #tpu.core_type<tc>, window_params = [{pipeline_mode = #tpu.pipeline_mode<synchronous>, transform_indices = @transform_0, window_bounds = array<i64: 768, 768>}, {pipeline_mode = #tpu.pipeline_mode<synchronous>, transform_indices = @transform_1, window_bounds = array<i64: 768, 256>}, {transform_indices = @transform_2, window_bounds = array<i64: 1, 256, 256>}, {transform_indices = @transform_3, window_bounds = array<i64: 1, 1, 256>}, {pipeline_mode = #tpu.pipeline_mode<synchronous>, transform_indices = @transform_4, window_bounds = array<i64: 768, 256>}]} {
    %c0_i32 = arith.constant 0 : i32
    %0 = arith.cmpi eq, %arg0, %c0_i32 : i32
    %1 = arith.extui %0 : i1 to i32
    %c0_i32_0 = arith.constant 0 : i32
    %2 = arith.cmpi ne, %1, %c0_i32_0 : i32
    scf.if %2 {
      %c0_14 = arith.constant 0 : index
      %c0_15 = arith.constant 0 : index
      %18 = vector.load %arg2[%c0_14, %c0_15] : memref<768x256xbf16, #tpu.memory_space<vmem>>, vector<768x256xbf16>
      %c0_16 = arith.constant 0 : index
      %c0_17 = arith.constant 0 : index
      %19 = vector.load %arg6[%c0_16, %c0_17] : memref<768x256xbf16, #tpu.memory_space<vmem>>, vector<768x256xbf16>
      tpu.vector_store %arg6[%c0_16, %c0_17], %18 {strides = array<i32>} : memref<768x256xbf16, #tpu.memory_space<vmem>>, vector<768x256xbf16>,
    } else {
    }
    %c0_i32_1 = arith.constant 0 : i32
    %3 = arith.cmpi sgt, %arg0, %c0_i32_1 : i32
    %4 = arith.extui %3 : i1 to i32
    %c0_i32_2 = arith.constant 0 : i32
    %5 = arith.cmpi ne, %4, %c0_i32_2 : i32
    scf.if %5 {
      %c0_14 = arith.constant 0 : index
      %c0_15 = arith.constant 0 : index
      %18 = vector.load %arg6[%c0_14, %c0_15] : memref<768x256xbf16, #tpu.memory_space<vmem>>, vector<768x256xbf16>
      %c0_16 = arith.constant 0 : index
      %c0_17 = arith.constant 0 : index
      %c0_18 = arith.constant 0 : index
      %19 = vector.load %arg3[%c0_16, %c0_17, %c0_18] : memref<1x256x256xbf16, #tpu.memory_space<vmem>>, vector<1x256x256xbf16>
      %20 = vector.shape_cast %19 : vector<1x256x256xbf16> to vector<256x256xbf16>
      %cst_19 = arith.constant dense<0.000000e+00> : vector<768x256xf32>
      %21 = tpu.matmul %18, %20, %cst_19 {dimension_numbers = #tpu.dot_dimension_numbers<[1], [0], [0], [1], [0, 0, 1, 1], [], []>} : vector<768x256xbf16>, vector<256x256xbf16>, vector<768x256xf32> -> vector<768x256xf32>
      %22 = arith.truncf %21 : vector<768x256xf32> to vector<768x256xbf16>
      %c0_20 = arith.constant 0 : index
      %c0_21 = arith.constant 0 : index
      %23 = vector.load %arg6[%c0_20, %c0_21] : memref<768x256xbf16, #tpu.memory_space<vmem>>, vector<768x256xbf16>
      tpu.vector_store %arg6[%c0_20, %c0_21], %22 {strides = array<i32>} : memref<768x256xbf16, #tpu.memory_space<vmem>>, vector<768x256xbf16>,
    } else {
    }
    %c0 = arith.constant 0 : index
    %c0_3 = arith.constant 0 : index
    %6 = vector.load %arg1[%c0, %c0_3] : memref<768x768xbf16, #tpu.memory_space<vmem>>, vector<768x768xbf16>
    %c0_4 = arith.constant 0 : index
    %c0_5 = arith.constant 0 : index
    %7 = vector.load %arg6[%c0_4, %c0_5] : memref<768x256xbf16, #tpu.memory_space<vmem>>, vector<768x256xbf16>
    %cst = arith.constant dense<0.000000e+00> : vector<768x256xf32>
    %8 = tpu.matmul %6, %7, %cst {dimension_numbers = #tpu.dot_dimension_numbers<[1], [0], [0], [1], [0, 0, 1, 1], [], []>} : vector<768x768xbf16>, vector<768x256xbf16>, vector<768x256xf32> -> vector<768x256xf32>
    %c0_6 = arith.constant 0 : index
    %c0_7 = arith.constant 0 : index
    %c0_8 = arith.constant 0 : index
    %9 = vector.load %arg4[%c0_6, %c0_7, %c0_8] : memref<1x1x256xf32, #tpu.memory_space<vmem>>, vector<1x1x256xf32>
    %10 = vector.shape_cast %9 : vector<1x1x256xf32> to vector<1x256xf32>
    %11 = vector.broadcast %10 : vector<1x256xf32> to vector<768x256xf32>
    %12 = arith.addf %8, %11 : vector<768x256xf32>
    %cst_9 = arith.constant 0.000000e+00 : f32
    %13 = vector.broadcast %cst_9 : f32 to vector<768x256xf32>
    %14 = arith.maximumf %12, %13 : vector<768x256xf32>
    %15 = arith.truncf %14 : vector<768x256xf32> to vector<768x256xbf16>
    %c0_10 = arith.constant 0 : index
    %c0_11 = arith.constant 0 : index
    %16 = vector.load %arg6[%c0_10, %c0_11] : memref<768x256xbf16, #tpu.memory_space<vmem>>, vector<768x256xbf16>
    tpu.vector_store %arg6[%c0_10, %c0_11], %15 {strides = array<i32>} : memref<768x256xbf16, #tpu.memory_space<vmem>>, vector<768x256xbf16>,
    %c0_12 = arith.constant 0 : index
    %c0_13 = arith.constant 0 : index
    %17 = vector.load %arg5[%c0_12, %c0_13] : memref<768x256xf32, #tpu.memory_space<vmem>>, vector<768x256xf32>
    tpu.vector_store %arg5[%c0_12, %c0_13], %12 {strides = array<i32>} : memref<768x256xf32, #tpu.memory_space<vmem>>, vector<768x256xf32>,
    return
  }
  func.func @transform_0(%arg0: i32) -> (i32, i32) {
    %c0_i32 = arith.constant 0 : i32
    %c0_i32_0 = arith.constant 0 : i32
    %c0_i32_1 = arith.constant 0 : i32
    return %c0_i32, %c0_i32_0 : i32, i32
  }
  func.func @transform_1(%arg0: i32) -> (i32, i32) {
    %c0_i32 = arith.constant 0 : i32
    %c0_i32_0 = arith.constant 0 : i32
    %c0_i32_1 = arith.constant 0 : i32
    return %c0_i32, %c0_i32_0 : i32, i32
  }
  func.func @transform_2(%arg0: i32) -> (i32, i32, i32) {
    %c0_i32 = arith.constant 0 : i32
    %c0_i32_0 = arith.constant 0 : i32
    %c0_i32_1 = arith.constant 0 : i32
    return %arg0, %c0_i32, %c0_i32_0 : i32, i32, i32
  }
  func.func @transform_3(%arg0: i32) -> (i32, i32, i32) {
    %c0_i32 = arith.constant 0 : i32
    %c0_i32_0 = arith.constant 0 : i32
    %c0_i32_1 = arith.constant 0 : i32
    return %arg0, %c0_i32, %c0_i32_0 : i32, i32, i32
  }
  func.func @transform_4(%arg0: i32) -> (i32, i32) {
    %c0_i32 = arith.constant 0 : i32
    %c0_i32_0 = arith.constant 0 : i32
    %c0_i32_1 = arith.constant 0 : i32
    return %c0_i32, %c0_i32_0 : i32, i32
  }
}

</mosaic_0001>

<llo_original>
// kernel: gcn_encoder_forward.2
$region0: #{gcn_encoder_forward.2}
  #allocation0 [shape = 'u32[]', space=smem, size = 0x4, offset = 0x4, fixed_abs, tag = 'smem constant byte address 0x4 - core index']
  #allocation1 [shape = 'u32[144,128]{1,0:T(1,128)}', space=vmem, size = 0x12000, scoped, tag = 'internal scratch']
  %s0 = inlined_call_operand.vmem [shape: bf16[768,128], index: 0, kind: input, shape index: {}]
  %s1 = inlined_call_operand.vmem [shape: bf16[128,256], index: 1, kind: input, shape index: {}]
  %s2 = inlined_call_operand.vmem [shape: bf16[768,256], index: 2, kind: output, shape index: {}]
  %s3 = sld [smem:[#allocation0]]
  $region41: #{gcn_encoder_forward.2} parent=0
    _
  %s5 = ssub.s32 1, %s3
  %s6 = scalar_select 0, %s5, %s3
  loop: start=0, step=1, limit=4
  $region2: #{gcn_encoder_forward.2} parent=0 // loop_pre_header
    _
  $region3: #{gcn_encoder_forward.2} parent=0 // loop_header
    %s8 = sphi 0, %s12
    %p9 = scmp.ge.s32.totalorder %s8, 4
    %s18 = sphi 0, %s20
    %s21 = sphi 0, %s18
    %s22 = sphi 0, %s21
    %s38 = sphi 0, %s22
    %s42 = sphi 0, %s42
    %s44 = sphi 0, %s42
    %s45 = sphi 0, %s44
    %s59 = sphi 0, %s45
    %s65 = sphi 0, %s67
    %s68 = sphi 0, %s65
    %s69 = sphi 0, %s68
    %s85 = sphi 0, %s69
  $region4: #{gcn_encoder_forward.2} parent=0 // loop_header_branch
    %11 = sbr.rel (%p9) target = $region8
  $region5: #{gcn_encoder_forward.2} parent=0 // loop_body
    %s13 = ssub.s32 %s8, 1
    %s14 = ssub.s32 %s8, 2
    %s15 = sadd.s32 %s8, 1
    %s16 = ssub.s32 %s8, %s15
    %p17 = scmp.eq.s32.totalorder %s16, 0
    %s19 = sadd.s32 %s18, 1
    %s20 = scalar_select %p17, %s18, %s19
    %p23 = pneg %p17
    %p24 = scmp.eq.s32.totalorder %s8, 1
    %p25 = por %p23, %p24
    %p26 = scmp.ne.s32.totalorder %s18, %s21
    %p27 = scmp.eq.s32.totalorder %s8, 0
    %p28 = por %p26, %p27
    %p29 = scmp.ne.s32.totalorder %s18, %s21
    %p30 = scmp.eq.s32.totalorder %s13, 1
    %p31 = por %p29, %p30
    %p32 = scmp.ne.s32.totalorder %s21, %s22
    %p33 = scmp.eq.s32.totalorder %s13, 0
    %p34 = por %p32, %p33
    %p35 = scmp.ne.s32.totalorder %s21, %s22
    %p36 = scmp.eq.s32.totalorder %s14, 1
    %p37 = por %p35, %p36
    %p39 = scmp.ne.s32.totalorder %s22, %s38
    %p40 = scmp.eq.s32.totalorder %s14, 0
    %p41 = por %p39, %p40
    %s43 = sadd.s32 %s42, 1
    %p46 = scmp.eq.s32.totalorder %s8, 1
    %p47 = scmp.ne.s32.totalorder %s42, %s44
    %p48 = scmp.eq.s32.totalorder %s8, 0
    %p49 = por %p47, %p48
    %p50 = scmp.ne.s32.totalorder %s42, %s44
    %p51 = scmp.eq.s32.totalorder %s13, 1
    %p52 = por %p50, %p51
    %p53 = scmp.ne.s32.totalorder %s44, %s45
    %p54 = scmp.eq.s32.totalorder %s13, 0
    %p55 = por %p53, %p54
    %p56 = scmp.ne.s32.totalorder %s44, %s45
    %p57 = scmp.eq.s32.totalorder %s14, 1
    %p58 = por %p56, %p57
    %p60 = scmp.ne.s32.totalorder %s45, %s59
    %p61 = scmp.eq.s32.totalorder %s14, 0
    %p62 = por %p60, %p61
    %s63 = ssub.s32 %s8, %s15
    %p64 = scmp.eq.s32.totalorder %s63, 0
    %s66 = sadd.s32 %s65, 1
    %s67 = scalar_select %p64, %s65, %s66
    %p70 = pneg %p64
    %p71 = scmp.eq.s32.totalorder %s8, 1
    %p72 = por %p70, %p71
    %p73 = scmp.ne.s32.totalorder %s65, %s68
    %p74 = scmp.eq.s32.totalorder %s8, 0
    %p75 = por %p73, %p74
    %p76 = scmp.ne.s32.totalorder %s65, %s68
    %p77 = scmp.eq.s32.totalorder %s13, 1
    %p78 = por %p76, %p77
    %p79 = scmp.ne.s32.totalorder %s68, %s69
    %p80 = scmp.eq.s32.totalorder %s13, 0
    %p81 = por %p79, %p80
    %p82 = scmp.ne.s32.totalorder %s68, %s69
    %p83 = scmp.eq.s32.totalorder %s14, 1
    %p84 = por %p82, %p83
    %p86 = scmp.ne.s32.totalorder %s69, %s85
    %p87 = scmp.eq.s32.totalorder %s14, 0
    %p88 = por %p86, %p87
    %p89 = scmp.le.s32.totalorder 1, %s8
    %p90 = scmp.lt.s32.totalorder %s8, 3
    %p91 = pnand %p89, %p90
    %p92 = pneg %p91
    // Predicated region
    $region9: #{gcn_encoder_forward.2} parent=5 // pred_check
      _
    $region10: #{gcn_encoder_forward.2} parent=5 // pred_check_branch
      %94 = sbr.rel (%p91) target = $region12
    $region11: #{gcn_encoder_forward.2} parent=5 // pred_region
      %s95 = ssub.s32 %s8, 1
      // Predicated region
      $region13: #{gcn_encoder_forward.2} parent=11 // pred_check
        %p96 = pneg %p55
      $region14: #{gcn_encoder_forward.2} parent=11 // pred_check_branch
        %98 = sbr.rel (%p96) target = $region16
      $region15: #{gcn_encoder_forward.2} parent=11 // pred_region
        _
      $region16: #{gcn_encoder_forward.2} parent=11 // pred_fallthru
        _
    $region12: #{gcn_encoder_forward.2} parent=5 // pred_fallthru
      _
    %p99 = scmp.lt.s32.totalorder %s8, 2
    // Predicated region
    $region17: #{gcn_encoder_forward.2} parent=5 // pred_check
      %p100 = pneg %p99
    $region18: #{gcn_encoder_forward.2} parent=5 // pred_check_branch
      %102 = sbr.rel (%p100) target = $region20
    $region19: #{gcn_encoder_forward.2} parent=5 // pred_region
      // Predicated region
      $region21: #{gcn_encoder_forward.2} parent=19 // pred_check
        %p103 = pneg %p28
      $region22: #{gcn_encoder_forward.2} parent=19 // pred_check_branch
        %105 = sbr.rel (%p103) target = $region24
      $region23: #{gcn_encoder_forward.2} parent=19 // pred_region
        %s106 = smul.u32 48, %s8
        %p107 = scmp.lt.s32.totalorder %s106, 95
        %s108 = scalar_select %p107, %s106, 95
        %s109 = smul.addr %s108, 4
        %s110 = scalar_lea.vmem %s0, %s109
        %s111 = smul.u32 48, %s8
      $region24: #{gcn_encoder_forward.2} parent=19 // pred_fallthru
        _
    $region20: #{gcn_encoder_forward.2} parent=5 // pred_fallthru
      _
    %p112 = scmp.le.s32.totalorder 1, %s8
    %p113 = scmp.lt.s32.totalorder %s8, 3
    %p114 = pnand %p112, %p113
    %p115 = pneg %p114
    // Predicated region
    $region25: #{gcn_encoder_forward.2} parent=5 // pred_check
      _
    $region26: #{gcn_encoder_forward.2} parent=5 // pred_check_branch
      %117 = sbr.rel (%p114) target = $region28
    $region27: #{gcn_encoder_forward.2} parent=5 // pred_region
      %s118 = ssub.s32 %s8, 1
      %s119 = smul.u32 48, %s13
      %p120 = scmp.lt.s32.totalorder %s119, 95
      %s121 = scalar_select %p120, %s119, 95
      %s122 = smul.addr %s121, 4
      %s123 = scalar_lea.vmem %s0, %s122
      %p124 = pneg %p34
      %p125 = pneg %p31
      %p126 = pneg %p55
      %p127 = pneg %p52
      %p128 = pneg %p81
      %p129 = pneg %p78
      %s130 = smul.u32 48, %s13
      %p131 = scmp.lt.s32.totalorder %s130, 95
      %s132 = scalar_select %p131, %s130, 95
      %s133 = smul.addr %s132, 2
      %s134 = smul.addr %s133, 4
      %s135 = scalar_lea.vmem %s2, %s134
      %s136 = smul.u32 48, %s13
      %p137 = scmp.lt.s32.totalorder %s136, 95
      %s138 = scalar_select %p137, %s136, 95
      %s139 = smul.addr %s138, 4
      %s140 = scalar_lea.vmem %s0, %s139
      %s141 = smul.u32 48, %s13
      %s142 = smul.u32 48, %s13
      %p143 = scmp.lt.s32.totalorder %s142, 95
      %s144 = scalar_select %p143, %s142, 95
      %s145 = smul.addr %s144, 2
      %s146 = smul.addr %s145, 4
      %s147 = scalar_lea.vmem %s2, %s146
      %s148 = smul.u32 48, %s13
      %v150 = vld [vmem:[%s140] sm:$0xf]
      %v151 = vld [vmem:[%s140 + $0x4] sm:$0xf]
      %v152 = vld [vmem:[%s140 + $0x8] sm:$0xf]
      %v153 = vld [vmem:[%s140 + $0xc] sm:$0xf]
      %v154 = vld [vmem:[%s140 + $0x10] sm:$0xf]
      %v155 = vld [vmem:[%s140 + $0x14] sm:$0xf]
      %v156 = vld [vmem:[%s140 + $0x18] sm:$0xf]
      %v157 = vld [vmem:[%s140 + $0x1c] sm:$0xf]
      %v158 = vld [vmem:[%s140 + $0x20] sm:$0xf]
      %v159 = vld [vmem:[%s140 + $0x24] sm:$0xf]
      %v160 = vld [vmem:[%s140 + $0x28] sm:$0xf]
      %v161 = vld [vmem:[%s140 + $0x2c] sm:$0xf]
      %v162 = vld [vmem:[%s140 + $0x30] sm:$0xf]
      %v163 = vld [vmem:[%s140 + $0x34] sm:$0xf]
      %v164 = vld [vmem:[%s140 + $0x38] sm:$0xf]
      %v165 = vld [vmem:[%s140 + $0x3c] sm:$0xf]
      %v166 = vld [vmem:[%s140 + $0x40] sm:$0xf]
      %v167 = vld [vmem:[%s140 + $0x44] sm:$0xf]
      %v168 = vld [vmem:[%s140 + $0x48] sm:$0xf]
      %v169 = vld [vmem:[%s140 + $0x4c] sm:$0xf]
      %v170 = vld [vmem:[%s140 + $0x50] sm:$0xf]
      %v171 = vld [vmem:[%s140 + $0x54] sm:$0xf]
      %v172 = vld [vmem:[%s140 + $0x58] sm:$0xf]
      %v173 = vld [vmem:[%s140 + $0x5c] sm:$0xf]
      %v174 = vld [vmem:[%s140 + $0x60] sm:$0xf]
      %v175 = vld [vmem:[%s140 + $0x64] sm:$0xf]
      %v176 = vld [vmem:[%s140 + $0x68] sm:$0xf]
      %v177 = vld [vmem:[%s140 + $0x6c] sm:$0xf]
      %v178 = vld [vmem:[%s140 + $0x70] sm:$0xf]
      %v179 = vld [vmem:[%s140 + $0x74] sm:$0xf]
      %v180 = vld [vmem:[%s140 + $0x78] sm:$0xf]
      %v181 = vld [vmem:[%s140 + $0x7c] sm:$0xf]
      %v182 = vld [vmem:[%s140 + $0x80] sm:$0xf]
      %v183 = vld [vmem:[%s140 + $0x84] sm:$0xf]
      %v184 = vld [vmem:[%s140 + $0x88] sm:$0xf]
      %v185 = vld [vmem:[%s140 + $0x8c] sm:$0xf]
      %v186 = vld [vmem:[%s140 + $0x90] sm:$0xf]
      %v187 = vld [vmem:[%s140 + $0x94] sm:$0xf]
      %v188 = vld [vmem:[%s140 + $0x98] sm:$0xf]
      %v189 = vld [vmem:[%s140 + $0x9c] sm:$0xf]
      %v190 = vld [vmem:[%s140 + $0xa0] sm:$0xf]
      %v191 = vld [vmem:[%s140 + $0xa4] sm:$0xf]
      %v192 = vld [vmem:[%s140 + $0xa8] sm:$0xf]
      %v193 = vld [vmem:[%s140 + $0xac] sm:$0xf]
      %v194 = vld [vmem:[%s140 + $0xb0] sm:$0xf]
      %v195 = vld [vmem:[%s140 + $0xb4] sm:$0xf]
      %v196 = vld [vmem:[%s140 + $0xb8] sm:$0xf]
      %v197 = vld [vmem:[%s140 + $0xbc] sm:$0xf]
      %v198 = vld [vmem:[%s1] sm:$0xff]
      %v199 = vld [vmem:[%s1 + $0x8] sm:$0xff]
      %v200 = vld [vmem:[%s1 + $0x10] sm:$0xff]
      %v201 = vld [vmem:[%s1 + $0x18] sm:$0xff]
      %v202 = vld [vmem:[%s1 + $0x20] sm:$0xff]
      %v203 = vld [vmem:[%s1 + $0x28] sm:$0xff]
      %v204 = vld [vmem:[%s1 + $0x30] sm:$0xff]
      %v205 = vld [vmem:[%s1 + $0x38] sm:$0xff]
      %v206 = vld [vmem:[%s1 + $0x40] sm:$0xff]
      %v207 = vld [vmem:[%s1 + $0x48] sm:$0xff]
      %v208 = vld [vmem:[%s1 + $0x50] sm:$0xff]
      %v209 = vld [vmem:[%s1 + $0x58] sm:$0xff]
      %v210 = vld [vmem:[%s1 + $0x60] sm:$0xff]
      %v211 = vld [vmem:[%s1 + $0x68] sm:$0xff]
      %v212 = vld [vmem:[%s1 + $0x70] sm:$0xff]
      %v213 = vld [vmem:[%s1 + $0x78] sm:$0xff]
      %v262 = vunpack.c.l.b16 %v150
      %v263 = vunpack.c.l.b16 %v151
      %v264 = vunpack.c.l.b16 %v152
      %v265 = vunpack.c.l.b16 %v153
      %v266 = vunpack.c.l.b16 %v154
      %v267 = vunpack.c.l.b16 %v155
      %v268 = vunpack.c.l.b16 %v156
      %v269 = vunpack.c.l.b16 %v157
      %v270 = vunpack.c.l.b16 %v158
      %v271 = vunpack.c.l.b16 %v159
      %v272 = vunpack.c.l.b16 %v160
      %v273 = vunpack.c.l.b16 %v161
      %v274 = vunpack.c.l.b16 %v162
      %v275 = vunpack.c.l.b16 %v163
      %v276 = vunpack.c.l.b16 %v164
      %v277 = vunpack.c.l.b16 %v165
      %v278 = vunpack.c.l.b16 %v166
      %v279 = vunpack.c.l.b16 %v167
      %v280 = vunpack.c.l.b16 %v168
      %v281 = vunpack.c.l.b16 %v169
      %v282 = vunpack.c.l.b16 %v170
      %v283 = vunpack.c.l.b16 %v171
      %v284 = vunpack.c.l.b16 %v172
      %v285 = vunpack.c.l.b16 %v173
      %v286 = vunpack.c.l.b16 %v174
      %v287 = vunpack.c.l.b16 %v175
      %v288 = vunpack.c.l.b16 %v176
      %v289 = vunpack.c.l.b16 %v177
      %v290 = vunpack.c.l.b16 %v178
      %v291 = vunpack.c.l.b16 %v179
      %v292 = vunpack.c.l.b16 %v180
      %v293 = vunpack.c.l.b16 %v181
      %v294 = vunpack.c.l.b16 %v182
      %v295 = vunpack.c.l.b16 %v183
      %v296 = vunpack.c.l.b16 %v184
      %v297 = vunpack.c.l.b16 %v185
      %v298 = vunpack.c.l.b16 %v186
      %v299 = vunpack.c.l.b16 %v187
      %v300 = vunpack.c.l.b16 %v188
      %v301 = vunpack.c.l.b16 %v189
      %v302 = vunpack.c.l.b16 %v190
      %v303 = vunpack.c.l.b16 %v191
      %v304 = vunpack.c.l.b16 %v192
      %v305 = vunpack.c.l.b16 %v193
      %v306 = vunpack.c.l.b16 %v194
      %v307 = vunpack.c.l.b16 %v195
      %v308 = vunpack.c.l.b16 %v196
      %v309 = vunpack.c.l.b16 %v197
      %v310 = vpack.c.b16 %v263, %v262
      %v311 = vpack.c.b16 %v265, %v264
      %v312 = vpack.c.b16 %v267, %v266
      %v313 = vpack.c.b16 %v269, %v268
      %v314 = vpack.c.b16 %v271, %v270
      %v315 = vpack.c.b16 %v273, %v272
      %v316 = vpack.c.b16 %v275, %v274
      %v317 = vpack.c.b16 %v277, %v276
      %v318 = vpack.c.b16 %v279, %v278
      %v319 = vpack.c.b16 %v281, %v280
      %v320 = vpack.c.b16 %v283, %v282
      %v321 = vpack.c.b16 %v285, %v284
      %v322 = vpack.c.b16 %v287, %v286
      %v323 = vpack.c.b16 %v289, %v288
      %v324 = vpack.c.b16 %v291, %v290
      %v325 = vpack.c.b16 %v293, %v292
      %v326 = vpack.c.b16 %v295, %v294
      %v327 = vpack.c.b16 %v297, %v296
      %v328 = vpack.c.b16 %v299, %v298
      %v329 = vpack.c.b16 %v301, %v300
      %v330 = vpack.c.b16 %v303, %v302
      %v331 = vpack.c.b16 %v305, %v304
      %v332 = vpack.c.b16 %v307, %v306
      %v333 = vpack.c.b16 %v309, %v308
      %v374 = vunpack.c.l.b16 %v198
      %v375 = vunpack.c.h.b16 %v198
      %v376 = vunpack.c.l.b16 %v199
      %v377 = vunpack.c.h.b16 %v199
      %v378 = vunpack.c.l.b16 %v200
      %v379 = vunpack.c.h.b16 %v200
      %v380 = vunpack.c.l.b16 %v201
      %v381 = vunpack.c.h.b16 %v201
      %v382 = vunpack.c.l.b16 %v202
      %v383 = vunpack.c.h.b16 %v202
      %v384 = vunpack.c.l.b16 %v203
      %v385 = vunpack.c.h.b16 %v203
      %v386 = vunpack.c.l.b16 %v204
      %v387 = vunpack.c.h.b16 %v204
      %v388 = vunpack.c.l.b16 %v205
      %v389 = vunpack.c.h.b16 %v205
      %v390 = vunpack.c.l.b16 %v206
      %v391 = vunpack.c.h.b16 %v206
      %v392 = vunpack.c.l.b16 %v207
      %v393 = vunpack.c.h.b16 %v207
      %v394 = vunpack.c.l.b16 %v208
      %v395 = vunpack.c.h.b16 %v208
      %v396 = vunpack.c.l.b16 %v209
      %v397 = vunpack.c.h.b16 %v209
      %v398 = vunpack.c.l.b16 %v210
      %v399 = vunpack.c.h.b16 %v210
      %v400 = vunpack.c.l.b16 %v211
      %v401 = vunpack.c.h.b16 %v211
      %v402 = vunpack.c.l.b16 %v212
      %v403 = vunpack.c.h.b16 %v212
      %v404 = vunpack.c.l.b16 %v213
      %v405 = vunpack.c.h.b16 %v213
      %v406 = vpack.c.b16 %v376, %v374
      %v407 = vpack.c.b16 %v377, %v375
      %v408 = vpack.c.b16 %v380, %v378
      %v409 = vpack.c.b16 %v381, %v379
      %v410 = vpack.c.b16 %v384, %v382
      %v411 = vpack.c.b16 %v385, %v383
      %v412 = vpack.c.b16 %v388, %v386
      %v413 = vpack.c.b16 %v389, %v387
      %v414 = vpack.c.b16 %v392, %v390
      %v415 = vpack.c.b16 %v393, %v391
      %v416 = vpack.c.b16 %v396, %v394
      %v417 = vpack.c.b16 %v397, %v395
      %v418 = vpack.c.b16 %v400, %v398
      %v419 = vpack.c.b16 %v401, %v399
      %v420 = vpack.c.b16 %v404, %v402
      %v421 = vpack.c.b16 %v405, %v403
      %438 = vmatprep.subr.bf16.mxu0 %v421
      %439 = vmatpush1.bf16.msra.mxu0 %v420
      %440 = vmatprep.subr.bf16.mxu0 %v419
      %441 = vmatpush1.bf16.msra.mxu0 %v418
      %442 = vmatprep.subr.bf16.mxu0 %v417
      %443 = vmatpush1.bf16.msra.mxu0 %v416
      %444 = vmatprep.subr.bf16.mxu0 %v415
      %445 = vmatpush1.bf16.msra.mxu0 %v414
      %446 = vmatprep.subr.bf16.mxu0 %v413
      %447 = vmatpush1.bf16.msra.mxu0 %v412
      %448 = vmatprep.subr.bf16.mxu0 %v411
      %449 = vmatpush1.bf16.msra.mxu0 %v410
      %450 = vmatprep.subr.bf16.mxu0 %v409
      %451 = vmatpush1.bf16.msra.mxu0 %v408
      %452 = vmatprep.subr.bf16.mxu0 %v407
      %453 = vmatpush1.bf16.msra.mxu0 %v406
      %454 = vmatprep.subr.bf16.mxu0 0
      %455 = vmatpush2.bf16.msra.mxu0 0
      %456 = vmatprep.subr.bf16.mxu0 0
      %457 = vmatpush2.bf16.msra.mxu0 0
      %458 = vmatprep.subr.bf16.mxu0 0
      %459 = vmatpush2.bf16.msra.mxu0 0
      %460 = vmatprep.subr.bf16.mxu0 0
      %461 = vmatpush2.bf16.msra.mxu0 0
      %462 = vmatprep.subr.bf16.mxu0 0
      %463 = vmatpush2.bf16.msra.mxu0 0
      %464 = vmatprep.subr.bf16.mxu0 0
      %465 = vmatpush2.bf16.msra.mxu0 0
      %466 = vmatprep.subr.bf16.mxu0 0
      %467 = vmatpush2.bf16.msra.mxu0 0
      %468 = vmatprep.subr.bf16.mxu0 0
      %469 = vmatpush2.bf16.msra.mxu0 0
      %470 = vmatprep.mubr.bf16.mxu0 0
      %471 = vmatmul.mubr.bf16.gmra.mxu0 %v310
      %v472 = vpop.f32.mrf.mxu0
      %v473 = vadd.f32 0.0, %v472
      %v474 = vpop.f32.mrf.mxu0
      %v475 = vadd.f32 0.0, %v474
      %v476 = vpop.f32.mrf.mxu0
      %v477 = vadd.f32 0.0, %v476
      %v478 = vpop.f32.mrf.mxu0
      %v479 = vadd.f32 0.0, %v478
      %480 = vmatprep.mubr.bf16.mxu0 0
      %481 = vmatmul.mubr.bf16.gmra.mxu0 %v311
      %v482 = vpop.f32.mrf.mxu0
      %v483 = vadd.f32 0.0, %v482
      %v484 = vpop.f32.mrf.mxu0
      %v485 = vadd.f32 0.0, %v484
      %v486 = vpop.f32.mrf.mxu0
      %v487 = vadd.f32 0.0, %v486
      %v488 = vpop.f32.mrf.mxu0
      %v489 = vadd.f32 0.0, %v488
      %490 = vmatprep.mubr.bf16.mxu0 0
      %491 = vmatmul.mubr.bf16.gmra.mxu0 %v312
      %v492 = vpop.f32.mrf.mxu0
      %v493 = vadd.f32 0.0, %v492
      %v494 = vpop.f32.mrf.mxu0
      %v495 = vadd.f32 0.0, %v494
      %v496 = vpop.f32.mrf.mxu0
      %v497 = vadd.f32 0.0, %v496
      %v498 = vpop.f32.mrf.mxu0
      %v499 = vadd.f32 0.0, %v498
      %500 = vmatprep.mubr.bf16.mxu0 0
      %501 = vmatmul.mubr.bf16.gmra.mxu0 %v313
      %v502 = vpop.f32.mrf.mxu0
      %v503 = vadd.f32 0.0, %v502
      %v504 = vpop.f32.mrf.mxu0
      %v505 = vadd.f32 0.0, %v504
      %v506 = vpop.f32.mrf.mxu0
      %v507 = vadd.f32 0.0, %v506
      %v508 = vpop.f32.mrf.mxu0
      %v509 = vadd.f32 0.0, %v508
      %510 = vmatprep.mubr.bf16.mxu0 0
      %511 = vmatmul.mubr.bf16.gmra.mxu0 %v314
      %v512 = vpop.f32.mrf.mxu0
      %v513 = vadd.f32 0.0, %v512
      %v514 = vpop.f32.mrf.mxu0
      %v515 = vadd.f32 0.0, %v514
      %v516 = vpop.f32.mrf.mxu0
      %v517 = vadd.f32 0.0, %v516
      %v518 = vpop.f32.mrf.mxu0
      %v519 = vadd.f32 0.0, %v518
      %520 = vmatprep.mubr.bf16.mxu0 0
      %521 = vmatmul.mubr.bf16.gmra.mxu0 %v315
      %v522 = vpop.f32.mrf.mxu0
      %v523 = vadd.f32 0.0, %v522
      %v524 = vpop.f32.mrf.mxu0
      %v525 = vadd.f32 0.0, %v524
      %v526 = vpop.f32.mrf.mxu0
      %v527 = vadd.f32 0.0, %v526
      %v528 = vpop.f32.mrf.mxu0
      %v529 = vadd.f32 0.0, %v528
      %530 = vmatprep.mubr.bf16.mxu0 0
      %531 = vmatmul.mubr.bf16.gmra.mxu0 %v316
      %v532 = vpop.f32.mrf.mxu0
      %v533 = vadd.f32 0.0, %v532
      %v534 = vpop.f32.mrf.mxu0
      %v535 = vadd.f32 0.0, %v534
      %v536 = vpop.f32.mrf.mxu0
      %v537 = vadd.f32 0.0, %v536
      %v538 = vpop.f32.mrf.mxu0
      %v539 = vadd.f32 0.0, %v538
      %540 = vmatprep.mubr.bf16.mxu0 0
      %541 = vmatmul.mubr.bf16.gmra.mxu0 %v317
      %v542 = vpop.f32.mrf.mxu0
      %v543 = vadd.f32 0.0, %v542
      %v544 = vpop.f32.mrf.mxu0
      %v545 = vadd.f32 0.0, %v544
      %v546 = vpop.f32.mrf.mxu0
      %v547 = vadd.f32 0.0, %v546
      %v548 = vpop.f32.mrf.mxu0
      %v549 = vadd.f32 0.0, %v548
      %550 = vmatprep.mubr.bf16.mxu0 0
      %551 = vmatmul.mubr.bf16.gmra.mxu0 %v318
      %v552 = vpop.f32.mrf.mxu0
      %v553 = vadd.f32 0.0, %v552
      %v554 = vpop.f32.mrf.mxu0
      %v555 = vadd.f32 0.0, %v554
      %v556 = vpop.f32.mrf.mxu0
      %v557 = vadd.f32 0.0, %v556
      %v558 = vpop.f32.mrf.mxu0
      %v559 = vadd.f32 0.0, %v558
      %560 = vmatprep.mubr.bf16.mxu0 0
      %561 = vmatmul.mubr.bf16.gmra.mxu0 %v319
      %v562 = vpop.f32.mrf.mxu0
      %v563 = vadd.f32 0.0, %v562
      %v564 = vpop.f32.mrf.mxu0
      %v565 = vadd.f32 0.0, %v564
      %v566 = vpop.f32.mrf.mxu0
      %v567 = vadd.f32 0.0, %v566
      %v568 = vpop.f32.mrf.mxu0
      %v569 = vadd.f32 0.0, %v568
      %570 = vmatprep.mubr.bf16.mxu0 0
      %571 = vmatmul.mubr.bf16.gmra.mxu0 %v320
      %v572 = vpop.f32.mrf.mxu0
      %v573 = vadd.f32 0.0, %v572
      %v574 = vpop.f32.mrf.mxu0
      %v575 = vadd.f32 0.0, %v574
      %v576 = vpop.f32.mrf.mxu0
      %v577 = vadd.f32 0.0, %v576
      %v578 = vpop.f32.mrf.mxu0
      %v579 = vadd.f32 0.0, %v578
      %580 = vmatprep.mubr.bf16.mxu0 0
      %581 = vmatmul.mubr.bf16.gmra.mxu0 %v321
      %v582 = vpop.f32.mrf.mxu0
      %v583 = vadd.f32 0.0, %v582
      %v584 = vpop.f32.mrf.mxu0
      %v585 = vadd.f32 0.0, %v584
      %v586 = vpop.f32.mrf.mxu0
      %v587 = vadd.f32 0.0, %v586
      %v588 = vpop.f32.mrf.mxu0
      %v589 = vadd.f32 0.0, %v588
      %590 = vmatprep.mubr.bf16.mxu0 0
      %591 = vmatmul.mubr.bf16.gmra.mxu0 %v322
      %v592 = vpop.f32.mrf.mxu0
      %v593 = vadd.f32 0.0, %v592
      %v594 = vpop.f32.mrf.mxu0
      %v595 = vadd.f32 0.0, %v594
      %v596 = vpop.f32.mrf.mxu0
      %v597 = vadd.f32 0.0, %v596
      %v598 = vpop.f32.mrf.mxu0
      %v599 = vadd.f32 0.0, %v598
      %600 = vmatprep.mubr.bf16.mxu0 0
      %601 = vmatmul.mubr.bf16.gmra.mxu0 %v323
      %v602 = vpop.f32.mrf.mxu0
      %v603 = vadd.f32 0.0, %v602
      %v604 = vpop.f32.mrf.mxu0
      %v605 = vadd.f32 0.0, %v604
      %v606 = vpop.f32.mrf.mxu0
      %v607 = vadd.f32 0.0, %v606
      %v608 = vpop.f32.mrf.mxu0
      %v609 = vadd.f32 0.0, %v608
      %610 = vmatprep.mubr.bf16.mxu0 0
      %611 = vmatmul.mubr.bf16.gmra.mxu0 %v324
      %v612 = vpop.f32.mrf.mxu0
      %v613 = vadd.f32 0.0, %v612
      %v614 = vpop.f32.mrf.mxu0
      %v615 = vadd.f32 0.0, %v614
      %v616 = vpop.f32.mrf.mxu0
      %v617 = vadd.f32 0.0, %v616
      %v618 = vpop.f32.mrf.mxu0
      %v619 = vadd.f32 0.0, %v618
      %620 = vmatprep.mubr.bf16.mxu0 0
      %621 = vmatmul.mubr.bf16.gmra.mxu0 %v325
      %v622 = vpop.f32.mrf.mxu0
      %v623 = vadd.f32 0.0, %v622
      %v624 = vpop.f32.mrf.mxu0
      %v625 = vadd.f32 0.0, %v624
      %v626 = vpop.f32.mrf.mxu0
      %v627 = vadd.f32 0.0, %v626
      %v628 = vpop.f32.mrf.mxu0
      %v629 = vadd.f32 0.0, %v628
      %630 = vmatprep.mubr.bf16.mxu0 0
      %631 = vmatmul.mubr.bf16.gmra.mxu0 %v326
      %v632 = vpop.f32.mrf.mxu0
      %v633 = vadd.f32 0.0, %v632
      %v634 = vpop.f32.mrf.mxu0
      %v635 = vadd.f32 0.0, %v634
      %v636 = vpop.f32.mrf.mxu0
      %v637 = vadd.f32 0.0, %v636
      %v638 = vpop.f32.mrf.mxu0
      %v639 = vadd.f32 0.0, %v638
      %640 = vmatprep.mubr.bf16.mxu0 0
      %641 = vmatmul.mubr.bf16.gmra.mxu0 %v327
      %v642 = vpop.f32.mrf.mxu0
      %v643 = vadd.f32 0.0, %v642
      %v644 = vpop.f32.mrf.mxu0
      %v645 = vadd.f32 0.0, %v644
      %v646 = vpop.f32.mrf.mxu0
      %v647 = vadd.f32 0.0, %v646
      %v648 = vpop.f32.mrf.mxu0
      %v649 = vadd.f32 0.0, %v648
      %650 = vmatprep.mubr.bf16.mxu0 0
      %651 = vmatmul.mubr.bf16.gmra.mxu0 %v328
      %v652 = vpop.f32.mrf.mxu0
      %v653 = vadd.f32 0.0, %v652
      %v654 = vpop.f32.mrf.mxu0
      %v655 = vadd.f32 0.0, %v654
      %v656 = vpop.f32.mrf.mxu0
      %v657 = vadd.f32 0.0, %v656
      %v658 = vpop.f32.mrf.mxu0
      %v659 = vadd.f32 0.0, %v658
      %660 = vmatprep.mubr.bf16.mxu0 0
      %661 = vmatmul.mubr.bf16.gmra.mxu0 %v329
      %v662 = vpop.f32.mrf.mxu0
      %v663 = vadd.f32 0.0, %v662
      %v664 = vpop.f32.mrf.mxu0
      %v665 = vadd.f32 0.0, %v664
      %v666 = vpop.f32.mrf.mxu0
      %v667 = vadd.f32 0.0, %v666
      %v668 = vpop.f32.mrf.mxu0
      %v669 = vadd.f32 0.0, %v668
      %670 = vmatprep.mubr.bf16.mxu0 0
      %671 = vmatmul.mubr.bf16.gmra.mxu0 %v330
      %v672 = vpop.f32.mrf.mxu0
      %v673 = vadd.f32 0.0, %v672
      %v674 = vpop.f32.mrf.mxu0
      %v675 = vadd.f32 0.0, %v674
      %v676 = vpop.f32.mrf.mxu0
      %v677 = vadd.f32 0.0, %v676
      %v678 = vpop.f32.mrf.mxu0
      %v679 = vadd.f32 0.0, %v678
      %680 = vmatprep.mubr.bf16.mxu0 0
      %681 = vmatmul.mubr.bf16.gmra.mxu0 %v331
      %v682 = vpop.f32.mrf.mxu0
      %v683 = vadd.f32 0.0, %v682
      %v684 = vpop.f32.mrf.mxu0
      %v685 = vadd.f32 0.0, %v684
      %v686 = vpop.f32.mrf.mxu0
      %v687 = vadd.f32 0.0, %v686
      %v688 = vpop.f32.mrf.mxu0
      %v689 = vadd.f32 0.0, %v688
      %690 = vmatprep.mubr.bf16.mxu0 0
      %691 = vmatmul.mubr.bf16.gmra.mxu0 %v332
      %v692 = vpop.f32.mrf.mxu0
      %v693 = vadd.f32 0.0, %v692
      %v694 = vpop.f32.mrf.mxu0
      %v695 = vadd.f32 0.0, %v694
      %v696 = vpop.f32.mrf.mxu0
      %v697 = vadd.f32 0.0, %v696
      %v698 = vpop.f32.mrf.mxu0
      %v699 = vadd.f32 0.0, %v698
      %700 = vmatprep.mubr.bf16.mxu0 0
      %701 = vmatmul.mubr.bf16.gmra.mxu0 %v333
      %v702 = vpop.f32.mrf.mxu0
      %v703 = vadd.f32 0.0, %v702
      %v704 = vpop.f32.mrf.mxu0
      %v705 = vadd.f32 0.0, %v704
      %v706 = vpop.f32.mrf.mxu0
      %v707 = vadd.f32 0.0, %v706
      %v708 = vpop.f32.mrf.mxu0
      %v709 = vadd.f32 0.0, %v708
      %710 = vdwg.mxu0
      %v711 = vpack.c.bf16 %v477, %v473
      %v712 = vpack.c.bf16 %v479, %v475
      %v713 = vpack.c.bf16 %v487, %v483
      %v714 = vpack.c.bf16 %v489, %v485
      %v715 = vpack.c.bf16 %v497, %v493
      %v716 = vpack.c.bf16 %v499, %v495
      %v717 = vpack.c.bf16 %v507, %v503
      %v718 = vpack.c.bf16 %v509, %v505
      %v719 = vpack.c.bf16 %v517, %v513
      %v720 = vpack.c.bf16 %v519, %v515
      %v721 = vpack.c.bf16 %v527, %v523
      %v722 = vpack.c.bf16 %v529, %v525
      %v723 = vpack.c.bf16 %v537, %v533
      %v724 = vpack.c.bf16 %v539, %v535
      %v725 = vpack.c.bf16 %v547, %v543
      %v726 = vpack.c.bf16 %v549, %v545
      %v727 = vpack.c.bf16 %v557, %v553
      %v728 = vpack.c.bf16 %v559, %v555
      %v729 = vpack.c.bf16 %v567, %v563
      %v730 = vpack.c.bf16 %v569, %v565
      %v731 = vpack.c.bf16 %v577, %v573
      %v732 = vpack.c.bf16 %v579, %v575
      %v733 = vpack.c.bf16 %v587, %v583
      %v734 = vpack.c.bf16 %v589, %v585
      %v735 = vpack.c.bf16 %v597, %v593
      %v736 = vpack.c.bf16 %v599, %v595
      %v737 = vpack.c.bf16 %v607, %v603
      %v738 = vpack.c.bf16 %v609, %v605
      %v739 = vpack.c.bf16 %v617, %v613
      %v740 = vpack.c.bf16 %v619, %v615
      %v741 = vpack.c.bf16 %v627, %v623
      %v742 = vpack.c.bf16 %v629, %v625
      %v743 = vpack.c.bf16 %v637, %v633
      %v744 = vpack.c.bf16 %v639, %v635
      %v745 = vpack.c.bf16 %v647, %v643
      %v746 = vpack.c.bf16 %v649, %v645
      %v747 = vpack.c.bf16 %v657, %v653
      %v748 = vpack.c.bf16 %v659, %v655
      %v749 = vpack.c.bf16 %v667, %v663
      %v750 = vpack.c.bf16 %v669, %v665
      %v751 = vpack.c.bf16 %v677, %v673
      %v752 = vpack.c.bf16 %v679, %v675
      %v753 = vpack.c.bf16 %v687, %v683
      %v754 = vpack.c.bf16 %v689, %v685
      %v755 = vpack.c.bf16 %v697, %v693
      %v756 = vpack.c.bf16 %v699, %v695
      %v757 = vpack.c.bf16 %v707, %v703
      %v758 = vpack.c.bf16 %v709, %v705
      %v807 = vunpack.c.l.b16 %v711
      %v808 = vunpack.c.l.b16 %v712
      %v809 = vunpack.c.h.b16 %v711
      %v810 = vunpack.c.h.b16 %v712
      %v811 = vunpack.c.l.b16 %v713
      %v812 = vunpack.c.l.b16 %v714
      %v813 = vunpack.c.h.b16 %v713
      %v814 = vunpack.c.h.b16 %v714
      %v815 = vunpack.c.l.b16 %v715
      %v816 = vunpack.c.l.b16 %v716
      %v817 = vunpack.c.h.b16 %v715
      %v818 = vunpack.c.h.b16 %v716
      %v819 = vunpack.c.l.b16 %v717
      %v820 = vunpack.c.l.b16 %v718
      %v821 = vunpack.c.h.b16 %v717
      %v822 = vunpack.c.h.b16 %v718
      %v823 = vunpack.c.l.b16 %v719
      %v824 = vunpack.c.l.b16 %v720
      %v825 = vunpack.c.h.b16 %v719
      %v826 = vunpack.c.h.b16 %v720
      %v827 = vunpack.c.l.b16 %v721
      %v828 = vunpack.c.l.b16 %v722
      %v829 = vunpack.c.h.b16 %v721
      %v830 = vunpack.c.h.b16 %v722
      %v831 = vunpack.c.l.b16 %v723
      %v832 = vunpack.c.l.b16 %v724
      %v833 = vunpack.c.h.b16 %v723
      %v834 = vunpack.c.h.b16 %v724
      %v835 = vunpack.c.l.b16 %v725
      %v836 = vunpack.c.l.b16 %v726
      %v837 = vunpack.c.h.b16 %v725
      %v838 = vunpack.c.h.b16 %v726
      %v839 = vunpack.c.l.b16 %v727
      %v840 = vunpack.c.l.b16 %v728
      %v841 = vunpack.c.h.b16 %v727
      %v842 = vunpack.c.h.b16 %v728
      %v843 = vunpack.c.l.b16 %v729
      %v844 = vunpack.c.l.b16 %v730
      %v845 = vunpack.c.h.b16 %v729
      %v846 = vunpack.c.h.b16 %v730
      %v847 = vunpack.c.l.b16 %v731
      %v848 = vunpack.c.l.b16 %v732
      %v849 = vunpack.c.h.b16 %v731
      %v850 = vunpack.c.h.b16 %v732
      %v851 = vunpack.c.l.b16 %v733
      %v852 = vunpack.c.l.b16 %v734
      %v853 = vunpack.c.h.b16 %v733
      %v854 = vunpack.c.h.b16 %v734
      %v855 = vunpack.c.l.b16 %v735
      %v856 = vunpack.c.l.b16 %v736
      %v857 = vunpack.c.h.b16 %v735
      %v858 = vunpack.c.h.b16 %v736
      %v859 = vunpack.c.l.b16 %v737
      %v860 = vunpack.c.l.b16 %v738
      %v861 = vunpack.c.h.b16 %v737
      %v862 = vunpack.c.h.b16 %v738
      %v863 = vunpack.c.l.b16 %v739
      %v864 = vunpack.c.l.b16 %v740
      %v865 = vunpack.c.h.b16 %v739
      %v866 = vunpack.c.h.b16 %v740
      %v867 = vunpack.c.l.b16 %v741
      %v868 = vunpack.c.l.b16 %v742
      %v869 = vunpack.c.h.b16 %v741
      %v870 = vunpack.c.h.b16 %v742
      %v871 = vunpack.c.l.b16 %v743
      %v872 = vunpack.c.l.b16 %v744
      %v873 = vunpack.c.h.b16 %v743
      %v874 = vunpack.c.h.b16 %v744
      %v875 = vunpack.c.l.b16 %v745
      %v876 = vunpack.c.l.b16 %v746
      %v877 = vunpack.c.h.b16 %v745
      %v878 = vunpack.c.h.b16 %v746
      %v879 = vunpack.c.l.b16 %v747
      %v880 = vunpack.c.l.b16 %v748
      %v881 = vunpack.c.h.b16 %v747
      %v882 = vunpack.c.h.b16 %v748
      %v883 = vunpack.c.l.b16 %v749
      %v884 = vunpack.c.l.b16 %v750
      %v885 = vunpack.c.h.b16 %v749
      %v886 = vunpack.c.h.b16 %v750
      %v887 = vunpack.c.l.b16 %v751
      %v888 = vunpack.c.l.b16 %v752
      %v889 = vunpack.c.h.b16 %v751
      %v890 = vunpack.c.h.b16 %v752
      %v891 = vunpack.c.l.b16 %v753
      %v892 = vunpack.c.l.b16 %v754
      %v893 = vunpack.c.h.b16 %v753
      %v894 = vunpack.c.h.b16 %v754
      %v895 = vunpack.c.l.b16 %v755
      %v896 = vunpack.c.l.b16 %v756
      %v897 = vunpack.c.h.b16 %v755
      %v898 = vunpack.c.h.b16 %v756
      %v899 = vunpack.c.l.b16 %v757
      %v900 = vunpack.c.l.b16 %v758
      %v901 = vunpack.c.h.b16 %v757
      %v902 = vunpack.c.h.b16 %v758
      %v903 = vpack.c.b16 %v808, %v807
      %v904 = vpack.c.b16 %v810, %v809
      %v905 = vpack.c.b16 %v812, %v811
      %v906 = vpack.c.b16 %v814, %v813
      %v907 = vpack.c.b16 %v816, %v815
      %v908 = vpack.c.b16 %v818, %v817
      %v909 = vpack.c.b16 %v820, %v819
      %v910 = vpack.c.b16 %v822, %v821
      %v911 = vpack.c.b16 %v824, %v823
      %v912 = vpack.c.b16 %v826, %v825
      %v913 = vpack.c.b16 %v828, %v827
      %v914 = vpack.c.b16 %v830, %v829
      %v915 = vpack.c.b16 %v832, %v831
      %v916 = vpack.c.b16 %v834, %v833
      %v917 = vpack.c.b16 %v836, %v835
      %v918 = vpack.c.b16 %v838, %v837
      %v919 = vpack.c.b16 %v840, %v839
      %v920 = vpack.c.b16 %v842, %v841
      %v921 = vpack.c.b16 %v844, %v843
      %v922 = vpack.c.b16 %v846, %v845
      %v923 = vpack.c.b16 %v848, %v847
      %v924 = vpack.c.b16 %v850, %v849
      %v925 = vpack.c.b16 %v852, %v851
      %v926 = vpack.c.b16 %v854, %v853
      %v927 = vpack.c.b16 %v856, %v855
      %v928 = vpack.c.b16 %v858, %v857
      %v929 = vpack.c.b16 %v860, %v859
      %v930 = vpack.c.b16 %v862, %v861
      %v931 = vpack.c.b16 %v864, %v863
      %v932 = vpack.c.b16 %v866, %v865
      %v933 = vpack.c.b16 %v868, %v867
      %v934 = vpack.c.b16 %v870, %v869
      %v935 = vpack.c.b16 %v872, %v871
      %v936 = vpack.c.b16 %v874, %v873
      %v937 = vpack.c.b16 %v876, %v875
      %v938 = vpack.c.b16 %v878, %v877
      %v939 = vpack.c.b16 %v880, %v879
      %v940 = vpack.c.b16 %v882, %v881
      %v941 = vpack.c.b16 %v884, %v883
      %v942 = vpack.c.b16 %v886, %v885
      %v943 = vpack.c.b16 %v888, %v887
      %v944 = vpack.c.b16 %v890, %v889
      %v945 = vpack.c.b16 %v892, %v891
      %v946 = vpack.c.b16 %v894, %v893
      %v947 = vpack.c.b16 %v896, %v895
      %v948 = vpack.c.b16 %v898, %v897
      %v949 = vpack.c.b16 %v900, %v899
      %v950 = vpack.c.b16 %v902, %v901
      %999 = vst [vmem:[%s147] sm:$0xff] %v903
      %1000 = vst [vmem:[%s147 + $0x8] sm:$0xff] %v904
      %1001 = vst [vmem:[%s147 + $0x10] sm:$0xff] %v905
      %1002 = vst [vmem:[%s147 + $0x18] sm:$0xff] %v906
      %1003 = vst [vmem:[%s147 + $0x20] sm:$0xff] %v907
      %1004 = vst [vmem:[%s147 + $0x28] sm:$0xff] %v908
      %1005 = vst [vmem:[%s147 + $0x30] sm:$0xff] %v909
      %1006 = vst [vmem:[%s147 + $0x38] sm:$0xff] %v910
      %1007 = vst [vmem:[%s147 + $0x40] sm:$0xff] %v911
      %1008 = vst [vmem:[%s147 + $0x48] sm:$0xff] %v912
      %1009 = vst [vmem:[%s147 + $0x50] sm:$0xff] %v913
      %1010 = vst [vmem:[%s147 + $0x58] sm:$0xff] %v914
      %1011 = vst [vmem:[%s147 + $0x60] sm:$0xff] %v915
      %1012 = vst [vmem:[%s147 + $0x68] sm:$0xff] %v916
      %1013 = vst [vmem:[%s147 + $0x70] sm:$0xff] %v917
      %1014 = vst [vmem:[%s147 + $0x78] sm:$0xff] %v918
      %1015 = vst [vmem:[%s147 + $0x80] sm:$0xff] %v919
      %1016 = vst [vmem:[%s147 + $0x88] sm:$0xff] %v920
      %1017 = vst [vmem:[%s147 + $0x90] sm:$0xff] %v921
      %1018 = vst [vmem:[%s147 + $0x98] sm:$0xff] %v922
      %1019 = vst [vmem:[%s147 + $0xa0] sm:$0xff] %v923
      %1020 = vst [vmem:[%s147 + $0xa8] sm:$0xff] %v924
      %1021 = vst [vmem:[%s147 + $0xb0] sm:$0xff] %v925
      %1022 = vst [vmem:[%s147 + $0xb8] sm:$0xff] %v926
      %1023 = vst [vmem:[%s147 + $0xc0] sm:$0xff] %v927
      %1024 = vst [vmem:[%s147 + $0xc8] sm:$0xff] %v928
      %1025 = vst [vmem:[%s147 + $0xd0] sm:$0xff] %v929
      %1026 = vst [vmem:[%s147 + $0xd8] sm:$0xff] %v930
      %1027 = vst [vmem:[%s147 + $0xe0] sm:$0xff] %v931
      %1028 = vst [vmem:[%s147 + $0xe8] sm:$0xff] %v932
      %1029 = vst [vmem:[%s147 + $0xf0] sm:$0xff] %v933
      %1030 = vst [vmem:[%s147 + $0xf8] sm:$0xff] %v934
      %1031 = vst [vmem:[%s147 + $0x100] sm:$0xff] %v935
      %1032 = vst [vmem:[%s147 + $0x108] sm:$0xff] %v936
      %1033 = vst [vmem:[%s147 + $0x110] sm:$0xff] %v937
      %1034 = vst [vmem:[%s147 + $0x118] sm:$0xff] %v938
      %1035 = vst [vmem:[%s147 + $0x120] sm:$0xff] %v939
      %1036 = vst [vmem:[%s147 + $0x128] sm:$0xff] %v940
      %1037 = vst [vmem:[%s147 + $0x130] sm:$0xff] %v941
      %1038 = vst [vmem:[%s147 + $0x138] sm:$0xff] %v942
      %1039 = vst [vmem:[%s147 + $0x140] sm:$0xff] %v943
      %1040 = vst [vmem:[%s147 + $0x148] sm:$0xff] %v944
      %1041 = vst [vmem:[%s147 + $0x150] sm:$0xff] %v945
      %1042 = vst [vmem:[%s147 + $0x158] sm:$0xff] %v946
      %1043 = vst [vmem:[%s147 + $0x160] sm:$0xff] %v947
      %1044 = vst [vmem:[%s147 + $0x168] sm:$0xff] %v948
      %1045 = vst [vmem:[%s147 + $0x170] sm:$0xff] %v949
      %1046 = vst [vmem:[%s147 + $0x178] sm:$0xff] %v950
      %s1047 = smul.u32 48, %s13
      %p1048 = scmp.lt.s32.totalorder %s1047, 95
      %s1049 = scalar_select %p1048, %s1047, 95
      %s1050 = smul.addr %s1049, 2
      %s1051 = smul.addr %s1050, 4
      %s1052 = scalar_lea.vmem %s2, %s1051
      // Predicated region
      $region29: #{gcn_encoder_forward.2} parent=27 // pred_check
        %p1053 = pneg %p78
      $region30: #{gcn_encoder_forward.2} parent=27 // pred_check_branch
        %1055 = sbr.rel (%p1053) target = $region32
      $region31: #{gcn_encoder_forward.2} parent=27 // pred_region
        %s1056 = smul.u32 48, %s13
      $region32: #{gcn_encoder_forward.2} parent=27 // pred_fallthru
        _
    $region28: #{gcn_encoder_forward.2} parent=5 // pred_fallthru
      _
    %p1057 = scmp.le.s32.totalorder 2, %s8
    // Predicated region
    $region33: #{gcn_encoder_forward.2} parent=5 // pred_check
      %p1058 = pneg %p1057
    $region34: #{gcn_encoder_forward.2} parent=5 // pred_check_branch
      %1060 = sbr.rel (%p1058) target = $region36
    $region35: #{gcn_encoder_forward.2} parent=5 // pred_region
      %s1061 = ssub.s32 %s8, 2
      // Predicated region
      $region37: #{gcn_encoder_forward.2} parent=35 // pred_check
        %p1062 = pneg %p84
      $region38: #{gcn_encoder_forward.2} parent=35 // pred_check_branch
        %1064 = sbr.rel (%p1062) target = $region40
      $region39: #{gcn_encoder_forward.2} parent=35 // pred_region
        %s1065 = smul.u32 48, %s14
        %p1066 = scmp.lt.s32.totalorder %s1065, 95
        %s1067 = scalar_select %p1066, %s1065, 95
        %s1068 = smul.addr %s1067, 2
        %s1069 = smul.addr %s1068, 4
        %s1070 = scalar_lea.vmem %s2, %s1069
      $region40: #{gcn_encoder_forward.2} parent=35 // pred_fallthru
        _
    $region36: #{gcn_encoder_forward.2} parent=5 // pred_fallthru
      _
  $region6: #{gcn_encoder_forward.2} parent=0 // loop_footer
    %s12 = sadd.s32 1, %s8
  $region7: #{gcn_encoder_forward.2} parent=0 // loop_footer_branch
    %7 = sbr.rel target = $region3
  $region8: #{gcn_encoder_forward.2} parent=0 // loop_exit
    _

// kernel: gcn_encoder_forward.3
$region0: #{gcn_encoder_forward.3}
  #allocation0 [shape = 'u32[]', space=smem, size = 0x4, offset = 0x4, fixed_abs, tag = 'smem constant byte address 0x4 - core index']
  #allocation1 [shape = 'u32[144,128]{1,0:T(1,128)}', space=vmem, size = 0x12000, scoped, tag = 'internal scratch']
  #allocation2 [shape = 'bf16[768,256]{1,0:T(8,128)(2,1)}', space=vmem, size = 0x60000, scoped, tag = 'scratch operand']
  %s0 = inlined_call_operand.vmem [shape: bf16[768,768], index: 0, kind: input, shape index: {}]
  %s1 = inlined_call_operand.vmem [shape: bf16[768,256], index: 1, kind: input, shape index: {}]
  %s2 = inlined_call_operand.vmem [shape: bf16[4,256,256], index: 2, kind: input, shape index: {}]
  %s3 = inlined_call_operand.vmem [shape: f32[4,1,256], index: 3, kind: input, shape index: {}]
  %s4 = inlined_call_operand.vmem [shape: f32[768,256], index: 4, kind: output, shape index: {}]
  %s5 = sld [smem:[#allocation0]]
  $region57: #{gcn_encoder_forward.3} parent=0
    _
  %s7 = ssub.s32 1, %s5
  %s8 = scalar_select 0, %s7, %s5
  loop: start=0, step=1, limit=6
  $region2: #{gcn_encoder_forward.3} parent=0 // loop_pre_header
    _
  $region3: #{gcn_encoder_forward.3} parent=0 // loop_header
    %s10 = sphi 0, %s14
    %p11 = scmp.ge.s32.totalorder %s10, 6
    %s18 = sphi 0, %s18
    %s20 = sphi 0, %s18
    %s21 = sphi 0, %s20
    %s35 = sphi 0, %s21
    %s39 = sphi 0, %s39
    %s41 = sphi 0, %s39
    %s42 = sphi 0, %s41
    %s56 = sphi 0, %s42
    %s62 = sphi 0, %s64
    %s65 = sphi 0, %s62
    %s66 = sphi 0, %s65
    %s82 = sphi 0, %s66
    %s88 = sphi 0, %s90
    %s91 = sphi 0, %s88
    %s92 = sphi 0, %s91
    %s108 = sphi 0, %s92
    %s112 = sphi 0, %s112
    %s114 = sphi 0, %s112
    %s115 = sphi 0, %s114
    %s129 = sphi 0, %s115
  $region4: #{gcn_encoder_forward.3} parent=0 // loop_header_branch
    %13 = sbr.rel (%p11) target = $region8
  $region5: #{gcn_encoder_forward.3} parent=0 // loop_body
    %s15 = ssub.s32 %s10, 1
    %s16 = ssub.s32 %s10, 2
    %s17 = sadd.s32 %s10, 1
    %s19 = sadd.s32 %s18, 1
    %p22 = scmp.eq.s32.totalorder %s10, 3
    %p23 = scmp.ne.s32.totalorder %s18, %s20
    %p24 = scmp.eq.s32.totalorder %s10, 0
    %p25 = por %p23, %p24
    %p26 = scmp.ne.s32.totalorder %s18, %s20
    %p27 = scmp.eq.s32.totalorder %s15, 3
    %p28 = por %p26, %p27
    %p29 = scmp.ne.s32.totalorder %s20, %s21
    %p30 = scmp.eq.s32.totalorder %s15, 0
    %p31 = por %p29, %p30
    %p32 = scmp.ne.s32.totalorder %s20, %s21
    %p33 = scmp.eq.s32.totalorder %s16, 3
    %p34 = por %p32, %p33
    %p36 = scmp.ne.s32.totalorder %s21, %s35
    %p37 = scmp.eq.s32.totalorder %s16, 0
    %p38 = por %p36, %p37
    %s40 = sadd.s32 %s39, 1
    %p43 = scmp.eq.s32.totalorder %s10, 3
    %p44 = scmp.ne.s32.totalorder %s39, %s41
    %p45 = scmp.eq.s32.totalorder %s10, 0
    %p46 = por %p44, %p45
    %p47 = scmp.ne.s32.totalorder %s39, %s41
    %p48 = scmp.eq.s32.totalorder %s15, 3
    %p49 = por %p47, %p48
    %p50 = scmp.ne.s32.totalorder %s41, %s42
    %p51 = scmp.eq.s32.totalorder %s15, 0
    %p52 = por %p50, %p51
    %p53 = scmp.ne.s32.totalorder %s41, %s42
    %p54 = scmp.eq.s32.totalorder %s16, 3
    %p55 = por %p53, %p54
    %p57 = scmp.ne.s32.totalorder %s42, %s56
    %p58 = scmp.eq.s32.totalorder %s16, 0
    %p59 = por %p57, %p58
    %s60 = ssub.s32 %s10, %s17
    %p61 = scmp.eq.s32.totalorder %s60, 0
    %s63 = sadd.s32 %s62, 1
    %s64 = scalar_select %p61, %s62, %s63
    %p67 = pneg %p61
    %p68 = scmp.eq.s32.totalorder %s10, 3
    %p69 = por %p67, %p68
    %p70 = scmp.ne.s32.totalorder %s62, %s65
    %p71 = scmp.eq.s32.totalorder %s10, 0
    %p72 = por %p70, %p71
    %p73 = scmp.ne.s32.totalorder %s62, %s65
    %p74 = scmp.eq.s32.totalorder %s15, 3
    %p75 = por %p73, %p74
    %p76 = scmp.ne.s32.totalorder %s65, %s66
    %p77 = scmp.eq.s32.totalorder %s15, 0
    %p78 = por %p76, %p77
    %p79 = scmp.ne.s32.totalorder %s65, %s66
    %p80 = scmp.eq.s32.totalorder %s16, 3
    %p81 = por %p79, %p80
    %p83 = scmp.ne.s32.totalorder %s66, %s82
    %p84 = scmp.eq.s32.totalorder %s16, 0
    %p85 = por %p83, %p84
    %s86 = ssub.s32 %s10, %s17
    %p87 = scmp.eq.s32.totalorder %s86, 0
    %s89 = sadd.s32 %s88, 1
    %s90 = scalar_select %p87, %s88, %s89
    %p93 = pneg %p87
    %p94 = scmp.eq.s32.totalorder %s10, 3
    %p95 = por %p93, %p94
    %p96 = scmp.ne.s32.totalorder %s88, %s91
    %p97 = scmp.eq.s32.totalorder %s10, 0
    %p98 = por %p96, %p97
    %p99 = scmp.ne.s32.totalorder %s88, %s91
    %p100 = scmp.eq.s32.totalorder %s15, 3
    %p101 = por %p99, %p100
    %p102 = scmp.ne.s32.totalorder %s91, %s92
    %p103 = scmp.eq.s32.totalorder %s15, 0
    %p104 = por %p102, %p103
    %p105 = scmp.ne.s32.totalorder %s91, %s92
    %p106 = scmp.eq.s32.totalorder %s16, 3
    %p107 = por %p105, %p106
    %p109 = scmp.ne.s32.totalorder %s92, %s108
    %p110 = scmp.eq.s32.totalorder %s16, 0
    %p111 = por %p109, %p110
    %s113 = sadd.s32 %s112, 1
    %p116 = scmp.eq.s32.totalorder %s10, 3
    %p117 = scmp.ne.s32.totalorder %s112, %s114
    %p118 = scmp.eq.s32.totalorder %s10, 0
    %p119 = por %p117, %p118
    %p120 = scmp.ne.s32.totalorder %s112, %s114
    %p121 = scmp.eq.s32.totalorder %s15, 3
    %p122 = por %p120, %p121
    %p123 = scmp.ne.s32.totalorder %s114, %s115
    %p124 = scmp.eq.s32.totalorder %s15, 0
    %p125 = por %p123, %p124
    %p126 = scmp.ne.s32.totalorder %s114, %s115
    %p127 = scmp.eq.s32.totalorder %s16, 3
    %p128 = por %p126, %p127
    %p130 = scmp.ne.s32.totalorder %s115, %s129
    %p131 = scmp.eq.s32.totalorder %s16, 0
    %p132 = por %p130, %p131
    %p133 = scmp.le.s32.totalorder 1, %s10
    %p134 = scmp.lt.s32.totalorder %s10, 5
    %p135 = pnand %p133, %p134
    %p136 = pneg %p135
    // Predicated region
    $region9: #{gcn_encoder_forward.3} parent=5 // pred_check
      _
    $region10: #{gcn_encoder_forward.3} parent=5 // pred_check_branch
      %138 = sbr.rel (%p135) target = $region12
    $region11: #{gcn_encoder_forward.3} parent=5 // pred_region
      %s139 = ssub.s32 %s10, 1
      // Predicated region
      $region13: #{gcn_encoder_forward.3} parent=11 // pred_check
        %p140 = pneg %p31
      $region14: #{gcn_encoder_forward.3} parent=11 // pred_check_branch
        %142 = sbr.rel (%p140) target = $region16
      $region15: #{gcn_encoder_forward.3} parent=11 // pred_region
        _
      $region16: #{gcn_encoder_forward.3} parent=11 // pred_fallthru
        _
      // Predicated region
      $region17: #{gcn_encoder_forward.3} parent=11 // pred_check
        %p143 = pneg %p52
      $region18: #{gcn_encoder_forward.3} parent=11 // pred_check_branch
        %145 = sbr.rel (%p143) target = $region20
      $region19: #{gcn_encoder_forward.3} parent=11 // pred_region
        _
      $region20: #{gcn_encoder_forward.3} parent=11 // pred_fallthru
        _
    $region12: #{gcn_encoder_forward.3} parent=5 // pred_fallthru
      _
    %p146 = scmp.lt.s32.totalorder %s10, 4
    // Predicated region
    $region21: #{gcn_encoder_forward.3} parent=5 // pred_check
      %p147 = pneg %p146
    $region22: #{gcn_encoder_forward.3} parent=5 // pred_check_branch
      %149 = sbr.rel (%p147) target = $region24
    $region23: #{gcn_encoder_forward.3} parent=5 // pred_region
      // Predicated region
      $region25: #{gcn_encoder_forward.3} parent=23 // pred_check
        %p150 = pneg %p72
      $region26: #{gcn_encoder_forward.3} parent=23 // pred_check_branch
        %152 = sbr.rel (%p150) target = $region28
      $region27: #{gcn_encoder_forward.3} parent=23 // pred_region
        %p153 = scmp.lt.s32.totalorder %s10, 3
        %s154 = scalar_select %p153, %s10, 3
        %s155 = smul.addr %s154, 64
        %s156 = smul.addr %s155, 4
        %s157 = scalar_lea.vmem %s2, %s156
      $region28: #{gcn_encoder_forward.3} parent=23 // pred_fallthru
        _
      // Predicated region
      $region29: #{gcn_encoder_forward.3} parent=23 // pred_check
        %p158 = pneg %p98
      $region30: #{gcn_encoder_forward.3} parent=23 // pred_check_branch
        %160 = sbr.rel (%p158) target = $region32
      $region31: #{gcn_encoder_forward.3} parent=23 // pred_region
        %p161 = scmp.lt.s32.totalorder %s10, 3
        %s162 = scalar_select %p161, %s10, 3
        %s163 = smul.addr %s162, 2
        %s164 = scalar_lea.vmem %s3, %s163
      $region32: #{gcn_encoder_forward.3} parent=23 // pred_fallthru
        _
    $region24: #{gcn_encoder_forward.3} parent=5 // pred_fallthru
      _
    %p165 = scmp.le.s32.totalorder 1, %s10
    %p166 = scmp.lt.s32.totalorder %s10, 5
    %p167 = pnand %p165, %p166
    %p168 = pneg %p167
    // Predicated region
    $region33: #{gcn_encoder_forward.3} parent=5 // pred_check
      _
    $region34: #{gcn_encoder_forward.3} parent=5 // pred_check_branch
      %170 = sbr.rel (%p167) target = $region36
    $region35: #{gcn_encoder_forward.3} parent=5 // pred_region
      %s171 = ssub.s32 %s10, 1
      %p172 = pneg %p31
      %p173 = pneg %p28
      %p174 = pneg %p52
      %p175 = pneg %p49
      %p176 = scmp.lt.s32.totalorder %s15, 3
      %s177 = scalar_select %p176, %s15, 3
      %s178 = smul.addr %s177, 64
      %s179 = smul.addr %s178, 4
      %s180 = scalar_lea.vmem %s2, %s179
      %p181 = pneg %p78
      %p182 = pneg %p75
      %p183 = scmp.lt.s32.totalorder %s15, 3
      %s184 = scalar_select %p183, %s15, 3
      %s185 = smul.addr %s184, 2
      %s186 = scalar_lea.vmem %s3, %s185
      %p187 = pneg %p104
      %p188 = pneg %p101
      %p189 = pneg %p125
      %p190 = pneg %p122
      %p191 = scmp.lt.s32.totalorder %s15, 3
      %s192 = scalar_select %p191, %s15, 3
      %s193 = smul.addr %s192, 64
      %s194 = smul.addr %s193, 4
      %s195 = scalar_lea.vmem %s2, %s194
      %p196 = scmp.lt.s32.totalorder %s15, 3
      %s197 = scalar_select %p196, %s15, 3
      %s198 = smul.addr %s197, 2
      %s199 = scalar_lea.vmem %s3, %s198
      %p200 = scmp.eq.s32.totalorder %s15, 0
      // Predicated region
      $region37: #{gcn_encoder_forward.3} parent=35 // pred_check
        %p201 = pneg %p200
      $region38: #{gcn_encoder_forward.3} parent=35 // pred_check_branch
        %203 = sbr.rel (%p201) target = $region40
      $region39: #{gcn_encoder_forward.3} parent=35 // pred_region
        %v204 = vld [vmem:[%s1] sm:$0xff]
        %v205 = vld [vmem:[%s1 + $0x8] sm:$0xff]
        %v206 = vld [vmem:[%s1 + $0x10] sm:$0xff]
        %v207 = vld [vmem:[%s1 + $0x18] sm:$0xff]
        %v208 = vld [vmem:[%s1 + $0x20] sm:$0xff]
        %v209 = vld [vmem:[%s1 + $0x28] sm:$0xff]
        %v210 = vld [vmem:[%s1 + $0x30] sm:$0xff]
        %v211 = vld [vmem:[%s1 + $0x38] sm:$0xff]
        %v212 = vld [vmem:[%s1 + $0x40] sm:$0xff]
        %v213 = vld [vmem:[%s1 + $0x48] sm:$0xff]
        %v214 = vld [vmem:[%s1 + $0x50] sm:$0xff]
        %v215 = vld [vmem:[%s1 + $0x58] sm:$0xff]
        %v216 = vld [vmem:[%s1 + $0x60] sm:$0xff]
        %v217 = vld [vmem:[%s1 + $0x68] sm:$0xff]
        %v218 = vld [vmem:[%s1 + $0x70] sm:$0xff]
        %v219 = vld [vmem:[%s1 + $0x78] sm:$0xff]
        %v220 = vld [vmem:[%s1 + $0x80] sm:$0xff]
        %v221 = vld [vmem:[%s1 + $0x88] sm:$0xff]
        %v222 = vld [vmem:[%s1 + $0x90] sm:$0xff]
        %v223 = vld [vmem:[%s1 + $0x98] sm:$0xff]
        %v224 = vld [vmem:[%s1 + $0xa0] sm:$0xff]
        %v225 = vld [vmem:[%s1 + $0xa8] sm:$0xff]
        %v226 = vld [vmem:[%s1 + $0xb0] sm:$0xff]
        %v227 = vld [vmem:[%s1 + $0xb8] sm:$0xff]
        %v228 = vld [vmem:[%s1 + $0xc0] sm:$0xff]
        %v229 = vld [vmem:[%s1 + $0xc8] sm:$0xff]
        %v230 = vld [vmem:[%s1 + $0xd0] sm:$0xff]
        %v231 = vld [vmem:[%s1 + $0xd8] sm:$0xff]
        %v232 = vld [vmem:[%s1 + $0xe0] sm:$0xff]
        %v233 = vld [vmem:[%s1 + $0xe8] sm:$0xff]
        %v234 = vld [vmem:[%s1 + $0xf0] sm:$0xff]
        %v235 = vld [vmem:[%s1 + $0xf8] sm:$0xff]
        %v236 = vld [vmem:[%s1 + $0x100] sm:$0xff]
        %v237 = vld [vmem:[%s1 + $0x108] sm:$0xff]
        %v238 = vld [vmem:[%s1 + $0x110] sm:$0xff]
        %v239 = vld [vmem:[%s1 + $0x118] sm:$0xff]
        %v240 = vld [vmem:[%s1 + $0x120] sm:$0xff]
        %v241 = vld [vmem:[%s1 + $0x128] sm:$0xff]
        %v242 = vld [vmem:[%s1 + $0x130] sm:$0xff]
        %v243 = vld [vmem:[%s1 + $0x138] sm:$0xff]
        %v244 = vld [vmem:[%s1 + $0x140] sm:$0xff]
        %v245 = vld [vmem:[%s1 + $0x148] sm:$0xff]
        %v246 = vld [vmem:[%s1 + $0x150] sm:$0xff]
        %v247 = vld [vmem:[%s1 + $0x158] sm:$0xff]
        %v248 = vld [vmem:[%s1 + $0x160] sm:$0xff]
        %v249 = vld [vmem:[%s1 + $0x168] sm:$0xff]
        %v250 = vld [vmem:[%s1 + $0x170] sm:$0xff]
        %v251 = vld [vmem:[%s1 + $0x178] sm:$0xff]
        %v252 = vld [vmem:[%s1 + $0x180] sm:$0xff]
        %v253 = vld [vmem:[%s1 + $0x188] sm:$0xff]
        %v254 = vld [vmem:[%s1 + $0x190] sm:$0xff]
        %v255 = vld [vmem:[%s1 + $0x198] sm:$0xff]
        %v256 = vld [vmem:[%s1 + $0x1a0] sm:$0xff]
        %v257 = vld [vmem:[%s1 + $0x1a8] sm:$0xff]
        %v258 = vld [vmem:[%s1 + $0x1b0] sm:$0xff]
        %v259 = vld [vmem:[%s1 + $0x1b8] sm:$0xff]
        %v260 = vld [vmem:[%s1 + $0x1c0] sm:$0xff]
        %v261 = vld [vmem:[%s1 + $0x1c8] sm:$0xff]
        %v262 = vld [vmem:[%s1 + $0x1d0] sm:$0xff]
        %v263 = vld [vmem:[%s1 + $0x1d8] sm:$0xff]
        %v264 = vld [vmem:[%s1 + $0x1e0] sm:$0xff]
        %v265 = vld [vmem:[%s1 + $0x1e8] sm:$0xff]
        %v266 = vld [vmem:[%s1 + $0x1f0] sm:$0xff]
        %v267 = vld [vmem:[%s1 + $0x1f8] sm:$0xff]
        %v268 = vld [vmem:[%s1 + $0x200] sm:$0xff]
        %v269 = vld [vmem:[%s1 + $0x208] sm:$0xff]
        %v270 = vld [vmem:[%s1 + $0x210] sm:$0xff]
        %v271 = vld [vmem:[%s1 + $0x218] sm:$0xff]
        %v272 = vld [vmem:[%s1 + $0x220] sm:$0xff]
        %v273 = vld [vmem:[%s1 + $0x228] sm:$0xff]
        %v274 = vld [vmem:[%s1 + $0x230] sm:$0xff]
        %v275 = vld [vmem:[%s1 + $0x238] sm:$0xff]
        %v276 = vld [vmem:[%s1 + $0x240] sm:$0xff]
        %v277 = vld [vmem:[%s1 + $0x248] sm:$0xff]
        %v278 = vld [vmem:[%s1 + $0x250] sm:$0xff]
        %v279 = vld [vmem:[%s1 + $0x258] sm:$0xff]
        %v280 = vld [vmem:[%s1 + $0x260] sm:$0xff]
        %v281 = vld [vmem:[%s1 + $0x268] sm:$0xff]
        %v282 = vld [vmem:[%s1 + $0x270] sm:$0xff]
        %v283 = vld [vmem:[%s1 + $0x278] sm:$0xff]
        %v284 = vld [vmem:[%s1 + $0x280] sm:$0xff]
        %v285 = vld [vmem:[%s1 + $0x288] sm:$0xff]
        %v286 = vld [vmem:[%s1 + $0x290] sm:$0xff]
        %v287 = vld [vmem:[%s1 + $0x298] sm:$0xff]
        %v288 = vld [vmem:[%s1 + $0x2a0] sm:$0xff]
        %v289 = vld [vmem:[%s1 + $0x2a8] sm:$0xff]
        %v290 = vld [vmem:[%s1 + $0x2b0] sm:$0xff]
        %v291 = vld [vmem:[%s1 + $0x2b8] sm:$0xff]
        %v292 = vld [vmem:[%s1 + $0x2c0] sm:$0xff]
        %v293 = vld [vmem:[%s1 + $0x2c8] sm:$0xff]
        %v294 = vld [vmem:[%s1 + $0x2d0] sm:$0xff]
        %v295 = vld [vmem:[%s1 + $0x2d8] sm:$0xff]
        %v296 = vld [vmem:[%s1 + $0x2e0] sm:$0xff]
        %v297 = vld [vmem:[%s1 + $0x2e8] sm:$0xff]
        %v298 = vld [vmem:[%s1 + $0x2f0] sm:$0xff]
        %v299 = vld [vmem:[%s1 + $0x2f8] sm:$0xff]
        %300 = vst [vmem:[#allocation2] sm:$0xff] %v204
        %301 = vst [vmem:[#allocation2 + $0x8] sm:$0xff] %v205
        %302 = vst [vmem:[#allocation2 + $0x10] sm:$0xff] %v206
        %303 = vst [vmem:[#allocation2 + $0x18] sm:$0xff] %v207
        %304 = vst [vmem:[#allocation2 + $0x20] sm:$0xff] %v208
        %305 = vst [vmem:[#allocation2 + $0x28] sm:$0xff] %v209
        %306 = vst [vmem:[#allocation2 + $0x30] sm:$0xff] %v210
        %307 = vst [vmem:[#allocation2 + $0x38] sm:$0xff] %v211
        %308 = vst [vmem:[#allocation2 + $0x40] sm:$0xff] %v212
        %309 = vst [vmem:[#allocation2 + $0x48] sm:$0xff] %v213
        %310 = vst [vmem:[#allocation2 + $0x50] sm:$0xff] %v214
        %311 = vst [vmem:[#allocation2 + $0x58] sm:$0xff] %v215
        %312 = vst [vmem:[#allocation2 + $0x60] sm:$0xff] %v216
        %313 = vst [vmem:[#allocation2 + $0x68] sm:$0xff] %v217
        %314 = vst [vmem:[#allocation2 + $0x70] sm:$0xff] %v218
        %315 = vst [vmem:[#allocation2 + $0x78] sm:$0xff] %v219
        %316 = vst [vmem:[#allocation2 + $0x80] sm:$0xff] %v220
        %317 = vst [vmem:[#allocation2 + $0x88] sm:$0xff] %v221
        %318 = vst [vmem:[#allocation2 + $0x90] sm:$0xff] %v222
        %319 = vst [vmem:[#allocation2 + $0x98] sm:$0xff] %v223
        %320 = vst [vmem:[#allocation2 + $0xa0] sm:$0xff] %v224
        %321 = vst [vmem:[#allocation2 + $0xa8] sm:$0xff] %v225
        %322 = vst [vmem:[#allocation2 + $0xb0] sm:$0xff] %v226
        %323 = vst [vmem:[#allocation2 + $0xb8] sm:$0xff] %v227
        %324 = vst [vmem:[#allocation2 + $0xc0] sm:$0xff] %v228
        %325 = vst [vmem:[#allocation2 + $0xc8] sm:$0xff] %v229
        %326 = vst [vmem:[#allocation2 + $0xd0] sm:$0xff] %v230
        %327 = vst [vmem:[#allocation2 + $0xd8] sm:$0xff] %v231
        %328 = vst [vmem:[#allocation2 + $0xe0] sm:$0xff] %v232
        %329 = vst [vmem:[#allocation2 + $0xe8] sm:$0xff] %v233
        %330 = vst [vmem:[#allocation2 + $0xf0] sm:$0xff] %v234
        %331 = vst [vmem:[#allocation2 + $0xf8] sm:$0xff] %v235
        %332 = vst [vmem:[#allocation2 + $0x100] sm:$0xff] %v236
        %333 = vst [vmem:[#allocation2 + $0x108] sm:$0xff] %v237
        %334 = vst [vmem:[#allocation2 + $0x110] sm:$0xff] %v238
        %335 = vst [vmem:[#allocation2 + $0x118] sm:$0xff] %v239
        %336 = vst [vmem:[#allocation2 + $0x120] sm:$0xff] %v240
        %337 = vst [vmem:[#allocation2 + $0x128] sm:$0xff] %v241
        %338 = vst [vmem:[#allocation2 + $0x130] sm:$0xff] %v242
        %339 = vst [vmem:[#allocation2 + $0x138] sm:$0xff] %v243
        %340 = vst [vmem:[#allocation2 + $0x140] sm:$0xff] %v244
        %341 = vst [vmem:[#allocation2 + $0x148] sm:$0xff] %v245
        %342 = vst [vmem:[#allocation2 + $0x150] sm:$0xff] %v246
        %343 = vst [vmem:[#allocation2 + $0x158] sm:$0xff] %v247
        %344 = vst [vmem:[#allocation2 + $0x160] sm:$0xff] %v248
        %345 = vst [vmem:[#allocation2 + $0x168] sm:$0xff] %v249
        %346 = vst [vmem:[#allocation2 + $0x170] sm:$0xff] %v250
        %347 = vst [vmem:[#allocation2 + $0x178] sm:$0xff] %v251
        %348 = vst [vmem:[#allocation2 + $0x180] sm:$0xff] %v252
        %349 = vst [vmem:[#allocation2 + $0x188] sm:$0xff] %v253
        %350 = vst [vmem:[#allocation2 + $0x190] sm:$0xff] %v254
        %351 = vst [vmem:[#allocation2 + $0x198] sm:$0xff] %v255
        %352 = vst [vmem:[#allocation2 + $0x1a0] sm:$0xff] %v256
        %353 = vst [vmem:[#allocation2 + $0x1a8] sm:$0xff] %v257
        %354 = vst [vmem:[#allocation2 + $0x1b0] sm:$0xff] %v258
        %355 = vst [vmem:[#allocation2 + $0x1b8] sm:$0xff] %v259
        %356 = vst [vmem:[#allocation2 + $0x1c0] sm:$0xff] %v260
        %357 = vst [vmem:[#allocation2 + $0x1c8] sm:$0xff] %v261
        %358 = vst [vmem:[#allocation2 + $0x1d0] sm:$0xff] %v262
        %359 = vst [vmem:[#allocation2 + $0x1d8] sm:$0xff] %v263
        %360 = vst [vmem:[#allocation2 + $0x1e0] sm:$0xff] %v264
        %361 = vst [vmem:[#allocation2 + $0x1e8] sm:$0xff] %v265
        %362 = vst [vmem:[#allocation2 + $0x1f0] sm:$0xff] %v266
        %363 = vst [vmem:[#allocation2 + $0x1f8] sm:$0xff] %v267
        %364 = vst [vmem:[#allocation2 + $0x200] sm:$0xff] %v268
        %365 = vst [vmem:[#allocation2 + $0x208] sm:$0xff] %v269
        %366 = vst [vmem:[#allocation2 + $0x210] sm:$0xff] %v270
        %367 = vst [vmem:[#allocation2 + $0x218] sm:$0xff] %v271
        %368 = vst [vmem:[#allocation2 + $0x220] sm:$0xff] %v272
        %369 = vst [vmem:[#allocation2 + $0x228] sm:$0xff] %v273
        %370 = vst [vmem:[#allocation2 + $0x230] sm:$0xff] %v274
        %371 = vst [vmem:[#allocation2 + $0x238] sm:$0xff] %v275
        %372 = vst [vmem:[#allocation2 + $0x240] sm:$0xff] %v276
        %373 = vst [vmem:[#allocation2 + $0x248] sm:$0xff] %v277
        %374 = vst [vmem:[#allocation2 + $0x250] sm:$0xff] %v278
        %375 = vst [vmem:[#allocation2 + $0x258] sm:$0xff] %v279
        %376 = vst [vmem:[#allocation2 + $0x260] sm:$0xff] %v280
        %377 = vst [vmem:[#allocation2 + $0x268] sm:$0xff] %v281
        %378 = vst [vmem:[#allocation2 + $0x270] sm:$0xff] %v282
        %379 = vst [vmem:[#allocation2 + $0x278] sm:$0xff] %v283
        %380 = vst [vmem:[#allocation2 + $0x280] sm:$0xff] %v284
        %381 = vst [vmem:[#allocation2 + $0x288] sm:$0xff] %v285
        %382 = vst [vmem:[#allocation2 + $0x290] sm:$0xff] %v286
        %383 = vst [vmem:[#allocation2 + $0x298] sm:$0xff] %v287
        %384 = vst [vmem:[#allocation2 + $0x2a0] sm:$0xff] %v288
        %385 = vst [vmem:[#allocation2 + $0x2a8] sm:$0xff] %v289
        %386 = vst [vmem:[#allocation2 + $0x2b0] sm:$0xff] %v290
        %387 = vst [vmem:[#allocation2 + $0x2b8] sm:$0xff] %v291
        %388 = vst [vmem:[#allocation2 + $0x2c0] sm:$0xff] %v292
        %389 = vst [vmem:[#allocation2 + $0x2c8] sm:$0xff] %v293
        %390 = vst [vmem:[#allocation2 + $0x2d0] sm:$0xff] %v294
        %391 = vst [vmem:[#allocation2 + $0x2d8] sm:$0xff] %v295
        %392 = vst [vmem:[#allocation2 + $0x2e0] sm:$0xff] %v296
        %393 = vst [vmem:[#allocation2 + $0x2e8] sm:$0xff] %v297
        %394 = vst [vmem:[#allocation2 + $0x2f0] sm:$0xff] %v298
        %395 = vst [vmem:[#allocation2 + $0x2f8] sm:$0xff] %v299
      $region40: #{gcn_encoder_forward.3} parent=35 // pred_fallthru
        _
      %p396 = scmp.gt.s32.totalorder %s15, 0
      // Predicated region
      $region41: #{gcn_encoder_forward.3} parent=35 // pred_check
        %p397 = pneg %p396
      $region42: #{gcn_encoder_forward.3} parent=35 // pred_check_branch
        %399 = sbr.rel (%p397) target = $region44
      $region43: #{gcn_encoder_forward.3} parent=35 // pred_region
        %v400 = vld [vmem:[#allocation2] sm:$0xff]
        %v401 = vld [vmem:[#allocation2 + $0x8] sm:$0xff]
        %v402 = vld [vmem:[#allocation2 + $0x10] sm:$0xff]
        %v403 = vld [vmem:[#allocation2 + $0x18] sm:$0xff]
        %v404 = vld [vmem:[#allocation2 + $0x20] sm:$0xff]
        %v405 = vld [vmem:[#allocation2 + $0x28] sm:$0xff]
        %v406 = vld [vmem:[#allocation2 + $0x30] sm:$0xff]
        %v407 = vld [vmem:[#allocation2 + $0x38] sm:$0xff]
        %v408 = vld [vmem:[#allocation2 + $0x40] sm:$0xff]
        %v409 = vld [vmem:[#allocation2 + $0x48] sm:$0xff]
        %v410 = vld [vmem:[#allocation2 + $0x50] sm:$0xff]
        %v411 = vld [vmem:[#allocation2 + $0x58] sm:$0xff]
        %v412 = vld [vmem:[#allocation2 + $0x60] sm:$0xff]
        %v413 = vld [vmem:[#allocation2 + $0x68] sm:$0xff]
        %v414 = vld [vmem:[#allocation2 + $0x70] sm:$0xff]
        %v415 = vld [vmem:[#allocation2 + $0x78] sm:$0xff]
        %v416 = vld [vmem:[#allocation2 + $0x80] sm:$0xff]
        %v417 = vld [vmem:[#allocation2 + $0x88] sm:$0xff]
        %v418 = vld [vmem:[#allocation2 + $0x90] sm:$0xff]
        %v419 = vld [vmem:[#allocation2 + $0x98] sm:$0xff]
        %v420 = vld [vmem:[#allocation2 + $0xa0] sm:$0xff]
        %v421 = vld [vmem:[#allocation2 + $0xa8] sm:$0xff]
        %v422 = vld [vmem:[#allocation2 + $0xb0] sm:$0xff]
        %v423 = vld [vmem:[#allocation2 + $0xb8] sm:$0xff]
        %v424 = vld [vmem:[#allocation2 + $0xc0] sm:$0xff]
        %v425 = vld [vmem:[#allocation2 + $0xc8] sm:$0xff]
        %v426 = vld [vmem:[#allocation2 + $0xd0] sm:$0xff]
        %v427 = vld [vmem:[#allocation2 + $0xd8] sm:$0xff]
        %v428 = vld [vmem:[#allocation2 + $0xe0] sm:$0xff]
        %v429 = vld [vmem:[#allocation2 + $0xe8] sm:$0xff]
        %v430 = vld [vmem:[#allocation2 + $0xf0] sm:$0xff]
        %v431 = vld [vmem:[#allocation2 + $0xf8] sm:$0xff]
        %v432 = vld [vmem:[#allocation2 + $0x100] sm:$0xff]
        %v433 = vld [vmem:[#allocation2 + $0x108] sm:$0xff]
        %v434 = vld [vmem:[#allocation2 + $0x110] sm:$0xff]
        %v435 = vld [vmem:[#allocation2 + $0x118] sm:$0xff]
        %v436 = vld [vmem:[#allocation2 + $0x120] sm:$0xff]
        %v437 = vld [vmem:[#allocation2 + $0x128] sm:$0xff]
        %v438 = vld [vmem:[#allocation2 + $0x130] sm:$0xff]
        %v439 = vld [vmem:[#allocation2 + $0x138] sm:$0xff]
        %v440 = vld [vmem:[#allocation2 + $0x140] sm:$0xff]
        %v441 = vld [vmem:[#allocation2 + $0x148] sm:$0xff]
        %v442 = vld [vmem:[#allocation2 + $0x150] sm:$0xff]
        %v443 = vld [vmem:[#allocation2 + $0x158] sm:$0xff]
        %v444 = vld [vmem:[#allocation2 + $0x160] sm:$0xff]
        %v445 = vld [vmem:[#allocation2 + $0x168] sm:$0xff]
        %v446 = vld [vmem:[#allocation2 + $0x170] sm:$0xff]
        %v447 = vld [vmem:[#allocation2 + $0x178] sm:$0xff]
        %v448 = vld [vmem:[#allocation2 + $0x180] sm:$0xff]
        %v449 = vld [vmem:[#allocation2 + $0x188] sm:$0xff]
        %v450 = vld [vmem:[#allocation2 + $0x190] sm:$0xff]
        %v451 = vld [vmem:[#allocation2 + $0x198] sm:$0xff]
        %v452 = vld [vmem:[#allocation2 + $0x1a0] sm:$0xff]
        %v453 = vld [vmem:[#allocation2 + $0x1a8] sm:$0xff]
        %v454 = vld [vmem:[#allocation2 + $0x1b0] sm:$0xff]
        %v455 = vld [vmem:[#allocation2 + $0x1b8] sm:$0xff]
        %v456 = vld [vmem:[#allocation2 + $0x1c0] sm:$0xff]
        %v457 = vld [vmem:[#allocation2 + $0x1c8] sm:$0xff]
        %v458 = vld [vmem:[#allocation2 + $0x1d0] sm:$0xff]
        %v459 = vld [vmem:[#allocation2 + $0x1d8] sm:$0xff]
        %v460 = vld [vmem:[#allocation2 + $0x1e0] sm:$0xff]
        %v461 = vld [vmem:[#allocation2 + $0x1e8] sm:$0xff]
        %v462 = vld [vmem:[#allocation2 + $0x1f0] sm:$0xff]
        %v463 = vld [vmem:[#allocation2 + $0x1f8] sm:$0xff]
        %v464 = vld [vmem:[#allocation2 + $0x200] sm:$0xff]
        %v465 = vld [vmem:[#allocation2 + $0x208] sm:$0xff]
        %v466 = vld [vmem:[#allocation2 + $0x210] sm:$0xff]
        %v467 = vld [vmem:[#allocation2 + $0x218] sm:$0xff]
        %v468 = vld [vmem:[#allocation2 + $0x220] sm:$0xff]
        %v469 = vld [vmem:[#allocation2 + $0x228] sm:$0xff]
        %v470 = vld [vmem:[#allocation2 + $0x230] sm:$0xff]
        %v471 = vld [vmem:[#allocation2 + $0x238] sm:$0xff]
        %v472 = vld [vmem:[#allocation2 + $0x240] sm:$0xff]
        %v473 = vld [vmem:[#allocation2 + $0x248] sm:$0xff]
        %v474 = vld [vmem:[#allocation2 + $0x250] sm:$0xff]
        %v475 = vld [vmem:[#allocation2 + $0x258] sm:$0xff]
        %v476 = vld [vmem:[#allocation2 + $0x260] sm:$0xff]
        %v477 = vld [vmem:[#allocation2 + $0x268] sm:$0xff]
        %v478 = vld [vmem:[#allocation2 + $0x270] sm:$0xff]
        %v479 = vld [vmem:[#allocation2 + $0x278] sm:$0xff]
        %v480 = vld [vmem:[#allocation2 + $0x280] sm:$0xff]
        %v481 = vld [vmem:[#allocation2 + $0x288] sm:$0xff]
        %v482 = vld [vmem:[#allocation2 + $0x290] sm:$0xff]
        %v483 = vld [vmem:[#allocation2 + $0x298] sm:$0xff]
        %v484 = vld [vmem:[#allocation2 + $0x2a0] sm:$0xff]
        %v485 = vld [vmem:[#allocation2 + $0x2a8] sm:$0xff]
        %v486 = vld [vmem:[#allocation2 + $0x2b0] sm:$0xff]
        %v487 = vld [vmem:[#allocation2 + $0x2b8] sm:$0xff]
        %v488 = vld [vmem:[#allocation2 + $0x2c0] sm:$0xff]
        %v489 = vld [vmem:[#allocation2 + $0x2c8] sm:$0xff]
        %v490 = vld [vmem:[#allocation2 + $0x2d0] sm:$0xff]
        %v491 = vld [vmem:[#allocation2 + $0x2d8] sm:$0xff]
        %v492 = vld [vmem:[#allocation2 + $0x2e0] sm:$0xff]
        %v493 = vld [vmem:[#allocation2 + $0x2e8] sm:$0xff]
        %v494 = vld [vmem:[#allocation2 + $0x2f0] sm:$0xff]
        %v495 = vld [vmem:[#allocation2 + $0x2f8] sm:$0xff]
        %v496 = vld [vmem:[%s195] sm:$0xff]
        %v497 = vld [vmem:[%s195 + $0x8] sm:$0xff]
        %v498 = vld [vmem:[%s195 + $0x10] sm:$0xff]
        %v499 = vld [vmem:[%s195 + $0x18] sm:$0xff]
        %v500 = vld [vmem:[%s195 + $0x20] sm:$0xff]
        %v501 = vld [vmem:[%s195 + $0x28] sm:$0xff]
        %v502 = vld [vmem:[%s195 + $0x30] sm:$0xff]
        %v503 = vld [vmem:[%s195 + $0x38] sm:$0xff]
        %v504 = vld [vmem:[%s195 + $0x40] sm:$0xff]
        %v505 = vld [vmem:[%s195 + $0x48] sm:$0xff]
        %v506 = vld [vmem:[%s195 + $0x50] sm:$0xff]
        %v507 = vld [vmem:[%s195 + $0x58] sm:$0xff]
        %v508 = vld [vmem:[%s195 + $0x60] sm:$0xff]
        %v509 = vld [vmem:[%s195 + $0x68] sm:$0xff]
        %v510 = vld [vmem:[%s195 + $0x70] sm:$0xff]
        %v511 = vld [vmem:[%s195 + $0x78] sm:$0xff]
        %v512 = vld [vmem:[%s195 + $0x80] sm:$0xff]
        %v513 = vld [vmem:[%s195 + $0x88] sm:$0xff]
        %v514 = vld [vmem:[%s195 + $0x90] sm:$0xff]
        %v515 = vld [vmem:[%s195 + $0x98] sm:$0xff]
        %v516 = vld [vmem:[%s195 + $0xa0] sm:$0xff]
        %v517 = vld [vmem:[%s195 + $0xa8] sm:$0xff]
        %v518 = vld [vmem:[%s195 + $0xb0] sm:$0xff]
        %v519 = vld [vmem:[%s195 + $0xb8] sm:$0xff]
        %v520 = vld [vmem:[%s195 + $0xc0] sm:$0xff]
        %v521 = vld [vmem:[%s195 + $0xc8] sm:$0xff]
        %v522 = vld [vmem:[%s195 + $0xd0] sm:$0xff]
        %v523 = vld [vmem:[%s195 + $0xd8] sm:$0xff]
        %v524 = vld [vmem:[%s195 + $0xe0] sm:$0xff]
        %v525 = vld [vmem:[%s195 + $0xe8] sm:$0xff]
        %v526 = vld [vmem:[%s195 + $0xf0] sm:$0xff]
        %v527 = vld [vmem:[%s195 + $0xf8] sm:$0xff]
        %v624 = vunpack.c.l.b16 %v400
        %v625 = vunpack.c.h.b16 %v400
        %v626 = vunpack.c.l.b16 %v401
        %v627 = vunpack.c.h.b16 %v401
        %v628 = vunpack.c.l.b16 %v402
        %v629 = vunpack.c.h.b16 %v402
        %v630 = vunpack.c.l.b16 %v403
        %v631 = vunpack.c.h.b16 %v403
        %v632 = vunpack.c.l.b16 %v404
        %v633 = vunpack.c.h.b16 %v404
        %v634 = vunpack.c.l.b16 %v405
        %v635 = vunpack.c.h.b16 %v405
        %v636 = vunpack.c.l.b16 %v406
        %v637 = vunpack.c.h.b16 %v406
        %v638 = vunpack.c.l.b16 %v407
        %v639 = vunpack.c.h.b16 %v407
        %v640 = vunpack.c.l.b16 %v408
        %v641 = vunpack.c.h.b16 %v408
        %v642 = vunpack.c.l.b16 %v409
        %v643 = vunpack.c.h.b16 %v409
        %v644 = vunpack.c.l.b16 %v410
        %v645 = vunpack.c.h.b16 %v410
        %v646 = vunpack.c.l.b16 %v411
        %v647 = vunpack.c.h.b16 %v411
        %v648 = vunpack.c.l.b16 %v412
        %v649 = vunpack.c.h.b16 %v412
        %v650 = vunpack.c.l.b16 %v413
        %v651 = vunpack.c.h.b16 %v413
        %v652 = vunpack.c.l.b16 %v414
        %v653 = vunpack.c.h.b16 %v414
        %v654 = vunpack.c.l.b16 %v415
        %v655 = vunpack.c.h.b16 %v415
        %v656 = vunpack.c.l.b16 %v416
        %v657 = vunpack.c.h.b16 %v416
        %v658 = vunpack.c.l.b16 %v417
        %v659 = vunpack.c.h.b16 %v417
        %v660 = vunpack.c.l.b16 %v418
        %v661 = vunpack.c.h.b16 %v418
        %v662 = vunpack.c.l.b16 %v419
        %v663 = vunpack.c.h.b16 %v419
        %v664 = vunpack.c.l.b16 %v420
        %v665 = vunpack.c.h.b16 %v420
        %v666 = vunpack.c.l.b16 %v421
        %v667 = vunpack.c.h.b16 %v421
        %v668 = vunpack.c.l.b16 %v422
        %v669 = vunpack.c.h.b16 %v422
        %v670 = vunpack.c.l.b16 %v423
        %v671 = vunpack.c.h.b16 %v423
        %v672 = vunpack.c.l.b16 %v424
        %v673 = vunpack.c.h.b16 %v424
        %v674 = vunpack.c.l.b16 %v425
        %v675 = vunpack.c.h.b16 %v425
        %v676 = vunpack.c.l.b16 %v426
        %v677 = vunpack.c.h.b16 %v426
        %v678 = vunpack.c.l.b16 %v427
        %v679 = vunpack.c.h.b16 %v427
        %v680 = vunpack.c.l.b16 %v428
        %v681 = vunpack.c.h.b16 %v428
        %v682 = vunpack.c.l.b16 %v429
        %v683 = vunpack.c.h.b16 %v429
        %v684 = vunpack.c.l.b16 %v430
        %v685 = vunpack.c.h.b16 %v430
        %v686 = vunpack.c.l.b16 %v431
        %v687 = vunpack.c.h.b16 %v431
        %v688 = vunpack.c.l.b16 %v432
        %v689 = vunpack.c.h.b16 %v432
        %v690 = vunpack.c.l.b16 %v433
        %v691 = vunpack.c.h.b16 %v433
        %v692 = vunpack.c.l.b16 %v434
        %v693 = vunpack.c.h.b16 %v434
        %v694 = vunpack.c.l.b16 %v435
        %v695 = vunpack.c.h.b16 %v435
        %v696 = vunpack.c.l.b16 %v436
        %v697 = vunpack.c.h.b16 %v436
        %v698 = vunpack.c.l.b16 %v437
        %v699 = vunpack.c.h.b16 %v437
        %v700 = vunpack.c.l.b16 %v438
        %v701 = vunpack.c.h.b16 %v438
        %v702 = vunpack.c.l.b16 %v439
        %v703 = vunpack.c.h.b16 %v439
        %v704 = vunpack.c.l.b16 %v440
        %v705 = vunpack.c.h.b16 %v440
        %v706 = vunpack.c.l.b16 %v441
        %v707 = vunpack.c.h.b16 %v441
        %v708 = vunpack.c.l.b16 %v442
        %v709 = vunpack.c.h.b16 %v442
        %v710 = vunpack.c.l.b16 %v443
        %v711 = vunpack.c.h.b16 %v443
        %v712 = vunpack.c.l.b16 %v444
        %v713 = vunpack.c.h.b16 %v444
        %v714 = vunpack.c.l.b16 %v445
        %v715 = vunpack.c.h.b16 %v445
        %v716 = vunpack.c.l.b16 %v446
        %v717 = vunpack.c.h.b16 %v446
        %v718 = vunpack.c.l.b16 %v447
        %v719 = vunpack.c.h.b16 %v447
        %v720 = vunpack.c.l.b16 %v448
        %v721 = vunpack.c.h.b16 %v448
        %v722 = vunpack.c.l.b16 %v449
        %v723 = vunpack.c.h.b16 %v449
        %v724 = vunpack.c.l.b16 %v450
        %v725 = vunpack.c.h.b16 %v450
        %v726 = vunpack.c.l.b16 %v451
        %v727 = vunpack.c.h.b16 %v451
        %v728 = vunpack.c.l.b16 %v452
        %v729 = vunpack.c.h.b16 %v452
        %v730 = vunpack.c.l.b16 %v453
        %v731 = vunpack.c.h.b16 %v453
        %v732 = vunpack.c.l.b16 %v454
        %v733 = vunpack.c.h.b16 %v454
        %v734 = vunpack.c.l.b16 %v455
        %v735 = vunpack.c.h.b16 %v455
        %v736 = vunpack.c.l.b16 %v456
        %v737 = vunpack.c.h.b16 %v456
        %v738 = vunpack.c.l.b16 %v457
        %v739 = vunpack.c.h.b16 %v457
        %v740 = vunpack.c.l.b16 %v458
        %v741 = vunpack.c.h.b16 %v458
        %v742 = vunpack.c.l.b16 %v459
        %v743 = vunpack.c.h.b16 %v459
        %v744 = vunpack.c.l.b16 %v460
        %v745 = vunpack.c.h.b16 %v460
        %v746 = vunpack.c.l.b16 %v461
        %v747 = vunpack.c.h.b16 %v461
        %v748 = vunpack.c.l.b16 %v462
        %v749 = vunpack.c.h.b16 %v462
        %v750 = vunpack.c.l.b16 %v463
        %v751 = vunpack.c.h.b16 %v463
        %v752 = vunpack.c.l.b16 %v464
        %v753 = vunpack.c.h.b16 %v464
        %v754 = vunpack.c.l.b16 %v465
        %v755 = vunpack.c.h.b16 %v465
        %v756 = vunpack.c.l.b16 %v466
        %v757 = vunpack.c.h.b16 %v466
        %v758 = vunpack.c.l.b16 %v467
        %v759 = vunpack.c.h.b16 %v467
        %v760 = vunpack.c.l.b16 %v468
        %v761 = vunpack.c.h.b16 %v468
        %v762 = vunpack.c.l.b16 %v469
        %v763 = vunpack.c.h.b16 %v469
        %v764 = vunpack.c.l.b16 %v470
        %v765 = vunpack.c.h.b16 %v470
        %v766 = vunpack.c.l.b16 %v471
        %v767 = vunpack.c.h.b16 %v471
        %v768 = vunpack.c.l.b16 %v472
        %v769 = vunpack.c.h.b16 %v472
        %v770 = vunpack.c.l.b16 %v473
        %v771 = vunpack.c.h.b16 %v473
        %v772 = vunpack.c.l.b16 %v474
        %v773 = vunpack.c.h.b16 %v474
        %v774 = vunpack.c.l.b16 %v475
        %v775 = vunpack.c.h.b16 %v475
        %v776 = vunpack.c.l.b16 %v476
        %v777 = vunpack.c.h.b16 %v476
        %v778 = vunpack.c.l.b16 %v477
        %v779 = vunpack.c.h.b16 %v477
        %v780 = vunpack.c.l.b16 %v478
        %v781 = vunpack.c.h.b16 %v478
        %v782 = vunpack.c.l.b16 %v479
        %v783 = vunpack.c.h.b16 %v479
        %v784 = vunpack.c.l.b16 %v480
        %v785 = vunpack.c.h.b16 %v480
        %v786 = vunpack.c.l.b16 %v481
        %v787 = vunpack.c.h.b16 %v481
        %v788 = vunpack.c.l.b16 %v482
        %v789 = vunpack.c.h.b16 %v482
        %v790 = vunpack.c.l.b16 %v483
        %v791 = vunpack.c.h.b16 %v483
        %v792 = vunpack.c.l.b16 %v484
        %v793 = vunpack.c.h.b16 %v484
        %v794 = vunpack.c.l.b16 %v485
        %v795 = vunpack.c.h.b16 %v485
        %v796 = vunpack.c.l.b16 %v486
        %v797 = vunpack.c.h.b16 %v486
        %v798 = vunpack.c.l.b16 %v487
        %v799 = vunpack.c.h.b16 %v487
        %v800 = vunpack.c.l.b16 %v488
        %v801 = vunpack.c.h.b16 %v488
        %v802 = vunpack.c.l.b16 %v489
        %v803 = vunpack.c.h.b16 %v489
        %v804 = vunpack.c.l.b16 %v490
        %v805 = vunpack.c.h.b16 %v490
        %v806 = vunpack.c.l.b16 %v491
        %v807 = vunpack.c.h.b16 %v491
        %v808 = vunpack.c.l.b16 %v492
        %v809 = vunpack.c.h.b16 %v492
        %v810 = vunpack.c.l.b16 %v493
        %v811 = vunpack.c.h.b16 %v493
        %v812 = vunpack.c.l.b16 %v494
        %v813 = vunpack.c.h.b16 %v494
        %v814 = vunpack.c.l.b16 %v495
        %v815 = vunpack.c.h.b16 %v495
        %v816 = vpack.c.b16 %v626, %v624
        %v817 = vpack.c.b16 %v627, %v625
        %v818 = vpack.c.b16 %v630, %v628
        %v819 = vpack.c.b16 %v631, %v629
        %v820 = vpack.c.b16 %v634, %v632
        %v821 = vpack.c.b16 %v635, %v633
        %v822 = vpack.c.b16 %v638, %v636
        %v823 = vpack.c.b16 %v639, %v637
        %v824 = vpack.c.b16 %v642, %v640
        %v825 = vpack.c.b16 %v643, %v641
        %v826 = vpack.c.b16 %v646, %v644
        %v827 = vpack.c.b16 %v647, %v645
        %v828 = vpack.c.b16 %v650, %v648
        %v829 = vpack.c.b16 %v651, %v649
        %v830 = vpack.c.b16 %v654, %v652
        %v831 = vpack.c.b16 %v655, %v653
        %v832 = vpack.c.b16 %v658, %v656
        %v833 = vpack.c.b16 %v659, %v657
        %v834 = vpack.c.b16 %v662, %v660
        %v835 = vpack.c.b16 %v663, %v661
        %v836 = vpack.c.b16 %v666, %v664
        %v837 = vpack.c.b16 %v667, %v665
        %v838 = vpack.c.b16 %v670, %v668
        %v839 = vpack.c.b16 %v671, %v669
        %v840 = vpack.c.b16 %v674, %v672
        %v841 = vpack.c.b16 %v675, %v673
        %v842 = vpack.c.b16 %v678, %v676
        %v843 = vpack.c.b16 %v679, %v677
        %v844 = vpack.c.b16 %v682, %v680
        %v845 = vpack.c.b16 %v683, %v681
        %v846 = vpack.c.b16 %v686, %v684
        %v847 = vpack.c.b16 %v687, %v685
        %v848 = vpack.c.b16 %v690, %v688
        %v849 = vpack.c.b16 %v691, %v689
        %v850 = vpack.c.b16 %v694, %v692
        %v851 = vpack.c.b16 %v695, %v693
        %v852 = vpack.c.b16 %v698, %v696
        %v853 = vpack.c.b16 %v699, %v697
        %v854 = vpack.c.b16 %v702, %v700
        %v855 = vpack.c.b16 %v703, %v701
        %v856 = vpack.c.b16 %v706, %v704
        %v857 = vpack.c.b16 %v707, %v705
        %v858 = vpack.c.b16 %v710, %v708
        %v859 = vpack.c.b16 %v711, %v709
        %v860 = vpack.c.b16 %v714, %v712
        %v861 = vpack.c.b16 %v715, %v713
        %v862 = vpack.c.b16 %v718, %v716
        %v863 = vpack.c.b16 %v719, %v717
        %v864 = vpack.c.b16 %v722, %v720
        %v865 = vpack.c.b16 %v723, %v721
        %v866 = vpack.c.b16 %v726, %v724
        %v867 = vpack.c.b16 %v727, %v725
        %v868 = vpack.c.b16 %v730, %v728
        %v869 = vpack.c.b16 %v731, %v729
        %v870 = vpack.c.b16 %v734, %v732
        %v871 = vpack.c.b16 %v735, %v733
        %v872 = vpack.c.b16 %v738, %v736
        %v873 = vpack.c.b16 %v739, %v737
        %v874 = vpack.c.b16 %v742, %v740
        %v875 = vpack.c.b16 %v743, %v741
        %v876 = vpack.c.b16 %v746, %v744
        %v877 = vpack.c.b16 %v747, %v745
        %v878 = vpack.c.b16 %v750, %v748
        %v879 = vpack.c.b16 %v751, %v749
        %v880 = vpack.c.b16 %v754, %v752
        %v881 = vpack.c.b16 %v755, %v753
        %v882 = vpack.c.b16 %v758, %v756
        %v883 = vpack.c.b16 %v759, %v757
        %v884 = vpack.c.b16 %v762, %v760
        %v885 = vpack.c.b16 %v763, %v761
        %v886 = vpack.c.b16 %v766, %v764
        %v887 = vpack.c.b16 %v767, %v765
        %v888 = vpack.c.b16 %v770, %v768
        %v889 = vpack.c.b16 %v771, %v769
        %v890 = vpack.c.b16 %v774, %v772
        %v891 = vpack.c.b16 %v775, %v773
        %v892 = vpack.c.b16 %v778, %v776
        %v893 = vpack.c.b16 %v779, %v777
        %v894 = vpack.c.b16 %v782, %v780
        %v895 = vpack.c.b16 %v783, %v781
        %v896 = vpack.c.b16 %v786, %v784
        %v897 = vpack.c.b16 %v787, %v785
        %v898 = vpack.c.b16 %v790, %v788
        %v899 = vpack.c.b16 %v791, %v789
        %v900 = vpack.c.b16 %v794, %v792
        %v901 = vpack.c.b16 %v795, %v793
        %v902 = vpack.c.b16 %v798, %v796
        %v903 = vpack.c.b16 %v799, %v797
        %v904 = vpack.c.b16 %v802, %v800
        %v905 = vpack.c.b16 %v803, %v801
        %v906 = vpack.c.b16 %v806, %v804
        %v907 = vpack.c.b16 %v807, %v805
        %v908 = vpack.c.b16 %v810, %v808
        %v909 = vpack.c.b16 %v811, %v809
        %v910 = vpack.c.b16 %v814, %v812
        %v911 = vpack.c.b16 %v815, %v813
        %v1040 = vunpack.c.l.b16 %v496
        %v1041 = vunpack.c.h.b16 %v496
        %v1042 = vunpack.c.l.b16 %v497
        %v1043 = vunpack.c.h.b16 %v497
        %v1044 = vunpack.c.l.b16 %v498
        %v1045 = vunpack.c.h.b16 %v498
        %v1046 = vunpack.c.l.b16 %v499
        %v1047 = vunpack.c.h.b16 %v499
        %v1048 = vunpack.c.l.b16 %v500
        %v1049 = vunpack.c.h.b16 %v500
        %v1050 = vunpack.c.l.b16 %v501
        %v1051 = vunpack.c.h.b16 %v501
        %v1052 = vunpack.c.l.b16 %v502
        %v1053 = vunpack.c.h.b16 %v502
        %v1054 = vunpack.c.l.b16 %v503
        %v1055 = vunpack.c.h.b16 %v503
        %v1056 = vunpack.c.l.b16 %v504
        %v1057 = vunpack.c.h.b16 %v504
        %v1058 = vunpack.c.l.b16 %v505
        %v1059 = vunpack.c.h.b16 %v505
        %v1060 = vunpack.c.l.b16 %v506
        %v1061 = vunpack.c.h.b16 %v506
        %v1062 = vunpack.c.l.b16 %v507
        %v1063 = vunpack.c.h.b16 %v507
        %v1064 = vunpack.c.l.b16 %v508
        %v1065 = vunpack.c.h.b16 %v508
        %v1066 = vunpack.c.l.b16 %v509
        %v1067 = vunpack.c.h.b16 %v509
        %v1068 = vunpack.c.l.b16 %v510
        %v1069 = vunpack.c.h.b16 %v510
        %v1070 = vunpack.c.l.b16 %v511
        %v1071 = vunpack.c.h.b16 %v511
        %v1072 = vunpack.c.l.b16 %v512
        %v1073 = vunpack.c.h.b16 %v512
        %v1074 = vunpack.c.l.b16 %v513
        %v1075 = vunpack.c.h.b16 %v513
        %v1076 = vunpack.c.l.b16 %v514
        %v1077 = vunpack.c.h.b16 %v514
        %v1078 = vunpack.c.l.b16 %v515
        %v1079 = vunpack.c.h.b16 %v515
        %v1080 = vunpack.c.l.b16 %v516
        %v1081 = vunpack.c.h.b16 %v516
        %v1082 = vunpack.c.l.b16 %v517
        %v1083 = vunpack.c.h.b16 %v517
        %v1084 = vunpack.c.l.b16 %v518
        %v1085 = vunpack.c.h.b16 %v518
        %v1086 = vunpack.c.l.b16 %v519
        %v1087 = vunpack.c.h.b16 %v519
        %v1088 = vunpack.c.l.b16 %v520
        %v1089 = vunpack.c.h.b16 %v520
        %v1090 = vunpack.c.l.b16 %v521
        %v1091 = vunpack.c.h.b16 %v521
        %v1092 = vunpack.c.l.b16 %v522
        %v1093 = vunpack.c.h.b16 %v522
        %v1094 = vunpack.c.l.b16 %v523
        %v1095 = vunpack.c.h.b16 %v523
        %v1096 = vunpack.c.l.b16 %v524
        %v1097 = vunpack.c.h.b16 %v524
        %v1098 = vunpack.c.l.b16 %v525
        %v1099 = vunpack.c.h.b16 %v525
        %v1100 = vunpack.c.l.b16 %v526
        %v1101 = vunpack.c.h.b16 %v526
        %v1102 = vunpack.c.l.b16 %v527
        %v1103 = vunpack.c.h.b16 %v527
        %v1104 = vpack.c.b16 %v1042, %v1040
        %v1105 = vpack.c.b16 %v1043, %v1041
        %v1106 = vpack.c.b16 %v1046, %v1044
        %v1107 = vpack.c.b16 %v1047, %v1045
        %v1108 = vpack.c.b16 %v1050, %v1048
        %v1109 = vpack.c.b16 %v1051, %v1049
        %v1110 = vpack.c.b16 %v1054, %v1052
        %v1111 = vpack.c.b16 %v1055, %v1053
        %v1112 = vpack.c.b16 %v1058, %v1056
        %v1113 = vpack.c.b16 %v1059, %v1057
        %v1114 = vpack.c.b16 %v1062, %v1060
        %v1115 = vpack.c.b16 %v1063, %v1061
        %v1116 = vpack.c.b16 %v1066, %v1064
        %v1117 = vpack.c.b16 %v1067, %v1065
        %v1118 = vpack.c.b16 %v1070, %v1068
        %v1119 = vpack.c.b16 %v1071, %v1069
        %v1120 = vpack.c.b16 %v1074, %v1072
        %v1121 = vpack.c.b16 %v1075, %v1073
        %v1122 = vpack.c.b16 %v1078, %v1076
        %v1123 = vpack.c.b16 %v1079, %v1077
        %v1124 = vpack.c.b16 %v1082, %v1080
        %v1125 = vpack.c.b16 %v1083, %v1081
        %v1126 = vpack.c.b16 %v1086, %v1084
        %v1127 = vpack.c.b16 %v1087, %v1085
        %v1128 = vpack.c.b16 %v1090, %v1088
        %v1129 = vpack.c.b16 %v1091, %v1089
        %v1130 = vpack.c.b16 %v1094, %v1092
        %v1131 = vpack.c.b16 %v1095, %v1093
        %v1132 = vpack.c.b16 %v1098, %v1096
        %v1133 = vpack.c.b16 %v1099, %v1097
        %v1134 = vpack.c.b16 %v1102, %v1100
        %v1135 = vpack.c.b16 %v1103, %v1101
        %1168 = vmatprep.subr.bf16.mxu0 %v1119
        %1169 = vmatpush1.bf16.msra.mxu0 %v1118
        %1170 = vmatprep.subr.bf16.mxu0 %v1117
        %1171 = vmatpush1.bf16.msra.mxu0 %v1116
        %1172 = vmatprep.subr.bf16.mxu0 %v1115
        %1173 = vmatpush1.bf16.msra.mxu0 %v1114
        %1174 = vmatprep.subr.bf16.mxu0 %v1113
        %1175 = vmatpush1.bf16.msra.mxu0 %v1112
        %1176 = vmatprep.subr.bf16.mxu0 %v1111
        %1177 = vmatpush1.bf16.msra.mxu0 %v1110
        %1178 = vmatprep.subr.bf16.mxu0 %v1109
        %1179 = vmatpush1.bf16.msra.mxu0 %v1108
        %1180 = vmatprep.subr.bf16.mxu0 %v1107
        %1181 = vmatpush1.bf16.msra.mxu0 %v1106
        %1182 = vmatprep.subr.bf16.mxu0 %v1105
        %1183 = vmatpush1.bf16.msra.mxu0 %v1104
        %1184 = vmatprep.subr.bf16.mxu0 %v1135
        %1185 = vmatpush2.bf16.msra.mxu0 %v1134
        %1186 = vmatprep.subr.bf16.mxu0 %v1133
        %1187 = vmatpush2.bf16.msra.mxu0 %v1132
        %1188 = vmatprep.subr.bf16.mxu0 %v1131
        %1189 = vmatpush2.bf16.msra.mxu0 %v1130
        %1190 = vmatprep.subr.bf16.mxu0 %v1129
        %1191 = vmatpush2.bf16.msra.mxu0 %v1128
        %1192 = vmatprep.subr.bf16.mxu0 %v1127
        %1193 = vmatpush2.bf16.msra.mxu0 %v1126
        %1194 = vmatprep.subr.bf16.mxu0 %v1125
        %1195 = vmatpush2.bf16.msra.mxu0 %v1124
        %1196 = vmatprep.subr.bf16.mxu0 %v1123
        %1197 = vmatpush2.bf16.msra.mxu0 %v1122
        %1198 = vmatprep.subr.bf16.mxu0 %v1121
        %1199 = vmatpush2.bf16.msra.mxu0 %v1120
        %1200 = vmatprep.mubr.bf16.mxu0 %v817
        %1201 = vmatmul.mubr.bf16.gmra.mxu0 %v816
        %v1202 = vpop.f32.mrf.mxu0
        %v1203 = vadd.f32 0.0, %v1202
        %v1204 = vpop.f32.mrf.mxu0
        %v1205 = vadd.f32 0.0, %v1204
        %v1206 = vpop.f32.mrf.mxu0
        %v1207 = vadd.f32 0.0, %v1206
        %v1208 = vpop.f32.mrf.mxu0
        %v1209 = vadd.f32 0.0, %v1208
        %1210 = vmatprep.mubr.bf16.mxu0 %v819
        %1211 = vmatmul.mubr.bf16.gmra.mxu0 %v818
        %v1212 = vpop.f32.mrf.mxu0
        %v1213 = vadd.f32 0.0, %v1212
        %v1214 = vpop.f32.mrf.mxu0
        %v1215 = vadd.f32 0.0, %v1214
        %v1216 = vpop.f32.mrf.mxu0
        %v1217 = vadd.f32 0.0, %v1216
        %v1218 = vpop.f32.mrf.mxu0
        %v1219 = vadd.f32 0.0, %v1218
        %1220 = vmatprep.mubr.bf16.mxu0 %v821
        %1221 = vmatmul.mubr.bf16.gmra.mxu0 %v820
        %v1222 = vpop.f32.mrf.mxu0
        %v1223 = vadd.f32 0.0, %v1222
        %v1224 = vpop.f32.mrf.mxu0
        %v1225 = vadd.f32 0.0, %v1224
        %v1226 = vpop.f32.mrf.mxu0
        %v1227 = vadd.f32 0.0, %v1226
        %v1228 = vpop.f32.mrf.mxu0
        %v1229 = vadd.f32 0.0, %v1228
        %1230 = vmatprep.mubr.bf16.mxu0 %v823
        %1231 = vmatmul.mubr.bf16.gmra.mxu0 %v822
        %v1232 = vpop.f32.mrf.mxu0
        %v1233 = vadd.f32 0.0, %v1232
        %v1234 = vpop.f32.mrf.mxu0
        %v1235 = vadd.f32 0.0, %v1234
        %v1236 = vpop.f32.mrf.mxu0
        %v1237 = vadd.f32 0.0, %v1236
        %v1238 = vpop.f32.mrf.mxu0
        %v1239 = vadd.f32 0.0, %v1238
        %1240 = vmatprep.mubr.bf16.mxu0 %v825
        %1241 = vmatmul.mubr.bf16.gmra.mxu0 %v824
        %v1242 = vpop.f32.mrf.mxu0
        %v1243 = vadd.f32 0.0, %v1242
        %v1244 = vpop.f32.mrf.mxu0
        %v1245 = vadd.f32 0.0, %v1244
        %v1246 = vpop.f32.mrf.mxu0
        %v1247 = vadd.f32 0.0, %v1246
        %v1248 = vpop.f32.mrf.mxu0
        %v1249 = vadd.f32 0.0, %v1248
        %1250 = vmatprep.mubr.bf16.mxu0 %v827
        %1251 = vmatmul.mubr.bf16.gmra.mxu0 %v826
        %v1252 = vpop.f32.mrf.mxu0
        %v1253 = vadd.f32 0.0, %v1252
        %v1254 = vpop.f32.mrf.mxu0
        %v1255 = vadd.f32 0.0, %v1254
        %v1256 = vpop.f32.mrf.mxu0
        %v1257 = vadd.f32 0.0, %v1256
        %v1258 = vpop.f32.mrf.mxu0
        %v1259 = vadd.f32 0.0, %v1258
        %1260 = vmatprep.mubr.bf16.mxu0 %v829
        %1261 = vmatmul.mubr.bf16.gmra.mxu0 %v828
        %v1262 = vpop.f32.mrf.mxu0
        %v1263 = vadd.f32 0.0, %v1262
        %v1264 = vpop.f32.mrf.mxu0
        %v1265 = vadd.f32 0.0, %v1264
        %v1266 = vpop.f32.mrf.mxu0
        %v1267 = vadd.f32 0.0, %v1266
        %v1268 = vpop.f32.mrf.mxu0
        %v1269 = vadd.f32 0.0, %v1268
        %1270 = vmatprep.mubr.bf16.mxu0 %v831
        %1271 = vmatmul.mubr.bf16.gmra.mxu0 %v830
        %v1272 = vpop.f32.mrf.mxu0
        %v1273 = vadd.f32 0.0, %v1272
        %v1274 = vpop.f32.mrf.mxu0
        %v1275 = vadd.f32 0.0, %v1274
        %v1276 = vpop.f32.mrf.mxu0
        %v1277 = vadd.f32 0.0, %v1276
        %v1278 = vpop.f32.mrf.mxu0
        %v1279 = vadd.f32 0.0, %v1278
        %1280 = vmatprep.mubr.bf16.mxu0 %v833
        %1281 = vmatmul.mubr.bf16.gmra.mxu0 %v832
        %v1282 = vpop.f32.mrf.mxu0
        %v1283 = vadd.f32 0.0, %v1282
        %v1284 = vpop.f32.mrf.mxu0
        %v1285 = vadd.f32 0.0, %v1284
        %v1286 = vpop.f32.mrf.mxu0
        %v1287 = vadd.f32 0.0, %v1286
        %v1288 = vpop.f32.mrf.mxu0
        %v1289 = vadd.f32 0.0, %v1288
        %1290 = vmatprep.mubr.bf16.mxu0 %v835
        %1291 = vmatmul.mubr.bf16.gmra.mxu0 %v834
        %v1292 = vpop.f32.mrf.mxu0
        %v1293 = vadd.f32 0.0, %v1292
        %v1294 = vpop.f32.mrf.mxu0
        %v1295 = vadd.f32 0.0, %v1294
        %v1296 = vpop.f32.mrf.mxu0
        %v1297 = vadd.f32 0.0, %v1296
        %v1298 = vpop.f32.mrf.mxu0
        %v1299 = vadd.f32 0.0, %v1298
        %1300 = vmatprep.mubr.bf16.mxu0 %v837
        %1301 = vmatmul.mubr.bf16.gmra.mxu0 %v836
        %v1302 = vpop.f32.mrf.mxu0
        %v1303 = vadd.f32 0.0, %v1302
        %v1304 = vpop.f32.mrf.mxu0
        %v1305 = vadd.f32 0.0, %v1304
        %v1306 = vpop.f32.mrf.mxu0
        %v1307 = vadd.f32 0.0, %v1306
        %v1308 = vpop.f32.mrf.mxu0
        %v1309 = vadd.f32 0.0, %v1308
        %1310 = vmatprep.mubr.bf16.mxu0 %v839
        %1311 = vmatmul.mubr.bf16.gmra.mxu0 %v838
        %v1312 = vpop.f32.mrf.mxu0
        %v1313 = vadd.f32 0.0, %v1312
        %v1314 = vpop.f32.mrf.mxu0
        %v1315 = vadd.f32 0.0, %v1314
        %v1316 = vpop.f32.mrf.mxu0
        %v1317 = vadd.f32 0.0, %v1316
        %v1318 = vpop.f32.mrf.mxu0
        %v1319 = vadd.f32 0.0, %v1318
        %1320 = vmatprep.mubr.bf16.mxu0 %v841
        %1321 = vmatmul.mubr.bf16.gmra.mxu0 %v840
        %v1322 = vpop.f32.mrf.mxu0
        %v1323 = vadd.f32 0.0, %v1322
        %v1324 = vpop.f32.mrf.mxu0
        %v1325 = vadd.f32 0.0, %v1324
        %v1326 = vpop.f32.mrf.mxu0
        %v1327 = vadd.f32 0.0, %v1326
        %v1328 = vpop.f32.mrf.mxu0
        %v1329 = vadd.f32 0.0, %v1328
        %1330 = vmatprep.mubr.bf16.mxu0 %v843
        %1331 = vmatmul.mubr.bf16.gmra.mxu0 %v842
        %v1332 = vpop.f32.mrf.mxu0
        %v1333 = vadd.f32 0.0, %v1332
        %v1334 = vpop.f32.mrf.mxu0
        %v1335 = vadd.f32 0.0, %v1334
        %v1336 = vpop.f32.mrf.mxu0
        %v1337 = vadd.f32 0.0, %v1336
        %v1338 = vpop.f32.mrf.mxu0
        %v1339 = vadd.f32 0.0, %v1338
        %1340 = vmatprep.mubr.bf16.mxu0 %v845
        %1341 = vmatmul.mubr.bf16.gmra.mxu0 %v844
        %v1342 = vpop.f32.mrf.mxu0
        %v1343 = vadd.f32 0.0, %v1342
        %v1344 = vpop.f32.mrf.mxu0
        %v1345 = vadd.f32 0.0, %v1344
        %v1346 = vpop.f32.mrf.mxu0
        %v1347 = vadd.f32 0.0, %v1346
        %v1348 = vpop.f32.mrf.mxu0
        %v1349 = vadd.f32 0.0, %v1348
        %1350 = vmatprep.mubr.bf16.mxu0 %v847
        %1351 = vmatmul.mubr.bf16.gmra.mxu0 %v846
        %v1352 = vpop.f32.mrf.mxu0
        %v1353 = vadd.f32 0.0, %v1352
        %v1354 = vpop.f32.mrf.mxu0
        %v1355 = vadd.f32 0.0, %v1354
        %v1356 = vpop.f32.mrf.mxu0
        %v1357 = vadd.f32 0.0, %v1356
        %v1358 = vpop.f32.mrf.mxu0
        %v1359 = vadd.f32 0.0, %v1358
        %1360 = vmatprep.mubr.bf16.mxu0 %v849
        %1361 = vmatmul.mubr.bf16.gmra.mxu0 %v848
        %v1362 = vpop.f32.mrf.mxu0
        %v1363 = vadd.f32 0.0, %v1362
        %v1364 = vpop.f32.mrf.mxu0
        %v1365 = vadd.f32 0.0, %v1364
        %v1366 = vpop.f32.mrf.mxu0
        %v1367 = vadd.f32 0.0, %v1366
        %v1368 = vpop.f32.mrf.mxu0
        %v1369 = vadd.f32 0.0, %v1368
        %1370 = vmatprep.mubr.bf16.mxu0 %v851
        %1371 = vmatmul.mubr.bf16.gmra.mxu0 %v850
        %v1372 = vpop.f32.mrf.mxu0
        %v1373 = vadd.f32 0.0, %v1372
        %v1374 = vpop.f32.mrf.mxu0
        %v1375 = vadd.f32 0.0, %v1374
        %v1376 = vpop.f32.mrf.mxu0
        %v1377 = vadd.f32 0.0, %v1376
        %v1378 = vpop.f32.mrf.mxu0
        %v1379 = vadd.f32 0.0, %v1378
        %1380 = vmatprep.mubr.bf16.mxu0 %v853
        %1381 = vmatmul.mubr.bf16.gmra.mxu0 %v852
        %v1382 = vpop.f32.mrf.mxu0
        %v1383 = vadd.f32 0.0, %v1382
        %v1384 = vpop.f32.mrf.mxu0
        %v1385 = vadd.f32 0.0, %v1384
        %v1386 = vpop.f32.mrf.mxu0
        %v1387 = vadd.f32 0.0, %v1386
        %v1388 = vpop.f32.mrf.mxu0
        %v1389 = vadd.f32 0.0, %v1388
        %1390 = vmatprep.mubr.bf16.mxu0 %v855
        %1391 = vmatmul.mubr.bf16.gmra.mxu0 %v854
        %v1392 = vpop.f32.mrf.mxu0
        %v1393 = vadd.f32 0.0, %v1392
        %v1394 = vpop.f32.mrf.mxu0
        %v1395 = vadd.f32 0.0, %v1394
        %v1396 = vpop.f32.mrf.mxu0
        %v1397 = vadd.f32 0.0, %v1396
        %v1398 = vpop.f32.mrf.mxu0
        %v1399 = vadd.f32 0.0, %v1398
        %1400 = vmatprep.mubr.bf16.mxu0 %v857
        %1401 = vmatmul.mubr.bf16.gmra.mxu0 %v856
        %v1402 = vpop.f32.mrf.mxu0
        %v1403 = vadd.f32 0.0, %v1402
        %v1404 = vpop.f32.mrf.mxu0
        %v1405 = vadd.f32 0.0, %v1404
        %v1406 = vpop.f32.mrf.mxu0
        %v1407 = vadd.f32 0.0, %v1406
        %v1408 = vpop.f32.mrf.mxu0
        %v1409 = vadd.f32 0.0, %v1408
        %1410 = vmatprep.mubr.bf16.mxu0 %v859
        %1411 = vmatmul.mubr.bf16.gmra.mxu0 %v858
        %v1412 = vpop.f32.mrf.mxu0
        %v1413 = vadd.f32 0.0, %v1412
        %v1414 = vpop.f32.mrf.mxu0
        %v1415 = vadd.f32 0.0, %v1414
        %v1416 = vpop.f32.mrf.mxu0
        %v1417 = vadd.f32 0.0, %v1416
        %v1418 = vpop.f32.mrf.mxu0
        %v1419 = vadd.f32 0.0, %v1418
        %1420 = vmatprep.mubr.bf16.mxu0 %v861
        %1421 = vmatmul.mubr.bf16.gmra.mxu0 %v860
        %v1422 = vpop.f32.mrf.mxu0
        %v1423 = vadd.f32 0.0, %v1422
        %v1424 = vpop.f32.mrf.mxu0
        %v1425 = vadd.f32 0.0, %v1424
        %v1426 = vpop.f32.mrf.mxu0
        %v1427 = vadd.f32 0.0, %v1426
        %v1428 = vpop.f32.mrf.mxu0
        %v1429 = vadd.f32 0.0, %v1428
        %1430 = vmatprep.mubr.bf16.mxu0 %v863
        %1431 = vmatmul.mubr.bf16.gmra.mxu0 %v862
        %v1432 = vpop.f32.mrf.mxu0
        %v1433 = vadd.f32 0.0, %v1432
        %v1434 = vpop.f32.mrf.mxu0
        %v1435 = vadd.f32 0.0, %v1434
        %v1436 = vpop.f32.mrf.mxu0
        %v1437 = vadd.f32 0.0, %v1436
        %v1438 = vpop.f32.mrf.mxu0
        %v1439 = vadd.f32 0.0, %v1438
        %1440 = vmatprep.mubr.bf16.mxu0 %v865
        %1441 = vmatmul.mubr.bf16.gmra.mxu0 %v864
        %v1442 = vpop.f32.mrf.mxu0
        %v1443 = vadd.f32 0.0, %v1442
        %v1444 = vpop.f32.mrf.mxu0
        %v1445 = vadd.f32 0.0, %v1444
        %v1446 = vpop.f32.mrf.mxu0
        %v1447 = vadd.f32 0.0, %v1446
        %v1448 = vpop.f32.mrf.mxu0
        %v1449 = vadd.f32 0.0, %v1448
        %1450 = vmatprep.mubr.bf16.mxu0 %v867
        %1451 = vmatmul.mubr.bf16.gmra.mxu0 %v866
        %v1452 = vpop.f32.mrf.mxu0
        %v1453 = vadd.f32 0.0, %v1452
        %v1454 = vpop.f32.mrf.mxu0
        %v1455 = vadd.f32 0.0, %v1454
        %v1456 = vpop.f32.mrf.mxu0
        %v1457 = vadd.f32 0.0, %v1456
        %v1458 = vpop.f32.mrf.mxu0
        %v1459 = vadd.f32 0.0, %v1458
        %1460 = vmatprep.mubr.bf16.mxu0 %v869
        %1461 = vmatmul.mubr.bf16.gmra.mxu0 %v868
        %v1462 = vpop.f32.mrf.mxu0
        %v1463 = vadd.f32 0.0, %v1462
        %v1464 = vpop.f32.mrf.mxu0
        %v1465 = vadd.f32 0.0, %v1464
        %v1466 = vpop.f32.mrf.mxu0
        %v1467 = vadd.f32 0.0, %v1466
        %v1468 = vpop.f32.mrf.mxu0
        %v1469 = vadd.f32 0.0, %v1468
        %1470 = vmatprep.mubr.bf16.mxu0 %v871
        %1471 = vmatmul.mubr.bf16.gmra.mxu0 %v870
        %v1472 = vpop.f32.mrf.mxu0
        %v1473 = vadd.f32 0.0, %v1472
        %v1474 = vpop.f32.mrf.mxu0
        %v1475 = vadd.f32 0.0, %v1474
        %v1476 = vpop.f32.mrf.mxu0
        %v1477 = vadd.f32 0.0, %v1476
        %v1478 = vpop.f32.mrf.mxu0
        %v1479 = vadd.f32 0.0, %v1478
        %1480 = vmatprep.mubr.bf16.mxu0 %v873
        %1481 = vmatmul.mubr.bf16.gmra.mxu0 %v872
        %v1482 = vpop.f32.mrf.mxu0
        %v1483 = vadd.f32 0.0, %v1482
        %v1484 = vpop.f32.mrf.mxu0
        %v1485 = vadd.f32 0.0, %v1484
        %v1486 = vpop.f32.mrf.mxu0
        %v1487 = vadd.f32 0.0, %v1486
        %v1488 = vpop.f32.mrf.mxu0
        %v1489 = vadd.f32 0.0, %v1488
        %1490 = vmatprep.mubr.bf16.mxu0 %v875
        %1491 = vmatmul.mubr.bf16.gmra.mxu0 %v874
        %v1492 = vpop.f32.mrf.mxu0
        %v1493 = vadd.f32 0.0, %v1492
        %v1494 = vpop.f32.mrf.mxu0
        %v1495 = vadd.f32 0.0, %v1494
        %v1496 = vpop.f32.mrf.mxu0
        %v1497 = vadd.f32 0.0, %v1496
        %v1498 = vpop.f32.mrf.mxu0
        %v1499 = vadd.f32 0.0, %v1498
        %1500 = vmatprep.mubr.bf16.mxu0 %v877
        %1501 = vmatmul.mubr.bf16.gmra.mxu0 %v876
        %v1502 = vpop.f32.mrf.mxu0
        %v1503 = vadd.f32 0.0, %v1502
        %v1504 = vpop.f32.mrf.mxu0
        %v1505 = vadd.f32 0.0, %v1504
        %v1506 = vpop.f32.mrf.mxu0
        %v1507 = vadd.f32 0.0, %v1506
        %v1508 = vpop.f32.mrf.mxu0
        %v1509 = vadd.f32 0.0, %v1508
        %1510 = vmatprep.mubr.bf16.mxu0 %v879
        %1511 = vmatmul.mubr.bf16.gmra.mxu0 %v878
        %v1512 = vpop.f32.mrf.mxu0
        %v1513 = vadd.f32 0.0, %v1512
        %v1514 = vpop.f32.mrf.mxu0
        %v1515 = vadd.f32 0.0, %v1514
        %v1516 = vpop.f32.mrf.mxu0
        %v1517 = vadd.f32 0.0, %v1516
        %v1518 = vpop.f32.mrf.mxu0
        %v1519 = vadd.f32 0.0, %v1518
        %1520 = vmatprep.mubr.bf16.mxu0 %v881
        %1521 = vmatmul.mubr.bf16.gmra.mxu0 %v880
        %v1522 = vpop.f32.mrf.mxu0
        %v1523 = vadd.f32 0.0, %v1522
        %v1524 = vpop.f32.mrf.mxu0
        %v1525 = vadd.f32 0.0, %v1524
        %v1526 = vpop.f32.mrf.mxu0
        %v1527 = vadd.f32 0.0, %v1526
        %v1528 = vpop.f32.mrf.mxu0
        %v1529 = vadd.f32 0.0, %v1528
        %1530 = vmatprep.mubr.bf16.mxu0 %v883
        %1531 = vmatmul.mubr.bf16.gmra.mxu0 %v882
        %v1532 = vpop.f32.mrf.mxu0
        %v1533 = vadd.f32 0.0, %v1532
        %v1534 = vpop.f32.mrf.mxu0
        %v1535 = vadd.f32 0.0, %v1534
        %v1536 = vpop.f32.mrf.mxu0
        %v1537 = vadd.f32 0.0, %v1536
        %v1538 = vpop.f32.mrf.mxu0
        %v1539 = vadd.f32 0.0, %v1538
        %1540 = vmatprep.mubr.bf16.mxu0 %v885
        %1541 = vmatmul.mubr.bf16.gmra.mxu0 %v884
        %v1542 = vpop.f32.mrf.mxu0
        %v1543 = vadd.f32 0.0, %v1542
        %v1544 = vpop.f32.mrf.mxu0
        %v1545 = vadd.f32 0.0, %v1544
        %v1546 = vpop.f32.mrf.mxu0
        %v1547 = vadd.f32 0.0, %v1546
        %v1548 = vpop.f32.mrf.mxu0
        %v1549 = vadd.f32 0.0, %v1548
        %1550 = vmatprep.mubr.bf16.mxu0 %v887
        %1551 = vmatmul.mubr.bf16.gmra.mxu0 %v886
        %v1552 = vpop.f32.mrf.mxu0
        %v1553 = vadd.f32 0.0, %v1552
        %v1554 = vpop.f32.mrf.mxu0
        %v1555 = vadd.f32 0.0, %v1554
        %v1556 = vpop.f32.mrf.mxu0
        %v1557 = vadd.f32 0.0, %v1556
        %v1558 = vpop.f32.mrf.mxu0
        %v1559 = vadd.f32 0.0, %v1558
        %1560 = vmatprep.mubr.bf16.mxu0 %v889
        %1561 = vmatmul.mubr.bf16.gmra.mxu0 %v888
        %v1562 = vpop.f32.mrf.mxu0
        %v1563 = vadd.f32 0.0, %v1562
        %v1564 = vpop.f32.mrf.mxu0
        %v1565 = vadd.f32 0.0, %v1564
        %v1566 = vpop.f32.mrf.mxu0
        %v1567 = vadd.f32 0.0, %v1566
        %v1568 = vpop.f32.mrf.mxu0
        %v1569 = vadd.f32 0.0, %v1568
        %1570 = vmatprep.mubr.bf16.mxu0 %v891
        %1571 = vmatmul.mubr.bf16.gmra.mxu0 %v890
        %v1572 = vpop.f32.mrf.mxu0
        %v1573 = vadd.f32 0.0, %v1572
        %v1574 = vpop.f32.mrf.mxu0
        %v1575 = vadd.f32 0.0, %v1574
        %v1576 = vpop.f32.mrf.mxu0
        %v1577 = vadd.f32 0.0, %v1576
        %v1578 = vpop.f32.mrf.mxu0
        %v1579 = vadd.f32 0.0, %v1578
        %1580 = vmatprep.mubr.bf16.mxu0 %v893
        %1581 = vmatmul.mubr.bf16.gmra.mxu0 %v892
        %v1582 = vpop.f32.mrf.mxu0
        %v1583 = vadd.f32 0.0, %v1582
        %v1584 = vpop.f32.mrf.mxu0
        %v1585 = vadd.f32 0.0, %v1584
        %v1586 = vpop.f32.mrf.mxu0
        %v1587 = vadd.f32 0.0, %v1586
        %v1588 = vpop.f32.mrf.mxu0
        %v1589 = vadd.f32 0.0, %v1588
        %1590 = vmatprep.mubr.bf16.mxu0 %v895
        %1591 = vmatmul.mubr.bf16.gmra.mxu0 %v894
        %v1592 = vpop.f32.mrf.mxu0
        %v1593 = vadd.f32 0.0, %v1592
        %v1594 = vpop.f32.mrf.mxu0
        %v1595 = vadd.f32 0.0, %v1594
        %v1596 = vpop.f32.mrf.mxu0
        %v1597 = vadd.f32 0.0, %v1596
        %v1598 = vpop.f32.mrf.mxu0
        %v1599 = vadd.f32 0.0, %v1598
        %1600 = vmatprep.mubr.bf16.mxu0 %v897
        %1601 = vmatmul.mubr.bf16.gmra.mxu0 %v896
        %v1602 = vpop.f32.mrf.mxu0
        %v1603 = vadd.f32 0.0, %v1602
        %v1604 = vpop.f32.mrf.mxu0
        %v1605 = vadd.f32 0.0, %v1604
        %v1606 = vpop.f32.mrf.mxu0
        %v1607 = vadd.f32 0.0, %v1606
        %v1608 = vpop.f32.mrf.mxu0
        %v1609 = vadd.f32 0.0, %v1608
        %1610 = vmatprep.mubr.bf16.mxu0 %v899
        %1611 = vmatmul.mubr.bf16.gmra.mxu0 %v898
        %v1612 = vpop.f32.mrf.mxu0
        %v1613 = vadd.f32 0.0, %v1612
        %v1614 = vpop.f32.mrf.mxu0
        %v1615 = vadd.f32 0.0, %v1614
        %v1616 = vpop.f32.mrf.mxu0
        %v1617 = vadd.f32 0.0, %v1616
        %v1618 = vpop.f32.mrf.mxu0
        %v1619 = vadd.f32 0.0, %v1618
        %1620 = vmatprep.mubr.bf16.mxu0 %v901
        %1621 = vmatmul.mubr.bf16.gmra.mxu0 %v900
        %v1622 = vpop.f32.mrf.mxu0
        %v1623 = vadd.f32 0.0, %v1622
        %v1624 = vpop.f32.mrf.mxu0
        %v1625 = vadd.f32 0.0, %v1624
        %v1626 = vpop.f32.mrf.mxu0
        %v1627 = vadd.f32 0.0, %v1626
        %v1628 = vpop.f32.mrf.mxu0
        %v1629 = vadd.f32 0.0, %v1628
        %1630 = vmatprep.mubr.bf16.mxu0 %v903
        %1631 = vmatmul.mubr.bf16.gmra.mxu0 %v902
        %v1632 = vpop.f32.mrf.mxu0
        %v1633 = vadd.f32 0.0, %v1632
        %v1634 = vpop.f32.mrf.mxu0
        %v1635 = vadd.f32 0.0, %v1634
        %v1636 = vpop.f32.mrf.mxu0
        %v1637 = vadd.f32 0.0, %v1636
        %v1638 = vpop.f32.mrf.mxu0
        %v1639 = vadd.f32 0.0, %v1638
        %1640 = vmatprep.mubr.bf16.mxu0 %v905
        %1641 = vmatmul.mubr.bf16.gmra.mxu0 %v904
        %v1642 = vpop.f32.mrf.mxu0
        %v1643 = vadd.f32 0.0, %v1642
        %v1644 = vpop.f32.mrf.mxu0
        %v1645 = vadd.f32 0.0, %v1644
        %v1646 = vpop.f32.mrf.mxu0
        %v1647 = vadd.f32 0.0, %v1646
        %v1648 = vpop.f32.mrf.mxu0
        %v1649 = vadd.f32 0.0, %v1648
        %1650 = vmatprep.mubr.bf16.mxu0 %v907
        %1651 = vmatmul.mubr.bf16.gmra.mxu0 %v906
        %v1652 = vpop.f32.mrf.mxu0
        %v1653 = vadd.f32 0.0, %v1652
        %v1654 = vpop.f32.mrf.mxu0
        %v1655 = vadd.f32 0.0, %v1654
        %v1656 = vpop.f32.mrf.mxu0
        %v1657 = vadd.f32 0.0, %v1656
        %v1658 = vpop.f32.mrf.mxu0
        %v1659 = vadd.f32 0.0, %v1658
        %1660 = vmatprep.mubr.bf16.mxu0 %v909
        %1661 = vmatmul.mubr.bf16.gmra.mxu0 %v908
        %v1662 = vpop.f32.mrf.mxu0
        %v1663 = vadd.f32 0.0, %v1662
        %v1664 = vpop.f32.mrf.mxu0
        %v1665 = vadd.f32 0.0, %v1664
        %v1666 = vpop.f32.mrf.mxu0
        %v1667 = vadd.f32 0.0, %v1666
        %v1668 = vpop.f32.mrf.mxu0
        %v1669 = vadd.f32 0.0, %v1668
        %1670 = vmatprep.mubr.bf16.mxu0 %v911
        %1671 = vmatmul.mubr.bf16.gmra.mxu0 %v910
        %v1672 = vpop.f32.mrf.mxu0
        %v1673 = vadd.f32 0.0, %v1672
        %v1674 = vpop.f32.mrf.mxu0
        %v1675 = vadd.f32 0.0, %v1674
        %v1676 = vpop.f32.mrf.mxu0
        %v1677 = vadd.f32 0.0, %v1676
        %v1678 = vpop.f32.mrf.mxu0
        %v1679 = vadd.f32 0.0, %v1678
        %1680 = vdwg.mxu0
        %v1681 = vpack.c.bf16 %v1207, %v1203
        %v1682 = vpack.c.bf16 %v1209, %v1205
        %v1683 = vpack.c.bf16 %v1217, %v1213
        %v1684 = vpack.c.bf16 %v1219, %v1215
        %v1685 = vpack.c.bf16 %v1227, %v1223
        %v1686 = vpack.c.bf16 %v1229, %v1225
        %v1687 = vpack.c.bf16 %v1237, %v1233
        %v1688 = vpack.c.bf16 %v1239, %v1235
        %v1689 = vpack.c.bf16 %v1247, %v1243
        %v1690 = vpack.c.bf16 %v1249, %v1245
        %v1691 = vpack.c.bf16 %v1257, %v1253
        %v1692 = vpack.c.bf16 %v1259, %v1255
        %v1693 = vpack.c.bf16 %v1267, %v1263
        %v1694 = vpack.c.bf16 %v1269, %v1265
        %v1695 = vpack.c.bf16 %v1277, %v1273
        %v1696 = vpack.c.bf16 %v1279, %v1275
        %v1697 = vpack.c.bf16 %v1287, %v1283
        %v1698 = vpack.c.bf16 %v1289, %v1285
        %v1699 = vpack.c.bf16 %v1297, %v1293
        %v1700 = vpack.c.bf16 %v1299, %v1295
        %v1701 = vpack.c.bf16 %v1307, %v1303
        %v1702 = vpack.c.bf16 %v1309, %v1305
        %v1703 = vpack.c.bf16 %v1317, %v1313
        %v1704 = vpack.c.bf16 %v1319, %v1315
        %v1705 = vpack.c.bf16 %v1327, %v1323
        %v1706 = vpack.c.bf16 %v1329, %v1325
        %v1707 = vpack.c.bf16 %v1337, %v1333
        %v1708 = vpack.c.bf16 %v1339, %v1335
        %v1709 = vpack.c.bf16 %v1347, %v1343
        %v1710 = vpack.c.bf16 %v1349, %v1345
        %v1711 = vpack.c.bf16 %v1357, %v1353
        %v1712 = vpack.c.bf16 %v1359, %v1355
        %v1713 = vpack.c.bf16 %v1367, %v1363
        %v1714 = vpack.c.bf16 %v1369, %v1365
        %v1715 = vpack.c.bf16 %v1377, %v1373
        %v1716 = vpack.c.bf16 %v1379, %v1375
        %v1717 = vpack.c.bf16 %v1387, %v1383
        %v1718 = vpack.c.bf16 %v1389, %v1385
        %v1719 = vpack.c.bf16 %v1397, %v1393
        %v1720 = vpack.c.bf16 %v1399, %v1395
        %v1721 = vpack.c.bf16 %v1407, %v1403
        %v1722 = vpack.c.bf16 %v1409, %v1405
        %v1723 = vpack.c.bf16 %v1417, %v1413
        %v1724 = vpack.c.bf16 %v1419, %v1415
        %v1725 = vpack.c.bf16 %v1427, %v1423
        %v1726 = vpack.c.bf16 %v1429, %v1425
        %v1727 = vpack.c.bf16 %v1437, %v1433
        %v1728 = vpack.c.bf16 %v1439, %v1435
        %v1729 = vpack.c.bf16 %v1447, %v1443
        %v1730 = vpack.c.bf16 %v1449, %v1445
        %v1731 = vpack.c.bf16 %v1457, %v1453
        %v1732 = vpack.c.bf16 %v1459, %v1455
        %v1733 = vpack.c.bf16 %v1467, %v1463
        %v1734 = vpack.c.bf16 %v1469, %v1465
        %v1735 = vpack.c.bf16 %v1477, %v1473
        %v1736 = vpack.c.bf16 %v1479, %v1475
        %v1737 = vpack.c.bf16 %v1487, %v1483
        %v1738 = vpack.c.bf16 %v1489, %v1485
        %v1739 = vpack.c.bf16 %v1497, %v1493
        %v1740 = vpack.c.bf16 %v1499, %v1495
        %v1741 = vpack.c.bf16 %v1507, %v1503
        %v1742 = vpack.c.bf16 %v1509, %v1505
        %v1743 = vpack.c.bf16 %v1517, %v1513
        %v1744 = vpack.c.bf16 %v1519, %v1515
        %v1745 = vpack.c.bf16 %v1527, %v1523
        %v1746 = vpack.c.bf16 %v1529, %v1525
        %v1747 = vpack.c.bf16 %v1537, %v1533
        %v1748 = vpack.c.bf16 %v1539, %v1535
        %v1749 = vpack.c.bf16 %v1547, %v1543
        %v1750 = vpack.c.bf16 %v1549, %v1545
        %v1751 = vpack.c.bf16 %v1557, %v1553
        %v1752 = vpack.c.bf16 %v1559, %v1555
        %v1753 = vpack.c.bf16 %v1567, %v1563
        %v1754 = vpack.c.bf16 %v1569, %v1565
        %v1755 = vpack.c.bf16 %v1577, %v1573
        %v1756 = vpack.c.bf16 %v1579, %v1575
        %v1757 = vpack.c.bf16 %v1587, %v1583
        %v1758 = vpack.c.bf16 %v1589, %v1585
        %v1759 = vpack.c.bf16 %v1597, %v1593
        %v1760 = vpack.c.bf16 %v1599, %v1595
        %v1761 = vpack.c.bf16 %v1607, %v1603
        %v1762 = vpack.c.bf16 %v1609, %v1605
        %v1763 = vpack.c.bf16 %v1617, %v1613
        %v1764 = vpack.c.bf16 %v1619, %v1615
        %v1765 = vpack.c.bf16 %v1627, %v1623
        %v1766 = vpack.c.bf16 %v1629, %v1625
        %v1767 = vpack.c.bf16 %v1637, %v1633
        %v1768 = vpack.c.bf16 %v1639, %v1635
        %v1769 = vpack.c.bf16 %v1647, %v1643
        %v1770 = vpack.c.bf16 %v1649, %v1645
        %v1771 = vpack.c.bf16 %v1657, %v1653
        %v1772 = vpack.c.bf16 %v1659, %v1655
        %v1773 = vpack.c.bf16 %v1667, %v1663
        %v1774 = vpack.c.bf16 %v1669, %v1665
        %v1775 = vpack.c.bf16 %v1677, %v1673
        %v1776 = vpack.c.bf16 %v1679, %v1675
        %v1873 = vunpack.c.l.b16 %v1681
        %v1874 = vunpack.c.l.b16 %v1682
        %v1875 = vunpack.c.h.b16 %v1681
        %v1876 = vunpack.c.h.b16 %v1682
        %v1877 = vunpack.c.l.b16 %v1683
        %v1878 = vunpack.c.l.b16 %v1684
        %v1879 = vunpack.c.h.b16 %v1683
        %v1880 = vunpack.c.h.b16 %v1684
        %v1881 = vunpack.c.l.b16 %v1685
        %v1882 = vunpack.c.l.b16 %v1686
        %v1883 = vunpack.c.h.b16 %v1685
        %v1884 = vunpack.c.h.b16 %v1686
        %v1885 = vunpack.c.l.b16 %v1687
        %v1886 = vunpack.c.l.b16 %v1688
        %v1887 = vunpack.c.h.b16 %v1687
        %v1888 = vunpack.c.h.b16 %v1688
        %v1889 = vunpack.c.l.b16 %v1689
        %v1890 = vunpack.c.l.b16 %v1690
        %v1891 = vunpack.c.h.b16 %v1689
        %v1892 = vunpack.c.h.b16 %v1690
        %v1893 = vunpack.c.l.b16 %v1691
        %v1894 = vunpack.c.l.b16 %v1692
        %v1895 = vunpack.c.h.b16 %v1691
        %v1896 = vunpack.c.h.b16 %v1692
        %v1897 = vunpack.c.l.b16 %v1693
        %v1898 = vunpack.c.l.b16 %v1694
        %v1899 = vunpack.c.h.b16 %v1693
        %v1900 = vunpack.c.h.b16 %v1694
        %v1901 = vunpack.c.l.b16 %v1695
        %v1902 = vunpack.c.l.b16 %v1696
        %v1903 = vunpack.c.h.b16 %v1695
        %v1904 = vunpack.c.h.b16 %v1696
        %v1905 = vunpack.c.l.b16 %v1697
        %v1906 = vunpack.c.l.b16 %v1698
        %v1907 = vunpack.c.h.b16 %v1697
        %v1908 = vunpack.c.h.b16 %v1698
        %v1909 = vunpack.c.l.b16 %v1699
        %v1910 = vunpack.c.l.b16 %v1700
        %v1911 = vunpack.c.h.b16 %v1699
        %v1912 = vunpack.c.h.b16 %v1700
        %v1913 = vunpack.c.l.b16 %v1701
        %v1914 = vunpack.c.l.b16 %v1702
        %v1915 = vunpack.c.h.b16 %v1701
        %v1916 = vunpack.c.h.b16 %v1702
        %v1917 = vunpack.c.l.b16 %v1703
        %v1918 = vunpack.c.l.b16 %v1704
        %v1919 = vunpack.c.h.b16 %v1703
        %v1920 = vunpack.c.h.b16 %v1704
        %v1921 = vunpack.c.l.b16 %v1705
        %v1922 = vunpack.c.l.b16 %v1706
        %v1923 = vunpack.c.h.b16 %v1705
        %v1924 = vunpack.c.h.b16 %v1706
        %v1925 = vunpack.c.l.b16 %v1707
        %v1926 = vunpack.c.l.b16 %v1708
        %v1927 = vunpack.c.h.b16 %v1707
        %v1928 = vunpack.c.h.b16 %v1708
        %v1929 = vunpack.c.l.b16 %v1709
        %v1930 = vunpack.c.l.b16 %v1710
        %v1931 = vunpack.c.h.b16 %v1709
        %v1932 = vunpack.c.h.b16 %v1710
        %v1933 = vunpack.c.l.b16 %v1711
        %v1934 = vunpack.c.l.b16 %v1712
        %v1935 = vunpack.c.h.b16 %v1711
        %v1936 = vunpack.c.h.b16 %v1712
        %v1937 = vunpack.c.l.b16 %v1713
        %v1938 = vunpack.c.l.b16 %v1714
        %v1939 = vunpack.c.h.b16 %v1713
        %v1940 = vunpack.c.h.b16 %v1714
        %v1941 = vunpack.c.l.b16 %v1715
        %v1942 = vunpack.c.l.b16 %v1716
        %v1943 = vunpack.c.h.b16 %v1715
        %v1944 = vunpack.c.h.b16 %v1716
        %v1945 = vunpack.c.l.b16 %v1717
        %v1946 = vunpack.c.l.b16 %v1718
        %v1947 = vunpack.c.h.b16 %v1717
        %v1948 = vunpack.c.h.b16 %v1718
        %v1949 = vunpack.c.l.b16 %v1719
        %v1950 = vunpack.c.l.b16 %v1720
        %v1951 = vunpack.c.h.b16 %v1719
        %v1952 = vunpack.c.h.b16 %v1720
        %v1953 = vunpack.c.l.b16 %v1721
        %v1954 = vunpack.c.l.b16 %v1722
        %v1955 = vunpack.c.h.b16 %v1721
        %v1956 = vunpack.c.h.b16 %v1722
        %v1957 = vunpack.c.l.b16 %v1723
        %v1958 = vunpack.c.l.b16 %v1724
        %v1959 = vunpack.c.h.b16 %v1723
        %v1960 = vunpack.c.h.b16 %v1724
        %v1961 = vunpack.c.l.b16 %v1725
        %v1962 = vunpack.c.l.b16 %v1726
        %v1963 = vunpack.c.h.b16 %v1725
        %v1964 = vunpack.c.h.b16 %v1726
        %v1965 = vunpack.c.l.b16 %v1727
        %v1966 = vunpack.c.l.b16 %v1728
        %v1967 = vunpack.c.h.b16 %v1727
        %v1968 = vunpack.c.h.b16 %v1728
        %v1969 = vunpack.c.l.b16 %v1729
        %v1970 = vunpack.c.l.b16 %v1730
        %v1971 = vunpack.c.h.b16 %v1729
        %v1972 = vunpack.c.h.b16 %v1730
        %v1973 = vunpack.c.l.b16 %v1731
        %v1974 = vunpack.c.l.b16 %v1732
        %v1975 = vunpack.c.h.b16 %v1731
        %v1976 = vunpack.c.h.b16 %v1732
        %v1977 = vunpack.c.l.b16 %v1733
        %v1978 = vunpack.c.l.b16 %v1734
        %v1979 = vunpack.c.h.b16 %v1733
        %v1980 = vunpack.c.h.b16 %v1734
        %v1981 = vunpack.c.l.b16 %v1735
        %v1982 = vunpack.c.l.b16 %v1736
        %v1983 = vunpack.c.h.b16 %v1735
        %v1984 = vunpack.c.h.b16 %v1736
        %v1985 = vunpack.c.l.b16 %v1737
        %v1986 = vunpack.c.l.b16 %v1738
        %v1987 = vunpack.c.h.b16 %v1737
        %v1988 = vunpack.c.h.b16 %v1738
        %v1989 = vunpack.c.l.b16 %v1739
        %v1990 = vunpack.c.l.b16 %v1740
        %v1991 = vunpack.c.h.b16 %v1739
        %v1992 = vunpack.c.h.b16 %v1740
        %v1993 = vunpack.c.l.b16 %v1741
        %v1994 = vunpack.c.l.b16 %v1742
        %v1995 = vunpack.c.h.b16 %v1741
        %v1996 = vunpack.c.h.b16 %v1742
        %v1997 = vunpack.c.l.b16 %v1743
        %v1998 = vunpack.c.l.b16 %v1744
        %v1999 = vunpack.c.h.b16 %v1743
        %v2000 = vunpack.c.h.b16 %v1744
        %v2001 = vunpack.c.l.b16 %v1745
        %v2002 = vunpack.c.l.b16 %v1746
        %v2003 = vunpack.c.h.b16 %v1745
        %v2004 = vunpack.c.h.b16 %v1746
        %v2005 = vunpack.c.l.b16 %v1747
        %v2006 = vunpack.c.l.b16 %v1748
        %v2007 = vunpack.c.h.b16 %v1747
        %v2008 = vunpack.c.h.b16 %v1748
        %v2009 = vunpack.c.l.b16 %v1749
        %v2010 = vunpack.c.l.b16 %v1750
        %v2011 = vunpack.c.h.b16 %v1749
        %v2012 = vunpack.c.h.b16 %v1750
        %v2013 = vunpack.c.l.b16 %v1751
        %v2014 = vunpack.c.l.b16 %v1752
        %v2015 = vunpack.c.h.b16 %v1751
        %v2016 = vunpack.c.h.b16 %v1752
        %v2017 = vunpack.c.l.b16 %v1753
        %v2018 = vunpack.c.l.b16 %v1754
        %v2019 = vunpack.c.h.b16 %v1753
        %v2020 = vunpack.c.h.b16 %v1754
        %v2021 = vunpack.c.l.b16 %v1755
        %v2022 = vunpack.c.l.b16 %v1756
        %v2023 = vunpack.c.h.b16 %v1755
        %v2024 = vunpack.c.h.b16 %v1756
        %v2025 = vunpack.c.l.b16 %v1757
        %v2026 = vunpack.c.l.b16 %v1758
        %v2027 = vunpack.c.h.b16 %v1757
        %v2028 = vunpack.c.h.b16 %v1758
        %v2029 = vunpack.c.l.b16 %v1759
        %v2030 = vunpack.c.l.b16 %v1760
        %v2031 = vunpack.c.h.b16 %v1759
        %v2032 = vunpack.c.h.b16 %v1760
        %v2033 = vunpack.c.l.b16 %v1761
        %v2034 = vunpack.c.l.b16 %v1762
        %v2035 = vunpack.c.h.b16 %v1761
        %v2036 = vunpack.c.h.b16 %v1762
        %v2037 = vunpack.c.l.b16 %v1763
        %v2038 = vunpack.c.l.b16 %v1764
        %v2039 = vunpack.c.h.b16 %v1763
        %v2040 = vunpack.c.h.b16 %v1764
        %v2041 = vunpack.c.l.b16 %v1765
        %v2042 = vunpack.c.l.b16 %v1766
        %v2043 = vunpack.c.h.b16 %v1765
        %v2044 = vunpack.c.h.b16 %v1766
        %v2045 = vunpack.c.l.b16 %v1767
        %v2046 = vunpack.c.l.b16 %v1768
        %v2047 = vunpack.c.h.b16 %v1767
        %v2048 = vunpack.c.h.b16 %v1768
        %v2049 = vunpack.c.l.b16 %v1769
        %v2050 = vunpack.c.l.b16 %v1770
        %v2051 = vunpack.c.h.b16 %v1769
        %v2052 = vunpack.c.h.b16 %v1770
        %v2053 = vunpack.c.l.b16 %v1771
        %v2054 = vunpack.c.l.b16 %v1772
        %v2055 = vunpack.c.h.b16 %v1771
        %v2056 = vunpack.c.h.b16 %v1772
        %v2057 = vunpack.c.l.b16 %v1773
        %v2058 = vunpack.c.l.b16 %v1774
        %v2059 = vunpack.c.h.b16 %v1773
        %v2060 = vunpack.c.h.b16 %v1774
        %v2061 = vunpack.c.l.b16 %v1775
        %v2062 = vunpack.c.l.b16 %v1776
        %v2063 = vunpack.c.h.b16 %v1775
        %v2064 = vunpack.c.h.b16 %v1776
        %v2065 = vpack.c.b16 %v1874, %v1873
        %v2066 = vpack.c.b16 %v1876, %v1875
        %v2067 = vpack.c.b16 %v1878, %v1877
        %v2068 = vpack.c.b16 %v1880, %v1879
        %v2069 = vpack.c.b16 %v1882, %v1881
        %v2070 = vpack.c.b16 %v1884, %v1883
        %v2071 = vpack.c.b16 %v1886, %v1885
        %v2072 = vpack.c.b16 %v1888, %v1887
        %v2073 = vpack.c.b16 %v1890, %v1889
        %v2074 = vpack.c.b16 %v1892, %v1891
        %v2075 = vpack.c.b16 %v1894, %v1893
        %v2076 = vpack.c.b16 %v1896, %v1895
        %v2077 = vpack.c.b16 %v1898, %v1897
        %v2078 = vpack.c.b16 %v1900, %v1899
        %v2079 = vpack.c.b16 %v1902, %v1901
        %v2080 = vpack.c.b16 %v1904, %v1903
        %v2081 = vpack.c.b16 %v1906, %v1905
        %v2082 = vpack.c.b16 %v1908, %v1907
        %v2083 = vpack.c.b16 %v1910, %v1909
        %v2084 = vpack.c.b16 %v1912, %v1911
        %v2085 = vpack.c.b16 %v1914, %v1913
        %v2086 = vpack.c.b16 %v1916, %v1915
        %v2087 = vpack.c.b16 %v1918, %v1917
        %v2088 = vpack.c.b16 %v1920, %v1919
        %v2089 = vpack.c.b16 %v1922, %v1921
        %v2090 = vpack.c.b16 %v1924, %v1923
        %v2091 = vpack.c.b16 %v1926, %v1925
        %v2092 = vpack.c.b16 %v1928, %v1927
        %v2093 = vpack.c.b16 %v1930, %v1929
        %v2094 = vpack.c.b16 %v1932, %v1931
        %v2095 = vpack.c.b16 %v1934, %v1933
        %v2096 = vpack.c.b16 %v1936, %v1935
        %v2097 = vpack.c.b16 %v1938, %v1937
        %v2098 = vpack.c.b16 %v1940, %v1939
        %v2099 = vpack.c.b16 %v1942, %v1941
        %v2100 = vpack.c.b16 %v1944, %v1943
        %v2101 = vpack.c.b16 %v1946, %v1945
        %v2102 = vpack.c.b16 %v1948, %v1947
        %v2103 = vpack.c.b16 %v1950, %v1949
        %v2104 = vpack.c.b16 %v1952, %v1951
        %v2105 = vpack.c.b16 %v1954, %v1953
        %v2106 = vpack.c.b16 %v1956, %v1955
        %v2107 = vpack.c.b16 %v1958, %v1957
        %v2108 = vpack.c.b16 %v1960, %v1959
        %v2109 = vpack.c.b16 %v1962, %v1961
        %v2110 = vpack.c.b16 %v1964, %v1963
        %v2111 = vpack.c.b16 %v1966, %v1965
        %v2112 = vpack.c.b16 %v1968, %v1967
        %v2113 = vpack.c.b16 %v1970, %v1969
        %v2114 = vpack.c.b16 %v1972, %v1971
        %v2115 = vpack.c.b16 %v1974, %v1973
        %v2116 = vpack.c.b16 %v1976, %v1975
        %v2117 = vpack.c.b16 %v1978, %v1977
        %v2118 = vpack.c.b16 %v1980, %v1979
        %v2119 = vpack.c.b16 %v1982, %v1981
        %v2120 = vpack.c.b16 %v1984, %v1983
        %v2121 = vpack.c.b16 %v1986, %v1985
        %v2122 = vpack.c.b16 %v1988, %v1987
        %v2123 = vpack.c.b16 %v1990, %v1989
        %v2124 = vpack.c.b16 %v1992, %v1991
        %v2125 = vpack.c.b16 %v1994, %v1993
        %v2126 = vpack.c.b16 %v1996, %v1995
        %v2127 = vpack.c.b16 %v1998, %v1997
        %v2128 = vpack.c.b16 %v2000, %v1999
        %v2129 = vpack.c.b16 %v2002, %v2001
        %v2130 = vpack.c.b16 %v2004, %v2003
        %v2131 = vpack.c.b16 %v2006, %v2005
        %v2132 = vpack.c.b16 %v2008, %v2007
        %v2133 = vpack.c.b16 %v2010, %v2009
        %v2134 = vpack.c.b16 %v2012, %v2011
        %v2135 = vpack.c.b16 %v2014, %v2013
        %v2136 = vpack.c.b16 %v2016, %v2015
        %v2137 = vpack.c.b16 %v2018, %v2017
        %v2138 = vpack.c.b16 %v2020, %v2019
        %v2139 = vpack.c.b16 %v2022, %v2021
        %v2140 = vpack.c.b16 %v2024, %v2023
        %v2141 = vpack.c.b16 %v2026, %v2025
        %v2142 = vpack.c.b16 %v2028, %v2027
        %v2143 = vpack.c.b16 %v2030, %v2029
        %v2144 = vpack.c.b16 %v2032, %v2031
        %v2145 = vpack.c.b16 %v2034, %v2033
        %v2146 = vpack.c.b16 %v2036, %v2035
        %v2147 = vpack.c.b16 %v2038, %v2037
        %v2148 = vpack.c.b16 %v2040, %v2039
        %v2149 = vpack.c.b16 %v2042, %v2041
        %v2150 = vpack.c.b16 %v2044, %v2043
        %v2151 = vpack.c.b16 %v2046, %v2045
        %v2152 = vpack.c.b16 %v2048, %v2047
        %v2153 = vpack.c.b16 %v2050, %v2049
        %v2154 = vpack.c.b16 %v2052, %v2051
        %v2155 = vpack.c.b16 %v2054, %v2053
        %v2156 = vpack.c.b16 %v2056, %v2055
        %v2157 = vpack.c.b16 %v2058, %v2057
        %v2158 = vpack.c.b16 %v2060, %v2059
        %v2159 = vpack.c.b16 %v2062, %v2061
        %v2160 = vpack.c.b16 %v2064, %v2063
        %2257 = vst [vmem:[#allocation2] sm:$0xff] %v2065
        %2258 = vst [vmem:[#allocation2 + $0x8] sm:$0xff] %v2066
        %2259 = vst [vmem:[#allocation2 + $0x10] sm:$0xff] %v2067
        %2260 = vst [vmem:[#allocation2 + $0x18] sm:$0xff] %v2068
        %2261 = vst [vmem:[#allocation2 + $0x20] sm:$0xff] %v2069
        %2262 = vst [vmem:[#allocation2 + $0x28] sm:$0xff] %v2070
        %2263 = vst [vmem:[#allocation2 + $0x30] sm:$0xff] %v2071
        %2264 = vst [vmem:[#allocation2 + $0x38] sm:$0xff] %v2072
        %2265 = vst [vmem:[#allocation2 + $0x40] sm:$0xff] %v2073
        %2266 = vst [vmem:[#allocation2 + $0x48] sm:$0xff] %v2074
        %2267 = vst [vmem:[#allocation2 + $0x50] sm:$0xff] %v2075
        %2268 = vst [vmem:[#allocation2 + $0x58] sm:$0xff] %v2076
        %2269 = vst [vmem:[#allocation2 + $0x60] sm:$0xff] %v2077
        %2270 = vst [vmem:[#allocation2 + $0x68] sm:$0xff] %v2078
        %2271 = vst [vmem:[#allocation2 + $0x70] sm:$0xff] %v2079
        %2272 = vst [vmem:[#allocation2 + $0x78] sm:$0xff] %v2080
        %2273 = vst [vmem:[#allocation2 + $0x80] sm:$0xff] %v2081
        %2274 = vst [vmem:[#allocation2 + $0x88] sm:$0xff] %v2082
        %2275 = vst [vmem:[#allocation2 + $0x90] sm:$0xff] %v2083
        %2276 = vst [vmem:[#allocation2 + $0x98] sm:$0xff] %v2084
        %2277 = vst [vmem:[#allocation2 + $0xa0] sm:$0xff] %v2085
        %2278 = vst [vmem:[#allocation2 + $0xa8] sm:$0xff] %v2086
        %2279 = vst [vmem:[#allocation2 + $0xb0] sm:$0xff] %v2087
        %2280 = vst [vmem:[#allocation2 + $0xb8] sm:$0xff] %v2088
        %2281 = vst [vmem:[#allocation2 + $0xc0] sm:$0xff] %v2089
        %2282 = vst [vmem:[#allocation2 + $0xc8] sm:$0xff] %v2090
        %2283 = vst [vmem:[#allocation2 + $0xd0] sm:$0xff] %v2091
        %2284 = vst [vmem:[#allocation2 + $0xd8] sm:$0xff] %v2092
        %2285 = vst [vmem:[#allocation2 + $0xe0] sm:$0xff] %v2093
        %2286 = vst [vmem:[#allocation2 + $0xe8] sm:$0xff] %v2094
        %2287 = vst [vmem:[#allocation2 + $0xf0] sm:$0xff] %v2095
        %2288 = vst [vmem:[#allocation2 + $0xf8] sm:$0xff] %v2096
        %2289 = vst [vmem:[#allocation2 + $0x100] sm:$0xff] %v2097
        %2290 = vst [vmem:[#allocation2 + $0x108] sm:$0xff] %v2098
        %2291 = vst [vmem:[#allocation2 + $0x110] sm:$0xff] %v2099
        %2292 = vst [vmem:[#allocation2 + $0x118] sm:$0xff] %v2100
        %2293 = vst [vmem:[#allocation2 + $0x120] sm:$0xff] %v2101
        %2294 = vst [vmem:[#allocation2 + $0x128] sm:$0xff] %v2102
        %2295 = vst [vmem:[#allocation2 + $0x130] sm:$0xff] %v2103
        %2296 = vst [vmem:[#allocation2 + $0x138] sm:$0xff] %v2104
        %2297 = vst [vmem:[#allocation2 + $0x140] sm:$0xff] %v2105
        %2298 = vst [vmem:[#allocation2 + $0x148] sm:$0xff] %v2106
        %2299 = vst [vmem:[#allocation2 + $0x150] sm:$0xff] %v2107
        %2300 = vst [vmem:[#allocation2 + $0x158] sm:$0xff] %v2108
        %2301 = vst [vmem:[#allocation2 + $0x160] sm:$0xff] %v2109
        %2302 = vst [vmem:[#allocation2 + $0x168] sm:$0xff] %v2110
        %2303 = vst [vmem:[#allocation2 + $0x170] sm:$0xff] %v2111
        %2304 = vst [vmem:[#allocation2 + $0x178] sm:$0xff] %v2112
        %2305 = vst [vmem:[#allocation2 + $0x180] sm:$0xff] %v2113
        %2306 = vst [vmem:[#allocation2 + $0x188] sm:$0xff] %v2114
        %2307 = vst [vmem:[#allocation2 + $0x190] sm:$0xff] %v2115
        %2308 = vst [vmem:[#allocation2 + $0x198] sm:$0xff] %v2116
        %2309 = vst [vmem:[#allocation2 + $0x1a0] sm:$0xff] %v2117
        %2310 = vst [vmem:[#allocation2 + $0x1a8] sm:$0xff] %v2118
        %2311 = vst [vmem:[#allocation2 + $0x1b0] sm:$0xff] %v2119
        %2312 = vst [vmem:[#allocation2 + $0x1b8] sm:$0xff] %v2120
        %2313 = vst [vmem:[#allocation2 + $0x1c0] sm:$0xff] %v2121
        %2314 = vst [vmem:[#allocation2 + $0x1c8] sm:$0xff] %v2122
        %2315 = vst [vmem:[#allocation2 + $0x1d0] sm:$0xff] %v2123
        %2316 = vst [vmem:[#allocation2 + $0x1d8] sm:$0xff] %v2124
        %2317 = vst [vmem:[#allocation2 + $0x1e0] sm:$0xff] %v2125
        %2318 = vst [vmem:[#allocation2 + $0x1e8] sm:$0xff] %v2126
        %2319 = vst [vmem:[#allocation2 + $0x1f0] sm:$0xff] %v2127
        %2320 = vst [vmem:[#allocation2 + $0x1f8] sm:$0xff] %v2128
        %2321 = vst [vmem:[#allocation2 + $0x200] sm:$0xff] %v2129
        %2322 = vst [vmem:[#allocation2 + $0x208] sm:$0xff] %v2130
        %2323 = vst [vmem:[#allocation2 + $0x210] sm:$0xff] %v2131
        %2324 = vst [vmem:[#allocation2 + $0x218] sm:$0xff] %v2132
        %2325 = vst [vmem:[#allocation2 + $0x220] sm:$0xff] %v2133
        %2326 = vst [vmem:[#allocation2 + $0x228] sm:$0xff] %v2134
        %2327 = vst [vmem:[#allocation2 + $0x230] sm:$0xff] %v2135
        %2328 = vst [vmem:[#allocation2 + $0x238] sm:$0xff] %v2136
        %2329 = vst [vmem:[#allocation2 + $0x240] sm:$0xff] %v2137
        %2330 = vst [vmem:[#allocation2 + $0x248] sm:$0xff] %v2138
        %2331 = vst [vmem:[#allocation2 + $0x250] sm:$0xff] %v2139
        %2332 = vst [vmem:[#allocation2 + $0x258] sm:$0xff] %v2140
        %2333 = vst [vmem:[#allocation2 + $0x260] sm:$0xff] %v2141
        %2334 = vst [vmem:[#allocation2 + $0x268] sm:$0xff] %v2142
        %2335 = vst [vmem:[#allocation2 + $0x270] sm:$0xff] %v2143
        %2336 = vst [vmem:[#allocation2 + $0x278] sm:$0xff] %v2144
        %2337 = vst [vmem:[#allocation2 + $0x280] sm:$0xff] %v2145
        %2338 = vst [vmem:[#allocation2 + $0x288] sm:$0xff] %v2146
        %2339 = vst [vmem:[#allocation2 + $0x290] sm:$0xff] %v2147
        %2340 = vst [vmem:[#allocation2 + $0x298] sm:$0xff] %v2148
        %2341 = vst [vmem:[#allocation2 + $0x2a0] sm:$0xff] %v2149
        %2342 = vst [vmem:[#allocation2 + $0x2a8] sm:$0xff] %v2150
        %2343 = vst [vmem:[#allocation2 + $0x2b0] sm:$0xff] %v2151
        %2344 = vst [vmem:[#allocation2 + $0x2b8] sm:$0xff] %v2152
        %2345 = vst [vmem:[#allocation2 + $0x2c0] sm:$0xff] %v2153
        %2346 = vst [vmem:[#allocation2 + $0x2c8] sm:$0xff] %v2154
        %2347 = vst [vmem:[#allocation2 + $0x2d0] sm:$0xff] %v2155
        %2348 = vst [vmem:[#allocation2 + $0x2d8] sm:$0xff] %v2156
        %2349 = vst [vmem:[#allocation2 + $0x2e0] sm:$0xff] %v2157
        %2350 = vst [vmem:[#allocation2 + $0x2e8] sm:$0xff] %v2158
        %2351 = vst [vmem:[#allocation2 + $0x2f0] sm:$0xff] %v2159
        %2352 = vst [vmem:[#allocation2 + $0x2f8] sm:$0xff] %v2160
      $region44: #{gcn_encoder_forward.3} parent=35 // pred_fallthru
        _
      %v2353 = vld [vmem:[%s0] sm:$0xff]
      %v2354 = vld [vmem:[%s0 + $0x8] sm:$0xff]
      %v2355 = vld [vmem:[%s0 + $0x10] sm:$0xff]
      %v2356 = vld [vmem:[%s0 + $0x18] sm:$0xff]
      %v2357 = vld [vmem:[%s0 + $0x20] sm:$0xff]
      %v2358 = vld [vmem:[%s0 + $0x28] sm:$0xff]
      %v2359 = vld [vmem:[%s0 + $0x30] sm:$0xff]
      %v2360 = vld [vmem:[%s0 + $0x38] sm:$0xff]
      %v2361 = vld [vmem:[%s0 + $0x40] sm:$0xff]
      %v2362 = vld [vmem:[%s0 + $0x48] sm:$0xff]
      %v2363 = vld [vmem:[%s0 + $0x50] sm:$0xff]
      %v2364 = vld [vmem:[%s0 + $0x58] sm:$0xff]
      %v2365 = vld [vmem:[%s0 + $0x60] sm:$0xff]
      %v2366 = vld [vmem:[%s0 + $0x68] sm:$0xff]
      %v2367 = vld [vmem:[%s0 + $0x70] sm:$0xff]
      %v2368 = vld [vmem:[%s0 + $0x78] sm:$0xff]
      %v2369 = vld [vmem:[%s0 + $0x80] sm:$0xff]
      %v2370 = vld [vmem:[%s0 + $0x88] sm:$0xff]
      %v2371 = vld [vmem:[%s0 + $0x90] sm:$0xff]
      %v2372 = vld [vmem:[%s0 + $0x98] sm:$0xff]
      %v2373 = vld [vmem:[%s0 + $0xa0] sm:$0xff]
      %v2374 = vld [vmem:[%s0 + $0xa8] sm:$0xff]
      %v2375 = vld [vmem:[%s0 + $0xb0] sm:$0xff]
      %v2376 = vld [vmem:[%s0 + $0xb8] sm:$0xff]
      %v2377 = vld [vmem:[%s0 + $0xc0] sm:$0xff]
      %v2378 = vld [vmem:[%s0 + $0xc8] sm:$0xff]
      %v2379 = vld [vmem:[%s0 + $0xd0] sm:$0xff]
      %v2380 = vld [vmem:[%s0 + $0xd8] sm:$0xff]
      %v2381 = vld [vmem:[%s0 + $0xe0] sm:$0xff]
      %v2382 = vld [vmem:[%s0 + $0xe8] sm:$0xff]
      %v2383 = vld [vmem:[%s0 + $0xf0] sm:$0xff]
      %v2384 = vld [vmem:[%s0 + $0xf8] sm:$0xff]
      %v2385 = vld [vmem:[%s0 + $0x100] sm:$0xff]
      %v2386 = vld [vmem:[%s0 + $0x108] sm:$0xff]
      %v2387 = vld [vmem:[%s0 + $0x110] sm:$0xff]
      %v2388 = vld [vmem:[%s0 + $0x118] sm:$0xff]
      %v2389 = vld [vmem:[%s0 + $0x120] sm:$0xff]
      %v2390 = vld [vmem:[%s0 + $0x128] sm:$0xff]
      %v2391 = vld [vmem:[%s0 + $0x130] sm:$0xff]
      %v2392 = vld [vmem:[%s0 + $0x138] sm:$0xff]
      %v2393 = vld [vmem:[%s0 + $0x140] sm:$0xff]
      %v2394 = vld [vmem:[%s0 + $0x148] sm:$0xff]
      %v2395 = vld [vmem:[%s0 + $0x150] sm:$0xff]
      %v2396 = vld [vmem:[%s0 + $0x158] sm:$0xff]
      %v2397 = vld [vmem:[%s0 + $0x160] sm:$0xff]
      %v2398 = vld [vmem:[%s0 + $0x168] sm:$0xff]
      %v2399 = vld [vmem:[%s0 + $0x170] sm:$0xff]
      %v2400 = vld [vmem:[%s0 + $0x178] sm:$0xff]
      %v2401 = vld [vmem:[%s0 + $0x180] sm:$0xff]
      %v2402 = vld [vmem:[%s0 + $0x188] sm:$0xff]
      %v2403 = vld [vmem:[%s0 + $0x190] sm:$0xff]
      %v2404 = vld [vmem:[%s0 + $0x198] sm:$0xff]
      %v2405 = vld [vmem:[%s0 + $0x1a0] sm:$0xff]
      %v2406 = vld [vmem:[%s0 + $0x1a8] sm:$0xff]
      %v2407 = vld [vmem:[%s0 + $0x1b0] sm:$0xff]
      %v2408 = vld [vmem:[%s0 + $0x1b8] sm:$0xff]
      %v2409 = vld [vmem:[%s0 + $0x1c0] sm:$0xff]
      %v2410 = vld [vmem:[%s0 + $0x1c8] sm:$0xff]
      %v2411 = vld [vmem:[%s0 + $0x1d0] sm:$0xff]
      %v2412 = vld [vmem:[%s0 + $0x1d8] sm:$0xff]
      %v2413 = vld [vmem:[%s0 + $0x1e0] sm:$0xff]
      %v2414 = vld [vmem:[%s0 + $0x1e8] sm:$0xff]
      %v2415 = vld [vmem:[%s0 + $0x1f0] sm:$0xff]
      %v2416 = vld [vmem:[%s0 + $0x1f8] sm:$0xff]
      %v2417 = vld [vmem:[%s0 + $0x200] sm:$0xff]
      %v2418 = vld [vmem:[%s0 + $0x208] sm:$0xff]
      %v2419 = vld [vmem:[%s0 + $0x210] sm:$0xff]
      %v2420 = vld [vmem:[%s0 + $0x218] sm:$0xff]
      %v2421 = vld [vmem:[%s0 + $0x220] sm:$0xff]
      %v2422 = vld [vmem:[%s0 + $0x228] sm:$0xff]
      %v2423 = vld [vmem:[%s0 + $0x230] sm:$0xff]
      %v2424 = vld [vmem:[%s0 + $0x238] sm:$0xff]
      %v2425 = vld [vmem:[%s0 + $0x240] sm:$0xff]
      %v2426 = vld [vmem:[%s0 + $0x248] sm:$0xff]
      %v2427 = vld [vmem:[%s0 + $0x250] sm:$0xff]
      %v2428 = vld [vmem:[%s0 + $0x258] sm:$0xff]
      %v2429 = vld [vmem:[%s0 + $0x260] sm:$0xff]
      %v2430 = vld [vmem:[%s0 + $0x268] sm:$0xff]
      %v2431 = vld [vmem:[%s0 + $0x270] sm:$0xff]
      %v2432 = vld [vmem:[%s0 + $0x278] sm:$0xff]
      %v2433 = vld [vmem:[%s0 + $0x280] sm:$0xff]
      %v2434 = vld [vmem:[%s0 + $0x288] sm:$0xff]
      %v2435 = vld [vmem:[%s0 + $0x290] sm:$0xff]
      %v2436 = vld [vmem:[%s0 + $0x298] sm:$0xff]
      %v2437 = vld [vmem:[%s0 + $0x2a0] sm:$0xff]
      %v2438 = vld [vmem:[%s0 + $0x2a8] sm:$0xff]
      %v2439 = vld [vmem:[%s0 + $0x2b0] sm:$0xff]
      %v2440 = vld [vmem:[%s0 + $0x2b8] sm:$0xff]
      %v2441 = vld [vmem:[%s0 + $0x2c0] sm:$0xff]
      %v2442 = vld [vmem:[%s0 + $0x2c8] sm:$0xff]
      %v2443 = vld [vmem:[%s0 + $0x2d0] sm:$0xff]
      %v2444 = vld [vmem:[%s0 + $0x2d8] sm:$0xff]
      %v2445 = vld [vmem:[%s0 + $0x2e0] sm:$0xff]
      %v2446 = vld [vmem:[%s0 + $0x2e8] sm:$0xff]
      %v2447 = vld [vmem:[%s0 + $0x2f0] sm:$0xff]
      %v2448 = vld [vmem:[%s0 + $0x2f8] sm:$0xff]
      %v2449 = vld [vmem:[%s0 + $0x300] sm:$0xff]
      %v2450 = vld [vmem:[%s0 + $0x308] sm:$0xff]
      %v2451 = vld [vmem:[%s0 + $0x310] sm:$0xff]
      %v2452 = vld [vmem:[%s0 + $0x318] sm:$0xff]
      %v2453 = vld [vmem:[%s0 + $0x320] sm:$0xff]
      %v2454 = vld [vmem:[%s0 + $0x328] sm:$0xff]
      %v2455 = vld [vmem:[%s0 + $0x330] sm:$0xff]
      %v2456 = vld [vmem:[%s0 + $0x338] sm:$0xff]
      %v2457 = vld [vmem:[%s0 + $0x340] sm:$0xff]
      %v2458 = vld [vmem:[%s0 + $0x348] sm:$0xff]
      %v2459 = vld [vmem:[%s0 + $0x350] sm:$0xff]
      %v2460 = vld [vmem:[%s0 + $0x358] sm:$0xff]
      %v2461 = vld [vmem:[%s0 + $0x360] sm:$0xff]
      %v2462 = vld [vmem:[%s0 + $0x368] sm:$0xff]
      %v2463 = vld [vmem:[%s0 + $0x370] sm:$0xff]
      %v2464 = vld [vmem:[%s0 + $0x378] sm:$0xff]
      %v2465 = vld [vmem:[%s0 + $0x380] sm:$0xff]
      %v2466 = vld [vmem:[%s0 + $0x388] sm:$0xff]
      %v2467 = vld [vmem:[%s0 + $0x390] sm:$0xff]
      %v2468 = vld [vmem:[%s0 + $0x398] sm:$0xff]
      %v2469 = vld [vmem:[%s0 + $0x3a0] sm:$0xff]
      %v2470 = vld [vmem:[%s0 + $0x3a8] sm:$0xff]
      %v2471 = vld [vmem:[%s0 + $0x3b0] sm:$0xff]
      %v2472 = vld [vmem:[%s0 + $0x3b8] sm:$0xff]
      %v2473 = vld [vmem:[%s0 + $0x3c0] sm:$0xff]
      %v2474 = vld [vmem:[%s0 + $0x3c8] sm:$0xff]
      %v2475 = vld [vmem:[%s0 + $0x3d0] sm:$0xff]
      %v2476 = vld [vmem:[%s0 + $0x3d8] sm:$0xff]
      %v2477 = vld [vmem:[%s0 + $0x3e0] sm:$0xff]
      %v2478 = vld [vmem:[%s0 + $0x3e8] sm:$0xff]
      %v2479 = vld [vmem:[%s0 + $0x3f0] sm:$0xff]
      %v2480 = vld [vmem:[%s0 + $0x3f8] sm:$0xff]
      %v2481 = vld [vmem:[%s0 + $0x400] sm:$0xff]
      %v2482 = vld [vmem:[%s0 + $0x408] sm:$0xff]
      %v2483 = vld [vmem:[%s0 + $0x410] sm:$0xff]
      %v2484 = vld [vmem:[%s0 + $0x418] sm:$0xff]
      %v2485 = vld [vmem:[%s0 + $0x420] sm:$0xff]
      %v2486 = vld [vmem:[%s0 + $0x428] sm:$0xff]
      %v2487 = vld [vmem:[%s0 + $0x430] sm:$0xff]
      %v2488 = vld [vmem:[%s0 + $0x438] sm:$0xff]
      %v2489 = vld [vmem:[%s0 + $0x440] sm:$0xff]
      %v2490 = vld [vmem:[%s0 + $0x448] sm:$0xff]
      %v2491 = vld [vmem:[%s0 + $0x450] sm:$0xff]
      %v2492 = vld [vmem:[%s0 + $0x458] sm:$0xff]
      %v2493 = vld [vmem:[%s0 + $0x460] sm:$0xff]
      %v2494 = vld [vmem:[%s0 + $0x468] sm:$0xff]
      %v2495 = vld [vmem:[%s0 + $0x470] sm:$0xff]
      %v2496 = vld [vmem:[%s0 + $0x478] sm:$0xff]
      %v2497 = vld [vmem:[%s0 + $0x480] sm:$0xff]
      %v2498 = vld [vmem:[%s0 + $0x488] sm:$0xff]
      %v2499 = vld [vmem:[%s0 + $0x490] sm:$0xff]
      %v2500 = vld [vmem:[%s0 + $0x498] sm:$0xff]
      %v2501 = vld [vmem:[%s0 + $0x4a0] sm:$0xff]
      %v2502 = vld [vmem:[%s0 + $0x4a8] sm:$0xff]
      %v2503 = vld [vmem:[%s0 + $0x4b0] sm:$0xff]
      %v2504 = vld [vmem:[%s0 + $0x4b8] sm:$0xff]
      %v2505 = vld [vmem:[%s0 + $0x4c0] sm:$0xff]
      %v2506 = vld [vmem:[%s0 + $0x4c8] sm:$0xff]
      %v2507 = vld [vmem:[%s0 + $0x4d0] sm:$0xff]
      %v2508 = vld [vmem:[%s0 + $0x4d8] sm:$0xff]
      %v2509 = vld [vmem:[%s0 + $0x4e0] sm:$0xff]
      %v2510 = vld [vmem:[%s0 + $0x4e8] sm:$0xff]
      %v2511 = vld [vmem:[%s0 + $0x4f0] sm:$0xff]
      %v2512 = vld [vmem:[%s0 + $0x4f8] sm:$0xff]
      %v2513 = vld [vmem:[%s0 + $0x500] sm:$0xff]
      %v2514 = vld [vmem:[%s0 + $0x508] sm:$0xff]
      %v2515 = vld [vmem:[%s0 + $0x510] sm:$0xff]
      %v2516 = vld [vmem:[%s0 + $0x518] sm:$0xff]
      %v2517 = vld [vmem:[%s0 + $0x520] sm:$0xff]
      %v2518 = vld [vmem:[%s0 + $0x528] sm:$0xff]
      %v2519 = vld [vmem:[%s0 + $0x530] sm:$0xff]
      %v2520 = vld [vmem:[%s0 + $0x538] sm:$0xff]
      %v2521 = vld [vmem:[%s0 + $0x540] sm:$0xff]
      %v2522 = vld [vmem:[%s0 + $0x548] sm:$0xff]
      %v2523 = vld [vmem:[%s0 + $0x550] sm:$0xff]
      %v2524 = vld [vmem:[%s0 + $0x558] sm:$0xff]
      %v2525 = vld [vmem:[%s0 + $0x560] sm:$0xff]
      %v2526 = vld [vmem:[%s0 + $0x568] sm:$0xff]
      %v2527 = vld [vmem:[%s0 + $0x570] sm:$0xff]
      %v2528 = vld [vmem:[%s0 + $0x578] sm:$0xff]
      %v2529 = vld [vmem:[%s0 + $0x580] sm:$0xff]
      %v2530 = vld [vmem:[%s0 + $0x588] sm:$0xff]
      %v2531 = vld [vmem:[%s0 + $0x590] sm:$0xff]
      %v2532 = vld [vmem:[%s0 + $0x598] sm:$0xff]
      %v2533 = vld [vmem:[%s0 + $0x5a0] sm:$0xff]
      %v2534 = vld [vmem:[%s0 + $0x5a8] sm:$0xff]
      %v2535 = vld [vmem:[%s0 + $0x5b0] sm:$0xff]
      %v2536 = vld [vmem:[%s0 + $0x5b8] sm:$0xff]
      %v2537 = vld [vmem:[%s0 + $0x5c0] sm:$0xff]
      %v2538 = vld [vmem:[%s0 + $0x5c8] sm:$0xff]
      %v2539 = vld [vmem:[%s0 + $0x5d0] sm:$0xff]
      %v2540 = vld [vmem:[%s0 + $0x5d8] sm:$0xff]
      %v2541 = vld [vmem:[%s0 + $0x5e0] sm:$0xff]
      %v2542 = vld [vmem:[%s0 + $0x5e8] sm:$0xff]
      %v2543 = vld [vmem:[%s0 + $0x5f0] sm:$0xff]
      %v2544 = vld [vmem:[%s0 + $0x5f8] sm:$0xff]
      %v2545 = vld [vmem:[%s0 + $0x600] sm:$0xff]
      %v2546 = vld [vmem:[%s0 + $0x608] sm:$0xff]
      %v2547 = vld [vmem:[%s0 + $0x610] sm:$0xff]
      %v2548 = vld [vmem:[%s0 + $0x618] sm:$0xff]
      %v2549 = vld [vmem:[%s0 + $0x620] sm:$0xff]
      %v2550 = vld [vmem:[%s0 + $0x628] sm:$0xff]
      %v2551 = vld [vmem:[%s0 + $0x630] sm:$0xff]
      %v2552 = vld [vmem:[%s0 + $0x638] sm:$0xff]
      %v2553 = vld [vmem:[%s0 + $0x640] sm:$0xff]
      %v2554 = vld [vmem:[%s0 + $0x648] sm:$0xff]
      %v2555 = vld [vmem:[%s0 + $0x650] sm:$0xff]
      %v2556 = vld [vmem:[%s0 + $0x658] sm:$0xff]
      %v2557 = vld [vmem:[%s0 + $0x660] sm:$0xff]
      %v2558 = vld [vmem:[%s0 + $0x668] sm:$0xff]
      %v2559 = vld [vmem:[%s0 + $0x670] sm:$0xff]
      %v2560 = vld [vmem:[%s0 + $0x678] sm:$0xff]
      %v2561 = vld [vmem:[%s0 + $0x680] sm:$0xff]
      %v2562 = vld [vmem:[%s0 + $0x688] sm:$0xff]
      %v2563 = vld [vmem:[%s0 + $0x690] sm:$0xff]
      %v2564 = vld [vmem:[%s0 + $0x698] sm:$0xff]
      %v2565 = vld [vmem:[%s0 + $0x6a0] sm:$0xff]
      %v2566 = vld [vmem:[%s0 + $0x6a8] sm:$0xff]
      %v2567 = vld [vmem:[%s0 + $0x6b0] sm:$0xff]
      %v2568 = vld [vmem:[%s0 + $0x6b8] sm:$0xff]
      %v2569 = vld [vmem:[%s0 + $0x6c0] sm:$0xff]
      %v2570 = vld [vmem:[%s0 + $0x6c8] sm:$0xff]
      %v2571 = vld [vmem:[%s0 + $0x6d0] sm:$0xff]
      %v2572 = vld [vmem:[%s0 + $0x6d8] sm:$0xff]
      %v2573 = vld [vmem:[%s0 + $0x6e0] sm:$0xff]
      %v2574 = vld [vmem:[%s0 + $0x6e8] sm:$0xff]
      %v2575 = vld [vmem:[%s0 + $0x6f0] sm:$0xff]
      %v2576 = vld [vmem:[%s0 + $0x6f8] sm:$0xff]
      %v2577 = vld [vmem:[%s0 + $0x700] sm:$0xff]
      %v2578 = vld [vmem:[%s0 + $0x708] sm:$0xff]
      %v2579 = vld [vmem:[%s0 + $0x710] sm:$0xff]
      %v2580 = vld [vmem:[%s0 + $0x718] sm:$0xff]
      %v2581 = vld [vmem:[%s0 + $0x720] sm:$0xff]
      %v2582 = vld [vmem:[%s0 + $0x728] sm:$0xff]
      %v2583 = vld [vmem:[%s0 + $0x730] sm:$0xff]
      %v2584 = vld [vmem:[%s0 + $0x738] sm:$0xff]
      %v2585 = vld [vmem:[%s0 + $0x740] sm:$0xff]
      %v2586 = vld [vmem:[%s0 + $0x748] sm:$0xff]
      %v2587 = vld [vmem:[%s0 + $0x750] sm:$0xff]
      %v2588 = vld [vmem:[%s0 + $0x758] sm:$0xff]
      %v2589 = vld [vmem:[%s0 + $0x760] sm:$0xff]
      %v2590 = vld [vmem:[%s0 + $0x768] sm:$0xff]
      %v2591 = vld [vmem:[%s0 + $0x770] sm:$0xff]
      %v2592 = vld [vmem:[%s0 + $0x778] sm:$0xff]
      %v2593 = vld [vmem:[%s0 + $0x780] sm:$0xff]
      %v2594 = vld [vmem:[%s0 + $0x788] sm:$0xff]
      %v2595 = vld [vmem:[%s0 + $0x790] sm:$0xff]
      %v2596 = vld [vmem:[%s0 + $0x798] sm:$0xff]
      %v2597 = vld [vmem:[%s0 + $0x7a0] sm:$0xff]
      %v2598 = vld [vmem:[%s0 + $0x7a8] sm:$0xff]
      %v2599 = vld [vmem:[%s0 + $0x7b0] sm:$0xff]
      %v2600 = vld [vmem:[%s0 + $0x7b8] sm:$0xff]
      %v2601 = vld [vmem:[%s0 + $0x7c0] sm:$0xff]
      %v2602 = vld [vmem:[%s0 + $0x7c8] sm:$0xff]
      %v2603 = vld [vmem:[%s0 + $0x7d0] sm:$0xff]
      %v2604 = vld [vmem:[%s0 + $0x7d8] sm:$0xff]
      %v2605 = vld [vmem:[%s0 + $0x7e0] sm:$0xff]
      %v2606 = vld [vmem:[%s0 + $0x7e8] sm:$0xff]
      %v2607 = vld [vmem:[%s0 + $0x7f0] sm:$0xff]
      %v2608 = vld [vmem:[%s0 + $0x7f8] sm:$0xff]
      %v2609 = vld [vmem:[%s0 + $0x800] sm:$0xff]
      %v2610 = vld [vmem:[%s0 + $0x808] sm:$0xff]
      %v2611 = vld [vmem:[%s0 + $0x810] sm:$0xff]
      %v2612 = vld [vmem:[%s0 + $0x818] sm:$0xff]
      %v2613 = vld [vmem:[%s0 + $0x820] sm:$0xff]
      %v2614 = vld [vmem:[%s0 + $0x828] sm:$0xff]
      %v2615 = vld [vmem:[%s0 + $0x830] sm:$0xff]
      %v2616 = vld [vmem:[%s0 + $0x838] sm:$0xff]
      %v2617 = vld [vmem:[%s0 + $0x840] sm:$0xff]
      %v2618 = vld [vmem:[%s0 + $0x848] sm:$0xff]
      %v2619 = vld [vmem:[%s0 + $0x850] sm:$0xff]
      %v2620 = vld [vmem:[%s0 + $0x858] sm:$0xff]
      %v2621 = vld [vmem:[%s0 + $0x860] sm:$0xff]
      %v2622 = vld [vmem:[%s0 + $0x868] sm:$0xff]
      %v2623 = vld [vmem:[%s0 + $0x870] sm:$0xff]
      %v2624 = vld [vmem:[%s0 + $0x878] sm:$0xff]
      %v2625 = vld [vmem:[%s0 + $0x880] sm:$0xff]
      %v2626 = vld [vmem:[%s0 + $0x888] sm:$0xff]
      %v2627 = vld [vmem:[%s0 + $0x890] sm:$0xff]
      %v2628 = vld [vmem:[%s0 + $0x898] sm:$0xff]
      %v2629 = vld [vmem:[%s0 + $0x8a0] sm:$0xff]
      %v2630 = vld [vmem:[%s0 + $0x8a8] sm:$0xff]
      %v2631 = vld [vmem:[%s0 + $0x8b0] sm:$0xff]
      %v2632 = vld [vmem:[%s0 + $0x8b8] sm:$0xff]
      %v2633 = vld [vmem:[%s0 + $0x8c0] sm:$0xff]
      %v2634 = vld [vmem:[%s0 + $0x8c8] sm:$0xff]
      %v2635 = vld [vmem:[%s0 + $0x8d0] sm:$0xff]
      %v2636 = vld [vmem:[%s0 + $0x8d8] sm:$0xff]
      %v2637 = vld [vmem:[%s0 + $0x8e0] sm:$0xff]
      %v2638 = vld [vmem:[%s0 + $0x8e8] sm:$0xff]
      %v2639 = vld [vmem:[%s0 + $0x8f0] sm:$0xff]
      %v2640 = vld [vmem:[%s0 + $0x8f8] sm:$0xff]
      %v2641 = vld [vmem:[#allocation2] sm:$0xff]
      %v2642 = vld [vmem:[#allocation2 + $0x8] sm:$0xff]
      %v2643 = vld [vmem:[#allocation2 + $0x10] sm:$0xff]
      %v2644 = vld [vmem:[#allocation2 + $0x18] sm:$0xff]
      %v2645 = vld [vmem:[#allocation2 + $0x20] sm:$0xff]
      %v2646 = vld [vmem:[#allocation2 + $0x28] sm:$0xff]
      %v2647 = vld [vmem:[#allocation2 + $0x30] sm:$0xff]
      %v2648 = vld [vmem:[#allocation2 + $0x38] sm:$0xff]
      %v2649 = vld [vmem:[#allocation2 + $0x40] sm:$0xff]
      %v2650 = vld [vmem:[#allocation2 + $0x48] sm:$0xff]
      %v2651 = vld [vmem:[#allocation2 + $0x50] sm:$0xff]
      %v2652 = vld [vmem:[#allocation2 + $0x58] sm:$0xff]
      %v2653 = vld [vmem:[#allocation2 + $0x60] sm:$0xff]
      %v2654 = vld [vmem:[#allocation2 + $0x68] sm:$0xff]
      %v2655 = vld [vmem:[#allocation2 + $0x70] sm:$0xff]
      %v2656 = vld [vmem:[#allocation2 + $0x78] sm:$0xff]
      %v2657 = vld [vmem:[#allocation2 + $0x80] sm:$0xff]
      %v2658 = vld [vmem:[#allocation2 + $0x88] sm:$0xff]
      %v2659 = vld [vmem:[#allocation2 + $0x90] sm:$0xff]
      %v2660 = vld [vmem:[#allocation2 + $0x98] sm:$0xff]
      %v2661 = vld [vmem:[#allocation2 + $0xa0] sm:$0xff]
      %v2662 = vld [vmem:[#allocation2 + $0xa8] sm:$0xff]
      %v2663 = vld [vmem:[#allocation2 + $0xb0] sm:$0xff]
      %v2664 = vld [vmem:[#allocation2 + $0xb8] sm:$0xff]
      %v2665 = vld [vmem:[#allocation2 + $0xc0] sm:$0xff]
      %v2666 = vld [vmem:[#allocation2 + $0xc8] sm:$0xff]
      %v2667 = vld [vmem:[#allocation2 + $0xd0] sm:$0xff]
      %v2668 = vld [vmem:[#allocation2 + $0xd8] sm:$0xff]
      %v2669 = vld [vmem:[#allocation2 + $0xe0] sm:$0xff]
      %v2670 = vld [vmem:[#allocation2 + $0xe8] sm:$0xff]
      %v2671 = vld [vmem:[#allocation2 + $0xf0] sm:$0xff]
      %v2672 = vld [vmem:[#allocation2 + $0xf8] sm:$0xff]
      %v2673 = vld [vmem:[#allocation2 + $0x100] sm:$0xff]
      %v2674 = vld [vmem:[#allocation2 + $0x108] sm:$0xff]
      %v2675 = vld [vmem:[#allocation2 + $0x110] sm:$0xff]
      %v2676 = vld [vmem:[#allocation2 + $0x118] sm:$0xff]
      %v2677 = vld [vmem:[#allocation2 + $0x120] sm:$0xff]
      %v2678 = vld [vmem:[#allocation2 + $0x128] sm:$0xff]
      %v2679 = vld [vmem:[#allocation2 + $0x130] sm:$0xff]
      %v2680 = vld [vmem:[#allocation2 + $0x138] sm:$0xff]
      %v2681 = vld [vmem:[#allocation2 + $0x140] sm:$0xff]
      %v2682 = vld [vmem:[#allocation2 + $0x148] sm:$0xff]
      %v2683 = vld [vmem:[#allocation2 + $0x150] sm:$0xff]
      %v2684 = vld [vmem:[#allocation2 + $0x158] sm:$0xff]
      %v2685 = vld [vmem:[#allocation2 + $0x160] sm:$0xff]
      %v2686 = vld [vmem:[#allocation2 + $0x168] sm:$0xff]
      %v2687 = vld [vmem:[#allocation2 + $0x170] sm:$0xff]
      %v2688 = vld [vmem:[#allocation2 + $0x178] sm:$0xff]
      %v2689 = vld [vmem:[#allocation2 + $0x180] sm:$0xff]
      %v2690 = vld [vmem:[#allocation2 + $0x188] sm:$0xff]
      %v2691 = vld [vmem:[#allocation2 + $0x190] sm:$0xff]
      %v2692 = vld [vmem:[#allocation2 + $0x198] sm:$0xff]
      %v2693 = vld [vmem:[#allocation2 + $0x1a0] sm:$0xff]
      %v2694 = vld [vmem:[#allocation2 + $0x1a8] sm:$0xff]
      %v2695 = vld [vmem:[#allocation2 + $0x1b0] sm:$0xff]
      %v2696 = vld [vmem:[#allocation2 + $0x1b8] sm:$0xff]
      %v2697 = vld [vmem:[#allocation2 + $0x1c0] sm:$0xff]
      %v2698 = vld [vmem:[#allocation2 + $0x1c8] sm:$0xff]
      %v2699 = vld [vmem:[#allocation2 + $0x1d0] sm:$0xff]
      %v2700 = vld [vmem:[#allocation2 + $0x1d8] sm:$0xff]
      %v2701 = vld [vmem:[#allocation2 + $0x1e0] sm:$0xff]
      %v2702 = vld [vmem:[#allocation2 + $0x1e8] sm:$0xff]
      %v2703 = vld [vmem:[#allocation2 + $0x1f0] sm:$0xff]
      %v2704 = vld [vmem:[#allocation2 + $0x1f8] sm:$0xff]
      %v2705 = vld [vmem:[#allocation2 + $0x200] sm:$0xff]
      %v2706 = vld [vmem:[#allocation2 + $0x208] sm:$0xff]
      %v2707 = vld [vmem:[#allocation2 + $0x210] sm:$0xff]
      %v2708 = vld [vmem:[#allocation2 + $0x218] sm:$0xff]
      %v2709 = vld [vmem:[#allocation2 + $0x220] sm:$0xff]
      %v2710 = vld [vmem:[#allocation2 + $0x228] sm:$0xff]
      %v2711 = vld [vmem:[#allocation2 + $0x230] sm:$0xff]
      %v2712 = vld [vmem:[#allocation2 + $0x238] sm:$0xff]
      %v2713 = vld [vmem:[#allocation2 + $0x240] sm:$0xff]
      %v2714 = vld [vmem:[#allocation2 + $0x248] sm:$0xff]
      %v2715 = vld [vmem:[#allocation2 + $0x250] sm:$0xff]
      %v2716 = vld [vmem:[#allocation2 + $0x258] sm:$0xff]
      %v2717 = vld [vmem:[#allocation2 + $0x260] sm:$0xff]
      %v2718 = vld [vmem:[#allocation2 + $0x268] sm:$0xff]
      %v2719 = vld [vmem:[#allocation2 + $0x270] sm:$0xff]
      %v2720 = vld [vmem:[#allocation2 + $0x278] sm:$0xff]
      %v2721 = vld [vmem:[#allocation2 + $0x280] sm:$0xff]
      %v2722 = vld [vmem:[#allocation2 + $0x288] sm:$0xff]
      %v2723 = vld [vmem:[#allocation2 + $0x290] sm:$0xff]
      %v2724 = vld [vmem:[#allocation2 + $0x298] sm:$0xff]
      %v2725 = vld [vmem:[#allocation2 + $0x2a0] sm:$0xff]
      %v2726 = vld [vmem:[#allocation2 + $0x2a8] sm:$0xff]
      %v2727 = vld [vmem:[#allocation2 + $0x2b0] sm:$0xff]
      %v2728 = vld [vmem:[#allocation2 + $0x2b8] sm:$0xff]
      %v2729 = vld [vmem:[#allocation2 + $0x2c0] sm:$0xff]
      %v2730 = vld [vmem:[#allocation2 + $0x2c8] sm:$0xff]
      %v2731 = vld [vmem:[#allocation2 + $0x2d0] sm:$0xff]
      %v2732 = vld [vmem:[#allocation2 + $0x2d8] sm:$0xff]
      %v2733 = vld [vmem:[#allocation2 + $0x2e0] sm:$0xff]
      %v2734 = vld [vmem:[#allocation2 + $0x2e8] sm:$0xff]
      %v2735 = vld [vmem:[#allocation2 + $0x2f0] sm:$0xff]
      %v2736 = vld [vmem:[#allocation2 + $0x2f8] sm:$0xff]
      %v2737 = vld [vmem:[%s199] sm:$0x3]
      %v2739 = vlaneseq
      %v2740 = vshrl.u32 %v2739, 7
      %v2741 = vsub.s32 0, %v2740
      %v2742 = vrot.slane %v2737, %v2741
      %v2743 = vlaneseq
      %v2744 = vshrl.u32 %v2743, 7
      %v2745 = vsub.s32 1, %v2744
      %v2746 = vrot.slane %v2737, %v2745
      %v3037 = vunpack.c.l.b16 %v2353
      %v3038 = vunpack.c.h.b16 %v2353
      %v3039 = vunpack.c.l.b16 %v2354
      %v3040 = vunpack.c.h.b16 %v2354
      %v3041 = vunpack.c.l.b16 %v2355
      %v3042 = vunpack.c.h.b16 %v2355
      %v3043 = vunpack.c.l.b16 %v2356
      %v3044 = vunpack.c.h.b16 %v2356
      %v3045 = vunpack.c.l.b16 %v2357
      %v3046 = vunpack.c.h.b16 %v2357
      %v3047 = vunpack.c.l.b16 %v2358
      %v3048 = vunpack.c.h.b16 %v2358
      %v3049 = vunpack.c.l.b16 %v2359
      %v3050 = vunpack.c.h.b16 %v2359
      %v3051 = vunpack.c.l.b16 %v2360
      %v3052 = vunpack.c.h.b16 %v2360
      %v3053 = vunpack.c.l.b16 %v2361
      %v3054 = vunpack.c.h.b16 %v2361
      %v3055 = vunpack.c.l.b16 %v2362
      %v3056 = vunpack.c.h.b16 %v2362
      %v3057 = vunpack.c.l.b16 %v2363
      %v3058 = vunpack.c.h.b16 %v2363
      %v3059 = vunpack.c.l.b16 %v2364
      %v3060 = vunpack.c.h.b16 %v2364
      %v3061 = vunpack.c.l.b16 %v2365
      %v3062 = vunpack.c.h.b16 %v2365
      %v3063 = vunpack.c.l.b16 %v2366
      %v3064 = vunpack.c.h.b16 %v2366
      %v3065 = vunpack.c.l.b16 %v2367
      %v3066 = vunpack.c.h.b16 %v2367
      %v3067 = vunpack.c.l.b16 %v2368
      %v3068 = vunpack.c.h.b16 %v2368
      %v3069 = vunpack.c.l.b16 %v2369
      %v3070 = vunpack.c.h.b16 %v2369
      %v3071 = vunpack.c.l.b16 %v2370
      %v3072 = vunpack.c.h.b16 %v2370
      %v3073 = vunpack.c.l.b16 %v2371
      %v3074 = vunpack.c.h.b16 %v2371
      %v3075 = vunpack.c.l.b16 %v2372
      %v3076 = vunpack.c.h.b16 %v2372
      %v3077 = vunpack.c.l.b16 %v2373
      %v3078 = vunpack.c.h.b16 %v2373
      %v3079 = vunpack.c.l.b16 %v2374
      %v3080 = vunpack.c.h.b16 %v2374
      %v3081 = vunpack.c.l.b16 %v2375
      %v3082 = vunpack.c.h.b16 %v2375
      %v3083 = vunpack.c.l.b16 %v2376
      %v3084 = vunpack.c.h.b16 %v2376
      %v3085 = vunpack.c.l.b16 %v2377
      %v3086 = vunpack.c.h.b16 %v2377
      %v3087 = vunpack.c.l.b16 %v2378
      %v3088 = vunpack.c.h.b16 %v2378
      %v3089 = vunpack.c.l.b16 %v2379
      %v3090 = vunpack.c.h.b16 %v2379
      %v3091 = vunpack.c.l.b16 %v2380
      %v3092 = vunpack.c.h.b16 %v2380
      %v3093 = vunpack.c.l.b16 %v2381
      %v3094 = vunpack.c.h.b16 %v2381
      %v3095 = vunpack.c.l.b16 %v2382
      %v3096 = vunpack.c.h.b16 %v2382
      %v3097 = vunpack.c.l.b16 %v2383
      %v3098 = vunpack.c.h.b16 %v2383
      %v3099 = vunpack.c.l.b16 %v2384
      %v3100 = vunpack.c.h.b16 %v2384
      %v3101 = vunpack.c.l.b16 %v2385
      %v3102 = vunpack.c.h.b16 %v2385
      %v3103 = vunpack.c.l.b16 %v2386
      %v3104 = vunpack.c.h.b16 %v2386
      %v3105 = vunpack.c.l.b16 %v2387
      %v3106 = vunpack.c.h.b16 %v2387
      %v3107 = vunpack.c.l.b16 %v2388
      %v3108 = vunpack.c.h.b16 %v2388
      %v3109 = vunpack.c.l.b16 %v2389
      %v3110 = vunpack.c.h.b16 %v2389
      %v3111 = vunpack.c.l.b16 %v2390
      %v3112 = vunpack.c.h.b16 %v2390
      %v3113 = vunpack.c.l.b16 %v2391
      %v3114 = vunpack.c.h.b16 %v2391
      %v3115 = vunpack.c.l.b16 %v2392
      %v3116 = vunpack.c.h.b16 %v2392
      %v3117 = vunpack.c.l.b16 %v2393
      %v3118 = vunpack.c.h.b16 %v2393
      %v3119 = vunpack.c.l.b16 %v2394
      %v3120 = vunpack.c.h.b16 %v2394
      %v3121 = vunpack.c.l.b16 %v2395
      %v3122 = vunpack.c.h.b16 %v2395
      %v3123 = vunpack.c.l.b16 %v2396
      %v3124 = vunpack.c.h.b16 %v2396
      %v3125 = vunpack.c.l.b16 %v2397
      %v3126 = vunpack.c.h.b16 %v2397
      %v3127 = vunpack.c.l.b16 %v2398
      %v3128 = vunpack.c.h.b16 %v2398
      %v3129 = vunpack.c.l.b16 %v2399
      %v3130 = vunpack.c.h.b16 %v2399
      %v3131 = vunpack.c.l.b16 %v2400
      %v3132 = vunpack.c.h.b16 %v2400
      %v3133 = vunpack.c.l.b16 %v2401
      %v3134 = vunpack.c.h.b16 %v2401
      %v3135 = vunpack.c.l.b16 %v2402
      %v3136 = vunpack.c.h.b16 %v2402
      %v3137 = vunpack.c.l.b16 %v2403
      %v3138 = vunpack.c.h.b16 %v2403
      %v3139 = vunpack.c.l.b16 %v2404
      %v3140 = vunpack.c.h.b16 %v2404
      %v3141 = vunpack.c.l.b16 %v2405
      %v3142 = vunpack.c.h.b16 %v2405
      %v3143 = vunpack.c.l.b16 %v2406
      %v3144 = vunpack.c.h.b16 %v2406
      %v3145 = vunpack.c.l.b16 %v2407
      %v3146 = vunpack.c.h.b16 %v2407
      %v3147 = vunpack.c.l.b16 %v2408
      %v3148 = vunpack.c.h.b16 %v2408
      %v3149 = vunpack.c.l.b16 %v2409
      %v3150 = vunpack.c.h.b16 %v2409
      %v3151 = vunpack.c.l.b16 %v2410
      %v3152 = vunpack.c.h.b16 %v2410
      %v3153 = vunpack.c.l.b16 %v2411
      %v3154 = vunpack.c.h.b16 %v2411
      %v3155 = vunpack.c.l.b16 %v2412
      %v3156 = vunpack.c.h.b16 %v2412
      %v3157 = vunpack.c.l.b16 %v2413
      %v3158 = vunpack.c.h.b16 %v2413
      %v3159 = vunpack.c.l.b16 %v2414
      %v3160 = vunpack.c.h.b16 %v2414
      %v3161 = vunpack.c.l.b16 %v2415
      %v3162 = vunpack.c.h.b16 %v2415
      %v3163 = vunpack.c.l.b16 %v2416
      %v3164 = vunpack.c.h.b16 %v2416
      %v3165 = vunpack.c.l.b16 %v2417
      %v3166 = vunpack.c.h.b16 %v2417
      %v3167 = vunpack.c.l.b16 %v2418
      %v3168 = vunpack.c.h.b16 %v2418
      %v3169 = vunpack.c.l.b16 %v2419
      %v3170 = vunpack.c.h.b16 %v2419
      %v3171 = vunpack.c.l.b16 %v2420
      %v3172 = vunpack.c.h.b16 %v2420
      %v3173 = vunpack.c.l.b16 %v2421
      %v3174 = vunpack.c.h.b16 %v2421
      %v3175 = vunpack.c.l.b16 %v2422
      %v3176 = vunpack.c.h.b16 %v2422
      %v3177 = vunpack.c.l.b16 %v2423
      %v3178 = vunpack.c.h.b16 %v2423
      %v3179 = vunpack.c.l.b16 %v2424
      %v3180 = vunpack.c.h.b16 %v2424
      %v3181 = vunpack.c.l.b16 %v2425
      %v3182 = vunpack.c.h.b16 %v2425
      %v3183 = vunpack.c.l.b16 %v2426
      %v3184 = vunpack.c.h.b16 %v2426
      %v3185 = vunpack.c.l.b16 %v2427
      %v3186 = vunpack.c.h.b16 %v2427
      %v3187 = vunpack.c.l.b16 %v2428
      %v3188 = vunpack.c.h.b16 %v2428
      %v3189 = vunpack.c.l.b16 %v2429
      %v3190 = vunpack.c.h.b16 %v2429
      %v3191 = vunpack.c.l.b16 %v2430
      %v3192 = vunpack.c.h.b16 %v2430
      %v3193 = vunpack.c.l.b16 %v2431
      %v3194 = vunpack.c.h.b16 %v2431
      %v3195 = vunpack.c.l.b16 %v2432
      %v3196 = vunpack.c.h.b16 %v2432
      %v3197 = vunpack.c.l.b16 %v2433
      %v3198 = vunpack.c.h.b16 %v2433
      %v3199 = vunpack.c.l.b16 %v2434
      %v3200 = vunpack.c.h.b16 %v2434
      %v3201 = vunpack.c.l.b16 %v2435
      %v3202 = vunpack.c.h.b16 %v2435
      %v3203 = vunpack.c.l.b16 %v2436
      %v3204 = vunpack.c.h.b16 %v2436
      %v3205 = vunpack.c.l.b16 %v2437
      %v3206 = vunpack.c.h.b16 %v2437
      %v3207 = vunpack.c.l.b16 %v2438
      %v3208 = vunpack.c.h.b16 %v2438
      %v3209 = vunpack.c.l.b16 %v2439
      %v3210 = vunpack.c.h.b16 %v2439
      %v3211 = vunpack.c.l.b16 %v2440
      %v3212 = vunpack.c.h.b16 %v2440
      %v3213 = vunpack.c.l.b16 %v2441
      %v3214 = vunpack.c.h.b16 %v2441
      %v3215 = vunpack.c.l.b16 %v2442
      %v3216 = vunpack.c.h.b16 %v2442
      %v3217 = vunpack.c.l.b16 %v2443
      %v3218 = vunpack.c.h.b16 %v2443
      %v3219 = vunpack.c.l.b16 %v2444
      %v3220 = vunpack.c.h.b16 %v2444
      %v3221 = vunpack.c.l.b16 %v2445
      %v3222 = vunpack.c.h.b16 %v2445
      %v3223 = vunpack.c.l.b16 %v2446
      %v3224 = vunpack.c.h.b16 %v2446
      %v3225 = vunpack.c.l.b16 %v2447
      %v3226 = vunpack.c.h.b16 %v2447
      %v3227 = vunpack.c.l.b16 %v2448
      %v3228 = vunpack.c.h.b16 %v2448
      %v3229 = vunpack.c.l.b16 %v2449
      %v3230 = vunpack.c.h.b16 %v2449
      %v3231 = vunpack.c.l.b16 %v2450
      %v3232 = vunpack.c.h.b16 %v2450
      %v3233 = vunpack.c.l.b16 %v2451
      %v3234 = vunpack.c.h.b16 %v2451
      %v3235 = vunpack.c.l.b16 %v2452
      %v3236 = vunpack.c.h.b16 %v2452
      %v3237 = vunpack.c.l.b16 %v2453
      %v3238 = vunpack.c.h.b16 %v2453
      %v3239 = vunpack.c.l.b16 %v2454
      %v3240 = vunpack.c.h.b16 %v2454
      %v3241 = vunpack.c.l.b16 %v2455
      %v3242 = vunpack.c.h.b16 %v2455
      %v3243 = vunpack.c.l.b16 %v2456
      %v3244 = vunpack.c.h.b16 %v2456
      %v3245 = vunpack.c.l.b16 %v2457
      %v3246 = vunpack.c.h.b16 %v2457
      %v3247 = vunpack.c.l.b16 %v2458
      %v3248 = vunpack.c.h.b16 %v2458
      %v3249 = vunpack.c.l.b16 %v2459
      %v3250 = vunpack.c.h.b16 %v2459
      %v3251 = vunpack.c.l.b16 %v2460
      %v3252 = vunpack.c.h.b16 %v2460
      %v3253 = vunpack.c.l.b16 %v2461
      %v3254 = vunpack.c.h.b16 %v2461
      %v3255 = vunpack.c.l.b16 %v2462
      %v3256 = vunpack.c.h.b16 %v2462
      %v3257 = vunpack.c.l.b16 %v2463
      %v3258 = vunpack.c.h.b16 %v2463
      %v3259 = vunpack.c.l.b16 %v2464
      %v3260 = vunpack.c.h.b16 %v2464
      %v3261 = vunpack.c.l.b16 %v2465
      %v3262 = vunpack.c.h.b16 %v2465
      %v3263 = vunpack.c.l.b16 %v2466
      %v3264 = vunpack.c.h.b16 %v2466
      %v3265 = vunpack.c.l.b16 %v2467
      %v3266 = vunpack.c.h.b16 %v2467
      %v3267 = vunpack.c.l.b16 %v2468
      %v3268 = vunpack.c.h.b16 %v2468
      %v3269 = vunpack.c.l.b16 %v2469
      %v3270 = vunpack.c.h.b16 %v2469
      %v3271 = vunpack.c.l.b16 %v2470
      %v3272 = vunpack.c.h.b16 %v2470
      %v3273 = vunpack.c.l.b16 %v2471
      %v3274 = vunpack.c.h.b16 %v2471
      %v3275 = vunpack.c.l.b16 %v2472
      %v3276 = vunpack.c.h.b16 %v2472
      %v3277 = vunpack.c.l.b16 %v2473
      %v3278 = vunpack.c.h.b16 %v2473
      %v3279 = vunpack.c.l.b16 %v2474
      %v3280 = vunpack.c.h.b16 %v2474
      %v3281 = vunpack.c.l.b16 %v2475
      %v3282 = vunpack.c.h.b16 %v2475
      %v3283 = vunpack.c.l.b16 %v2476
      %v3284 = vunpack.c.h.b16 %v2476
      %v3285 = vunpack.c.l.b16 %v2477
      %v3286 = vunpack.c.h.b16 %v2477
      %v3287 = vunpack.c.l.b16 %v2478
      %v3288 = vunpack.c.h.b16 %v2478
      %v3289 = vunpack.c.l.b16 %v2479
      %v3290 = vunpack.c.h.b16 %v2479
      %v3291 = vunpack.c.l.b16 %v2480
      %v3292 = vunpack.c.h.b16 %v2480
      %v3293 = vunpack.c.l.b16 %v2481
      %v3294 = vunpack.c.h.b16 %v2481
      %v3295 = vunpack.c.l.b16 %v2482
      %v3296 = vunpack.c.h.b16 %v2482
      %v3297 = vunpack.c.l.b16 %v2483
      %v3298 = vunpack.c.h.b16 %v2483
      %v3299 = vunpack.c.l.b16 %v2484
      %v3300 = vunpack.c.h.b16 %v2484
      %v3301 = vunpack.c.l.b16 %v2485
      %v3302 = vunpack.c.h.b16 %v2485
      %v3303 = vunpack.c.l.b16 %v2486
      %v3304 = vunpack.c.h.b16 %v2486
      %v3305 = vunpack.c.l.b16 %v2487
      %v3306 = vunpack.c.h.b16 %v2487
      %v3307 = vunpack.c.l.b16 %v2488
      %v3308 = vunpack.c.h.b16 %v2488
      %v3309 = vunpack.c.l.b16 %v2489
      %v3310 = vunpack.c.h.b16 %v2489
      %v3311 = vunpack.c.l.b16 %v2490
      %v3312 = vunpack.c.h.b16 %v2490
      %v3313 = vunpack.c.l.b16 %v2491
      %v3314 = vunpack.c.h.b16 %v2491
      %v3315 = vunpack.c.l.b16 %v2492
      %v3316 = vunpack.c.h.b16 %v2492
      %v3317 = vunpack.c.l.b16 %v2493
      %v3318 = vunpack.c.h.b16 %v2493
      %v3319 = vunpack.c.l.b16 %v2494
      %v3320 = vunpack.c.h.b16 %v2494
      %v3321 = vunpack.c.l.b16 %v2495
      %v3322 = vunpack.c.h.b16 %v2495
      %v3323 = vunpack.c.l.b16 %v2496
      %v3324 = vunpack.c.h.b16 %v2496
      %v3325 = vunpack.c.l.b16 %v2497
      %v3326 = vunpack.c.h.b16 %v2497
      %v3327 = vunpack.c.l.b16 %v2498
      %v3328 = vunpack.c.h.b16 %v2498
      %v3329 = vunpack.c.l.b16 %v2499
      %v3330 = vunpack.c.h.b16 %v2499
      %v3331 = vunpack.c.l.b16 %v2500
      %v3332 = vunpack.c.h.b16 %v2500
      %v3333 = vunpack.c.l.b16 %v2501
      %v3334 = vunpack.c.h.b16 %v2501
      %v3335 = vunpack.c.l.b16 %v2502
      %v3336 = vunpack.c.h.b16 %v2502
      %v3337 = vunpack.c.l.b16 %v2503
      %v3338 = vunpack.c.h.b16 %v2503
      %v3339 = vunpack.c.l.b16 %v2504
      %v3340 = vunpack.c.h.b16 %v2504
      %v3341 = vunpack.c.l.b16 %v2505
      %v3342 = vunpack.c.h.b16 %v2505
      %v3343 = vunpack.c.l.b16 %v2506
      %v3344 = vunpack.c.h.b16 %v2506
      %v3345 = vunpack.c.l.b16 %v2507
      %v3346 = vunpack.c.h.b16 %v2507
      %v3347 = vunpack.c.l.b16 %v2508
      %v3348 = vunpack.c.h.b16 %v2508
      %v3349 = vunpack.c.l.b16 %v2509
      %v3350 = vunpack.c.h.b16 %v2509
      %v3351 = vunpack.c.l.b16 %v2510
      %v3352 = vunpack.c.h.b16 %v2510
      %v3353 = vunpack.c.l.b16 %v2511
      %v3354 = vunpack.c.h.b16 %v2511
      %v3355 = vunpack.c.l.b16 %v2512
      %v3356 = vunpack.c.h.b16 %v2512
      %v3357 = vunpack.c.l.b16 %v2513
      %v3358 = vunpack.c.h.b16 %v2513
      %v3359 = vunpack.c.l.b16 %v2514
      %v3360 = vunpack.c.h.b16 %v2514
      %v3361 = vunpack.c.l.b16 %v2515
      %v3362 = vunpack.c.h.b16 %v2515
      %v3363 = vunpack.c.l.b16 %v2516
      %v3364 = vunpack.c.h.b16 %v2516
      %v3365 = vunpack.c.l.b16 %v2517
      %v3366 = vunpack.c.h.b16 %v2517
      %v3367 = vunpack.c.l.b16 %v2518
      %v3368 = vunpack.c.h.b16 %v2518
      %v3369 = vunpack.c.l.b16 %v2519
      %v3370 = vunpack.c.h.b16 %v2519
      %v3371 = vunpack.c.l.b16 %v2520
      %v3372 = vunpack.c.h.b16 %v2520
      %v3373 = vunpack.c.l.b16 %v2521
      %v3374 = vunpack.c.h.b16 %v2521
      %v3375 = vunpack.c.l.b16 %v2522
      %v3376 = vunpack.c.h.b16 %v2522
      %v3377 = vunpack.c.l.b16 %v2523
      %v3378 = vunpack.c.h.b16 %v2523
      %v3379 = vunpack.c.l.b16 %v2524
      %v3380 = vunpack.c.h.b16 %v2524
      %v3381 = vunpack.c.l.b16 %v2525
      %v3382 = vunpack.c.h.b16 %v2525
      %v3383 = vunpack.c.l.b16 %v2526
      %v3384 = vunpack.c.h.b16 %v2526
      %v3385 = vunpack.c.l.b16 %v2527
      %v3386 = vunpack.c.h.b16 %v2527
      %v3387 = vunpack.c.l.b16 %v2528
      %v3388 = vunpack.c.h.b16 %v2528
      %v3389 = vunpack.c.l.b16 %v2529
      %v3390 = vunpack.c.h.b16 %v2529
      %v3391 = vunpack.c.l.b16 %v2530
      %v3392 = vunpack.c.h.b16 %v2530
      %v3393 = vunpack.c.l.b16 %v2531
      %v3394 = vunpack.c.h.b16 %v2531
      %v3395 = vunpack.c.l.b16 %v2532
      %v3396 = vunpack.c.h.b16 %v2532
      %v3397 = vunpack.c.l.b16 %v2533
      %v3398 = vunpack.c.h.b16 %v2533
      %v3399 = vunpack.c.l.b16 %v2534
      %v3400 = vunpack.c.h.b16 %v2534
      %v3401 = vunpack.c.l.b16 %v2535
      %v3402 = vunpack.c.h.b16 %v2535
      %v3403 = vunpack.c.l.b16 %v2536
      %v3404 = vunpack.c.h.b16 %v2536
      %v3405 = vunpack.c.l.b16 %v2537
      %v3406 = vunpack.c.h.b16 %v2537
      %v3407 = vunpack.c.l.b16 %v2538
      %v3408 = vunpack.c.h.b16 %v2538
      %v3409 = vunpack.c.l.b16 %v2539
      %v3410 = vunpack.c.h.b16 %v2539
      %v3411 = vunpack.c.l.b16 %v2540
      %v3412 = vunpack.c.h.b16 %v2540
      %v3413 = vunpack.c.l.b16 %v2541
      %v3414 = vunpack.c.h.b16 %v2541
      %v3415 = vunpack.c.l.b16 %v2542
      %v3416 = vunpack.c.h.b16 %v2542
      %v3417 = vunpack.c.l.b16 %v2543
      %v3418 = vunpack.c.h.b16 %v2543
      %v3419 = vunpack.c.l.b16 %v2544
      %v3420 = vunpack.c.h.b16 %v2544
      %v3421 = vunpack.c.l.b16 %v2545
      %v3422 = vunpack.c.h.b16 %v2545
      %v3423 = vunpack.c.l.b16 %v2546
      %v3424 = vunpack.c.h.b16 %v2546
      %v3425 = vunpack.c.l.b16 %v2547
      %v3426 = vunpack.c.h.b16 %v2547
      %v3427 = vunpack.c.l.b16 %v2548
      %v3428 = vunpack.c.h.b16 %v2548
      %v3429 = vunpack.c.l.b16 %v2549
      %v3430 = vunpack.c.h.b16 %v2549
      %v3431 = vunpack.c.l.b16 %v2550
      %v3432 = vunpack.c.h.b16 %v2550
      %v3433 = vunpack.c.l.b16 %v2551
      %v3434 = vunpack.c.h.b16 %v2551
      %v3435 = vunpack.c.l.b16 %v2552
      %v3436 = vunpack.c.h.b16 %v2552
      %v3437 = vunpack.c.l.b16 %v2553
      %v3438 = vunpack.c.h.b16 %v2553
      %v3439 = vunpack.c.l.b16 %v2554
      %v3440 = vunpack.c.h.b16 %v2554
      %v3441 = vunpack.c.l.b16 %v2555
      %v3442 = vunpack.c.h.b16 %v2555
      %v3443 = vunpack.c.l.b16 %v2556
      %v3444 = vunpack.c.h.b16 %v2556
      %v3445 = vunpack.c.l.b16 %v2557
      %v3446 = vunpack.c.h.b16 %v2557
      %v3447 = vunpack.c.l.b16 %v2558
      %v3448 = vunpack.c.h.b16 %v2558
      %v3449 = vunpack.c.l.b16 %v2559
      %v3450 = vunpack.c.h.b16 %v2559
      %v3451 = vunpack.c.l.b16 %v2560
      %v3452 = vunpack.c.h.b16 %v2560
      %v3453 = vunpack.c.l.b16 %v2561
      %v3454 = vunpack.c.h.b16 %v2561
      %v3455 = vunpack.c.l.b16 %v2562
      %v3456 = vunpack.c.h.b16 %v2562
      %v3457 = vunpack.c.l.b16 %v2563
      %v3458 = vunpack.c.h.b16 %v2563
      %v3459 = vunpack.c.l.b16 %v2564
      %v3460 = vunpack.c.h.b16 %v2564
      %v3461 = vunpack.c.l.b16 %v2565
      %v3462 = vunpack.c.h.b16 %v2565
      %v3463 = vunpack.c.l.b16 %v2566
      %v3464 = vunpack.c.h.b16 %v2566
      %v3465 = vunpack.c.l.b16 %v2567
      %v3466 = vunpack.c.h.b16 %v2567
      %v3467 = vunpack.c.l.b16 %v2568
      %v3468 = vunpack.c.h.b16 %v2568
      %v3469 = vunpack.c.l.b16 %v2569
      %v3470 = vunpack.c.h.b16 %v2569
      %v3471 = vunpack.c.l.b16 %v2570
      %v3472 = vunpack.c.h.b16 %v2570
      %v3473 = vunpack.c.l.b16 %v2571
      %v3474 = vunpack.c.h.b16 %v2571
      %v3475 = vunpack.c.l.b16 %v2572
      %v3476 = vunpack.c.h.b16 %v2572
      %v3477 = vunpack.c.l.b16 %v2573
      %v3478 = vunpack.c.h.b16 %v2573
      %v3479 = vunpack.c.l.b16 %v2574
      %v3480 = vunpack.c.h.b16 %v2574
      %v3481 = vunpack.c.l.b16 %v2575
      %v3482 = vunpack.c.h.b16 %v2575
      %v3483 = vunpack.c.l.b16 %v2576
      %v3484 = vunpack.c.h.b16 %v2576
      %v3485 = vunpack.c.l.b16 %v2577
      %v3486 = vunpack.c.h.b16 %v2577
      %v3487 = vunpack.c.l.b16 %v2578
      %v3488 = vunpack.c.h.b16 %v2578
      %v3489 = vunpack.c.l.b16 %v2579
      %v3490 = vunpack.c.h.b16 %v2579
      %v3491 = vunpack.c.l.b16 %v2580
      %v3492 = vunpack.c.h.b16 %v2580
      %v3493 = vunpack.c.l.b16 %v2581
      %v3494 = vunpack.c.h.b16 %v2581
      %v3495 = vunpack.c.l.b16 %v2582
      %v3496 = vunpack.c.h.b16 %v2582
      %v3497 = vunpack.c.l.b16 %v2583
      %v3498 = vunpack.c.h.b16 %v2583
      %v3499 = vunpack.c.l.b16 %v2584
      %v3500 = vunpack.c.h.b16 %v2584
      %v3501 = vunpack.c.l.b16 %v2585
      %v3502 = vunpack.c.h.b16 %v2585
      %v3503 = vunpack.c.l.b16 %v2586
      %v3504 = vunpack.c.h.b16 %v2586
      %v3505 = vunpack.c.l.b16 %v2587
      %v3506 = vunpack.c.h.b16 %v2587
      %v3507 = vunpack.c.l.b16 %v2588
      %v3508 = vunpack.c.h.b16 %v2588
      %v3509 = vunpack.c.l.b16 %v2589
      %v3510 = vunpack.c.h.b16 %v2589
      %v3511 = vunpack.c.l.b16 %v2590
      %v3512 = vunpack.c.h.b16 %v2590
      %v3513 = vunpack.c.l.b16 %v2591
      %v3514 = vunpack.c.h.b16 %v2591
      %v3515 = vunpack.c.l.b16 %v2592
      %v3516 = vunpack.c.h.b16 %v2592
      %v3517 = vunpack.c.l.b16 %v2593
      %v3518 = vunpack.c.h.b16 %v2593
      %v3519 = vunpack.c.l.b16 %v2594
      %v3520 = vunpack.c.h.b16 %v2594
      %v3521 = vunpack.c.l.b16 %v2595
      %v3522 = vunpack.c.h.b16 %v2595
      %v3523 = vunpack.c.l.b16 %v2596
      %v3524 = vunpack.c.h.b16 %v2596
      %v3525 = vunpack.c.l.b16 %v2597
      %v3526 = vunpack.c.h.b16 %v2597
      %v3527 = vunpack.c.l.b16 %v2598
      %v3528 = vunpack.c.h.b16 %v2598
      %v3529 = vunpack.c.l.b16 %v2599
      %v3530 = vunpack.c.h.b16 %v2599
      %v3531 = vunpack.c.l.b16 %v2600
      %v3532 = vunpack.c.h.b16 %v2600
      %v3533 = vunpack.c.l.b16 %v2601
      %v3534 = vunpack.c.h.b16 %v2601
      %v3535 = vunpack.c.l.b16 %v2602
      %v3536 = vunpack.c.h.b16 %v2602
      %v3537 = vunpack.c.l.b16 %v2603
      %v3538 = vunpack.c.h.b16 %v2603
      %v3539 = vunpack.c.l.b16 %v2604
      %v3540 = vunpack.c.h.b16 %v2604
      %v3541 = vunpack.c.l.b16 %v2605
      %v3542 = vunpack.c.h.b16 %v2605
      %v3543 = vunpack.c.l.b16 %v2606
      %v3544 = vunpack.c.h.b16 %v2606
      %v3545 = vunpack.c.l.b16 %v2607
      %v3546 = vunpack.c.h.b16 %v2607
      %v3547 = vunpack.c.l.b16 %v2608
      %v3548 = vunpack.c.h.b16 %v2608
      %v3549 = vunpack.c.l.b16 %v2609
      %v3550 = vunpack.c.h.b16 %v2609
      %v3551 = vunpack.c.l.b16 %v2610
      %v3552 = vunpack.c.h.b16 %v2610
      %v3553 = vunpack.c.l.b16 %v2611
      %v3554 = vunpack.c.h.b16 %v2611
      %v3555 = vunpack.c.l.b16 %v2612
      %v3556 = vunpack.c.h.b16 %v2612
      %v3557 = vunpack.c.l.b16 %v2613
      %v3558 = vunpack.c.h.b16 %v2613
      %v3559 = vunpack.c.l.b16 %v2614
      %v3560 = vunpack.c.h.b16 %v2614
      %v3561 = vunpack.c.l.b16 %v2615
      %v3562 = vunpack.c.h.b16 %v2615
      %v3563 = vunpack.c.l.b16 %v2616
      %v3564 = vunpack.c.h.b16 %v2616
      %v3565 = vunpack.c.l.b16 %v2617
      %v3566 = vunpack.c.h.b16 %v2617
      %v3567 = vunpack.c.l.b16 %v2618
      %v3568 = vunpack.c.h.b16 %v2618
      %v3569 = vunpack.c.l.b16 %v2619
      %v3570 = vunpack.c.h.b16 %v2619
      %v3571 = vunpack.c.l.b16 %v2620
      %v3572 = vunpack.c.h.b16 %v2620
      %v3573 = vunpack.c.l.b16 %v2621
      %v3574 = vunpack.c.h.b16 %v2621
      %v3575 = vunpack.c.l.b16 %v2622
      %v3576 = vunpack.c.h.b16 %v2622
      %v3577 = vunpack.c.l.b16 %v2623
      %v3578 = vunpack.c.h.b16 %v2623
      %v3579 = vunpack.c.l.b16 %v2624
      %v3580 = vunpack.c.h.b16 %v2624
      %v3581 = vunpack.c.l.b16 %v2625
      %v3582 = vunpack.c.h.b16 %v2625
      %v3583 = vunpack.c.l.b16 %v2626
      %v3584 = vunpack.c.h.b16 %v2626
      %v3585 = vunpack.c.l.b16 %v2627
      %v3586 = vunpack.c.h.b16 %v2627
      %v3587 = vunpack.c.l.b16 %v2628
      %v3588 = vunpack.c.h.b16 %v2628
      %v3589 = vunpack.c.l.b16 %v2629
      %v3590 = vunpack.c.h.b16 %v2629
      %v3591 = vunpack.c.l.b16 %v2630
      %v3592 = vunpack.c.h.b16 %v2630
      %v3593 = vunpack.c.l.b16 %v2631
      %v3594 = vunpack.c.h.b16 %v2631
      %v3595 = vunpack.c.l.b16 %v2632
      %v3596 = vunpack.c.h.b16 %v2632
      %v3597 = vunpack.c.l.b16 %v2633
      %v3598 = vunpack.c.h.b16 %v2633
      %v3599 = vunpack.c.l.b16 %v2634
      %v3600 = vunpack.c.h.b16 %v2634
      %v3601 = vunpack.c.l.b16 %v2635
      %v3602 = vunpack.c.h.b16 %v2635
      %v3603 = vunpack.c.l.b16 %v2636
      %v3604 = vunpack.c.h.b16 %v2636
      %v3605 = vunpack.c.l.b16 %v2637
      %v3606 = vunpack.c.h.b16 %v2637
      %v3607 = vunpack.c.l.b16 %v2638
      %v3608 = vunpack.c.h.b16 %v2638
      %v3609 = vunpack.c.l.b16 %v2639
      %v3610 = vunpack.c.h.b16 %v2639
      %v3611 = vunpack.c.l.b16 %v2640
      %v3612 = vunpack.c.h.b16 %v2640
      %v3613 = vpack.c.b16 %v3043, %v3037
      %v3614 = vpack.c.b16 %v3044, %v3038
      %v3615 = vpack.c.b16 %v3045, %v3039
      %v3616 = vpack.c.b16 %v3046, %v3040
      %v3617 = vpack.c.b16 %v3047, %v3041
      %v3618 = vpack.c.b16 %v3048, %v3042
      %v3619 = vpack.c.b16 %v3055, %v3049
      %v3620 = vpack.c.b16 %v3056, %v3050
      %v3621 = vpack.c.b16 %v3057, %v3051
      %v3622 = vpack.c.b16 %v3058, %v3052
      %v3623 = vpack.c.b16 %v3059, %v3053
      %v3624 = vpack.c.b16 %v3060, %v3054
      %v3625 = vpack.c.b16 %v3067, %v3061
      %v3626 = vpack.c.b16 %v3068, %v3062
      %v3627 = vpack.c.b16 %v3069, %v3063
      %v3628 = vpack.c.b16 %v3070, %v3064
      %v3629 = vpack.c.b16 %v3071, %v3065
      %v3630 = vpack.c.b16 %v3072, %v3066
      %v3631 = vpack.c.b16 %v3079, %v3073
      %v3632 = vpack.c.b16 %v3080, %v3074
      %v3633 = vpack.c.b16 %v3081, %v3075
      %v3634 = vpack.c.b16 %v3082, %v3076
      %v3635 = vpack.c.b16 %v3083, %v3077
      %v3636 = vpack.c.b16 %v3084, %v3078
      %v3637 = vpack.c.b16 %v3091, %v3085
      %v3638 = vpack.c.b16 %v3092, %v3086
      %v3639 = vpack.c.b16 %v3093, %v3087
      %v3640 = vpack.c.b16 %v3094, %v3088
      %v3641 = vpack.c.b16 %v3095, %v3089
      %v3642 = vpack.c.b16 %v3096, %v3090
      %v3643 = vpack.c.b16 %v3103, %v3097
      %v3644 = vpack.c.b16 %v3104, %v3098
      %v3645 = vpack.c.b16 %v3105, %v3099
      %v3646 = vpack.c.b16 %v3106, %v3100
      %v3647 = vpack.c.b16 %v3107, %v3101
      %v3648 = vpack.c.b16 %v3108, %v3102
      %v3649 = vpack.c.b16 %v3115, %v3109
      %v3650 = vpack.c.b16 %v3116, %v3110
      %v3651 = vpack.c.b16 %v3117, %v3111
      %v3652 = vpack.c.b16 %v3118, %v3112
      %v3653 = vpack.c.b16 %v3119, %v3113
      %v3654 = vpack.c.b16 %v3120, %v3114
      %v3655 = vpack.c.b16 %v3127, %v3121
      %v3656 = vpack.c.b16 %v3128, %v3122
      %v3657 = vpack.c.b16 %v3129, %v3123
      %v3658 = vpack.c.b16 %v3130, %v3124
      %v3659 = vpack.c.b16 %v3131, %v3125
      %v3660 = vpack.c.b16 %v3132, %v3126
      %v3661 = vpack.c.b16 %v3139, %v3133
      %v3662 = vpack.c.b16 %v3140, %v3134
      %v3663 = vpack.c.b16 %v3141, %v3135
      %v3664 = vpack.c.b16 %v3142, %v3136
      %v3665 = vpack.c.b16 %v3143, %v3137
      %v3666 = vpack.c.b16 %v3144, %v3138
      %v3667 = vpack.c.b16 %v3151, %v3145
      %v3668 = vpack.c.b16 %v3152, %v3146
      %v3669 = vpack.c.b16 %v3153, %v3147
      %v3670 = vpack.c.b16 %v3154, %v3148
      %v3671 = vpack.c.b16 %v3155, %v3149
      %v3672 = vpack.c.b16 %v3156, %v3150
      %v3673 = vpack.c.b16 %v3163, %v3157
      %v3674 = vpack.c.b16 %v3164, %v3158
      %v3675 = vpack.c.b16 %v3165, %v3159
      %v3676 = vpack.c.b16 %v3166, %v3160
      %v3677 = vpack.c.b16 %v3167, %v3161
      %v3678 = vpack.c.b16 %v3168, %v3162
      %v3679 = vpack.c.b16 %v3175, %v3169
      %v3680 = vpack.c.b16 %v3176, %v3170
      %v3681 = vpack.c.b16 %v3177, %v3171
      %v3682 = vpack.c.b16 %v3178, %v3172
      %v3683 = vpack.c.b16 %v3179, %v3173
      %v3684 = vpack.c.b16 %v3180, %v3174
      %v3685 = vpack.c.b16 %v3187, %v3181
      %v3686 = vpack.c.b16 %v3188, %v3182
      %v3687 = vpack.c.b16 %v3189, %v3183
      %v3688 = vpack.c.b16 %v3190, %v3184
      %v3689 = vpack.c.b16 %v3191, %v3185
      %v3690 = vpack.c.b16 %v3192, %v3186
      %v3691 = vpack.c.b16 %v3199, %v3193
      %v3692 = vpack.c.b16 %v3200, %v3194
      %v3693 = vpack.c.b16 %v3201, %v3195
      %v3694 = vpack.c.b16 %v3202, %v3196
      %v3695 = vpack.c.b16 %v3203, %v3197
      %v3696 = vpack.c.b16 %v3204, %v3198
      %v3697 = vpack.c.b16 %v3211, %v3205
      %v3698 = vpack.c.b16 %v3212, %v3206
      %v3699 = vpack.c.b16 %v3213, %v3207
      %v3700 = vpack.c.b16 %v3214, %v3208
      %v3701 = vpack.c.b16 %v3215, %v3209
      %v3702 = vpack.c.b16 %v3216, %v3210
      %v3703 = vpack.c.b16 %v3223, %v3217
      %v3704 = vpack.c.b16 %v3224, %v3218
      %v3705 = vpack.c.b16 %v3225, %v3219
      %v3706 = vpack.c.b16 %v3226, %v3220
      %v3707 = vpack.c.b16 %v3227, %v3221
      %v3708 = vpack.c.b16 %v3228, %v3222
      %v3709 = vpack.c.b16 %v3235, %v3229
      %v3710 = vpack.c.b16 %v3236, %v3230
      %v3711 = vpack.c.b16 %v3237, %v3231
      %v3712 = vpack.c.b16 %v3238, %v3232
      %v3713 = vpack.c.b16 %v3239, %v3233
      %v3714 = vpack.c.b16 %v3240, %v3234
      %v3715 = vpack.c.b16 %v3247, %v3241
      %v3716 = vpack.c.b16 %v3248, %v3242
      %v3717 = vpack.c.b16 %v3249, %v3243
      %v3718 = vpack.c.b16 %v3250, %v3244
      %v3719 = vpack.c.b16 %v3251, %v3245
      %v3720 = vpack.c.b16 %v3252, %v3246
      %v3721 = vpack.c.b16 %v3259, %v3253
      %v3722 = vpack.c.b16 %v3260, %v3254
      %v3723 = vpack.c.b16 %v3261, %v3255
      %v3724 = vpack.c.b16 %v3262, %v3256
      %v3725 = vpack.c.b16 %v3263, %v3257
      %v3726 = vpack.c.b16 %v3264, %v3258
      %v3727 = vpack.c.b16 %v3271, %v3265
      %v3728 = vpack.c.b16 %v3272, %v3266
      %v3729 = vpack.c.b16 %v3273, %v3267
      %v3730 = vpack.c.b16 %v3274, %v3268
      %v3731 = vpack.c.b16 %v3275, %v3269
      %v3732 = vpack.c.b16 %v3276, %v3270
      %v3733 = vpack.c.b16 %v3283, %v3277
      %v3734 = vpack.c.b16 %v3284, %v3278
      %v3735 = vpack.c.b16 %v3285, %v3279
      %v3736 = vpack.c.b16 %v3286, %v3280
      %v3737 = vpack.c.b16 %v3287, %v3281
      %v3738 = vpack.c.b16 %v3288, %v3282
      %v3739 = vpack.c.b16 %v3295, %v3289
      %v3740 = vpack.c.b16 %v3296, %v3290
      %v3741 = vpack.c.b16 %v3297, %v3291
      %v3742 = vpack.c.b16 %v3298, %v3292
      %v3743 = vpack.c.b16 %v3299, %v3293
      %v3744 = vpack.c.b16 %v3300, %v3294
      %v3745 = vpack.c.b16 %v3307, %v3301
      %v3746 = vpack.c.b16 %v3308, %v3302
      %v3747 = vpack.c.b16 %v3309, %v3303
      %v3748 = vpack.c.b16 %v3310, %v3304
      %v3749 = vpack.c.b16 %v3311, %v3305
      %v3750 = vpack.c.b16 %v3312, %v3306
      %v3751 = vpack.c.b16 %v3319, %v3313
      %v3752 = vpack.c.b16 %v3320, %v3314
      %v3753 = vpack.c.b16 %v3321, %v3315
      %v3754 = vpack.c.b16 %v3322, %v3316
      %v3755 = vpack.c.b16 %v3323, %v3317
      %v3756 = vpack.c.b16 %v3324, %v3318
      %v3757 = vpack.c.b16 %v3331, %v3325
      %v3758 = vpack.c.b16 %v3332, %v3326
      %v3759 = vpack.c.b16 %v3333, %v3327
      %v3760 = vpack.c.b16 %v3334, %v3328
      %v3761 = vpack.c.b16 %v3335, %v3329
      %v3762 = vpack.c.b16 %v3336, %v3330
      %v3763 = vpack.c.b16 %v3343, %v3337
      %v3764 = vpack.c.b16 %v3344, %v3338
      %v3765 = vpack.c.b16 %v3345, %v3339
      %v3766 = vpack.c.b16 %v3346, %v3340
      %v3767 = vpack.c.b16 %v3347, %v3341
      %v3768 = vpack.c.b16 %v3348, %v3342
      %v3769 = vpack.c.b16 %v3355, %v3349
      %v3770 = vpack.c.b16 %v3356, %v3350
      %v3771 = vpack.c.b16 %v3357, %v3351
      %v3772 = vpack.c.b16 %v3358, %v3352
      %v3773 = vpack.c.b16 %v3359, %v3353
      %v3774 = vpack.c.b16 %v3360, %v3354
      %v3775 = vpack.c.b16 %v3367, %v3361
      %v3776 = vpack.c.b16 %v3368, %v3362
      %v3777 = vpack.c.b16 %v3369, %v3363
      %v3778 = vpack.c.b16 %v3370, %v3364
      %v3779 = vpack.c.b16 %v3371, %v3365
      %v3780 = vpack.c.b16 %v3372, %v3366
      %v3781 = vpack.c.b16 %v3379, %v3373
      %v3782 = vpack.c.b16 %v3380, %v3374
      %v3783 = vpack.c.b16 %v3381, %v3375
      %v3784 = vpack.c.b16 %v3382, %v3376
      %v3785 = vpack.c.b16 %v3383, %v3377
      %v3786 = vpack.c.b16 %v3384, %v3378
      %v3787 = vpack.c.b16 %v3391, %v3385
      %v3788 = vpack.c.b16 %v3392, %v3386
      %v3789 = vpack.c.b16 %v3393, %v3387
      %v3790 = vpack.c.b16 %v3394, %v3388
      %v3791 = vpack.c.b16 %v3395, %v3389
      %v3792 = vpack.c.b16 %v3396, %v3390
      %v3793 = vpack.c.b16 %v3403, %v3397
      %v3794 = vpack.c.b16 %v3404, %v3398
      %v3795 = vpack.c.b16 %v3405, %v3399
      %v3796 = vpack.c.b16 %v3406, %v3400
      %v3797 = vpack.c.b16 %v3407, %v3401
      %v3798 = vpack.c.b16 %v3408, %v3402
      %v3799 = vpack.c.b16 %v3415, %v3409
      %v3800 = vpack.c.b16 %v3416, %v3410
      %v3801 = vpack.c.b16 %v3417, %v3411
      %v3802 = vpack.c.b16 %v3418, %v3412
      %v3803 = vpack.c.b16 %v3419, %v3413
      %v3804 = vpack.c.b16 %v3420, %v3414
      %v3805 = vpack.c.b16 %v3427, %v3421
      %v3806 = vpack.c.b16 %v3428, %v3422
      %v3807 = vpack.c.b16 %v3429, %v3423
      %v3808 = vpack.c.b16 %v3430, %v3424
      %v3809 = vpack.c.b16 %v3431, %v3425
      %v3810 = vpack.c.b16 %v3432, %v3426
      %v3811 = vpack.c.b16 %v3439, %v3433
      %v3812 = vpack.c.b16 %v3440, %v3434
      %v3813 = vpack.c.b16 %v3441, %v3435
      %v3814 = vpack.c.b16 %v3442, %v3436
      %v3815 = vpack.c.b16 %v3443, %v3437
      %v3816 = vpack.c.b16 %v3444, %v3438
      %v3817 = vpack.c.b16 %v3451, %v3445
      %v3818 = vpack.c.b16 %v3452, %v3446
      %v3819 = vpack.c.b16 %v3453, %v3447
      %v3820 = vpack.c.b16 %v3454, %v3448
      %v3821 = vpack.c.b16 %v3455, %v3449
      %v3822 = vpack.c.b16 %v3456, %v3450
      %v3823 = vpack.c.b16 %v3463, %v3457
      %v3824 = vpack.c.b16 %v3464, %v3458
      %v3825 = vpack.c.b16 %v3465, %v3459
      %v3826 = vpack.c.b16 %v3466, %v3460
      %v3827 = vpack.c.b16 %v3467, %v3461
      %v3828 = vpack.c.b16 %v3468, %v3462
      %v3829 = vpack.c.b16 %v3475, %v3469
      %v3830 = vpack.c.b16 %v3476, %v3470
      %v3831 = vpack.c.b16 %v3477, %v3471
      %v3832 = vpack.c.b16 %v3478, %v3472
      %v3833 = vpack.c.b16 %v3479, %v3473
      %v3834 = vpack.c.b16 %v3480, %v3474
      %v3835 = vpack.c.b16 %v3487, %v3481
      %v3836 = vpack.c.b16 %v3488, %v3482
      %v3837 = vpack.c.b16 %v3489, %v3483
      %v3838 = vpack.c.b16 %v3490, %v3484
      %v3839 = vpack.c.b16 %v3491, %v3485
      %v3840 = vpack.c.b16 %v3492, %v3486
      %v3841 = vpack.c.b16 %v3499, %v3493
      %v3842 = vpack.c.b16 %v3500, %v3494
      %v3843 = vpack.c.b16 %v3501, %v3495
      %v3844 = vpack.c.b16 %v3502, %v3496
      %v3845 = vpack.c.b16 %v3503, %v3497
      %v3846 = vpack.c.b16 %v3504, %v3498
      %v3847 = vpack.c.b16 %v3511, %v3505
      %v3848 = vpack.c.b16 %v3512, %v3506
      %v3849 = vpack.c.b16 %v3513, %v3507
      %v3850 = vpack.c.b16 %v3514, %v3508
      %v3851 = vpack.c.b16 %v3515, %v3509
      %v3852 = vpack.c.b16 %v3516, %v3510
      %v3853 = vpack.c.b16 %v3523, %v3517
      %v3854 = vpack.c.b16 %v3524, %v3518
      %v3855 = vpack.c.b16 %v3525, %v3519
      %v3856 = vpack.c.b16 %v3526, %v3520
      %v3857 = vpack.c.b16 %v3527, %v3521
      %v3858 = vpack.c.b16 %v3528, %v3522
      %v3859 = vpack.c.b16 %v3535, %v3529
      %v3860 = vpack.c.b16 %v3536, %v3530
      %v3861 = vpack.c.b16 %v3537, %v3531
      %v3862 = vpack.c.b16 %v3538, %v3532
      %v3863 = vpack.c.b16 %v3539, %v3533
      %v3864 = vpack.c.b16 %v3540, %v3534
      %v3865 = vpack.c.b16 %v3547, %v3541
      %v3866 = vpack.c.b16 %v3548, %v3542
      %v3867 = vpack.c.b16 %v3549, %v3543
      %v3868 = vpack.c.b16 %v3550, %v3544
      %v3869 = vpack.c.b16 %v3551, %v3545
      %v3870 = vpack.c.b16 %v3552, %v3546
      %v3871 = vpack.c.b16 %v3559, %v3553
      %v3872 = vpack.c.b16 %v3560, %v3554
      %v3873 = vpack.c.b16 %v3561, %v3555
      %v3874 = vpack.c.b16 %v3562, %v3556
      %v3875 = vpack.c.b16 %v3563, %v3557
      %v3876 = vpack.c.b16 %v3564, %v3558
      %v3877 = vpack.c.b16 %v3571, %v3565
      %v3878 = vpack.c.b16 %v3572, %v3566
      %v3879 = vpack.c.b16 %v3573, %v3567
      %v3880 = vpack.c.b16 %v3574, %v3568
      %v3881 = vpack.c.b16 %v3575, %v3569
      %v3882 = vpack.c.b16 %v3576, %v3570
      %v3883 = vpack.c.b16 %v3583, %v3577
      %v3884 = vpack.c.b16 %v3584, %v3578
      %v3885 = vpack.c.b16 %v3585, %v3579
      %v3886 = vpack.c.b16 %v3586, %v3580
      %v3887 = vpack.c.b16 %v3587, %v3581
      %v3888 = vpack.c.b16 %v3588, %v3582
      %v3889 = vpack.c.b16 %v3595, %v3589
      %v3890 = vpack.c.b16 %v3596, %v3590
      %v3891 = vpack.c.b16 %v3597, %v3591
      %v3892 = vpack.c.b16 %v3598, %v3592
      %v3893 = vpack.c.b16 %v3599, %v3593
      %v3894 = vpack.c.b16 %v3600, %v3594
      %v3895 = vpack.c.b16 %v3607, %v3601
      %v3896 = vpack.c.b16 %v3608, %v3602
      %v3897 = vpack.c.b16 %v3609, %v3603
      %v3898 = vpack.c.b16 %v3610, %v3604
      %v3899 = vpack.c.b16 %v3611, %v3605
      %v3900 = vpack.c.b16 %v3612, %v3606
      %v4285 = vunpack.c.l.b16 %v2641
      %v4286 = vunpack.c.h.b16 %v2641
      %v4287 = vunpack.c.l.b16 %v2642
      %v4288 = vunpack.c.h.b16 %v2642
      %v4289 = vunpack.c.l.b16 %v2643
      %v4290 = vunpack.c.h.b16 %v2643
      %v4291 = vunpack.c.l.b16 %v2644
      %v4292 = vunpack.c.h.b16 %v2644
      %v4293 = vunpack.c.l.b16 %v2645
      %v4294 = vunpack.c.h.b16 %v2645
      %v4295 = vunpack.c.l.b16 %v2646
      %v4296 = vunpack.c.h.b16 %v2646
      %v4297 = vunpack.c.l.b16 %v2647
      %v4298 = vunpack.c.h.b16 %v2647
      %v4299 = vunpack.c.l.b16 %v2648
      %v4300 = vunpack.c.h.b16 %v2648
      %v4301 = vunpack.c.l.b16 %v2649
      %v4302 = vunpack.c.h.b16 %v2649
      %v4303 = vunpack.c.l.b16 %v2650
      %v4304 = vunpack.c.h.b16 %v2650
      %v4305 = vunpack.c.l.b16 %v2651
      %v4306 = vunpack.c.h.b16 %v2651
      %v4307 = vunpack.c.l.b16 %v2652
      %v4308 = vunpack.c.h.b16 %v2652
      %v4309 = vunpack.c.l.b16 %v2653
      %v4310 = vunpack.c.h.b16 %v2653
      %v4311 = vunpack.c.l.b16 %v2654
      %v4312 = vunpack.c.h.b16 %v2654
      %v4313 = vunpack.c.l.b16 %v2655
      %v4314 = vunpack.c.h.b16 %v2655
      %v4315 = vunpack.c.l.b16 %v2656
      %v4316 = vunpack.c.h.b16 %v2656
      %v4317 = vunpack.c.l.b16 %v2657
      %v4318 = vunpack.c.h.b16 %v2657
      %v4319 = vunpack.c.l.b16 %v2658
      %v4320 = vunpack.c.h.b16 %v2658
      %v4321 = vunpack.c.l.b16 %v2659
      %v4322 = vunpack.c.h.b16 %v2659
      %v4323 = vunpack.c.l.b16 %v2660
      %v4324 = vunpack.c.h.b16 %v2660
      %v4325 = vunpack.c.l.b16 %v2661
      %v4326 = vunpack.c.h.b16 %v2661
      %v4327 = vunpack.c.l.b16 %v2662
      %v4328 = vunpack.c.h.b16 %v2662
      %v4329 = vunpack.c.l.b16 %v2663
      %v4330 = vunpack.c.h.b16 %v2663
      %v4331 = vunpack.c.l.b16 %v2664
      %v4332 = vunpack.c.h.b16 %v2664
      %v4333 = vunpack.c.l.b16 %v2665
      %v4334 = vunpack.c.h.b16 %v2665
      %v4335 = vunpack.c.l.b16 %v2666
      %v4336 = vunpack.c.h.b16 %v2666
      %v4337 = vunpack.c.l.b16 %v2667
      %v4338 = vunpack.c.h.b16 %v2667
      %v4339 = vunpack.c.l.b16 %v2668
      %v4340 = vunpack.c.h.b16 %v2668
      %v4341 = vunpack.c.l.b16 %v2669
      %v4342 = vunpack.c.h.b16 %v2669
      %v4343 = vunpack.c.l.b16 %v2670
      %v4344 = vunpack.c.h.b16 %v2670
      %v4345 = vunpack.c.l.b16 %v2671
      %v4346 = vunpack.c.h.b16 %v2671
      %v4347 = vunpack.c.l.b16 %v2672
      %v4348 = vunpack.c.h.b16 %v2672
      %v4349 = vunpack.c.l.b16 %v2673
      %v4350 = vunpack.c.h.b16 %v2673
      %v4351 = vunpack.c.l.b16 %v2674
      %v4352 = vunpack.c.h.b16 %v2674
      %v4353 = vunpack.c.l.b16 %v2675
      %v4354 = vunpack.c.h.b16 %v2675
      %v4355 = vunpack.c.l.b16 %v2676
      %v4356 = vunpack.c.h.b16 %v2676
      %v4357 = vunpack.c.l.b16 %v2677
      %v4358 = vunpack.c.h.b16 %v2677
      %v4359 = vunpack.c.l.b16 %v2678
      %v4360 = vunpack.c.h.b16 %v2678
      %v4361 = vunpack.c.l.b16 %v2679
      %v4362 = vunpack.c.h.b16 %v2679
      %v4363 = vunpack.c.l.b16 %v2680
      %v4364 = vunpack.c.h.b16 %v2680
      %v4365 = vunpack.c.l.b16 %v2681
      %v4366 = vunpack.c.h.b16 %v2681
      %v4367 = vunpack.c.l.b16 %v2682
      %v4368 = vunpack.c.h.b16 %v2682
      %v4369 = vunpack.c.l.b16 %v2683
      %v4370 = vunpack.c.h.b16 %v2683
      %v4371 = vunpack.c.l.b16 %v2684
      %v4372 = vunpack.c.h.b16 %v2684
      %v4373 = vunpack.c.l.b16 %v2685
      %v4374 = vunpack.c.h.b16 %v2685
      %v4375 = vunpack.c.l.b16 %v2686
      %v4376 = vunpack.c.h.b16 %v2686
      %v4377 = vunpack.c.l.b16 %v2687
      %v4378 = vunpack.c.h.b16 %v2687
      %v4379 = vunpack.c.l.b16 %v2688
      %v4380 = vunpack.c.h.b16 %v2688
      %v4381 = vunpack.c.l.b16 %v2689
      %v4382 = vunpack.c.h.b16 %v2689
      %v4383 = vunpack.c.l.b16 %v2690
      %v4384 = vunpack.c.h.b16 %v2690
      %v4385 = vunpack.c.l.b16 %v2691
      %v4386 = vunpack.c.h.b16 %v2691
      %v4387 = vunpack.c.l.b16 %v2692
      %v4388 = vunpack.c.h.b16 %v2692
      %v4389 = vunpack.c.l.b16 %v2693
      %v4390 = vunpack.c.h.b16 %v2693
      %v4391 = vunpack.c.l.b16 %v2694
      %v4392 = vunpack.c.h.b16 %v2694
      %v4393 = vunpack.c.l.b16 %v2695
      %v4394 = vunpack.c.h.b16 %v2695
      %v4395 = vunpack.c.l.b16 %v2696
      %v4396 = vunpack.c.h.b16 %v2696
      %v4397 = vunpack.c.l.b16 %v2697
      %v4398 = vunpack.c.h.b16 %v2697
      %v4399 = vunpack.c.l.b16 %v2698
      %v4400 = vunpack.c.h.b16 %v2698
      %v4401 = vunpack.c.l.b16 %v2699
      %v4402 = vunpack.c.h.b16 %v2699
      %v4403 = vunpack.c.l.b16 %v2700
      %v4404 = vunpack.c.h.b16 %v2700
      %v4405 = vunpack.c.l.b16 %v2701
      %v4406 = vunpack.c.h.b16 %v2701
      %v4407 = vunpack.c.l.b16 %v2702
      %v4408 = vunpack.c.h.b16 %v2702
      %v4409 = vunpack.c.l.b16 %v2703
      %v4410 = vunpack.c.h.b16 %v2703
      %v4411 = vunpack.c.l.b16 %v2704
      %v4412 = vunpack.c.h.b16 %v2704
      %v4413 = vunpack.c.l.b16 %v2705
      %v4414 = vunpack.c.h.b16 %v2705
      %v4415 = vunpack.c.l.b16 %v2706
      %v4416 = vunpack.c.h.b16 %v2706
      %v4417 = vunpack.c.l.b16 %v2707
      %v4418 = vunpack.c.h.b16 %v2707
      %v4419 = vunpack.c.l.b16 %v2708
      %v4420 = vunpack.c.h.b16 %v2708
      %v4421 = vunpack.c.l.b16 %v2709
      %v4422 = vunpack.c.h.b16 %v2709
      %v4423 = vunpack.c.l.b16 %v2710
      %v4424 = vunpack.c.h.b16 %v2710
      %v4425 = vunpack.c.l.b16 %v2711
      %v4426 = vunpack.c.h.b16 %v2711
      %v4427 = vunpack.c.l.b16 %v2712
      %v4428 = vunpack.c.h.b16 %v2712
      %v4429 = vunpack.c.l.b16 %v2713
      %v4430 = vunpack.c.h.b16 %v2713
      %v4431 = vunpack.c.l.b16 %v2714
      %v4432 = vunpack.c.h.b16 %v2714
      %v4433 = vunpack.c.l.b16 %v2715
      %v4434 = vunpack.c.h.b16 %v2715
      %v4435 = vunpack.c.l.b16 %v2716
      %v4436 = vunpack.c.h.b16 %v2716
      %v4437 = vunpack.c.l.b16 %v2717
      %v4438 = vunpack.c.h.b16 %v2717
      %v4439 = vunpack.c.l.b16 %v2718
      %v4440 = vunpack.c.h.b16 %v2718
      %v4441 = vunpack.c.l.b16 %v2719
      %v4442 = vunpack.c.h.b16 %v2719
      %v4443 = vunpack.c.l.b16 %v2720
      %v4444 = vunpack.c.h.b16 %v2720
      %v4445 = vunpack.c.l.b16 %v2721
      %v4446 = vunpack.c.h.b16 %v2721
      %v4447 = vunpack.c.l.b16 %v2722
      %v4448 = vunpack.c.h.b16 %v2722
      %v4449 = vunpack.c.l.b16 %v2723
      %v4450 = vunpack.c.h.b16 %v2723
      %v4451 = vunpack.c.l.b16 %v2724
      %v4452 = vunpack.c.h.b16 %v2724
      %v4453 = vunpack.c.l.b16 %v2725
      %v4454 = vunpack.c.h.b16 %v2725
      %v4455 = vunpack.c.l.b16 %v2726
      %v4456 = vunpack.c.h.b16 %v2726
      %v4457 = vunpack.c.l.b16 %v2727
      %v4458 = vunpack.c.h.b16 %v2727
      %v4459 = vunpack.c.l.b16 %v2728
      %v4460 = vunpack.c.h.b16 %v2728
      %v4461 = vunpack.c.l.b16 %v2729
      %v4462 = vunpack.c.h.b16 %v2729
      %v4463 = vunpack.c.l.b16 %v2730
      %v4464 = vunpack.c.h.b16 %v2730
      %v4465 = vunpack.c.l.b16 %v2731
      %v4466 = vunpack.c.h.b16 %v2731
      %v4467 = vunpack.c.l.b16 %v2732
      %v4468 = vunpack.c.h.b16 %v2732
      %v4469 = vunpack.c.l.b16 %v2733
      %v4470 = vunpack.c.h.b16 %v2733
      %v4471 = vunpack.c.l.b16 %v2734
      %v4472 = vunpack.c.h.b16 %v2734
      %v4473 = vunpack.c.l.b16 %v2735
      %v4474 = vunpack.c.h.b16 %v2735
      %v4475 = vunpack.c.l.b16 %v2736
      %v4476 = vunpack.c.h.b16 %v2736
      %v4477 = vpack.c.b16 %v4287, %v4285
      %v4478 = vpack.c.b16 %v4288, %v4286
      %v4479 = vpack.c.b16 %v4291, %v4289
      %v4480 = vpack.c.b16 %v4292, %v4290
      %v4481 = vpack.c.b16 %v4295, %v4293
      %v4482 = vpack.c.b16 %v4296, %v4294
      %v4483 = vpack.c.b16 %v4299, %v4297
      %v4484 = vpack.c.b16 %v4300, %v4298
      %v4485 = vpack.c.b16 %v4303, %v4301
      %v4486 = vpack.c.b16 %v4304, %v4302
      %v4487 = vpack.c.b16 %v4307, %v4305
      %v4488 = vpack.c.b16 %v4308, %v4306
      %v4489 = vpack.c.b16 %v4311, %v4309
      %v4490 = vpack.c.b16 %v4312, %v4310
      %v4491 = vpack.c.b16 %v4315, %v4313
      %v4492 = vpack.c.b16 %v4316, %v4314
      %v4493 = vpack.c.b16 %v4319, %v4317
      %v4494 = vpack.c.b16 %v4320, %v4318
      %v4495 = vpack.c.b16 %v4323, %v4321
      %v4496 = vpack.c.b16 %v4324, %v4322
      %v4497 = vpack.c.b16 %v4327, %v4325
      %v4498 = vpack.c.b16 %v4328, %v4326
      %v4499 = vpack.c.b16 %v4331, %v4329
      %v4500 = vpack.c.b16 %v4332, %v4330
      %v4501 = vpack.c.b16 %v4335, %v4333
      %v4502 = vpack.c.b16 %v4336, %v4334
      %v4503 = vpack.c.b16 %v4339, %v4337
      %v4504 = vpack.c.b16 %v4340, %v4338
      %v4505 = vpack.c.b16 %v4343, %v4341
      %v4506 = vpack.c.b16 %v4344, %v4342
      %v4507 = vpack.c.b16 %v4347, %v4345
      %v4508 = vpack.c.b16 %v4348, %v4346
      %v4509 = vpack.c.b16 %v4351, %v4349
      %v4510 = vpack.c.b16 %v4352, %v4350
      %v4511 = vpack.c.b16 %v4355, %v4353
      %v4512 = vpack.c.b16 %v4356, %v4354
      %v4513 = vpack.c.b16 %v4359, %v4357
      %v4514 = vpack.c.b16 %v4360, %v4358
      %v4515 = vpack.c.b16 %v4363, %v4361
      %v4516 = vpack.c.b16 %v4364, %v4362
      %v4517 = vpack.c.b16 %v4367, %v4365
      %v4518 = vpack.c.b16 %v4368, %v4366
      %v4519 = vpack.c.b16 %v4371, %v4369
      %v4520 = vpack.c.b16 %v4372, %v4370
      %v4521 = vpack.c.b16 %v4375, %v4373
      %v4522 = vpack.c.b16 %v4376, %v4374
      %v4523 = vpack.c.b16 %v4379, %v4377
      %v4524 = vpack.c.b16 %v4380, %v4378
      %v4525 = vpack.c.b16 %v4383, %v4381
      %v4526 = vpack.c.b16 %v4384, %v4382
      %v4527 = vpack.c.b16 %v4387, %v4385
      %v4528 = vpack.c.b16 %v4388, %v4386
      %v4529 = vpack.c.b16 %v4391, %v4389
      %v4530 = vpack.c.b16 %v4392, %v4390
      %v4531 = vpack.c.b16 %v4395, %v4393
      %v4532 = vpack.c.b16 %v4396, %v4394
      %v4533 = vpack.c.b16 %v4399, %v4397
      %v4534 = vpack.c.b16 %v4400, %v4398
      %v4535 = vpack.c.b16 %v4403, %v4401
      %v4536 = vpack.c.b16 %v4404, %v4402
      %v4537 = vpack.c.b16 %v4407, %v4405
      %v4538 = vpack.c.b16 %v4408, %v4406
      %v4539 = vpack.c.b16 %v4411, %v4409
      %v4540 = vpack.c.b16 %v4412, %v4410
      %v4541 = vpack.c.b16 %v4415, %v4413
      %v4542 = vpack.c.b16 %v4416, %v4414
      %v4543 = vpack.c.b16 %v4419, %v4417
      %v4544 = vpack.c.b16 %v4420, %v4418
      %v4545 = vpack.c.b16 %v4423, %v4421
      %v4546 = vpack.c.b16 %v4424, %v4422
      %v4547 = vpack.c.b16 %v4427, %v4425
      %v4548 = vpack.c.b16 %v4428, %v4426
      %v4549 = vpack.c.b16 %v4431, %v4429
      %v4550 = vpack.c.b16 %v4432, %v4430
      %v4551 = vpack.c.b16 %v4435, %v4433
      %v4552 = vpack.c.b16 %v4436, %v4434
      %v4553 = vpack.c.b16 %v4439, %v4437
      %v4554 = vpack.c.b16 %v4440, %v4438
      %v4555 = vpack.c.b16 %v4443, %v4441
      %v4556 = vpack.c.b16 %v4444, %v4442
      %v4557 = vpack.c.b16 %v4447, %v4445
      %v4558 = vpack.c.b16 %v4448, %v4446
      %v4559 = vpack.c.b16 %v4451, %v4449
      %v4560 = vpack.c.b16 %v4452, %v4450
      %v4561 = vpack.c.b16 %v4455, %v4453
      %v4562 = vpack.c.b16 %v4456, %v4454
      %v4563 = vpack.c.b16 %v4459, %v4457
      %v4564 = vpack.c.b16 %v4460, %v4458
      %v4565 = vpack.c.b16 %v4463, %v4461
      %v4566 = vpack.c.b16 %v4464, %v4462
      %v4567 = vpack.c.b16 %v4467, %v4465
      %v4568 = vpack.c.b16 %v4468, %v4466
      %v4569 = vpack.c.b16 %v4471, %v4469
      %v4570 = vpack.c.b16 %v4472, %v4470
      %v4571 = vpack.c.b16 %v4475, %v4473
      %v4572 = vpack.c.b16 %v4476, %v4474
      %4669 = vmatprep.subr.bf16.mxu0 %v4492
      %4670 = vmatpush1.bf16.msra.mxu0 %v4491
      %4671 = vmatprep.subr.bf16.mxu0 %v4490
      %4672 = vmatpush1.bf16.msra.mxu0 %v4489
      %4673 = vmatprep.subr.bf16.mxu0 %v4488
      %4674 = vmatpush1.bf16.msra.mxu0 %v4487
      %4675 = vmatprep.subr.bf16.mxu0 %v4486
      %4676 = vmatpush1.bf16.msra.mxu0 %v4485
      %4677 = vmatprep.subr.bf16.mxu0 %v4484
      %4678 = vmatpush1.bf16.msra.mxu0 %v4483
      %4679 = vmatprep.subr.bf16.mxu0 %v4482
      %4680 = vmatpush1.bf16.msra.mxu0 %v4481
      %4681 = vmatprep.subr.bf16.mxu0 %v4480
      %4682 = vmatpush1.bf16.msra.mxu0 %v4479
      %4683 = vmatprep.subr.bf16.mxu0 %v4478
      %4684 = vmatpush1.bf16.msra.mxu0 %v4477
      %4685 = vmatprep.subr.bf16.mxu0 %v4508
      %4686 = vmatpush2.bf16.msra.mxu0 %v4507
      %4687 = vmatprep.subr.bf16.mxu0 %v4506
      %4688 = vmatpush2.bf16.msra.mxu0 %v4505
      %4689 = vmatprep.subr.bf16.mxu0 %v4504
      %4690 = vmatpush2.bf16.msra.mxu0 %v4503
      %4691 = vmatprep.subr.bf16.mxu0 %v4502
      %4692 = vmatpush2.bf16.msra.mxu0 %v4501
      %4693 = vmatprep.subr.bf16.mxu0 %v4500
      %4694 = vmatpush2.bf16.msra.mxu0 %v4499
      %4695 = vmatprep.subr.bf16.mxu0 %v4498
      %4696 = vmatpush2.bf16.msra.mxu0 %v4497
      %4697 = vmatprep.subr.bf16.mxu0 %v4496
      %4698 = vmatpush2.bf16.msra.mxu0 %v4495
      %4699 = vmatprep.subr.bf16.mxu0 %v4494
      %4700 = vmatpush2.bf16.msra.mxu0 %v4493
      %4701 = vmatprep.mubr.bf16.mxu0 %v3614
      %4702 = vmatmul.mubr.bf16.gmra.mxu0 %v3613
      %v4703 = vpop.f32.mrf.mxu0
      %v4704 = vadd.f32 %v2742, %v4703
      %v4705 = vpop.f32.mrf.mxu0
      %v4706 = vadd.f32 %v2746, %v4705
      %v4707 = vpop.f32.mrf.mxu0
      %v4708 = vadd.f32 %v2742, %v4707
      %v4709 = vpop.f32.mrf.mxu0
      %v4710 = vadd.f32 %v2746, %v4709
      %4711 = vmatprep.mubr.bf16.mxu0 %v3620
      %4712 = vmatmul.mubr.bf16.gmra.mxu0 %v3619
      %v4713 = vpop.f32.mrf.mxu0
      %v4714 = vadd.f32 %v2742, %v4713
      %v4715 = vpop.f32.mrf.mxu0
      %v4716 = vadd.f32 %v2746, %v4715
      %v4717 = vpop.f32.mrf.mxu0
      %v4718 = vadd.f32 %v2742, %v4717
      %v4719 = vpop.f32.mrf.mxu0
      %v4720 = vadd.f32 %v2746, %v4719
      %4721 = vmatprep.mubr.bf16.mxu0 %v3626
      %4722 = vmatmul.mubr.bf16.gmra.mxu0 %v3625
      %v4723 = vpop.f32.mrf.mxu0
      %v4724 = vadd.f32 %v2742, %v4723
      %v4725 = vpop.f32.mrf.mxu0
      %v4726 = vadd.f32 %v2746, %v4725
      %v4727 = vpop.f32.mrf.mxu0
      %v4728 = vadd.f32 %v2742, %v4727
      %v4729 = vpop.f32.mrf.mxu0
      %v4730 = vadd.f32 %v2746, %v4729
      %4731 = vmatprep.mubr.bf16.mxu0 %v3632
      %4732 = vmatmul.mubr.bf16.gmra.mxu0 %v3631
      %v4733 = vpop.f32.mrf.mxu0
      %v4734 = vadd.f32 %v2742, %v4733
      %v4735 = vpop.f32.mrf.mxu0
      %v4736 = vadd.f32 %v2746, %v4735
      %v4737 = vpop.f32.mrf.mxu0
      %v4738 = vadd.f32 %v2742, %v4737
      %v4739 = vpop.f32.mrf.mxu0
      %v4740 = vadd.f32 %v2746, %v4739
      %4741 = vmatprep.mubr.bf16.mxu0 %v3638
      %4742 = vmatmul.mubr.bf16.gmra.mxu0 %v3637
      %v4743 = vpop.f32.mrf.mxu0
      %v4744 = vadd.f32 %v2742, %v4743
      %v4745 = vpop.f32.mrf.mxu0
      %v4746 = vadd.f32 %v2746, %v4745
      %v4747 = vpop.f32.mrf.mxu0
      %v4748 = vadd.f32 %v2742, %v4747
      %v4749 = vpop.f32.mrf.mxu0
      %v4750 = vadd.f32 %v2746, %v4749
      %4751 = vmatprep.mubr.bf16.mxu0 %v3644
      %4752 = vmatmul.mubr.bf16.gmra.mxu0 %v3643
      %v4753 = vpop.f32.mrf.mxu0
      %v4754 = vadd.f32 %v2742, %v4753
      %v4755 = vpop.f32.mrf.mxu0
      %v4756 = vadd.f32 %v2746, %v4755
      %v4757 = vpop.f32.mrf.mxu0
      %v4758 = vadd.f32 %v2742, %v4757
      %v4759 = vpop.f32.mrf.mxu0
      %v4760 = vadd.f32 %v2746, %v4759
      %4761 = vmatprep.mubr.bf16.mxu0 %v3650
      %4762 = vmatmul.mubr.bf16.gmra.mxu0 %v3649
      %v4763 = vpop.f32.mrf.mxu0
      %v4764 = vadd.f32 %v2742, %v4763
      %v4765 = vpop.f32.mrf.mxu0
      %v4766 = vadd.f32 %v2746, %v4765
      %v4767 = vpop.f32.mrf.mxu0
      %v4768 = vadd.f32 %v2742, %v4767
      %v4769 = vpop.f32.mrf.mxu0
      %v4770 = vadd.f32 %v2746, %v4769
      %4771 = vmatprep.mubr.bf16.mxu0 %v3656
      %4772 = vmatmul.mubr.bf16.gmra.mxu0 %v3655
      %v4773 = vpop.f32.mrf.mxu0
      %v4774 = vadd.f32 %v2742, %v4773
      %v4775 = vpop.f32.mrf.mxu0
      %v4776 = vadd.f32 %v2746, %v4775
      %v4777 = vpop.f32.mrf.mxu0
      %v4778 = vadd.f32 %v2742, %v4777
      %v4779 = vpop.f32.mrf.mxu0
      %v4780 = vadd.f32 %v2746, %v4779
      %4781 = vmatprep.mubr.bf16.mxu0 %v3662
      %4782 = vmatmul.mubr.bf16.gmra.mxu0 %v3661
      %v4783 = vpop.f32.mrf.mxu0
      %v4784 = vadd.f32 %v2742, %v4783
      %v4785 = vpop.f32.mrf.mxu0
      %v4786 = vadd.f32 %v2746, %v4785
      %v4787 = vpop.f32.mrf.mxu0
      %v4788 = vadd.f32 %v2742, %v4787
      %v4789 = vpop.f32.mrf.mxu0
      %v4790 = vadd.f32 %v2746, %v4789
      %4791 = vmatprep.mubr.bf16.mxu0 %v3668
      %4792 = vmatmul.mubr.bf16.gmra.mxu0 %v3667
      %v4793 = vpop.f32.mrf.mxu0
      %v4794 = vadd.f32 %v2742, %v4793
      %v4795 = vpop.f32.mrf.mxu0
      %v4796 = vadd.f32 %v2746, %v4795
      %v4797 = vpop.f32.mrf.mxu0
      %v4798 = vadd.f32 %v2742, %v4797
      %v4799 = vpop.f32.mrf.mxu0
      %v4800 = vadd.f32 %v2746, %v4799
      %4801 = vmatprep.mubr.bf16.mxu0 %v3674
      %4802 = vmatmul.mubr.bf16.gmra.mxu0 %v3673
      %v4803 = vpop.f32.mrf.mxu0
      %v4804 = vadd.f32 %v2742, %v4803
      %v4805 = vpop.f32.mrf.mxu0
      %v4806 = vadd.f32 %v2746, %v4805
      %v4807 = vpop.f32.mrf.mxu0
      %v4808 = vadd.f32 %v2742, %v4807
      %v4809 = vpop.f32.mrf.mxu0
      %v4810 = vadd.f32 %v2746, %v4809
      %4811 = vmatprep.mubr.bf16.mxu0 %v3680
      %4812 = vmatmul.mubr.bf16.gmra.mxu0 %v3679
      %v4813 = vpop.f32.mrf.mxu0
      %v4814 = vadd.f32 %v2742, %v4813
      %v4815 = vpop.f32.mrf.mxu0
      %v4816 = vadd.f32 %v2746, %v4815
      %v4817 = vpop.f32.mrf.mxu0
      %v4818 = vadd.f32 %v2742, %v4817
      %v4819 = vpop.f32.mrf.mxu0
      %v4820 = vadd.f32 %v2746, %v4819
      %4821 = vmatprep.mubr.bf16.mxu0 %v3686
      %4822 = vmatmul.mubr.bf16.gmra.mxu0 %v3685
      %v4823 = vpop.f32.mrf.mxu0
      %v4824 = vadd.f32 %v2742, %v4823
      %v4825 = vpop.f32.mrf.mxu0
      %v4826 = vadd.f32 %v2746, %v4825
      %v4827 = vpop.f32.mrf.mxu0
      %v4828 = vadd.f32 %v2742, %v4827
      %v4829 = vpop.f32.mrf.mxu0
      %v4830 = vadd.f32 %v2746, %v4829
      %4831 = vmatprep.mubr.bf16.mxu0 %v3692
      %4832 = vmatmul.mubr.bf16.gmra.mxu0 %v3691
      %v4833 = vpop.f32.mrf.mxu0
      %v4834 = vadd.f32 %v2742, %v4833
      %v4835 = vpop.f32.mrf.mxu0
      %v4836 = vadd.f32 %v2746, %v4835
      %v4837 = vpop.f32.mrf.mxu0
      %v4838 = vadd.f32 %v2742, %v4837
      %v4839 = vpop.f32.mrf.mxu0
      %v4840 = vadd.f32 %v2746, %v4839
      %4841 = vmatprep.mubr.bf16.mxu0 %v3698
      %4842 = vmatmul.mubr.bf16.gmra.mxu0 %v3697
      %v4843 = vpop.f32.mrf.mxu0
      %v4844 = vadd.f32 %v2742, %v4843
      %v4845 = vpop.f32.mrf.mxu0
      %v4846 = vadd.f32 %v2746, %v4845
      %v4847 = vpop.f32.mrf.mxu0
      %v4848 = vadd.f32 %v2742, %v4847
      %v4849 = vpop.f32.mrf.mxu0
      %v4850 = vadd.f32 %v2746, %v4849
      %4851 = vmatprep.mubr.bf16.mxu0 %v3704
      %4852 = vmatmul.mubr.bf16.gmra.mxu0 %v3703
      %v4853 = vpop.f32.mrf.mxu0
      %v4854 = vadd.f32 %v2742, %v4853
      %v4855 = vpop.f32.mrf.mxu0
      %v4856 = vadd.f32 %v2746, %v4855
      %v4857 = vpop.f32.mrf.mxu0
      %v4858 = vadd.f32 %v2742, %v4857
      %v4859 = vpop.f32.mrf.mxu0
      %v4860 = vadd.f32 %v2746, %v4859
      %4861 = vmatprep.mubr.bf16.mxu0 %v3710
      %4862 = vmatmul.mubr.bf16.gmra.mxu0 %v3709
      %v4863 = vpop.f32.mrf.mxu0
      %v4864 = vadd.f32 %v2742, %v4863
      %v4865 = vpop.f32.mrf.mxu0
      %v4866 = vadd.f32 %v2746, %v4865
      %v4867 = vpop.f32.mrf.mxu0
      %v4868 = vadd.f32 %v2742, %v4867
      %v4869 = vpop.f32.mrf.mxu0
      %v4870 = vadd.f32 %v2746, %v4869
      %4871 = vmatprep.mubr.bf16.mxu0 %v3716
      %4872 = vmatmul.mubr.bf16.gmra.mxu0 %v3715
      %v4873 = vpop.f32.mrf.mxu0
      %v4874 = vadd.f32 %v2742, %v4873
      %v4875 = vpop.f32.mrf.mxu0
      %v4876 = vadd.f32 %v2746, %v4875
      %v4877 = vpop.f32.mrf.mxu0
      %v4878 = vadd.f32 %v2742, %v4877
      %v4879 = vpop.f32.mrf.mxu0
      %v4880 = vadd.f32 %v2746, %v4879
      %4881 = vmatprep.mubr.bf16.mxu0 %v3722
      %4882 = vmatmul.mubr.bf16.gmra.mxu0 %v3721
      %v4883 = vpop.f32.mrf.mxu0
      %v4884 = vadd.f32 %v2742, %v4883
      %v4885 = vpop.f32.mrf.mxu0
      %v4886 = vadd.f32 %v2746, %v4885
      %v4887 = vpop.f32.mrf.mxu0
      %v4888 = vadd.f32 %v2742, %v4887
      %v4889 = vpop.f32.mrf.mxu0
      %v4890 = vadd.f32 %v2746, %v4889
      %4891 = vmatprep.mubr.bf16.mxu0 %v3728
      %4892 = vmatmul.mubr.bf16.gmra.mxu0 %v3727
      %v4893 = vpop.f32.mrf.mxu0
      %v4894 = vadd.f32 %v2742, %v4893
      %v4895 = vpop.f32.mrf.mxu0
      %v4896 = vadd.f32 %v2746, %v4895
      %v4897 = vpop.f32.mrf.mxu0
      %v4898 = vadd.f32 %v2742, %v4897
      %v4899 = vpop.f32.mrf.mxu0
      %v4900 = vadd.f32 %v2746, %v4899
      %4901 = vmatprep.mubr.bf16.mxu0 %v3734
      %4902 = vmatmul.mubr.bf16.gmra.mxu0 %v3733
      %v4903 = vpop.f32.mrf.mxu0
      %v4904 = vadd.f32 %v2742, %v4903
      %v4905 = vpop.f32.mrf.mxu0
      %v4906 = vadd.f32 %v2746, %v4905
      %v4907 = vpop.f32.mrf.mxu0
      %v4908 = vadd.f32 %v2742, %v4907
      %v4909 = vpop.f32.mrf.mxu0
      %v4910 = vadd.f32 %v2746, %v4909
      %4911 = vmatprep.mubr.bf16.mxu0 %v3740
      %4912 = vmatmul.mubr.bf16.gmra.mxu0 %v3739
      %v4913 = vpop.f32.mrf.mxu0
      %v4914 = vadd.f32 %v2742, %v4913
      %v4915 = vpop.f32.mrf.mxu0
      %v4916 = vadd.f32 %v2746, %v4915
      %v4917 = vpop.f32.mrf.mxu0
      %v4918 = vadd.f32 %v2742, %v4917
      %v4919 = vpop.f32.mrf.mxu0
      %v4920 = vadd.f32 %v2746, %v4919
      %4921 = vmatprep.mubr.bf16.mxu0 %v3746
      %4922 = vmatmul.mubr.bf16.gmra.mxu0 %v3745
      %v4923 = vpop.f32.mrf.mxu0
      %v4924 = vadd.f32 %v2742, %v4923
      %v4925 = vpop.f32.mrf.mxu0
      %v4926 = vadd.f32 %v2746, %v4925
      %v4927 = vpop.f32.mrf.mxu0
      %v4928 = vadd.f32 %v2742, %v4927
      %v4929 = vpop.f32.mrf.mxu0
      %v4930 = vadd.f32 %v2746, %v4929
      %4931 = vmatprep.mubr.bf16.mxu0 %v3752
      %4932 = vmatmul.mubr.bf16.gmra.mxu0 %v3751
      %v4933 = vpop.f32.mrf.mxu0
      %v4934 = vadd.f32 %v2742, %v4933
      %v4935 = vpop.f32.mrf.mxu0
      %v4936 = vadd.f32 %v2746, %v4935
      %v4937 = vpop.f32.mrf.mxu0
      %v4938 = vadd.f32 %v2742, %v4937
      %v4939 = vpop.f32.mrf.mxu0
      %v4940 = vadd.f32 %v2746, %v4939
      %4941 = vmatprep.mubr.bf16.mxu0 %v3758
      %4942 = vmatmul.mubr.bf16.gmra.mxu0 %v3757
      %v4943 = vpop.f32.mrf.mxu0
      %v4944 = vadd.f32 %v2742, %v4943
      %v4945 = vpop.f32.mrf.mxu0
      %v4946 = vadd.f32 %v2746, %v4945
      %v4947 = vpop.f32.mrf.mxu0
      %v4948 = vadd.f32 %v2742, %v4947
      %v4949 = vpop.f32.mrf.mxu0
      %v4950 = vadd.f32 %v2746, %v4949
      %4951 = vmatprep.mubr.bf16.mxu0 %v3764
      %4952 = vmatmul.mubr.bf16.gmra.mxu0 %v3763
      %v4953 = vpop.f32.mrf.mxu0
      %v4954 = vadd.f32 %v2742, %v4953
      %v4955 = vpop.f32.mrf.mxu0
      %v4956 = vadd.f32 %v2746, %v4955
      %v4957 = vpop.f32.mrf.mxu0
      %v4958 = vadd.f32 %v2742, %v4957
      %v4959 = vpop.f32.mrf.mxu0
      %v4960 = vadd.f32 %v2746, %v4959
      %4961 = vmatprep.mubr.bf16.mxu0 %v3770
      %4962 = vmatmul.mubr.bf16.gmra.mxu0 %v3769
      %v4963 = vpop.f32.mrf.mxu0
      %v4964 = vadd.f32 %v2742, %v4963
      %v4965 = vpop.f32.mrf.mxu0
      %v4966 = vadd.f32 %v2746, %v4965
      %v4967 = vpop.f32.mrf.mxu0
      %v4968 = vadd.f32 %v2742, %v4967
      %v4969 = vpop.f32.mrf.mxu0
      %v4970 = vadd.f32 %v2746, %v4969
      %4971 = vmatprep.mubr.bf16.mxu0 %v3776
      %4972 = vmatmul.mubr.bf16.gmra.mxu0 %v3775
      %v4973 = vpop.f32.mrf.mxu0
      %v4974 = vadd.f32 %v2742, %v4973
      %v4975 = vpop.f32.mrf.mxu0
      %v4976 = vadd.f32 %v2746, %v4975
      %v4977 = vpop.f32.mrf.mxu0
      %v4978 = vadd.f32 %v2742, %v4977
      %v4979 = vpop.f32.mrf.mxu0
      %v4980 = vadd.f32 %v2746, %v4979
      %4981 = vmatprep.mubr.bf16.mxu0 %v3782
      %4982 = vmatmul.mubr.bf16.gmra.mxu0 %v3781
      %v4983 = vpop.f32.mrf.mxu0
      %v4984 = vadd.f32 %v2742, %v4983
      %v4985 = vpop.f32.mrf.mxu0
      %v4986 = vadd.f32 %v2746, %v4985
      %v4987 = vpop.f32.mrf.mxu0
      %v4988 = vadd.f32 %v2742, %v4987
      %v4989 = vpop.f32.mrf.mxu0
      %v4990 = vadd.f32 %v2746, %v4989
      %4991 = vmatprep.mubr.bf16.mxu0 %v3788
      %4992 = vmatmul.mubr.bf16.gmra.mxu0 %v3787
      %v4993 = vpop.f32.mrf.mxu0
      %v4994 = vadd.f32 %v2742, %v4993
      %v4995 = vpop.f32.mrf.mxu0
      %v4996 = vadd.f32 %v2746, %v4995
      %v4997 = vpop.f32.mrf.mxu0
      %v4998 = vadd.f32 %v2742, %v4997
      %v4999 = vpop.f32.mrf.mxu0
      %v5000 = vadd.f32 %v2746, %v4999
      %5001 = vmatprep.mubr.bf16.mxu0 %v3794
      %5002 = vmatmul.mubr.bf16.gmra.mxu0 %v3793
      %v5003 = vpop.f32.mrf.mxu0
      %v5004 = vadd.f32 %v2742, %v5003
      %v5005 = vpop.f32.mrf.mxu0
      %v5006 = vadd.f32 %v2746, %v5005
      %v5007 = vpop.f32.mrf.mxu0
      %v5008 = vadd.f32 %v2742, %v5007
      %v5009 = vpop.f32.mrf.mxu0
      %v5010 = vadd.f32 %v2746, %v5009
      %5011 = vmatprep.mubr.bf16.mxu0 %v3800
      %5012 = vmatmul.mubr.bf16.gmra.mxu0 %v3799
      %v5013 = vpop.f32.mrf.mxu0
      %v5014 = vadd.f32 %v2742, %v5013
      %v5015 = vpop.f32.mrf.mxu0
      %v5016 = vadd.f32 %v2746, %v5015
      %v5017 = vpop.f32.mrf.mxu0
      %v5018 = vadd.f32 %v2742, %v5017
      %v5019 = vpop.f32.mrf.mxu0
      %v5020 = vadd.f32 %v2746, %v5019
      %5021 = vmatprep.mubr.bf16.mxu0 %v3806
      %5022 = vmatmul.mubr.bf16.gmra.mxu0 %v3805
      %v5023 = vpop.f32.mrf.mxu0
      %v5024 = vadd.f32 %v2742, %v5023
      %v5025 = vpop.f32.mrf.mxu0
      %v5026 = vadd.f32 %v2746, %v5025
      %v5027 = vpop.f32.mrf.mxu0
      %v5028 = vadd.f32 %v2742, %v5027
      %v5029 = vpop.f32.mrf.mxu0
      %v5030 = vadd.f32 %v2746, %v5029
      %5031 = vmatprep.mubr.bf16.mxu0 %v3812
      %5032 = vmatmul.mubr.bf16.gmra.mxu0 %v3811
      %v5033 = vpop.f32.mrf.mxu0
      %v5034 = vadd.f32 %v2742, %v5033
      %v5035 = vpop.f32.mrf.mxu0
      %v5036 = vadd.f32 %v2746, %v5035
      %v5037 = vpop.f32.mrf.mxu0
      %v5038 = vadd.f32 %v2742, %v5037
      %v5039 = vpop.f32.mrf.mxu0
      %v5040 = vadd.f32 %v2746, %v5039
      %5041 = vmatprep.mubr.bf16.mxu0 %v3818
      %5042 = vmatmul.mubr.bf16.gmra.mxu0 %v3817
      %v5043 = vpop.f32.mrf.mxu0
      %v5044 = vadd.f32 %v2742, %v5043
      %v5045 = vpop.f32.mrf.mxu0
      %v5046 = vadd.f32 %v2746, %v5045
      %v5047 = vpop.f32.mrf.mxu0
      %v5048 = vadd.f32 %v2742, %v5047
      %v5049 = vpop.f32.mrf.mxu0
      %v5050 = vadd.f32 %v2746, %v5049
      %5051 = vmatprep.mubr.bf16.mxu0 %v3824
      %5052 = vmatmul.mubr.bf16.gmra.mxu0 %v3823
      %v5053 = vpop.f32.mrf.mxu0
      %v5054 = vadd.f32 %v2742, %v5053
      %v5055 = vpop.f32.mrf.mxu0
      %v5056 = vadd.f32 %v2746, %v5055
      %v5057 = vpop.f32.mrf.mxu0
      %v5058 = vadd.f32 %v2742, %v5057
      %v5059 = vpop.f32.mrf.mxu0
      %v5060 = vadd.f32 %v2746, %v5059
      %5061 = vmatprep.mubr.bf16.mxu0 %v3830
      %5062 = vmatmul.mubr.bf16.gmra.mxu0 %v3829
      %v5063 = vpop.f32.mrf.mxu0
      %v5064 = vadd.f32 %v2742, %v5063
      %v5065 = vpop.f32.mrf.mxu0
      %v5066 = vadd.f32 %v2746, %v5065
      %v5067 = vpop.f32.mrf.mxu0
      %v5068 = vadd.f32 %v2742, %v5067
      %v5069 = vpop.f32.mrf.mxu0
      %v5070 = vadd.f32 %v2746, %v5069
      %5071 = vmatprep.mubr.bf16.mxu0 %v3836
      %5072 = vmatmul.mubr.bf16.gmra.mxu0 %v3835
      %v5073 = vpop.f32.mrf.mxu0
      %v5074 = vadd.f32 %v2742, %v5073
      %v5075 = vpop.f32.mrf.mxu0
      %v5076 = vadd.f32 %v2746, %v5075
      %v5077 = vpop.f32.mrf.mxu0
      %v5078 = vadd.f32 %v2742, %v5077
      %v5079 = vpop.f32.mrf.mxu0
      %v5080 = vadd.f32 %v2746, %v5079
      %5081 = vmatprep.mubr.bf16.mxu0 %v3842
      %5082 = vmatmul.mubr.bf16.gmra.mxu0 %v3841
      %v5083 = vpop.f32.mrf.mxu0
      %v5084 = vadd.f32 %v2742, %v5083
      %v5085 = vpop.f32.mrf.mxu0
      %v5086 = vadd.f32 %v2746, %v5085
      %v5087 = vpop.f32.mrf.mxu0
      %v5088 = vadd.f32 %v2742, %v5087
      %v5089 = vpop.f32.mrf.mxu0
      %v5090 = vadd.f32 %v2746, %v5089
      %5091 = vmatprep.mubr.bf16.mxu0 %v3848
      %5092 = vmatmul.mubr.bf16.gmra.mxu0 %v3847
      %v5093 = vpop.f32.mrf.mxu0
      %v5094 = vadd.f32 %v2742, %v5093
      %v5095 = vpop.f32.mrf.mxu0
      %v5096 = vadd.f32 %v2746, %v5095
      %v5097 = vpop.f32.mrf.mxu0
      %v5098 = vadd.f32 %v2742, %v5097
      %v5099 = vpop.f32.mrf.mxu0
      %v5100 = vadd.f32 %v2746, %v5099
      %5101 = vmatprep.mubr.bf16.mxu0 %v3854
      %5102 = vmatmul.mubr.bf16.gmra.mxu0 %v3853
      %v5103 = vpop.f32.mrf.mxu0
      %v5104 = vadd.f32 %v2742, %v5103
      %v5105 = vpop.f32.mrf.mxu0
      %v5106 = vadd.f32 %v2746, %v5105
      %v5107 = vpop.f32.mrf.mxu0
      %v5108 = vadd.f32 %v2742, %v5107
      %v5109 = vpop.f32.mrf.mxu0
      %v5110 = vadd.f32 %v2746, %v5109
      %5111 = vmatprep.mubr.bf16.mxu0 %v3860
      %5112 = vmatmul.mubr.bf16.gmra.mxu0 %v3859
      %v5113 = vpop.f32.mrf.mxu0
      %v5114 = vadd.f32 %v2742, %v5113
      %v5115 = vpop.f32.mrf.mxu0
      %v5116 = vadd.f32 %v2746, %v5115
      %v5117 = vpop.f32.mrf.mxu0
      %v5118 = vadd.f32 %v2742, %v5117
      %v5119 = vpop.f32.mrf.mxu0
      %v5120 = vadd.f32 %v2746, %v5119
      %5121 = vmatprep.mubr.bf16.mxu0 %v3866
      %5122 = vmatmul.mubr.bf16.gmra.mxu0 %v3865
      %v5123 = vpop.f32.mrf.mxu0
      %v5124 = vadd.f32 %v2742, %v5123
      %v5125 = vpop.f32.mrf.mxu0
      %v5126 = vadd.f32 %v2746, %v5125
      %v5127 = vpop.f32.mrf.mxu0
      %v5128 = vadd.f32 %v2742, %v5127
      %v5129 = vpop.f32.mrf.mxu0
      %v5130 = vadd.f32 %v2746, %v5129
      %5131 = vmatprep.mubr.bf16.mxu0 %v3872
      %5132 = vmatmul.mubr.bf16.gmra.mxu0 %v3871
      %v5133 = vpop.f32.mrf.mxu0
      %v5134 = vadd.f32 %v2742, %v5133
      %v5135 = vpop.f32.mrf.mxu0
      %v5136 = vadd.f32 %v2746, %v5135
      %v5137 = vpop.f32.mrf.mxu0
      %v5138 = vadd.f32 %v2742, %v5137
      %v5139 = vpop.f32.mrf.mxu0
      %v5140 = vadd.f32 %v2746, %v5139
      %5141 = vmatprep.mubr.bf16.mxu0 %v3878
      %5142 = vmatmul.mubr.bf16.gmra.mxu0 %v3877
      %v5143 = vpop.f32.mrf.mxu0
      %v5144 = vadd.f32 %v2742, %v5143
      %v5145 = vpop.f32.mrf.mxu0
      %v5146 = vadd.f32 %v2746, %v5145
      %v5147 = vpop.f32.mrf.mxu0
      %v5148 = vadd.f32 %v2742, %v5147
      %v5149 = vpop.f32.mrf.mxu0
      %v5150 = vadd.f32 %v2746, %v5149
      %5151 = vmatprep.mubr.bf16.mxu0 %v3884
      %5152 = vmatmul.mubr.bf16.gmra.mxu0 %v3883
      %v5153 = vpop.f32.mrf.mxu0
      %v5154 = vadd.f32 %v2742, %v5153
      %v5155 = vpop.f32.mrf.mxu0
      %v5156 = vadd.f32 %v2746, %v5155
      %v5157 = vpop.f32.mrf.mxu0
      %v5158 = vadd.f32 %v2742, %v5157
      %v5159 = vpop.f32.mrf.mxu0
      %v5160 = vadd.f32 %v2746, %v5159
      %5161 = vmatprep.mubr.bf16.mxu0 %v3890
      %5162 = vmatmul.mubr.bf16.gmra.mxu0 %v3889
      %v5163 = vpop.f32.mrf.mxu0
      %v5164 = vadd.f32 %v2742, %v5163
      %v5165 = vpop.f32.mrf.mxu0
      %v5166 = vadd.f32 %v2746, %v5165
      %v5167 = vpop.f32.mrf.mxu0
      %v5168 = vadd.f32 %v2742, %v5167
      %v5169 = vpop.f32.mrf.mxu0
      %v5170 = vadd.f32 %v2746, %v5169
      %5171 = vmatprep.mubr.bf16.mxu0 %v3896
      %5172 = vmatmul.mubr.bf16.gmra.mxu0 %v3895
      %v5173 = vpop.f32.mrf.mxu0
      %v5174 = vadd.f32 %v2742, %v5173
      %v5175 = vpop.f32.mrf.mxu0
      %v5176 = vadd.f32 %v2746, %v5175
      %v5177 = vpop.f32.mrf.mxu0
      %v5178 = vadd.f32 %v2742, %v5177
      %v5179 = vpop.f32.mrf.mxu0
      %v5180 = vadd.f32 %v2746, %v5179
      %5181 = vdwg.mxu0
      %5182 = vmatprep.subr.bf16.mxu0 %v4524
      %5183 = vmatpush1.bf16.msra.mxu0 %v4523
      %5184 = vmatprep.subr.bf16.mxu0 %v4522
      %5185 = vmatpush1.bf16.msra.mxu0 %v4521
      %5186 = vmatprep.subr.bf16.mxu0 %v4520
      %5187 = vmatpush1.bf16.msra.mxu0 %v4519
      %5188 = vmatprep.subr.bf16.mxu0 %v4518
      %5189 = vmatpush1.bf16.msra.mxu0 %v4517
      %5190 = vmatprep.subr.bf16.mxu0 %v4516
      %5191 = vmatpush1.bf16.msra.mxu0 %v4515
      %5192 = vmatprep.subr.bf16.mxu0 %v4514
      %5193 = vmatpush1.bf16.msra.mxu0 %v4513
      %5194 = vmatprep.subr.bf16.mxu0 %v4512
      %5195 = vmatpush1.bf16.msra.mxu0 %v4511
      %5196 = vmatprep.subr.bf16.mxu0 %v4510
      %5197 = vmatpush1.bf16.msra.mxu0 %v4509
      %5198 = vmatprep.subr.bf16.mxu0 %v4540
      %5199 = vmatpush2.bf16.msra.mxu0 %v4539
      %5200 = vmatprep.subr.bf16.mxu0 %v4538
      %5201 = vmatpush2.bf16.msra.mxu0 %v4537
      %5202 = vmatprep.subr.bf16.mxu0 %v4536
      %5203 = vmatpush2.bf16.msra.mxu0 %v4535
      %5204 = vmatprep.subr.bf16.mxu0 %v4534
      %5205 = vmatpush2.bf16.msra.mxu0 %v4533
      %5206 = vmatprep.subr.bf16.mxu0 %v4532
      %5207 = vmatpush2.bf16.msra.mxu0 %v4531
      %5208 = vmatprep.subr.bf16.mxu0 %v4530
      %5209 = vmatpush2.bf16.msra.mxu0 %v4529
      %5210 = vmatprep.subr.bf16.mxu0 %v4528
      %5211 = vmatpush2.bf16.msra.mxu0 %v4527
      %5212 = vmatprep.subr.bf16.mxu0 %v4526
      %5213 = vmatpush2.bf16.msra.mxu0 %v4525
      %5214 = vmatprep.mubr.bf16.mxu0 %v3616
      %5215 = vmatmul.mubr.bf16.gmra.mxu0 %v3615
      %v5216 = vpop.f32.mrf.mxu0
      %v5217 = vadd.f32 %v4704, %v5216
      %v5218 = vpop.f32.mrf.mxu0
      %v5219 = vadd.f32 %v4706, %v5218
      %v5220 = vpop.f32.mrf.mxu0
      %v5221 = vadd.f32 %v4708, %v5220
      %v5222 = vpop.f32.mrf.mxu0
      %v5223 = vadd.f32 %v4710, %v5222
      %5224 = vmatprep.mubr.bf16.mxu0 %v3622
      %5225 = vmatmul.mubr.bf16.gmra.mxu0 %v3621
      %v5226 = vpop.f32.mrf.mxu0
      %v5227 = vadd.f32 %v4714, %v5226
      %v5228 = vpop.f32.mrf.mxu0
      %v5229 = vadd.f32 %v4716, %v5228
      %v5230 = vpop.f32.mrf.mxu0
      %v5231 = vadd.f32 %v4718, %v5230
      %v5232 = vpop.f32.mrf.mxu0
      %v5233 = vadd.f32 %v4720, %v5232
      %5234 = vmatprep.mubr.bf16.mxu0 %v3628
      %5235 = vmatmul.mubr.bf16.gmra.mxu0 %v3627
      %v5236 = vpop.f32.mrf.mxu0
      %v5237 = vadd.f32 %v4724, %v5236
      %v5238 = vpop.f32.mrf.mxu0
      %v5239 = vadd.f32 %v4726, %v5238
      %v5240 = vpop.f32.mrf.mxu0
      %v5241 = vadd.f32 %v4728, %v5240
      %v5242 = vpop.f32.mrf.mxu0
      %v5243 = vadd.f32 %v4730, %v5242
      %5244 = vmatprep.mubr.bf16.mxu0 %v3634
      %5245 = vmatmul.mubr.bf16.gmra.mxu0 %v3633
      %v5246 = vpop.f32.mrf.mxu0
      %v5247 = vadd.f32 %v4734, %v5246
      %v5248 = vpop.f32.mrf.mxu0
      %v5249 = vadd.f32 %v4736, %v5248
      %v5250 = vpop.f32.mrf.mxu0
      %v5251 = vadd.f32 %v4738, %v5250
      %v5252 = vpop.f32.mrf.mxu0
      %v5253 = vadd.f32 %v4740, %v5252
      %5254 = vmatprep.mubr.bf16.mxu0 %v3640
      %5255 = vmatmul.mubr.bf16.gmra.mxu0 %v3639
      %v5256 = vpop.f32.mrf.mxu0
      %v5257 = vadd.f32 %v4744, %v5256
      %v5258 = vpop.f32.mrf.mxu0
      %v5259 = vadd.f32 %v4746, %v5258
      %v5260 = vpop.f32.mrf.mxu0
      %v5261 = vadd.f32 %v4748, %v5260
      %v5262 = vpop.f32.mrf.mxu0
      %v5263 = vadd.f32 %v4750, %v5262
      %5264 = vmatprep.mubr.bf16.mxu0 %v3646
      %5265 = vmatmul.mubr.bf16.gmra.mxu0 %v3645
      %v5266 = vpop.f32.mrf.mxu0
      %v5267 = vadd.f32 %v4754, %v5266
      %v5268 = vpop.f32.mrf.mxu0
      %v5269 = vadd.f32 %v4756, %v5268
      %v5270 = vpop.f32.mrf.mxu0
      %v5271 = vadd.f32 %v4758, %v5270
      %v5272 = vpop.f32.mrf.mxu0
      %v5273 = vadd.f32 %v4760, %v5272
      %5274 = vmatprep.mubr.bf16.mxu0 %v3652
      %5275 = vmatmul.mubr.bf16.gmra.mxu0 %v3651
      %v5276 = vpop.f32.mrf.mxu0
      %v5277 = vadd.f32 %v4764, %v5276
      %v5278 = vpop.f32.mrf.mxu0
      %v5279 = vadd.f32 %v4766, %v5278
      %v5280 = vpop.f32.mrf.mxu0
      %v5281 = vadd.f32 %v4768, %v5280
      %v5282 = vpop.f32.mrf.mxu0
      %v5283 = vadd.f32 %v4770, %v5282
      %5284 = vmatprep.mubr.bf16.mxu0 %v3658
      %5285 = vmatmul.mubr.bf16.gmra.mxu0 %v3657
      %v5286 = vpop.f32.mrf.mxu0
      %v5287 = vadd.f32 %v4774, %v5286
      %v5288 = vpop.f32.mrf.mxu0
      %v5289 = vadd.f32 %v4776, %v5288
      %v5290 = vpop.f32.mrf.mxu0
      %v5291 = vadd.f32 %v4778, %v5290
      %v5292 = vpop.f32.mrf.mxu0
      %v5293 = vadd.f32 %v4780, %v5292
      %5294 = vmatprep.mubr.bf16.mxu0 %v3664
      %5295 = vmatmul.mubr.bf16.gmra.mxu0 %v3663
      %v5296 = vpop.f32.mrf.mxu0
      %v5297 = vadd.f32 %v4784, %v5296
      %v5298 = vpop.f32.mrf.mxu0
      %v5299 = vadd.f32 %v4786, %v5298
      %v5300 = vpop.f32.mrf.mxu0
      %v5301 = vadd.f32 %v4788, %v5300
      %v5302 = vpop.f32.mrf.mxu0
      %v5303 = vadd.f32 %v4790, %v5302
      %5304 = vmatprep.mubr.bf16.mxu0 %v3670
      %5305 = vmatmul.mubr.bf16.gmra.mxu0 %v3669
      %v5306 = vpop.f32.mrf.mxu0
      %v5307 = vadd.f32 %v4794, %v5306
      %v5308 = vpop.f32.mrf.mxu0
      %v5309 = vadd.f32 %v4796, %v5308
      %v5310 = vpop.f32.mrf.mxu0
      %v5311 = vadd.f32 %v4798, %v5310
      %v5312 = vpop.f32.mrf.mxu0
      %v5313 = vadd.f32 %v4800, %v5312
      %5314 = vmatprep.mubr.bf16.mxu0 %v3676
      %5315 = vmatmul.mubr.bf16.gmra.mxu0 %v3675
      %v5316 = vpop.f32.mrf.mxu0
      %v5317 = vadd.f32 %v4804, %v5316
      %v5318 = vpop.f32.mrf.mxu0
      %v5319 = vadd.f32 %v4806, %v5318
      %v5320 = vpop.f32.mrf.mxu0
      %v5321 = vadd.f32 %v4808, %v5320
      %v5322 = vpop.f32.mrf.mxu0
      %v5323 = vadd.f32 %v4810, %v5322
      %5324 = vmatprep.mubr.bf16.mxu0 %v3682
      %5325 = vmatmul.mubr.bf16.gmra.mxu0 %v3681
      %v5326 = vpop.f32.mrf.mxu0
      %v5327 = vadd.f32 %v4814, %v5326
      %v5328 = vpop.f32.mrf.mxu0
      %v5329 = vadd.f32 %v4816, %v5328
      %v5330 = vpop.f32.mrf.mxu0
      %v5331 = vadd.f32 %v4818, %v5330
      %v5332 = vpop.f32.mrf.mxu0
      %v5333 = vadd.f32 %v4820, %v5332
      %5334 = vmatprep.mubr.bf16.mxu0 %v3688
      %5335 = vmatmul.mubr.bf16.gmra.mxu0 %v3687
      %v5336 = vpop.f32.mrf.mxu0
      %v5337 = vadd.f32 %v4824, %v5336
      %v5338 = vpop.f32.mrf.mxu0
      %v5339 = vadd.f32 %v4826, %v5338
      %v5340 = vpop.f32.mrf.mxu0
      %v5341 = vadd.f32 %v4828, %v5340
      %v5342 = vpop.f32.mrf.mxu0
      %v5343 = vadd.f32 %v4830, %v5342
      %5344 = vmatprep.mubr.bf16.mxu0 %v3694
      %5345 = vmatmul.mubr.bf16.gmra.mxu0 %v3693
      %v5346 = vpop.f32.mrf.mxu0
      %v5347 = vadd.f32 %v4834, %v5346
      %v5348 = vpop.f32.mrf.mxu0
      %v5349 = vadd.f32 %v4836, %v5348
      %v5350 = vpop.f32.mrf.mxu0
      %v5351 = vadd.f32 %v4838, %v5350
      %v5352 = vpop.f32.mrf.mxu0
      %v5353 = vadd.f32 %v4840, %v5352
      %5354 = vmatprep.mubr.bf16.mxu0 %v3700
      %5355 = vmatmul.mubr.bf16.gmra.mxu0 %v3699
      %v5356 = vpop.f32.mrf.mxu0
      %v5357 = vadd.f32 %v4844, %v5356
      %v5358 = vpop.f32.mrf.mxu0
      %v5359 = vadd.f32 %v4846, %v5358
      %v5360 = vpop.f32.mrf.mxu0
      %v5361 = vadd.f32 %v4848, %v5360
      %v5362 = vpop.f32.mrf.mxu0
      %v5363 = vadd.f32 %v4850, %v5362
      %5364 = vmatprep.mubr.bf16.mxu0 %v3706
      %5365 = vmatmul.mubr.bf16.gmra.mxu0 %v3705
      %v5366 = vpop.f32.mrf.mxu0
      %v5367 = vadd.f32 %v4854, %v5366
      %v5368 = vpop.f32.mrf.mxu0
      %v5369 = vadd.f32 %v4856, %v5368
      %v5370 = vpop.f32.mrf.mxu0
      %v5371 = vadd.f32 %v4858, %v5370
      %v5372 = vpop.f32.mrf.mxu0
      %v5373 = vadd.f32 %v4860, %v5372
      %5374 = vmatprep.mubr.bf16.mxu0 %v3712
      %5375 = vmatmul.mubr.bf16.gmra.mxu0 %v3711
      %v5376 = vpop.f32.mrf.mxu0
      %v5377 = vadd.f32 %v4864, %v5376
      %v5378 = vpop.f32.mrf.mxu0
      %v5379 = vadd.f32 %v4866, %v5378
      %v5380 = vpop.f32.mrf.mxu0
      %v5381 = vadd.f32 %v4868, %v5380
      %v5382 = vpop.f32.mrf.mxu0
      %v5383 = vadd.f32 %v4870, %v5382
      %5384 = vmatprep.mubr.bf16.mxu0 %v3718
      %5385 = vmatmul.mubr.bf16.gmra.mxu0 %v3717
      %v5386 = vpop.f32.mrf.mxu0
      %v5387 = vadd.f32 %v4874, %v5386
      %v5388 = vpop.f32.mrf.mxu0
      %v5389 = vadd.f32 %v4876, %v5388
      %v5390 = vpop.f32.mrf.mxu0
      %v5391 = vadd.f32 %v4878, %v5390
      %v5392 = vpop.f32.mrf.mxu0
      %v5393 = vadd.f32 %v4880, %v5392
      %5394 = vmatprep.mubr.bf16.mxu0 %v3724
      %5395 = vmatmul.mubr.bf16.gmra.mxu0 %v3723
      %v5396 = vpop.f32.mrf.mxu0
      %v5397 = vadd.f32 %v4884, %v5396
      %v5398 = vpop.f32.mrf.mxu0
      %v5399 = vadd.f32 %v4886, %v5398
      %v5400 = vpop.f32.mrf.mxu0
      %v5401 = vadd.f32 %v4888, %v5400
      %v5402 = vpop.f32.mrf.mxu0
      %v5403 = vadd.f32 %v4890, %v5402
      %5404 = vmatprep.mubr.bf16.mxu0 %v3730
      %5405 = vmatmul.mubr.bf16.gmra.mxu0 %v3729
      %v5406 = vpop.f32.mrf.mxu0
      %v5407 = vadd.f32 %v4894, %v5406
      %v5408 = vpop.f32.mrf.mxu0
      %v5409 = vadd.f32 %v4896, %v5408
      %v5410 = vpop.f32.mrf.mxu0
      %v5411 = vadd.f32 %v4898, %v5410
      %v5412 = vpop.f32.mrf.mxu0
      %v5413 = vadd.f32 %v4900, %v5412
      %5414 = vmatprep.mubr.bf16.mxu0 %v3736
      %5415 = vmatmul.mubr.bf16.gmra.mxu0 %v3735
      %v5416 = vpop.f32.mrf.mxu0
      %v5417 = vadd.f32 %v4904, %v5416
      %v5418 = vpop.f32.mrf.mxu0
      %v5419 = vadd.f32 %v4906, %v5418
      %v5420 = vpop.f32.mrf.mxu0
      %v5421 = vadd.f32 %v4908, %v5420
      %v5422 = vpop.f32.mrf.mxu0
      %v5423 = vadd.f32 %v4910, %v5422
      %5424 = vmatprep.mubr.bf16.mxu0 %v3742
      %5425 = vmatmul.mubr.bf16.gmra.mxu0 %v3741
      %v5426 = vpop.f32.mrf.mxu0
      %v5427 = vadd.f32 %v4914, %v5426
      %v5428 = vpop.f32.mrf.mxu0
      %v5429 = vadd.f32 %v4916, %v5428
      %v5430 = vpop.f32.mrf.mxu0
      %v5431 = vadd.f32 %v4918, %v5430
      %v5432 = vpop.f32.mrf.mxu0
      %v5433 = vadd.f32 %v4920, %v5432
      %5434 = vmatprep.mubr.bf16.mxu0 %v3748
      %5435 = vmatmul.mubr.bf16.gmra.mxu0 %v3747
      %v5436 = vpop.f32.mrf.mxu0
      %v5437 = vadd.f32 %v4924, %v5436
      %v5438 = vpop.f32.mrf.mxu0
      %v5439 = vadd.f32 %v4926, %v5438
      %v5440 = vpop.f32.mrf.mxu0
      %v5441 = vadd.f32 %v4928, %v5440
      %v5442 = vpop.f32.mrf.mxu0
      %v5443 = vadd.f32 %v4930, %v5442
      %5444 = vmatprep.mubr.bf16.mxu0 %v3754
      %5445 = vmatmul.mubr.bf16.gmra.mxu0 %v3753
      %v5446 = vpop.f32.mrf.mxu0
      %v5447 = vadd.f32 %v4934, %v5446
      %v5448 = vpop.f32.mrf.mxu0
      %v5449 = vadd.f32 %v4936, %v5448
      %v5450 = vpop.f32.mrf.mxu0
      %v5451 = vadd.f32 %v4938, %v5450
      %v5452 = vpop.f32.mrf.mxu0
      %v5453 = vadd.f32 %v4940, %v5452
      %5454 = vmatprep.mubr.bf16.mxu0 %v3760
      %5455 = vmatmul.mubr.bf16.gmra.mxu0 %v3759
      %v5456 = vpop.f32.mrf.mxu0
      %v5457 = vadd.f32 %v4944, %v5456
      %v5458 = vpop.f32.mrf.mxu0
      %v5459 = vadd.f32 %v4946, %v5458
      %v5460 = vpop.f32.mrf.mxu0
      %v5461 = vadd.f32 %v4948, %v5460
      %v5462 = vpop.f32.mrf.mxu0
      %v5463 = vadd.f32 %v4950, %v5462
      %5464 = vmatprep.mubr.bf16.mxu0 %v3766
      %5465 = vmatmul.mubr.bf16.gmra.mxu0 %v3765
      %v5466 = vpop.f32.mrf.mxu0
      %v5467 = vadd.f32 %v4954, %v5466
      %v5468 = vpop.f32.mrf.mxu0
      %v5469 = vadd.f32 %v4956, %v5468
      %v5470 = vpop.f32.mrf.mxu0
      %v5471 = vadd.f32 %v4958, %v5470
      %v5472 = vpop.f32.mrf.mxu0
      %v5473 = vadd.f32 %v4960, %v5472
      %5474 = vmatprep.mubr.bf16.mxu0 %v3772
      %5475 = vmatmul.mubr.bf16.gmra.mxu0 %v3771
      %v5476 = vpop.f32.mrf.mxu0
      %v5477 = vadd.f32 %v4964, %v5476
      %v5478 = vpop.f32.mrf.mxu0
      %v5479 = vadd.f32 %v4966, %v5478
      %v5480 = vpop.f32.mrf.mxu0
      %v5481 = vadd.f32 %v4968, %v5480
      %v5482 = vpop.f32.mrf.mxu0
      %v5483 = vadd.f32 %v4970, %v5482
      %5484 = vmatprep.mubr.bf16.mxu0 %v3778
      %5485 = vmatmul.mubr.bf16.gmra.mxu0 %v3777
      %v5486 = vpop.f32.mrf.mxu0
      %v5487 = vadd.f32 %v4974, %v5486
      %v5488 = vpop.f32.mrf.mxu0
      %v5489 = vadd.f32 %v4976, %v5488
      %v5490 = vpop.f32.mrf.mxu0
      %v5491 = vadd.f32 %v4978, %v5490
      %v5492 = vpop.f32.mrf.mxu0
      %v5493 = vadd.f32 %v4980, %v5492
      %5494 = vmatprep.mubr.bf16.mxu0 %v3784
      %5495 = vmatmul.mubr.bf16.gmra.mxu0 %v3783
      %v5496 = vpop.f32.mrf.mxu0
      %v5497 = vadd.f32 %v4984, %v5496
      %v5498 = vpop.f32.mrf.mxu0
      %v5499 = vadd.f32 %v4986, %v5498
      %v5500 = vpop.f32.mrf.mxu0
      %v5501 = vadd.f32 %v4988, %v5500
      %v5502 = vpop.f32.mrf.mxu0
      %v5503 = vadd.f32 %v4990, %v5502
      %5504 = vmatprep.mubr.bf16.mxu0 %v3790
      %5505 = vmatmul.mubr.bf16.gmra.mxu0 %v3789
      %v5506 = vpop.f32.mrf.mxu0
      %v5507 = vadd.f32 %v4994, %v5506
      %v5508 = vpop.f32.mrf.mxu0
      %v5509 = vadd.f32 %v4996, %v5508
      %v5510 = vpop.f32.mrf.mxu0
      %v5511 = vadd.f32 %v4998, %v5510
      %v5512 = vpop.f32.mrf.mxu0
      %v5513 = vadd.f32 %v5000, %v5512
      %5514 = vmatprep.mubr.bf16.mxu0 %v3796
      %5515 = vmatmul.mubr.bf16.gmra.mxu0 %v3795
      %v5516 = vpop.f32.mrf.mxu0
      %v5517 = vadd.f32 %v5004, %v5516
      %v5518 = vpop.f32.mrf.mxu0
      %v5519 = vadd.f32 %v5006, %v5518
      %v5520 = vpop.f32.mrf.mxu0
      %v5521 = vadd.f32 %v5008, %v5520
      %v5522 = vpop.f32.mrf.mxu0
      %v5523 = vadd.f32 %v5010, %v5522
      %5524 = vmatprep.mubr.bf16.mxu0 %v3802
      %5525 = vmatmul.mubr.bf16.gmra.mxu0 %v3801
      %v5526 = vpop.f32.mrf.mxu0
      %v5527 = vadd.f32 %v5014, %v5526
      %v5528 = vpop.f32.mrf.mxu0
      %v5529 = vadd.f32 %v5016, %v5528
      %v5530 = vpop.f32.mrf.mxu0
      %v5531 = vadd.f32 %v5018, %v5530
      %v5532 = vpop.f32.mrf.mxu0
      %v5533 = vadd.f32 %v5020, %v5532
      %5534 = vmatprep.mubr.bf16.mxu0 %v3808
      %5535 = vmatmul.mubr.bf16.gmra.mxu0 %v3807
      %v5536 = vpop.f32.mrf.mxu0
      %v5537 = vadd.f32 %v5024, %v5536
      %v5538 = vpop.f32.mrf.mxu0
      %v5539 = vadd.f32 %v5026, %v5538
      %v5540 = vpop.f32.mrf.mxu0
      %v5541 = vadd.f32 %v5028, %v5540
      %v5542 = vpop.f32.mrf.mxu0
      %v5543 = vadd.f32 %v5030, %v5542
      %5544 = vmatprep.mubr.bf16.mxu0 %v3814
      %5545 = vmatmul.mubr.bf16.gmra.mxu0 %v3813
      %v5546 = vpop.f32.mrf.mxu0
      %v5547 = vadd.f32 %v5034, %v5546
      %v5548 = vpop.f32.mrf.mxu0
      %v5549 = vadd.f32 %v5036, %v5548
      %v5550 = vpop.f32.mrf.mxu0
      %v5551 = vadd.f32 %v5038, %v5550
      %v5552 = vpop.f32.mrf.mxu0
      %v5553 = vadd.f32 %v5040, %v5552
      %5554 = vmatprep.mubr.bf16.mxu0 %v3820
      %5555 = vmatmul.mubr.bf16.gmra.mxu0 %v3819
      %v5556 = vpop.f32.mrf.mxu0
      %v5557 = vadd.f32 %v5044, %v5556
      %v5558 = vpop.f32.mrf.mxu0
      %v5559 = vadd.f32 %v5046, %v5558
      %v5560 = vpop.f32.mrf.mxu0
      %v5561 = vadd.f32 %v5048, %v5560
      %v5562 = vpop.f32.mrf.mxu0
      %v5563 = vadd.f32 %v5050, %v5562
      %5564 = vmatprep.mubr.bf16.mxu0 %v3826
      %5565 = vmatmul.mubr.bf16.gmra.mxu0 %v3825
      %v5566 = vpop.f32.mrf.mxu0
      %v5567 = vadd.f32 %v5054, %v5566
      %v5568 = vpop.f32.mrf.mxu0
      %v5569 = vadd.f32 %v5056, %v5568
      %v5570 = vpop.f32.mrf.mxu0
      %v5571 = vadd.f32 %v5058, %v5570
      %v5572 = vpop.f32.mrf.mxu0
      %v5573 = vadd.f32 %v5060, %v5572
      %5574 = vmatprep.mubr.bf16.mxu0 %v3832
      %5575 = vmatmul.mubr.bf16.gmra.mxu0 %v3831
      %v5576 = vpop.f32.mrf.mxu0
      %v5577 = vadd.f32 %v5064, %v5576
      %v5578 = vpop.f32.mrf.mxu0
      %v5579 = vadd.f32 %v5066, %v5578
      %v5580 = vpop.f32.mrf.mxu0
      %v5581 = vadd.f32 %v5068, %v5580
      %v5582 = vpop.f32.mrf.mxu0
      %v5583 = vadd.f32 %v5070, %v5582
      %5584 = vmatprep.mubr.bf16.mxu0 %v3838
      %5585 = vmatmul.mubr.bf16.gmra.mxu0 %v3837
      %v5586 = vpop.f32.mrf.mxu0
      %v5587 = vadd.f32 %v5074, %v5586
      %v5588 = vpop.f32.mrf.mxu0
      %v5589 = vadd.f32 %v5076, %v5588
      %v5590 = vpop.f32.mrf.mxu0
      %v5591 = vadd.f32 %v5078, %v5590
      %v5592 = vpop.f32.mrf.mxu0
      %v5593 = vadd.f32 %v5080, %v5592
      %5594 = vmatprep.mubr.bf16.mxu0 %v3844
      %5595 = vmatmul.mubr.bf16.gmra.mxu0 %v3843
      %v5596 = vpop.f32.mrf.mxu0
      %v5597 = vadd.f32 %v5084, %v5596
      %v5598 = vpop.f32.mrf.mxu0
      %v5599 = vadd.f32 %v5086, %v5598
      %v5600 = vpop.f32.mrf.mxu0
      %v5601 = vadd.f32 %v5088, %v5600
      %v5602 = vpop.f32.mrf.mxu0
      %v5603 = vadd.f32 %v5090, %v5602
      %5604 = vmatprep.mubr.bf16.mxu0 %v3850
      %5605 = vmatmul.mubr.bf16.gmra.mxu0 %v3849
      %v5606 = vpop.f32.mrf.mxu0
      %v5607 = vadd.f32 %v5094, %v5606
      %v5608 = vpop.f32.mrf.mxu0
      %v5609 = vadd.f32 %v5096, %v5608
      %v5610 = vpop.f32.mrf.mxu0
      %v5611 = vadd.f32 %v5098, %v5610
      %v5612 = vpop.f32.mrf.mxu0
      %v5613 = vadd.f32 %v5100, %v5612
      %5614 = vmatprep.mubr.bf16.mxu0 %v3856
      %5615 = vmatmul.mubr.bf16.gmra.mxu0 %v3855
      %v5616 = vpop.f32.mrf.mxu0
      %v5617 = vadd.f32 %v5104, %v5616
      %v5618 = vpop.f32.mrf.mxu0
      %v5619 = vadd.f32 %v5106, %v5618
      %v5620 = vpop.f32.mrf.mxu0
      %v5621 = vadd.f32 %v5108, %v5620
      %v5622 = vpop.f32.mrf.mxu0
      %v5623 = vadd.f32 %v5110, %v5622
      %5624 = vmatprep.mubr.bf16.mxu0 %v3862
      %5625 = vmatmul.mubr.bf16.gmra.mxu0 %v3861
      %v5626 = vpop.f32.mrf.mxu0
      %v5627 = vadd.f32 %v5114, %v5626
      %v5628 = vpop.f32.mrf.mxu0
      %v5629 = vadd.f32 %v5116, %v5628
      %v5630 = vpop.f32.mrf.mxu0
      %v5631 = vadd.f32 %v5118, %v5630
      %v5632 = vpop.f32.mrf.mxu0
      %v5633 = vadd.f32 %v5120, %v5632
      %5634 = vmatprep.mubr.bf16.mxu0 %v3868
      %5635 = vmatmul.mubr.bf16.gmra.mxu0 %v3867
      %v5636 = vpop.f32.mrf.mxu0
      %v5637 = vadd.f32 %v5124, %v5636
      %v5638 = vpop.f32.mrf.mxu0
      %v5639 = vadd.f32 %v5126, %v5638
      %v5640 = vpop.f32.mrf.mxu0
      %v5641 = vadd.f32 %v5128, %v5640
      %v5642 = vpop.f32.mrf.mxu0
      %v5643 = vadd.f32 %v5130, %v5642
      %5644 = vmatprep.mubr.bf16.mxu0 %v3874
      %5645 = vmatmul.mubr.bf16.gmra.mxu0 %v3873
      %v5646 = vpop.f32.mrf.mxu0
      %v5647 = vadd.f32 %v5134, %v5646
      %v5648 = vpop.f32.mrf.mxu0
      %v5649 = vadd.f32 %v5136, %v5648
      %v5650 = vpop.f32.mrf.mxu0
      %v5651 = vadd.f32 %v5138, %v5650
      %v5652 = vpop.f32.mrf.mxu0
      %v5653 = vadd.f32 %v5140, %v5652
      %5654 = vmatprep.mubr.bf16.mxu0 %v3880
      %5655 = vmatmul.mubr.bf16.gmra.mxu0 %v3879
      %v5656 = vpop.f32.mrf.mxu0
      %v5657 = vadd.f32 %v5144, %v5656
      %v5658 = vpop.f32.mrf.mxu0
      %v5659 = vadd.f32 %v5146, %v5658
      %v5660 = vpop.f32.mrf.mxu0
      %v5661 = vadd.f32 %v5148, %v5660
      %v5662 = vpop.f32.mrf.mxu0
      %v5663 = vadd.f32 %v5150, %v5662
      %5664 = vmatprep.mubr.bf16.mxu0 %v3886
      %5665 = vmatmul.mubr.bf16.gmra.mxu0 %v3885
      %v5666 = vpop.f32.mrf.mxu0
      %v5667 = vadd.f32 %v5154, %v5666
      %v5668 = vpop.f32.mrf.mxu0
      %v5669 = vadd.f32 %v5156, %v5668
      %v5670 = vpop.f32.mrf.mxu0
      %v5671 = vadd.f32 %v5158, %v5670
      %v5672 = vpop.f32.mrf.mxu0
      %v5673 = vadd.f32 %v5160, %v5672
      %5674 = vmatprep.mubr.bf16.mxu0 %v3892
      %5675 = vmatmul.mubr.bf16.gmra.mxu0 %v3891
      %v5676 = vpop.f32.mrf.mxu0
      %v5677 = vadd.f32 %v5164, %v5676
      %v5678 = vpop.f32.mrf.mxu0
      %v5679 = vadd.f32 %v5166, %v5678
      %v5680 = vpop.f32.mrf.mxu0
      %v5681 = vadd.f32 %v5168, %v5680
      %v5682 = vpop.f32.mrf.mxu0
      %v5683 = vadd.f32 %v5170, %v5682
      %5684 = vmatprep.mubr.bf16.mxu0 %v3898
      %5685 = vmatmul.mubr.bf16.gmra.mxu0 %v3897
      %v5686 = vpop.f32.mrf.mxu0
      %v5687 = vadd.f32 %v5174, %v5686
      %v5688 = vpop.f32.mrf.mxu0
      %v5689 = vadd.f32 %v5176, %v5688
      %v5690 = vpop.f32.mrf.mxu0
      %v5691 = vadd.f32 %v5178, %v5690
      %v5692 = vpop.f32.mrf.mxu0
      %v5693 = vadd.f32 %v5180, %v5692
      %5694 = vdwg.mxu0
      %5695 = vmatprep.subr.bf16.mxu0 %v4556
      %5696 = vmatpush1.bf16.msra.mxu0 %v4555
      %5697 = vmatprep.subr.bf16.mxu0 %v4554
      %5698 = vmatpush1.bf16.msra.mxu0 %v4553
      %5699 = vmatprep.subr.bf16.mxu0 %v4552
      %5700 = vmatpush1.bf16.msra.mxu0 %v4551
      %5701 = vmatprep.subr.bf16.mxu0 %v4550
      %5702 = vmatpush1.bf16.msra.mxu0 %v4549
      %5703 = vmatprep.subr.bf16.mxu0 %v4548
      %5704 = vmatpush1.bf16.msra.mxu0 %v4547
      %5705 = vmatprep.subr.bf16.mxu0 %v4546
      %5706 = vmatpush1.bf16.msra.mxu0 %v4545
      %5707 = vmatprep.subr.bf16.mxu0 %v4544
      %5708 = vmatpush1.bf16.msra.mxu0 %v4543
      %5709 = vmatprep.subr.bf16.mxu0 %v4542
      %5710 = vmatpush1.bf16.msra.mxu0 %v4541
      %5711 = vmatprep.subr.bf16.mxu0 %v4572
      %5712 = vmatpush2.bf16.msra.mxu0 %v4571
      %5713 = vmatprep.subr.bf16.mxu0 %v4570
      %5714 = vmatpush2.bf16.msra.mxu0 %v4569
      %5715 = vmatprep.subr.bf16.mxu0 %v4568
      %5716 = vmatpush2.bf16.msra.mxu0 %v4567
      %5717 = vmatprep.subr.bf16.mxu0 %v4566
      %5718 = vmatpush2.bf16.msra.mxu0 %v4565
      %5719 = vmatprep.subr.bf16.mxu0 %v4564
      %5720 = vmatpush2.bf16.msra.mxu0 %v4563
      %5721 = vmatprep.subr.bf16.mxu0 %v4562
      %5722 = vmatpush2.bf16.msra.mxu0 %v4561
      %5723 = vmatprep.subr.bf16.mxu0 %v4560
      %5724 = vmatpush2.bf16.msra.mxu0 %v4559
      %5725 = vmatprep.subr.bf16.mxu0 %v4558
      %5726 = vmatpush2.bf16.msra.mxu0 %v4557
      %5727 = vmatprep.mubr.bf16.mxu0 %v3618
      %5728 = vmatmul.mubr.bf16.gmra.mxu0 %v3617
      %v5729 = vpop.f32.mrf.mxu0
      %v5730 = vadd.f32 %v5217, %v5729
      %v5731 = vpop.f32.mrf.mxu0
      %v5732 = vadd.f32 %v5219, %v5731
      %v5733 = vpop.f32.mrf.mxu0
      %v5734 = vadd.f32 %v5221, %v5733
      %v5735 = vpop.f32.mrf.mxu0
      %v5736 = vadd.f32 %v5223, %v5735
      %5737 = vmatprep.mubr.bf16.mxu0 %v3624
      %5738 = vmatmul.mubr.bf16.gmra.mxu0 %v3623
      %v5739 = vpop.f32.mrf.mxu0
      %v5740 = vadd.f32 %v5227, %v5739
      %v5741 = vpop.f32.mrf.mxu0
      %v5742 = vadd.f32 %v5229, %v5741
      %v5743 = vpop.f32.mrf.mxu0
      %v5744 = vadd.f32 %v5231, %v5743
      %v5745 = vpop.f32.mrf.mxu0
      %v5746 = vadd.f32 %v5233, %v5745
      %5747 = vmatprep.mubr.bf16.mxu0 %v3630
      %5748 = vmatmul.mubr.bf16.gmra.mxu0 %v3629
      %v5749 = vpop.f32.mrf.mxu0
      %v5750 = vadd.f32 %v5237, %v5749
      %v5751 = vpop.f32.mrf.mxu0
      %v5752 = vadd.f32 %v5239, %v5751
      %v5753 = vpop.f32.mrf.mxu0
      %v5754 = vadd.f32 %v5241, %v5753
      %v5755 = vpop.f32.mrf.mxu0
      %v5756 = vadd.f32 %v5243, %v5755
      %5757 = vmatprep.mubr.bf16.mxu0 %v3636
      %5758 = vmatmul.mubr.bf16.gmra.mxu0 %v3635
      %v5759 = vpop.f32.mrf.mxu0
      %v5760 = vadd.f32 %v5247, %v5759
      %v5761 = vpop.f32.mrf.mxu0
      %v5762 = vadd.f32 %v5249, %v5761
      %v5763 = vpop.f32.mrf.mxu0
      %v5764 = vadd.f32 %v5251, %v5763
      %v5765 = vpop.f32.mrf.mxu0
      %v5766 = vadd.f32 %v5253, %v5765
      %5767 = vmatprep.mubr.bf16.mxu0 %v3642
      %5768 = vmatmul.mubr.bf16.gmra.mxu0 %v3641
      %v5769 = vpop.f32.mrf.mxu0
      %v5770 = vadd.f32 %v5257, %v5769
      %v5771 = vpop.f32.mrf.mxu0
      %v5772 = vadd.f32 %v5259, %v5771
      %v5773 = vpop.f32.mrf.mxu0
      %v5774 = vadd.f32 %v5261, %v5773
      %v5775 = vpop.f32.mrf.mxu0
      %v5776 = vadd.f32 %v5263, %v5775
      %5777 = vmatprep.mubr.bf16.mxu0 %v3648
      %5778 = vmatmul.mubr.bf16.gmra.mxu0 %v3647
      %v5779 = vpop.f32.mrf.mxu0
      %v5780 = vadd.f32 %v5267, %v5779
      %v5781 = vpop.f32.mrf.mxu0
      %v5782 = vadd.f32 %v5269, %v5781
      %v5783 = vpop.f32.mrf.mxu0
      %v5784 = vadd.f32 %v5271, %v5783
      %v5785 = vpop.f32.mrf.mxu0
      %v5786 = vadd.f32 %v5273, %v5785
      %5787 = vmatprep.mubr.bf16.mxu0 %v3654
      %5788 = vmatmul.mubr.bf16.gmra.mxu0 %v3653
      %v5789 = vpop.f32.mrf.mxu0
      %v5790 = vadd.f32 %v5277, %v5789
      %v5791 = vpop.f32.mrf.mxu0
      %v5792 = vadd.f32 %v5279, %v5791
      %v5793 = vpop.f32.mrf.mxu0
      %v5794 = vadd.f32 %v5281, %v5793
      %v5795 = vpop.f32.mrf.mxu0
      %v5796 = vadd.f32 %v5283, %v5795
      %5797 = vmatprep.mubr.bf16.mxu0 %v3660
      %5798 = vmatmul.mubr.bf16.gmra.mxu0 %v3659
      %v5799 = vpop.f32.mrf.mxu0
      %v5800 = vadd.f32 %v5287, %v5799
      %v5801 = vpop.f32.mrf.mxu0
      %v5802 = vadd.f32 %v5289, %v5801
      %v5803 = vpop.f32.mrf.mxu0
      %v5804 = vadd.f32 %v5291, %v5803
      %v5805 = vpop.f32.mrf.mxu0
      %v5806 = vadd.f32 %v5293, %v5805
      %5807 = vmatprep.mubr.bf16.mxu0 %v3666
      %5808 = vmatmul.mubr.bf16.gmra.mxu0 %v3665
      %v5809 = vpop.f32.mrf.mxu0
      %v5810 = vadd.f32 %v5297, %v5809
      %v5811 = vpop.f32.mrf.mxu0
      %v5812 = vadd.f32 %v5299, %v5811
      %v5813 = vpop.f32.mrf.mxu0
      %v5814 = vadd.f32 %v5301, %v5813
      %v5815 = vpop.f32.mrf.mxu0
      %v5816 = vadd.f32 %v5303, %v5815
      %5817 = vmatprep.mubr.bf16.mxu0 %v3672
      %5818 = vmatmul.mubr.bf16.gmra.mxu0 %v3671
      %v5819 = vpop.f32.mrf.mxu0
      %v5820 = vadd.f32 %v5307, %v5819
      %v5821 = vpop.f32.mrf.mxu0
      %v5822 = vadd.f32 %v5309, %v5821
      %v5823 = vpop.f32.mrf.mxu0
      %v5824 = vadd.f32 %v5311, %v5823
      %v5825 = vpop.f32.mrf.mxu0
      %v5826 = vadd.f32 %v5313, %v5825
      %5827 = vmatprep.mubr.bf16.mxu0 %v3678
      %5828 = vmatmul.mubr.bf16.gmra.mxu0 %v3677
      %v5829 = vpop.f32.mrf.mxu0
      %v5830 = vadd.f32 %v5317, %v5829
      %v5831 = vpop.f32.mrf.mxu0
      %v5832 = vadd.f32 %v5319, %v5831
      %v5833 = vpop.f32.mrf.mxu0
      %v5834 = vadd.f32 %v5321, %v5833
      %v5835 = vpop.f32.mrf.mxu0
      %v5836 = vadd.f32 %v5323, %v5835
      %5837 = vmatprep.mubr.bf16.mxu0 %v3684
      %5838 = vmatmul.mubr.bf16.gmra.mxu0 %v3683
      %v5839 = vpop.f32.mrf.mxu0
      %v5840 = vadd.f32 %v5327, %v5839
      %v5841 = vpop.f32.mrf.mxu0
      %v5842 = vadd.f32 %v5329, %v5841
      %v5843 = vpop.f32.mrf.mxu0
      %v5844 = vadd.f32 %v5331, %v5843
      %v5845 = vpop.f32.mrf.mxu0
      %v5846 = vadd.f32 %v5333, %v5845
      %5847 = vmatprep.mubr.bf16.mxu0 %v3690
      %5848 = vmatmul.mubr.bf16.gmra.mxu0 %v3689
      %v5849 = vpop.f32.mrf.mxu0
      %v5850 = vadd.f32 %v5337, %v5849
      %v5851 = vpop.f32.mrf.mxu0
      %v5852 = vadd.f32 %v5339, %v5851
      %v5853 = vpop.f32.mrf.mxu0
      %v5854 = vadd.f32 %v5341, %v5853
      %v5855 = vpop.f32.mrf.mxu0
      %v5856 = vadd.f32 %v5343, %v5855
      %5857 = vmatprep.mubr.bf16.mxu0 %v3696
      %5858 = vmatmul.mubr.bf16.gmra.mxu0 %v3695
      %v5859 = vpop.f32.mrf.mxu0
      %v5860 = vadd.f32 %v5347, %v5859
      %v5861 = vpop.f32.mrf.mxu0
      %v5862 = vadd.f32 %v5349, %v5861
      %v5863 = vpop.f32.mrf.mxu0
      %v5864 = vadd.f32 %v5351, %v5863
      %v5865 = vpop.f32.mrf.mxu0
      %v5866 = vadd.f32 %v5353, %v5865
      %5867 = vmatprep.mubr.bf16.mxu0 %v3702
      %5868 = vmatmul.mubr.bf16.gmra.mxu0 %v3701
      %v5869 = vpop.f32.mrf.mxu0
      %v5870 = vadd.f32 %v5357, %v5869
      %v5871 = vpop.f32.mrf.mxu0
      %v5872 = vadd.f32 %v5359, %v5871
      %v5873 = vpop.f32.mrf.mxu0
      %v5874 = vadd.f32 %v5361, %v5873
      %v5875 = vpop.f32.mrf.mxu0
      %v5876 = vadd.f32 %v5363, %v5875
      %5877 = vmatprep.mubr.bf16.mxu0 %v3708
      %5878 = vmatmul.mubr.bf16.gmra.mxu0 %v3707
      %v5879 = vpop.f32.mrf.mxu0
      %v5880 = vadd.f32 %v5367, %v5879
      %v5881 = vpop.f32.mrf.mxu0
      %v5882 = vadd.f32 %v5369, %v5881
      %v5883 = vpop.f32.mrf.mxu0
      %v5884 = vadd.f32 %v5371, %v5883
      %v5885 = vpop.f32.mrf.mxu0
      %v5886 = vadd.f32 %v5373, %v5885
      %5887 = vmatprep.mubr.bf16.mxu0 %v3714
      %5888 = vmatmul.mubr.bf16.gmra.mxu0 %v3713
      %v5889 = vpop.f32.mrf.mxu0
      %v5890 = vadd.f32 %v5377, %v5889
      %v5891 = vpop.f32.mrf.mxu0
      %v5892 = vadd.f32 %v5379, %v5891
      %v5893 = vpop.f32.mrf.mxu0
      %v5894 = vadd.f32 %v5381, %v5893
      %v5895 = vpop.f32.mrf.mxu0
      %v5896 = vadd.f32 %v5383, %v5895
      %5897 = vmatprep.mubr.bf16.mxu0 %v3720
      %5898 = vmatmul.mubr.bf16.gmra.mxu0 %v3719
      %v5899 = vpop.f32.mrf.mxu0
      %v5900 = vadd.f32 %v5387, %v5899
      %v5901 = vpop.f32.mrf.mxu0
      %v5902 = vadd.f32 %v5389, %v5901
      %v5903 = vpop.f32.mrf.mxu0
      %v5904 = vadd.f32 %v5391, %v5903
      %v5905 = vpop.f32.mrf.mxu0
      %v5906 = vadd.f32 %v5393, %v5905
      %5907 = vmatprep.mubr.bf16.mxu0 %v3726
      %5908 = vmatmul.mubr.bf16.gmra.mxu0 %v3725
      %v5909 = vpop.f32.mrf.mxu0
      %v5910 = vadd.f32 %v5397, %v5909
      %v5911 = vpop.f32.mrf.mxu0
      %v5912 = vadd.f32 %v5399, %v5911
      %v5913 = vpop.f32.mrf.mxu0
      %v5914 = vadd.f32 %v5401, %v5913
      %v5915 = vpop.f32.mrf.mxu0
      %v5916 = vadd.f32 %v5403, %v5915
      %5917 = vmatprep.mubr.bf16.mxu0 %v3732
      %5918 = vmatmul.mubr.bf16.gmra.mxu0 %v3731
      %v5919 = vpop.f32.mrf.mxu0
      %v5920 = vadd.f32 %v5407, %v5919
      %v5921 = vpop.f32.mrf.mxu0
      %v5922 = vadd.f32 %v5409, %v5921
      %v5923 = vpop.f32.mrf.mxu0
      %v5924 = vadd.f32 %v5411, %v5923
      %v5925 = vpop.f32.mrf.mxu0
      %v5926 = vadd.f32 %v5413, %v5925
      %5927 = vmatprep.mubr.bf16.mxu0 %v3738
      %5928 = vmatmul.mubr.bf16.gmra.mxu0 %v3737
      %v5929 = vpop.f32.mrf.mxu0
      %v5930 = vadd.f32 %v5417, %v5929
      %v5931 = vpop.f32.mrf.mxu0
      %v5932 = vadd.f32 %v5419, %v5931
      %v5933 = vpop.f32.mrf.mxu0
      %v5934 = vadd.f32 %v5421, %v5933
      %v5935 = vpop.f32.mrf.mxu0
      %v5936 = vadd.f32 %v5423, %v5935
      %5937 = vmatprep.mubr.bf16.mxu0 %v3744
      %5938 = vmatmul.mubr.bf16.gmra.mxu0 %v3743
      %v5939 = vpop.f32.mrf.mxu0
      %v5940 = vadd.f32 %v5427, %v5939
      %v5941 = vpop.f32.mrf.mxu0
      %v5942 = vadd.f32 %v5429, %v5941
      %v5943 = vpop.f32.mrf.mxu0
      %v5944 = vadd.f32 %v5431, %v5943
      %v5945 = vpop.f32.mrf.mxu0
      %v5946 = vadd.f32 %v5433, %v5945
      %5947 = vmatprep.mubr.bf16.mxu0 %v3750
      %5948 = vmatmul.mubr.bf16.gmra.mxu0 %v3749
      %v5949 = vpop.f32.mrf.mxu0
      %v5950 = vadd.f32 %v5437, %v5949
      %v5951 = vpop.f32.mrf.mxu0
      %v5952 = vadd.f32 %v5439, %v5951
      %v5953 = vpop.f32.mrf.mxu0
      %v5954 = vadd.f32 %v5441, %v5953
      %v5955 = vpop.f32.mrf.mxu0
      %v5956 = vadd.f32 %v5443, %v5955
      %5957 = vmatprep.mubr.bf16.mxu0 %v3756
      %5958 = vmatmul.mubr.bf16.gmra.mxu0 %v3755
      %v5959 = vpop.f32.mrf.mxu0
      %v5960 = vadd.f32 %v5447, %v5959
      %v5961 = vpop.f32.mrf.mxu0
      %v5962 = vadd.f32 %v5449, %v5961
      %v5963 = vpop.f32.mrf.mxu0
      %v5964 = vadd.f32 %v5451, %v5963
      %v5965 = vpop.f32.mrf.mxu0
      %v5966 = vadd.f32 %v5453, %v5965
      %5967 = vmatprep.mubr.bf16.mxu0 %v3762
      %5968 = vmatmul.mubr.bf16.gmra.mxu0 %v3761
      %v5969 = vpop.f32.mrf.mxu0
      %v5970 = vadd.f32 %v5457, %v5969
      %v5971 = vpop.f32.mrf.mxu0
      %v5972 = vadd.f32 %v5459, %v5971
      %v5973 = vpop.f32.mrf.mxu0
      %v5974 = vadd.f32 %v5461, %v5973
      %v5975 = vpop.f32.mrf.mxu0
      %v5976 = vadd.f32 %v5463, %v5975
      %5977 = vmatprep.mubr.bf16.mxu0 %v3768
      %5978 = vmatmul.mubr.bf16.gmra.mxu0 %v3767
      %v5979 = vpop.f32.mrf.mxu0
      %v5980 = vadd.f32 %v5467, %v5979
      %v5981 = vpop.f32.mrf.mxu0
      %v5982 = vadd.f32 %v5469, %v5981
      %v5983 = vpop.f32.mrf.mxu0
      %v5984 = vadd.f32 %v5471, %v5983
      %v5985 = vpop.f32.mrf.mxu0
      %v5986 = vadd.f32 %v5473, %v5985
      %5987 = vmatprep.mubr.bf16.mxu0 %v3774
      %5988 = vmatmul.mubr.bf16.gmra.mxu0 %v3773
      %v5989 = vpop.f32.mrf.mxu0
      %v5990 = vadd.f32 %v5477, %v5989
      %v5991 = vpop.f32.mrf.mxu0
      %v5992 = vadd.f32 %v5479, %v5991
      %v5993 = vpop.f32.mrf.mxu0
      %v5994 = vadd.f32 %v5481, %v5993
      %v5995 = vpop.f32.mrf.mxu0
      %v5996 = vadd.f32 %v5483, %v5995
      %5997 = vmatprep.mubr.bf16.mxu0 %v3780
      %5998 = vmatmul.mubr.bf16.gmra.mxu0 %v3779
      %v5999 = vpop.f32.mrf.mxu0
      %v6000 = vadd.f32 %v5487, %v5999
      %v6001 = vpop.f32.mrf.mxu0
      %v6002 = vadd.f32 %v5489, %v6001
      %v6003 = vpop.f32.mrf.mxu0
      %v6004 = vadd.f32 %v5491, %v6003
      %v6005 = vpop.f32.mrf.mxu0
      %v6006 = vadd.f32 %v5493, %v6005
      %6007 = vmatprep.mubr.bf16.mxu0 %v3786
      %6008 = vmatmul.mubr.bf16.gmra.mxu0 %v3785
      %v6009 = vpop.f32.mrf.mxu0
      %v6010 = vadd.f32 %v5497, %v6009
      %v6011 = vpop.f32.mrf.mxu0
      %v6012 = vadd.f32 %v5499, %v6011
      %v6013 = vpop.f32.mrf.mxu0
      %v6014 = vadd.f32 %v5501, %v6013
      %v6015 = vpop.f32.mrf.mxu0
      %v6016 = vadd.f32 %v5503, %v6015
      %6017 = vmatprep.mubr.bf16.mxu0 %v3792
      %6018 = vmatmul.mubr.bf16.gmra.mxu0 %v3791
      %v6019 = vpop.f32.mrf.mxu0
      %v6020 = vadd.f32 %v5507, %v6019
      %v6021 = vpop.f32.mrf.mxu0
      %v6022 = vadd.f32 %v5509, %v6021
      %v6023 = vpop.f32.mrf.mxu0
      %v6024 = vadd.f32 %v5511, %v6023
      %v6025 = vpop.f32.mrf.mxu0
      %v6026 = vadd.f32 %v5513, %v6025
      %6027 = vmatprep.mubr.bf16.mxu0 %v3798
      %6028 = vmatmul.mubr.bf16.gmra.mxu0 %v3797
      %v6029 = vpop.f32.mrf.mxu0
      %v6030 = vadd.f32 %v5517, %v6029
      %v6031 = vpop.f32.mrf.mxu0
      %v6032 = vadd.f32 %v5519, %v6031
      %v6033 = vpop.f32.mrf.mxu0
      %v6034 = vadd.f32 %v5521, %v6033
      %v6035 = vpop.f32.mrf.mxu0
      %v6036 = vadd.f32 %v5523, %v6035
      %6037 = vmatprep.mubr.bf16.mxu0 %v3804
      %6038 = vmatmul.mubr.bf16.gmra.mxu0 %v3803
      %v6039 = vpop.f32.mrf.mxu0
      %v6040 = vadd.f32 %v5527, %v6039
      %v6041 = vpop.f32.mrf.mxu0
      %v6042 = vadd.f32 %v5529, %v6041
      %v6043 = vpop.f32.mrf.mxu0
      %v6044 = vadd.f32 %v5531, %v6043
      %v6045 = vpop.f32.mrf.mxu0
      %v6046 = vadd.f32 %v5533, %v6045
      %6047 = vmatprep.mubr.bf16.mxu0 %v3810
      %6048 = vmatmul.mubr.bf16.gmra.mxu0 %v3809
      %v6049 = vpop.f32.mrf.mxu0
      %v6050 = vadd.f32 %v5537, %v6049
      %v6051 = vpop.f32.mrf.mxu0
      %v6052 = vadd.f32 %v5539, %v6051
      %v6053 = vpop.f32.mrf.mxu0
      %v6054 = vadd.f32 %v5541, %v6053
      %v6055 = vpop.f32.mrf.mxu0
      %v6056 = vadd.f32 %v5543, %v6055
      %6057 = vmatprep.mubr.bf16.mxu0 %v3816
      %6058 = vmatmul.mubr.bf16.gmra.mxu0 %v3815
      %v6059 = vpop.f32.mrf.mxu0
      %v6060 = vadd.f32 %v5547, %v6059
      %v6061 = vpop.f32.mrf.mxu0
      %v6062 = vadd.f32 %v5549, %v6061
      %v6063 = vpop.f32.mrf.mxu0
      %v6064 = vadd.f32 %v5551, %v6063
      %v6065 = vpop.f32.mrf.mxu0
      %v6066 = vadd.f32 %v5553, %v6065
      %6067 = vmatprep.mubr.bf16.mxu0 %v3822
      %6068 = vmatmul.mubr.bf16.gmra.mxu0 %v3821
      %v6069 = vpop.f32.mrf.mxu0
      %v6070 = vadd.f32 %v5557, %v6069
      %v6071 = vpop.f32.mrf.mxu0
      %v6072 = vadd.f32 %v5559, %v6071
      %v6073 = vpop.f32.mrf.mxu0
      %v6074 = vadd.f32 %v5561, %v6073
      %v6075 = vpop.f32.mrf.mxu0
      %v6076 = vadd.f32 %v5563, %v6075
      %6077 = vmatprep.mubr.bf16.mxu0 %v3828
      %6078 = vmatmul.mubr.bf16.gmra.mxu0 %v3827
      %v6079 = vpop.f32.mrf.mxu0
      %v6080 = vadd.f32 %v5567, %v6079
      %v6081 = vpop.f32.mrf.mxu0
      %v6082 = vadd.f32 %v5569, %v6081
      %v6083 = vpop.f32.mrf.mxu0
      %v6084 = vadd.f32 %v5571, %v6083
      %v6085 = vpop.f32.mrf.mxu0
      %v6086 = vadd.f32 %v5573, %v6085
      %6087 = vmatprep.mubr.bf16.mxu0 %v3834
      %6088 = vmatmul.mubr.bf16.gmra.mxu0 %v3833
      %v6089 = vpop.f32.mrf.mxu0
      %v6090 = vadd.f32 %v5577, %v6089
      %v6091 = vpop.f32.mrf.mxu0
      %v6092 = vadd.f32 %v5579, %v6091
      %v6093 = vpop.f32.mrf.mxu0
      %v6094 = vadd.f32 %v5581, %v6093
      %v6095 = vpop.f32.mrf.mxu0
      %v6096 = vadd.f32 %v5583, %v6095
      %6097 = vmatprep.mubr.bf16.mxu0 %v3840
      %6098 = vmatmul.mubr.bf16.gmra.mxu0 %v3839
      %v6099 = vpop.f32.mrf.mxu0
      %v6100 = vadd.f32 %v5587, %v6099
      %v6101 = vpop.f32.mrf.mxu0
      %v6102 = vadd.f32 %v5589, %v6101
      %v6103 = vpop.f32.mrf.mxu0
      %v6104 = vadd.f32 %v5591, %v6103
      %v6105 = vpop.f32.mrf.mxu0
      %v6106 = vadd.f32 %v5593, %v6105
      %6107 = vmatprep.mubr.bf16.mxu0 %v3846
      %6108 = vmatmul.mubr.bf16.gmra.mxu0 %v3845
      %v6109 = vpop.f32.mrf.mxu0
      %v6110 = vadd.f32 %v5597, %v6109
      %v6111 = vpop.f32.mrf.mxu0
      %v6112 = vadd.f32 %v5599, %v6111
      %v6113 = vpop.f32.mrf.mxu0
      %v6114 = vadd.f32 %v5601, %v6113
      %v6115 = vpop.f32.mrf.mxu0
      %v6116 = vadd.f32 %v5603, %v6115
      %6117 = vmatprep.mubr.bf16.mxu0 %v3852
      %6118 = vmatmul.mubr.bf16.gmra.mxu0 %v3851
      %v6119 = vpop.f32.mrf.mxu0
      %v6120 = vadd.f32 %v5607, %v6119
      %v6121 = vpop.f32.mrf.mxu0
      %v6122 = vadd.f32 %v5609, %v6121
      %v6123 = vpop.f32.mrf.mxu0
      %v6124 = vadd.f32 %v5611, %v6123
      %v6125 = vpop.f32.mrf.mxu0
      %v6126 = vadd.f32 %v5613, %v6125
      %6127 = vmatprep.mubr.bf16.mxu0 %v3858
      %6128 = vmatmul.mubr.bf16.gmra.mxu0 %v3857
      %v6129 = vpop.f32.mrf.mxu0
      %v6130 = vadd.f32 %v5617, %v6129
      %v6131 = vpop.f32.mrf.mxu0
      %v6132 = vadd.f32 %v5619, %v6131
      %v6133 = vpop.f32.mrf.mxu0
      %v6134 = vadd.f32 %v5621, %v6133
      %v6135 = vpop.f32.mrf.mxu0
      %v6136 = vadd.f32 %v5623, %v6135
      %6137 = vmatprep.mubr.bf16.mxu0 %v3864
      %6138 = vmatmul.mubr.bf16.gmra.mxu0 %v3863
      %v6139 = vpop.f32.mrf.mxu0
      %v6140 = vadd.f32 %v5627, %v6139
      %v6141 = vpop.f32.mrf.mxu0
      %v6142 = vadd.f32 %v5629, %v6141
      %v6143 = vpop.f32.mrf.mxu0
      %v6144 = vadd.f32 %v5631, %v6143
      %v6145 = vpop.f32.mrf.mxu0
      %v6146 = vadd.f32 %v5633, %v6145
      %6147 = vmatprep.mubr.bf16.mxu0 %v3870
      %6148 = vmatmul.mubr.bf16.gmra.mxu0 %v3869
      %v6149 = vpop.f32.mrf.mxu0
      %v6150 = vadd.f32 %v5637, %v6149
      %v6151 = vpop.f32.mrf.mxu0
      %v6152 = vadd.f32 %v5639, %v6151
      %v6153 = vpop.f32.mrf.mxu0
      %v6154 = vadd.f32 %v5641, %v6153
      %v6155 = vpop.f32.mrf.mxu0
      %v6156 = vadd.f32 %v5643, %v6155
      %6157 = vmatprep.mubr.bf16.mxu0 %v3876
      %6158 = vmatmul.mubr.bf16.gmra.mxu0 %v3875
      %v6159 = vpop.f32.mrf.mxu0
      %v6160 = vadd.f32 %v5647, %v6159
      %v6161 = vpop.f32.mrf.mxu0
      %v6162 = vadd.f32 %v5649, %v6161
      %v6163 = vpop.f32.mrf.mxu0
      %v6164 = vadd.f32 %v5651, %v6163
      %v6165 = vpop.f32.mrf.mxu0
      %v6166 = vadd.f32 %v5653, %v6165
      %6167 = vmatprep.mubr.bf16.mxu0 %v3882
      %6168 = vmatmul.mubr.bf16.gmra.mxu0 %v3881
      %v6169 = vpop.f32.mrf.mxu0
      %v6170 = vadd.f32 %v5657, %v6169
      %v6171 = vpop.f32.mrf.mxu0
      %v6172 = vadd.f32 %v5659, %v6171
      %v6173 = vpop.f32.mrf.mxu0
      %v6174 = vadd.f32 %v5661, %v6173
      %v6175 = vpop.f32.mrf.mxu0
      %v6176 = vadd.f32 %v5663, %v6175
      %6177 = vmatprep.mubr.bf16.mxu0 %v3888
      %6178 = vmatmul.mubr.bf16.gmra.mxu0 %v3887
      %v6179 = vpop.f32.mrf.mxu0
      %v6180 = vadd.f32 %v5667, %v6179
      %v6181 = vpop.f32.mrf.mxu0
      %v6182 = vadd.f32 %v5669, %v6181
      %v6183 = vpop.f32.mrf.mxu0
      %v6184 = vadd.f32 %v5671, %v6183
      %v6185 = vpop.f32.mrf.mxu0
      %v6186 = vadd.f32 %v5673, %v6185
      %6187 = vmatprep.mubr.bf16.mxu0 %v3894
      %6188 = vmatmul.mubr.bf16.gmra.mxu0 %v3893
      %v6189 = vpop.f32.mrf.mxu0
      %v6190 = vadd.f32 %v5677, %v6189
      %v6191 = vpop.f32.mrf.mxu0
      %v6192 = vadd.f32 %v5679, %v6191
      %v6193 = vpop.f32.mrf.mxu0
      %v6194 = vadd.f32 %v5681, %v6193
      %v6195 = vpop.f32.mrf.mxu0
      %v6196 = vadd.f32 %v5683, %v6195
      %6197 = vmatprep.mubr.bf16.mxu0 %v3900
      %6198 = vmatmul.mubr.bf16.gmra.mxu0 %v3899
      %v6199 = vpop.f32.mrf.mxu0
      %v6200 = vadd.f32 %v5687, %v6199
      %v6201 = vpop.f32.mrf.mxu0
      %v6202 = vadd.f32 %v5689, %v6201
      %v6203 = vpop.f32.mrf.mxu0
      %v6204 = vadd.f32 %v5691, %v6203
      %v6205 = vpop.f32.mrf.mxu0
      %v6206 = vadd.f32 %v5693, %v6205
      %6207 = vdwg.mxu0
      %v6208 = vmax.f32 %v5730, 0.0
      %v6209 = vmax.f32 %v5732, 0.0
      %v6210 = vmax.f32 %v5734, 0.0
      %v6211 = vmax.f32 %v5736, 0.0
      %v6212 = vmax.f32 %v5740, 0.0
      %v6213 = vmax.f32 %v5742, 0.0
      %v6214 = vmax.f32 %v5744, 0.0
      %v6215 = vmax.f32 %v5746, 0.0
      %v6216 = vmax.f32 %v5750, 0.0
      %v6217 = vmax.f32 %v5752, 0.0
      %v6218 = vmax.f32 %v5754, 0.0
      %v6219 = vmax.f32 %v5756, 0.0
      %v6220 = vmax.f32 %v5760, 0.0
      %v6221 = vmax.f32 %v5762, 0.0
      %v6222 = vmax.f32 %v5764, 0.0
      %v6223 = vmax.f32 %v5766, 0.0
      %v6224 = vmax.f32 %v5770, 0.0
      %v6225 = vmax.f32 %v5772, 0.0
      %v6226 = vmax.f32 %v5774, 0.0
      %v6227 = vmax.f32 %v5776, 0.0
      %v6228 = vmax.f32 %v5780, 0.0
      %v6229 = vmax.f32 %v5782, 0.0
      %v6230 = vmax.f32 %v5784, 0.0
      %v6231 = vmax.f32 %v5786, 0.0
      %v6232 = vmax.f32 %v5790, 0.0
      %v6233 = vmax.f32 %v5792, 0.0
      %v6234 = vmax.f32 %v5794, 0.0
      %v6235 = vmax.f32 %v5796, 0.0
      %v6236 = vmax.f32 %v5800, 0.0
      %v6237 = vmax.f32 %v5802, 0.0
      %v6238 = vmax.f32 %v5804, 0.0
      %v6239 = vmax.f32 %v5806, 0.0
      %v6240 = vmax.f32 %v5810, 0.0
      %v6241 = vmax.f32 %v5812, 0.0
      %v6242 = vmax.f32 %v5814, 0.0
      %v6243 = vmax.f32 %v5816, 0.0
      %v6244 = vmax.f32 %v5820, 0.0
      %v6245 = vmax.f32 %v5822, 0.0
      %v6246 = vmax.f32 %v5824, 0.0
      %v6247 = vmax.f32 %v5826, 0.0
      %v6248 = vmax.f32 %v5830, 0.0
      %v6249 = vmax.f32 %v5832, 0.0
      %v6250 = vmax.f32 %v5834, 0.0
      %v6251 = vmax.f32 %v5836, 0.0
      %v6252 = vmax.f32 %v5840, 0.0
      %v6253 = vmax.f32 %v5842, 0.0
      %v6254 = vmax.f32 %v5844, 0.0
      %v6255 = vmax.f32 %v5846, 0.0
      %v6256 = vmax.f32 %v5850, 0.0
      %v6257 = vmax.f32 %v5852, 0.0
      %v6258 = vmax.f32 %v5854, 0.0
      %v6259 = vmax.f32 %v5856, 0.0
      %v6260 = vmax.f32 %v5860, 0.0
      %v6261 = vmax.f32 %v5862, 0.0
      %v6262 = vmax.f32 %v5864, 0.0
      %v6263 = vmax.f32 %v5866, 0.0
      %v6264 = vmax.f32 %v5870, 0.0
      %v6265 = vmax.f32 %v5872, 0.0
      %v6266 = vmax.f32 %v5874, 0.0
      %v6267 = vmax.f32 %v5876, 0.0
      %v6268 = vmax.f32 %v5880, 0.0
      %v6269 = vmax.f32 %v5882, 0.0
      %v6270 = vmax.f32 %v5884, 0.0
      %v6271 = vmax.f32 %v5886, 0.0
      %v6272 = vmax.f32 %v5890, 0.0
      %v6273 = vmax.f32 %v5892, 0.0
      %v6274 = vmax.f32 %v5894, 0.0
      %v6275 = vmax.f32 %v5896, 0.0
      %v6276 = vmax.f32 %v5900, 0.0
      %v6277 = vmax.f32 %v5902, 0.0
      %v6278 = vmax.f32 %v5904, 0.0
      %v6279 = vmax.f32 %v5906, 0.0
      %v6280 = vmax.f32 %v5910, 0.0
      %v6281 = vmax.f32 %v5912, 0.0
      %v6282 = vmax.f32 %v5914, 0.0
      %v6283 = vmax.f32 %v5916, 0.0
      %v6284 = vmax.f32 %v5920, 0.0
      %v6285 = vmax.f32 %v5922, 0.0
      %v6286 = vmax.f32 %v5924, 0.0
      %v6287 = vmax.f32 %v5926, 0.0
      %v6288 = vmax.f32 %v5930, 0.0
      %v6289 = vmax.f32 %v5932, 0.0
      %v6290 = vmax.f32 %v5934, 0.0
      %v6291 = vmax.f32 %v5936, 0.0
      %v6292 = vmax.f32 %v5940, 0.0
      %v6293 = vmax.f32 %v5942, 0.0
      %v6294 = vmax.f32 %v5944, 0.0
      %v6295 = vmax.f32 %v5946, 0.0
      %v6296 = vmax.f32 %v5950, 0.0
      %v6297 = vmax.f32 %v5952, 0.0
      %v6298 = vmax.f32 %v5954, 0.0
      %v6299 = vmax.f32 %v5956, 0.0
      %v6300 = vmax.f32 %v5960, 0.0
      %v6301 = vmax.f32 %v5962, 0.0
      %v6302 = vmax.f32 %v5964, 0.0
      %v6303 = vmax.f32 %v5966, 0.0
      %v6304 = vmax.f32 %v5970, 0.0
      %v6305 = vmax.f32 %v5972, 0.0
      %v6306 = vmax.f32 %v5974, 0.0
      %v6307 = vmax.f32 %v5976, 0.0
      %v6308 = vmax.f32 %v5980, 0.0
      %v6309 = vmax.f32 %v5982, 0.0
      %v6310 = vmax.f32 %v5984, 0.0
      %v6311 = vmax.f32 %v5986, 0.0
      %v6312 = vmax.f32 %v5990, 0.0
      %v6313 = vmax.f32 %v5992, 0.0
      %v6314 = vmax.f32 %v5994, 0.0
      %v6315 = vmax.f32 %v5996, 0.0
      %v6316 = vmax.f32 %v6000, 0.0
      %v6317 = vmax.f32 %v6002, 0.0
      %v6318 = vmax.f32 %v6004, 0.0
      %v6319 = vmax.f32 %v6006, 0.0
      %v6320 = vmax.f32 %v6010, 0.0
      %v6321 = vmax.f32 %v6012, 0.0
      %v6322 = vmax.f32 %v6014, 0.0
      %v6323 = vmax.f32 %v6016, 0.0
      %v6324 = vmax.f32 %v6020, 0.0
      %v6325 = vmax.f32 %v6022, 0.0
      %v6326 = vmax.f32 %v6024, 0.0
      %v6327 = vmax.f32 %v6026, 0.0
      %v6328 = vmax.f32 %v6030, 0.0
      %v6329 = vmax.f32 %v6032, 0.0
      %v6330 = vmax.f32 %v6034, 0.0
      %v6331 = vmax.f32 %v6036, 0.0
      %v6332 = vmax.f32 %v6040, 0.0
      %v6333 = vmax.f32 %v6042, 0.0
      %v6334 = vmax.f32 %v6044, 0.0
      %v6335 = vmax.f32 %v6046, 0.0
      %v6336 = vmax.f32 %v6050, 0.0
      %v6337 = vmax.f32 %v6052, 0.0
      %v6338 = vmax.f32 %v6054, 0.0
      %v6339 = vmax.f32 %v6056, 0.0
      %v6340 = vmax.f32 %v6060, 0.0
      %v6341 = vmax.f32 %v6062, 0.0
      %v6342 = vmax.f32 %v6064, 0.0
      %v6343 = vmax.f32 %v6066, 0.0
      %v6344 = vmax.f32 %v6070, 0.0
      %v6345 = vmax.f32 %v6072, 0.0
      %v6346 = vmax.f32 %v6074, 0.0
      %v6347 = vmax.f32 %v6076, 0.0
      %v6348 = vmax.f32 %v6080, 0.0
      %v6349 = vmax.f32 %v6082, 0.0
      %v6350 = vmax.f32 %v6084, 0.0
      %v6351 = vmax.f32 %v6086, 0.0
      %v6352 = vmax.f32 %v6090, 0.0
      %v6353 = vmax.f32 %v6092, 0.0
      %v6354 = vmax.f32 %v6094, 0.0
      %v6355 = vmax.f32 %v6096, 0.0
      %v6356 = vmax.f32 %v6100, 0.0
      %v6357 = vmax.f32 %v6102, 0.0
      %v6358 = vmax.f32 %v6104, 0.0
      %v6359 = vmax.f32 %v6106, 0.0
      %v6360 = vmax.f32 %v6110, 0.0
      %v6361 = vmax.f32 %v6112, 0.0
      %v6362 = vmax.f32 %v6114, 0.0
      %v6363 = vmax.f32 %v6116, 0.0
      %v6364 = vmax.f32 %v6120, 0.0
      %v6365 = vmax.f32 %v6122, 0.0
      %v6366 = vmax.f32 %v6124, 0.0
      %v6367 = vmax.f32 %v6126, 0.0
      %v6368 = vmax.f32 %v6130, 0.0
      %v6369 = vmax.f32 %v6132, 0.0
      %v6370 = vmax.f32 %v6134, 0.0
      %v6371 = vmax.f32 %v6136, 0.0
      %v6372 = vmax.f32 %v6140, 0.0
      %v6373 = vmax.f32 %v6142, 0.0
      %v6374 = vmax.f32 %v6144, 0.0
      %v6375 = vmax.f32 %v6146, 0.0
      %v6376 = vmax.f32 %v6150, 0.0
      %v6377 = vmax.f32 %v6152, 0.0
      %v6378 = vmax.f32 %v6154, 0.0
      %v6379 = vmax.f32 %v6156, 0.0
      %v6380 = vmax.f32 %v6160, 0.0
      %v6381 = vmax.f32 %v6162, 0.0
      %v6382 = vmax.f32 %v6164, 0.0
      %v6383 = vmax.f32 %v6166, 0.0
      %v6384 = vmax.f32 %v6170, 0.0
      %v6385 = vmax.f32 %v6172, 0.0
      %v6386 = vmax.f32 %v6174, 0.0
      %v6387 = vmax.f32 %v6176, 0.0
      %v6388 = vmax.f32 %v6180, 0.0
      %v6389 = vmax.f32 %v6182, 0.0
      %v6390 = vmax.f32 %v6184, 0.0
      %v6391 = vmax.f32 %v6186, 0.0
      %v6392 = vmax.f32 %v6190, 0.0
      %v6393 = vmax.f32 %v6192, 0.0
      %v6394 = vmax.f32 %v6194, 0.0
      %v6395 = vmax.f32 %v6196, 0.0
      %v6396 = vmax.f32 %v6200, 0.0
      %v6397 = vmax.f32 %v6202, 0.0
      %v6398 = vmax.f32 %v6204, 0.0
      %v6399 = vmax.f32 %v6206, 0.0
      %v6400 = vpack.c.bf16 %v6210, %v6208
      %v6401 = vpack.c.bf16 %v6211, %v6209
      %v6402 = vpack.c.bf16 %v6214, %v6212
      %v6403 = vpack.c.bf16 %v6215, %v6213
      %v6404 = vpack.c.bf16 %v6218, %v6216
      %v6405 = vpack.c.bf16 %v6219, %v6217
      %v6406 = vpack.c.bf16 %v6222, %v6220
      %v6407 = vpack.c.bf16 %v6223, %v6221
      %v6408 = vpack.c.bf16 %v6226, %v6224
      %v6409 = vpack.c.bf16 %v6227, %v6225
      %v6410 = vpack.c.bf16 %v6230, %v6228
      %v6411 = vpack.c.bf16 %v6231, %v6229
      %v6412 = vpack.c.bf16 %v6234, %v6232
      %v6413 = vpack.c.bf16 %v6235, %v6233
      %v6414 = vpack.c.bf16 %v6238, %v6236
      %v6415 = vpack.c.bf16 %v6239, %v6237
      %v6416 = vpack.c.bf16 %v6242, %v6240
      %v6417 = vpack.c.bf16 %v6243, %v6241
      %v6418 = vpack.c.bf16 %v6246, %v6244
      %v6419 = vpack.c.bf16 %v6247, %v6245
      %v6420 = vpack.c.bf16 %v6250, %v6248
      %v6421 = vpack.c.bf16 %v6251, %v6249
      %v6422 = vpack.c.bf16 %v6254, %v6252
      %v6423 = vpack.c.bf16 %v6255, %v6253
      %v6424 = vpack.c.bf16 %v6258, %v6256
      %v6425 = vpack.c.bf16 %v6259, %v6257
      %v6426 = vpack.c.bf16 %v6262, %v6260
      %v6427 = vpack.c.bf16 %v6263, %v6261
      %v6428 = vpack.c.bf16 %v6266, %v6264
      %v6429 = vpack.c.bf16 %v6267, %v6265
      %v6430 = vpack.c.bf16 %v6270, %v6268
      %v6431 = vpack.c.bf16 %v6271, %v6269
      %v6432 = vpack.c.bf16 %v6274, %v6272
      %v6433 = vpack.c.bf16 %v6275, %v6273
      %v6434 = vpack.c.bf16 %v6278, %v6276
      %v6435 = vpack.c.bf16 %v6279, %v6277
      %v6436 = vpack.c.bf16 %v6282, %v6280
      %v6437 = vpack.c.bf16 %v6283, %v6281
      %v6438 = vpack.c.bf16 %v6286, %v6284
      %v6439 = vpack.c.bf16 %v6287, %v6285
      %v6440 = vpack.c.bf16 %v6290, %v6288
      %v6441 = vpack.c.bf16 %v6291, %v6289
      %v6442 = vpack.c.bf16 %v6294, %v6292
      %v6443 = vpack.c.bf16 %v6295, %v6293
      %v6444 = vpack.c.bf16 %v6298, %v6296
      %v6445 = vpack.c.bf16 %v6299, %v6297
      %v6446 = vpack.c.bf16 %v6302, %v6300
      %v6447 = vpack.c.bf16 %v6303, %v6301
      %v6448 = vpack.c.bf16 %v6306, %v6304
      %v6449 = vpack.c.bf16 %v6307, %v6305
      %v6450 = vpack.c.bf16 %v6310, %v6308
      %v6451 = vpack.c.bf16 %v6311, %v6309
      %v6452 = vpack.c.bf16 %v6314, %v6312
      %v6453 = vpack.c.bf16 %v6315, %v6313
      %v6454 = vpack.c.bf16 %v6318, %v6316
      %v6455 = vpack.c.bf16 %v6319, %v6317
      %v6456 = vpack.c.bf16 %v6322, %v6320
      %v6457 = vpack.c.bf16 %v6323, %v6321
      %v6458 = vpack.c.bf16 %v6326, %v6324
      %v6459 = vpack.c.bf16 %v6327, %v6325
      %v6460 = vpack.c.bf16 %v6330, %v6328
      %v6461 = vpack.c.bf16 %v6331, %v6329
      %v6462 = vpack.c.bf16 %v6334, %v6332
      %v6463 = vpack.c.bf16 %v6335, %v6333
      %v6464 = vpack.c.bf16 %v6338, %v6336
      %v6465 = vpack.c.bf16 %v6339, %v6337
      %v6466 = vpack.c.bf16 %v6342, %v6340
      %v6467 = vpack.c.bf16 %v6343, %v6341
      %v6468 = vpack.c.bf16 %v6346, %v6344
      %v6469 = vpack.c.bf16 %v6347, %v6345
      %v6470 = vpack.c.bf16 %v6350, %v6348
      %v6471 = vpack.c.bf16 %v6351, %v6349
      %v6472 = vpack.c.bf16 %v6354, %v6352
      %v6473 = vpack.c.bf16 %v6355, %v6353
      %v6474 = vpack.c.bf16 %v6358, %v6356
      %v6475 = vpack.c.bf16 %v6359, %v6357
      %v6476 = vpack.c.bf16 %v6362, %v6360
      %v6477 = vpack.c.bf16 %v6363, %v6361
      %v6478 = vpack.c.bf16 %v6366, %v6364
      %v6479 = vpack.c.bf16 %v6367, %v6365
      %v6480 = vpack.c.bf16 %v6370, %v6368
      %v6481 = vpack.c.bf16 %v6371, %v6369
      %v6482 = vpack.c.bf16 %v6374, %v6372
      %v6483 = vpack.c.bf16 %v6375, %v6373
      %v6484 = vpack.c.bf16 %v6378, %v6376
      %v6485 = vpack.c.bf16 %v6379, %v6377
      %v6486 = vpack.c.bf16 %v6382, %v6380
      %v6487 = vpack.c.bf16 %v6383, %v6381
      %v6488 = vpack.c.bf16 %v6386, %v6384
      %v6489 = vpack.c.bf16 %v6387, %v6385
      %v6490 = vpack.c.bf16 %v6390, %v6388
      %v6491 = vpack.c.bf16 %v6391, %v6389
      %v6492 = vpack.c.bf16 %v6394, %v6392
      %v6493 = vpack.c.bf16 %v6395, %v6393
      %v6494 = vpack.c.bf16 %v6398, %v6396
      %v6495 = vpack.c.bf16 %v6399, %v6397
      %v6592 = vunpack.c.l.b16 %v6400
      %v6593 = vunpack.c.l.b16 %v6401
      %v6594 = vunpack.c.h.b16 %v6400
      %v6595 = vunpack.c.h.b16 %v6401
      %v6596 = vunpack.c.l.b16 %v6402
      %v6597 = vunpack.c.l.b16 %v6403
      %v6598 = vunpack.c.h.b16 %v6402
      %v6599 = vunpack.c.h.b16 %v6403
      %v6600 = vunpack.c.l.b16 %v6404
      %v6601 = vunpack.c.l.b16 %v6405
      %v6602 = vunpack.c.h.b16 %v6404
      %v6603 = vunpack.c.h.b16 %v6405
      %v6604 = vunpack.c.l.b16 %v6406
      %v6605 = vunpack.c.l.b16 %v6407
      %v6606 = vunpack.c.h.b16 %v6406
      %v6607 = vunpack.c.h.b16 %v6407
      %v6608 = vunpack.c.l.b16 %v6408
      %v6609 = vunpack.c.l.b16 %v6409
      %v6610 = vunpack.c.h.b16 %v6408
      %v6611 = vunpack.c.h.b16 %v6409
      %v6612 = vunpack.c.l.b16 %v6410
      %v6613 = vunpack.c.l.b16 %v6411
      %v6614 = vunpack.c.h.b16 %v6410
      %v6615 = vunpack.c.h.b16 %v6411
      %v6616 = vunpack.c.l.b16 %v6412
      %v6617 = vunpack.c.l.b16 %v6413
      %v6618 = vunpack.c.h.b16 %v6412
      %v6619 = vunpack.c.h.b16 %v6413
      %v6620 = vunpack.c.l.b16 %v6414
      %v6621 = vunpack.c.l.b16 %v6415
      %v6622 = vunpack.c.h.b16 %v6414
      %v6623 = vunpack.c.h.b16 %v6415
      %v6624 = vunpack.c.l.b16 %v6416
      %v6625 = vunpack.c.l.b16 %v6417
      %v6626 = vunpack.c.h.b16 %v6416
      %v6627 = vunpack.c.h.b16 %v6417
      %v6628 = vunpack.c.l.b16 %v6418
      %v6629 = vunpack.c.l.b16 %v6419
      %v6630 = vunpack.c.h.b16 %v6418
      %v6631 = vunpack.c.h.b16 %v6419
      %v6632 = vunpack.c.l.b16 %v6420
      %v6633 = vunpack.c.l.b16 %v6421
      %v6634 = vunpack.c.h.b16 %v6420
      %v6635 = vunpack.c.h.b16 %v6421
      %v6636 = vunpack.c.l.b16 %v6422
      %v6637 = vunpack.c.l.b16 %v6423
      %v6638 = vunpack.c.h.b16 %v6422
      %v6639 = vunpack.c.h.b16 %v6423
      %v6640 = vunpack.c.l.b16 %v6424
      %v6641 = vunpack.c.l.b16 %v6425
      %v6642 = vunpack.c.h.b16 %v6424
      %v6643 = vunpack.c.h.b16 %v6425
      %v6644 = vunpack.c.l.b16 %v6426
      %v6645 = vunpack.c.l.b16 %v6427
      %v6646 = vunpack.c.h.b16 %v6426
      %v6647 = vunpack.c.h.b16 %v6427
      %v6648 = vunpack.c.l.b16 %v6428
      %v6649 = vunpack.c.l.b16 %v6429
      %v6650 = vunpack.c.h.b16 %v6428
      %v6651 = vunpack.c.h.b16 %v6429
      %v6652 = vunpack.c.l.b16 %v6430
      %v6653 = vunpack.c.l.b16 %v6431
      %v6654 = vunpack.c.h.b16 %v6430
      %v6655 = vunpack.c.h.b16 %v6431
      %v6656 = vunpack.c.l.b16 %v6432
      %v6657 = vunpack.c.l.b16 %v6433
      %v6658 = vunpack.c.h.b16 %v6432
      %v6659 = vunpack.c.h.b16 %v6433
      %v6660 = vunpack.c.l.b16 %v6434
      %v6661 = vunpack.c.l.b16 %v6435
      %v6662 = vunpack.c.h.b16 %v6434
      %v6663 = vunpack.c.h.b16 %v6435
      %v6664 = vunpack.c.l.b16 %v6436
      %v6665 = vunpack.c.l.b16 %v6437
      %v6666 = vunpack.c.h.b16 %v6436
      %v6667 = vunpack.c.h.b16 %v6437
      %v6668 = vunpack.c.l.b16 %v6438
      %v6669 = vunpack.c.l.b16 %v6439
      %v6670 = vunpack.c.h.b16 %v6438
      %v6671 = vunpack.c.h.b16 %v6439
      %v6672 = vunpack.c.l.b16 %v6440
      %v6673 = vunpack.c.l.b16 %v6441
      %v6674 = vunpack.c.h.b16 %v6440
      %v6675 = vunpack.c.h.b16 %v6441
      %v6676 = vunpack.c.l.b16 %v6442
      %v6677 = vunpack.c.l.b16 %v6443
      %v6678 = vunpack.c.h.b16 %v6442
      %v6679 = vunpack.c.h.b16 %v6443
      %v6680 = vunpack.c.l.b16 %v6444
      %v6681 = vunpack.c.l.b16 %v6445
      %v6682 = vunpack.c.h.b16 %v6444
      %v6683 = vunpack.c.h.b16 %v6445
      %v6684 = vunpack.c.l.b16 %v6446
      %v6685 = vunpack.c.l.b16 %v6447
      %v6686 = vunpack.c.h.b16 %v6446
      %v6687 = vunpack.c.h.b16 %v6447
      %v6688 = vunpack.c.l.b16 %v6448
      %v6689 = vunpack.c.l.b16 %v6449
      %v6690 = vunpack.c.h.b16 %v6448
      %v6691 = vunpack.c.h.b16 %v6449
      %v6692 = vunpack.c.l.b16 %v6450
      %v6693 = vunpack.c.l.b16 %v6451
      %v6694 = vunpack.c.h.b16 %v6450
      %v6695 = vunpack.c.h.b16 %v6451
      %v6696 = vunpack.c.l.b16 %v6452
      %v6697 = vunpack.c.l.b16 %v6453
      %v6698 = vunpack.c.h.b16 %v6452
      %v6699 = vunpack.c.h.b16 %v6453
      %v6700 = vunpack.c.l.b16 %v6454
      %v6701 = vunpack.c.l.b16 %v6455
      %v6702 = vunpack.c.h.b16 %v6454
      %v6703 = vunpack.c.h.b16 %v6455
      %v6704 = vunpack.c.l.b16 %v6456
      %v6705 = vunpack.c.l.b16 %v6457
      %v6706 = vunpack.c.h.b16 %v6456
      %v6707 = vunpack.c.h.b16 %v6457
      %v6708 = vunpack.c.l.b16 %v6458
      %v6709 = vunpack.c.l.b16 %v6459
      %v6710 = vunpack.c.h.b16 %v6458
      %v6711 = vunpack.c.h.b16 %v6459
      %v6712 = vunpack.c.l.b16 %v6460
      %v6713 = vunpack.c.l.b16 %v6461
      %v6714 = vunpack.c.h.b16 %v6460
      %v6715 = vunpack.c.h.b16 %v6461
      %v6716 = vunpack.c.l.b16 %v6462
      %v6717 = vunpack.c.l.b16 %v6463
      %v6718 = vunpack.c.h.b16 %v6462
      %v6719 = vunpack.c.h.b16 %v6463
      %v6720 = vunpack.c.l.b16 %v6464
      %v6721 = vunpack.c.l.b16 %v6465
      %v6722 = vunpack.c.h.b16 %v6464
      %v6723 = vunpack.c.h.b16 %v6465
      %v6724 = vunpack.c.l.b16 %v6466
      %v6725 = vunpack.c.l.b16 %v6467
      %v6726 = vunpack.c.h.b16 %v6466
      %v6727 = vunpack.c.h.b16 %v6467
      %v6728 = vunpack.c.l.b16 %v6468
      %v6729 = vunpack.c.l.b16 %v6469
      %v6730 = vunpack.c.h.b16 %v6468
      %v6731 = vunpack.c.h.b16 %v6469
      %v6732 = vunpack.c.l.b16 %v6470
      %v6733 = vunpack.c.l.b16 %v6471
      %v6734 = vunpack.c.h.b16 %v6470
      %v6735 = vunpack.c.h.b16 %v6471
      %v6736 = vunpack.c.l.b16 %v6472
      %v6737 = vunpack.c.l.b16 %v6473
      %v6738 = vunpack.c.h.b16 %v6472
      %v6739 = vunpack.c.h.b16 %v6473
      %v6740 = vunpack.c.l.b16 %v6474
      %v6741 = vunpack.c.l.b16 %v6475
      %v6742 = vunpack.c.h.b16 %v6474
      %v6743 = vunpack.c.h.b16 %v6475
      %v6744 = vunpack.c.l.b16 %v6476
      %v6745 = vunpack.c.l.b16 %v6477
      %v6746 = vunpack.c.h.b16 %v6476
      %v6747 = vunpack.c.h.b16 %v6477
      %v6748 = vunpack.c.l.b16 %v6478
      %v6749 = vunpack.c.l.b16 %v6479
      %v6750 = vunpack.c.h.b16 %v6478
      %v6751 = vunpack.c.h.b16 %v6479
      %v6752 = vunpack.c.l.b16 %v6480
      %v6753 = vunpack.c.l.b16 %v6481
      %v6754 = vunpack.c.h.b16 %v6480
      %v6755 = vunpack.c.h.b16 %v6481
      %v6756 = vunpack.c.l.b16 %v6482
      %v6757 = vunpack.c.l.b16 %v6483
      %v6758 = vunpack.c.h.b16 %v6482
      %v6759 = vunpack.c.h.b16 %v6483
      %v6760 = vunpack.c.l.b16 %v6484
      %v6761 = vunpack.c.l.b16 %v6485
      %v6762 = vunpack.c.h.b16 %v6484
      %v6763 = vunpack.c.h.b16 %v6485
      %v6764 = vunpack.c.l.b16 %v6486
      %v6765 = vunpack.c.l.b16 %v6487
      %v6766 = vunpack.c.h.b16 %v6486
      %v6767 = vunpack.c.h.b16 %v6487
      %v6768 = vunpack.c.l.b16 %v6488
      %v6769 = vunpack.c.l.b16 %v6489
      %v6770 = vunpack.c.h.b16 %v6488
      %v6771 = vunpack.c.h.b16 %v6489
      %v6772 = vunpack.c.l.b16 %v6490
      %v6773 = vunpack.c.l.b16 %v6491
      %v6774 = vunpack.c.h.b16 %v6490
      %v6775 = vunpack.c.h.b16 %v6491
      %v6776 = vunpack.c.l.b16 %v6492
      %v6777 = vunpack.c.l.b16 %v6493
      %v6778 = vunpack.c.h.b16 %v6492
      %v6779 = vunpack.c.h.b16 %v6493
      %v6780 = vunpack.c.l.b16 %v6494
      %v6781 = vunpack.c.l.b16 %v6495
      %v6782 = vunpack.c.h.b16 %v6494
      %v6783 = vunpack.c.h.b16 %v6495
      %v6784 = vpack.c.b16 %v6593, %v6592
      %v6785 = vpack.c.b16 %v6595, %v6594
      %v6786 = vpack.c.b16 %v6597, %v6596
      %v6787 = vpack.c.b16 %v6599, %v6598
      %v6788 = vpack.c.b16 %v6601, %v6600
      %v6789 = vpack.c.b16 %v6603, %v6602
      %v6790 = vpack.c.b16 %v6605, %v6604
      %v6791 = vpack.c.b16 %v6607, %v6606
      %v6792 = vpack.c.b16 %v6609, %v6608
      %v6793 = vpack.c.b16 %v6611, %v6610
      %v6794 = vpack.c.b16 %v6613, %v6612
      %v6795 = vpack.c.b16 %v6615, %v6614
      %v6796 = vpack.c.b16 %v6617, %v6616
      %v6797 = vpack.c.b16 %v6619, %v6618
      %v6798 = vpack.c.b16 %v6621, %v6620
      %v6799 = vpack.c.b16 %v6623, %v6622
      %v6800 = vpack.c.b16 %v6625, %v6624
      %v6801 = vpack.c.b16 %v6627, %v6626
      %v6802 = vpack.c.b16 %v6629, %v6628
      %v6803 = vpack.c.b16 %v6631, %v6630
      %v6804 = vpack.c.b16 %v6633, %v6632
      %v6805 = vpack.c.b16 %v6635, %v6634
      %v6806 = vpack.c.b16 %v6637, %v6636
      %v6807 = vpack.c.b16 %v6639, %v6638
      %v6808 = vpack.c.b16 %v6641, %v6640
      %v6809 = vpack.c.b16 %v6643, %v6642
      %v6810 = vpack.c.b16 %v6645, %v6644
      %v6811 = vpack.c.b16 %v6647, %v6646
      %v6812 = vpack.c.b16 %v6649, %v6648
      %v6813 = vpack.c.b16 %v6651, %v6650
      %v6814 = vpack.c.b16 %v6653, %v6652
      %v6815 = vpack.c.b16 %v6655, %v6654
      %v6816 = vpack.c.b16 %v6657, %v6656
      %v6817 = vpack.c.b16 %v6659, %v6658
      %v6818 = vpack.c.b16 %v6661, %v6660
      %v6819 = vpack.c.b16 %v6663, %v6662
      %v6820 = vpack.c.b16 %v6665, %v6664
      %v6821 = vpack.c.b16 %v6667, %v6666
      %v6822 = vpack.c.b16 %v6669, %v6668
      %v6823 = vpack.c.b16 %v6671, %v6670
      %v6824 = vpack.c.b16 %v6673, %v6672
      %v6825 = vpack.c.b16 %v6675, %v6674
      %v6826 = vpack.c.b16 %v6677, %v6676
      %v6827 = vpack.c.b16 %v6679, %v6678
      %v6828 = vpack.c.b16 %v6681, %v6680
      %v6829 = vpack.c.b16 %v6683, %v6682
      %v6830 = vpack.c.b16 %v6685, %v6684
      %v6831 = vpack.c.b16 %v6687, %v6686
      %v6832 = vpack.c.b16 %v6689, %v6688
      %v6833 = vpack.c.b16 %v6691, %v6690
      %v6834 = vpack.c.b16 %v6693, %v6692
      %v6835 = vpack.c.b16 %v6695, %v6694
      %v6836 = vpack.c.b16 %v6697, %v6696
      %v6837 = vpack.c.b16 %v6699, %v6698
      %v6838 = vpack.c.b16 %v6701, %v6700
      %v6839 = vpack.c.b16 %v6703, %v6702
      %v6840 = vpack.c.b16 %v6705, %v6704
      %v6841 = vpack.c.b16 %v6707, %v6706
      %v6842 = vpack.c.b16 %v6709, %v6708
      %v6843 = vpack.c.b16 %v6711, %v6710
      %v6844 = vpack.c.b16 %v6713, %v6712
      %v6845 = vpack.c.b16 %v6715, %v6714
      %v6846 = vpack.c.b16 %v6717, %v6716
      %v6847 = vpack.c.b16 %v6719, %v6718
      %v6848 = vpack.c.b16 %v6721, %v6720
      %v6849 = vpack.c.b16 %v6723, %v6722
      %v6850 = vpack.c.b16 %v6725, %v6724
      %v6851 = vpack.c.b16 %v6727, %v6726
      %v6852 = vpack.c.b16 %v6729, %v6728
      %v6853 = vpack.c.b16 %v6731, %v6730
      %v6854 = vpack.c.b16 %v6733, %v6732
      %v6855 = vpack.c.b16 %v6735, %v6734
      %v6856 = vpack.c.b16 %v6737, %v6736
      %v6857 = vpack.c.b16 %v6739, %v6738
      %v6858 = vpack.c.b16 %v6741, %v6740
      %v6859 = vpack.c.b16 %v6743, %v6742
      %v6860 = vpack.c.b16 %v6745, %v6744
      %v6861 = vpack.c.b16 %v6747, %v6746
      %v6862 = vpack.c.b16 %v6749, %v6748
      %v6863 = vpack.c.b16 %v6751, %v6750
      %v6864 = vpack.c.b16 %v6753, %v6752
      %v6865 = vpack.c.b16 %v6755, %v6754
      %v6866 = vpack.c.b16 %v6757, %v6756
      %v6867 = vpack.c.b16 %v6759, %v6758
      %v6868 = vpack.c.b16 %v6761, %v6760
      %v6869 = vpack.c.b16 %v6763, %v6762
      %v6870 = vpack.c.b16 %v6765, %v6764
      %v6871 = vpack.c.b16 %v6767, %v6766
      %v6872 = vpack.c.b16 %v6769, %v6768
      %v6873 = vpack.c.b16 %v6771, %v6770
      %v6874 = vpack.c.b16 %v6773, %v6772
      %v6875 = vpack.c.b16 %v6775, %v6774
      %v6876 = vpack.c.b16 %v6777, %v6776
      %v6877 = vpack.c.b16 %v6779, %v6778
      %v6878 = vpack.c.b16 %v6781, %v6780
      %v6879 = vpack.c.b16 %v6783, %v6782
      %6976 = vst [vmem:[#allocation2] sm:$0xff] %v6784
      %6977 = vst [vmem:[#allocation2 + $0x8] sm:$0xff] %v6785
      %6978 = vst [vmem:[#allocation2 + $0x10] sm:$0xff] %v6786
      %6979 = vst [vmem:[#allocation2 + $0x18] sm:$0xff] %v6787
      %6980 = vst [vmem:[#allocation2 + $0x20] sm:$0xff] %v6788
      %6981 = vst [vmem:[#allocation2 + $0x28] sm:$0xff] %v6789
      %6982 = vst [vmem:[#allocation2 + $0x30] sm:$0xff] %v6790
      %6983 = vst [vmem:[#allocation2 + $0x38] sm:$0xff] %v6791
      %6984 = vst [vmem:[#allocation2 + $0x40] sm:$0xff] %v6792
      %6985 = vst [vmem:[#allocation2 + $0x48] sm:$0xff] %v6793
      %6986 = vst [vmem:[#allocation2 + $0x50] sm:$0xff] %v6794
      %6987 = vst [vmem:[#allocation2 + $0x58] sm:$0xff] %v6795
      %6988 = vst [vmem:[#allocation2 + $0x60] sm:$0xff] %v6796
      %6989 = vst [vmem:[#allocation2 + $0x68] sm:$0xff] %v6797
      %6990 = vst [vmem:[#allocation2 + $0x70] sm:$0xff] %v6798
      %6991 = vst [vmem:[#allocation2 + $0x78] sm:$0xff] %v6799
      %6992 = vst [vmem:[#allocation2 + $0x80] sm:$0xff] %v6800
      %6993 = vst [vmem:[#allocation2 + $0x88] sm:$0xff] %v6801
      %6994 = vst [vmem:[#allocation2 + $0x90] sm:$0xff] %v6802
      %6995 = vst [vmem:[#allocation2 + $0x98] sm:$0xff] %v6803
      %6996 = vst [vmem:[#allocation2 + $0xa0] sm:$0xff] %v6804
      %6997 = vst [vmem:[#allocation2 + $0xa8] sm:$0xff] %v6805
      %6998 = vst [vmem:[#allocation2 + $0xb0] sm:$0xff] %v6806
      %6999 = vst [vmem:[#allocation2 + $0xb8] sm:$0xff] %v6807
      %7000 = vst [vmem:[#allocation2 + $0xc0] sm:$0xff] %v6808
      %7001 = vst [vmem:[#allocation2 + $0xc8] sm:$0xff] %v6809
      %7002 = vst [vmem:[#allocation2 + $0xd0] sm:$0xff] %v6810
      %7003 = vst [vmem:[#allocation2 + $0xd8] sm:$0xff] %v6811
      %7004 = vst [vmem:[#allocation2 + $0xe0] sm:$0xff] %v6812
      %7005 = vst [vmem:[#allocation2 + $0xe8] sm:$0xff] %v6813
      %7006 = vst [vmem:[#allocation2 + $0xf0] sm:$0xff] %v6814
      %7007 = vst [vmem:[#allocation2 + $0xf8] sm:$0xff] %v6815
      %7008 = vst [vmem:[#allocation2 + $0x100] sm:$0xff] %v6816
      %7009 = vst [vmem:[#allocation2 + $0x108] sm:$0xff] %v6817
      %7010 = vst [vmem:[#allocation2 + $0x110] sm:$0xff] %v6818
      %7011 = vst [vmem:[#allocation2 + $0x118] sm:$0xff] %v6819
      %7012 = vst [vmem:[#allocation2 + $0x120] sm:$0xff] %v6820
      %7013 = vst [vmem:[#allocation2 + $0x128] sm:$0xff] %v6821
      %7014 = vst [vmem:[#allocation2 + $0x130] sm:$0xff] %v6822
      %7015 = vst [vmem:[#allocation2 + $0x138] sm:$0xff] %v6823
      %7016 = vst [vmem:[#allocation2 + $0x140] sm:$0xff] %v6824
      %7017 = vst [vmem:[#allocation2 + $0x148] sm:$0xff] %v6825
      %7018 = vst [vmem:[#allocation2 + $0x150] sm:$0xff] %v6826
      %7019 = vst [vmem:[#allocation2 + $0x158] sm:$0xff] %v6827
      %7020 = vst [vmem:[#allocation2 + $0x160] sm:$0xff] %v6828
      %7021 = vst [vmem:[#allocation2 + $0x168] sm:$0xff] %v6829
      %7022 = vst [vmem:[#allocation2 + $0x170] sm:$0xff] %v6830
      %7023 = vst [vmem:[#allocation2 + $0x178] sm:$0xff] %v6831
      %7024 = vst [vmem:[#allocation2 + $0x180] sm:$0xff] %v6832
      %7025 = vst [vmem:[#allocation2 + $0x188] sm:$0xff] %v6833
      %7026 = vst [vmem:[#allocation2 + $0x190] sm:$0xff] %v6834
      %7027 = vst [vmem:[#allocation2 + $0x198] sm:$0xff] %v6835
      %7028 = vst [vmem:[#allocation2 + $0x1a0] sm:$0xff] %v6836
      %7029 = vst [vmem:[#allocation2 + $0x1a8] sm:$0xff] %v6837
      %7030 = vst [vmem:[#allocation2 + $0x1b0] sm:$0xff] %v6838
      %7031 = vst [vmem:[#allocation2 + $0x1b8] sm:$0xff] %v6839
      %7032 = vst [vmem:[#allocation2 + $0x1c0] sm:$0xff] %v6840
      %7033 = vst [vmem:[#allocation2 + $0x1c8] sm:$0xff] %v6841
      %7034 = vst [vmem:[#allocation2 + $0x1d0] sm:$0xff] %v6842
      %7035 = vst [vmem:[#allocation2 + $0x1d8] sm:$0xff] %v6843
      %7036 = vst [vmem:[#allocation2 + $0x1e0] sm:$0xff] %v6844
      %7037 = vst [vmem:[#allocation2 + $0x1e8] sm:$0xff] %v6845
      %7038 = vst [vmem:[#allocation2 + $0x1f0] sm:$0xff] %v6846
      %7039 = vst [vmem:[#allocation2 + $0x1f8] sm:$0xff] %v6847
      %7040 = vst [vmem:[#allocation2 + $0x200] sm:$0xff] %v6848
      %7041 = vst [vmem:[#allocation2 + $0x208] sm:$0xff] %v6849
      %7042 = vst [vmem:[#allocation2 + $0x210] sm:$0xff] %v6850
      %7043 = vst [vmem:[#allocation2 + $0x218] sm:$0xff] %v6851
      %7044 = vst [vmem:[#allocation2 + $0x220] sm:$0xff] %v6852
      %7045 = vst [vmem:[#allocation2 + $0x228] sm:$0xff] %v6853
      %7046 = vst [vmem:[#allocation2 + $0x230] sm:$0xff] %v6854
      %7047 = vst [vmem:[#allocation2 + $0x238] sm:$0xff] %v6855
      %7048 = vst [vmem:[#allocation2 + $0x240] sm:$0xff] %v6856
      %7049 = vst [vmem:[#allocation2 + $0x248] sm:$0xff] %v6857
      %7050 = vst [vmem:[#allocation2 + $0x250] sm:$0xff] %v6858
      %7051 = vst [vmem:[#allocation2 + $0x258] sm:$0xff] %v6859
      %7052 = vst [vmem:[#allocation2 + $0x260] sm:$0xff] %v6860
      %7053 = vst [vmem:[#allocation2 + $0x268] sm:$0xff] %v6861
      %7054 = vst [vmem:[#allocation2 + $0x270] sm:$0xff] %v6862
      %7055 = vst [vmem:[#allocation2 + $0x278] sm:$0xff] %v6863
      %7056 = vst [vmem:[#allocation2 + $0x280] sm:$0xff] %v6864
      %7057 = vst [vmem:[#allocation2 + $0x288] sm:$0xff] %v6865
      %7058 = vst [vmem:[#allocation2 + $0x290] sm:$0xff] %v6866
      %7059 = vst [vmem:[#allocation2 + $0x298] sm:$0xff] %v6867
      %7060 = vst [vmem:[#allocation2 + $0x2a0] sm:$0xff] %v6868
      %7061 = vst [vmem:[#allocation2 + $0x2a8] sm:$0xff] %v6869
      %7062 = vst [vmem:[#allocation2 + $0x2b0] sm:$0xff] %v6870
      %7063 = vst [vmem:[#allocation2 + $0x2b8] sm:$0xff] %v6871
      %7064 = vst [vmem:[#allocation2 + $0x2c0] sm:$0xff] %v6872
      %7065 = vst [vmem:[#allocation2 + $0x2c8] sm:$0xff] %v6873
      %7066 = vst [vmem:[#allocation2 + $0x2d0] sm:$0xff] %v6874
      %7067 = vst [vmem:[#allocation2 + $0x2d8] sm:$0xff] %v6875
      %7068 = vst [vmem:[#allocation2 + $0x2e0] sm:$0xff] %v6876
      %7069 = vst [vmem:[#allocation2 + $0x2e8] sm:$0xff] %v6877
      %7070 = vst [vmem:[#allocation2 + $0x2f0] sm:$0xff] %v6878
      %7071 = vst [vmem:[#allocation2 + $0x2f8] sm:$0xff] %v6879
      %7072 = vst [vmem:[%s4] sm:$0xff] %v5730
      %7073 = vst [vmem:[%s4 + $0x8] sm:$0xff] %v5732
      %7074 = vst [vmem:[%s4 + $0x10] sm:$0xff] %v5734
      %7075 = vst [vmem:[%s4 + $0x18] sm:$0xff] %v5736
      %7076 = vst [vmem:[%s4 + $0x20] sm:$0xff] %v5740
      %7077 = vst [vmem:[%s4 + $0x28] sm:$0xff] %v5742
      %7078 = vst [vmem:[%s4 + $0x30] sm:$0xff] %v5744
      %7079 = vst [vmem:[%s4 + $0x38] sm:$0xff] %v5746
      %7080 = vst [vmem:[%s4 + $0x40] sm:$0xff] %v5750
      %7081 = vst [vmem:[%s4 + $0x48] sm:$0xff] %v5752
      %7082 = vst [vmem:[%s4 + $0x50] sm:$0xff] %v5754
      %7083 = vst [vmem:[%s4 + $0x58] sm:$0xff] %v5756
      %7084 = vst [vmem:[%s4 + $0x60] sm:$0xff] %v5760
      %7085 = vst [vmem:[%s4 + $0x68] sm:$0xff] %v5762
      %7086 = vst [vmem:[%s4 + $0x70] sm:$0xff] %v5764
      %7087 = vst [vmem:[%s4 + $0x78] sm:$0xff] %v5766
      %7088 = vst [vmem:[%s4 + $0x80] sm:$0xff] %v5770
      %7089 = vst [vmem:[%s4 + $0x88] sm:$0xff] %v5772
      %7090 = vst [vmem:[%s4 + $0x90] sm:$0xff] %v5774
      %7091 = vst [vmem:[%s4 + $0x98] sm:$0xff] %v5776
      %7092 = vst [vmem:[%s4 + $0xa0] sm:$0xff] %v5780
      %7093 = vst [vmem:[%s4 + $0xa8] sm:$0xff] %v5782
      %7094 = vst [vmem:[%s4 + $0xb0] sm:$0xff] %v5784
      %7095 = vst [vmem:[%s4 + $0xb8] sm:$0xff] %v5786
      %7096 = vst [vmem:[%s4 + $0xc0] sm:$0xff] %v5790
      %7097 = vst [vmem:[%s4 + $0xc8] sm:$0xff] %v5792
      %7098 = vst [vmem:[%s4 + $0xd0] sm:$0xff] %v5794
      %7099 = vst [vmem:[%s4 + $0xd8] sm:$0xff] %v5796
      %7100 = vst [vmem:[%s4 + $0xe0] sm:$0xff] %v5800
      %7101 = vst [vmem:[%s4 + $0xe8] sm:$0xff] %v5802
      %7102 = vst [vmem:[%s4 + $0xf0] sm:$0xff] %v5804
      %7103 = vst [vmem:[%s4 + $0xf8] sm:$0xff] %v5806
      %7104 = vst [vmem:[%s4 + $0x100] sm:$0xff] %v5810
      %7105 = vst [vmem:[%s4 + $0x108] sm:$0xff] %v5812
      %7106 = vst [vmem:[%s4 + $0x110] sm:$0xff] %v5814
      %7107 = vst [vmem:[%s4 + $0x118] sm:$0xff] %v5816
      %7108 = vst [vmem:[%s4 + $0x120] sm:$0xff] %v5820
      %7109 = vst [vmem:[%s4 + $0x128] sm:$0xff] %v5822
      %7110 = vst [vmem:[%s4 + $0x130] sm:$0xff] %v5824
      %7111 = vst [vmem:[%s4 + $0x138] sm:$0xff] %v5826
      %7112 = vst [vmem:[%s4 + $0x140] sm:$0xff] %v5830
      %7113 = vst [vmem:[%s4 + $0x148] sm:$0xff] %v5832
      %7114 = vst [vmem:[%s4 + $0x150] sm:$0xff] %v5834
      %7115 = vst [vmem:[%s4 + $0x158] sm:$0xff] %v5836
      %7116 = vst [vmem:[%s4 + $0x160] sm:$0xff] %v5840
      %7117 = vst [vmem:[%s4 + $0x168] sm:$0xff] %v5842
      %7118 = vst [vmem:[%s4 + $0x170] sm:$0xff] %v5844
      %7119 = vst [vmem:[%s4 + $0x178] sm:$0xff] %v5846
      %7120 = vst [vmem:[%s4 + $0x180] sm:$0xff] %v5850
      %7121 = vst [vmem:[%s4 + $0x188] sm:$0xff] %v5852
      %7122 = vst [vmem:[%s4 + $0x190] sm:$0xff] %v5854
      %7123 = vst [vmem:[%s4 + $0x198] sm:$0xff] %v5856
      %7124 = vst [vmem:[%s4 + $0x1a0] sm:$0xff] %v5860
      %7125 = vst [vmem:[%s4 + $0x1a8] sm:$0xff] %v5862
      %7126 = vst [vmem:[%s4 + $0x1b0] sm:$0xff] %v5864
      %7127 = vst [vmem:[%s4 + $0x1b8] sm:$0xff] %v5866
      %7128 = vst [vmem:[%s4 + $0x1c0] sm:$0xff] %v5870
      %7129 = vst [vmem:[%s4 + $0x1c8] sm:$0xff] %v5872
      %7130 = vst [vmem:[%s4 + $0x1d0] sm:$0xff] %v5874
      %7131 = vst [vmem:[%s4 + $0x1d8] sm:$0xff] %v5876
      %7132 = vst [vmem:[%s4 + $0x1e0] sm:$0xff] %v5880
      %7133 = vst [vmem:[%s4 + $0x1e8] sm:$0xff] %v5882
      %7134 = vst [vmem:[%s4 + $0x1f0] sm:$0xff] %v5884
      %7135 = vst [vmem:[%s4 + $0x1f8] sm:$0xff] %v5886
      %7136 = vst [vmem:[%s4 + $0x200] sm:$0xff] %v5890
      %7137 = vst [vmem:[%s4 + $0x208] sm:$0xff] %v5892
      %7138 = vst [vmem:[%s4 + $0x210] sm:$0xff] %v5894
      %7139 = vst [vmem:[%s4 + $0x218] sm:$0xff] %v5896
      %7140 = vst [vmem:[%s4 + $0x220] sm:$0xff] %v5900
      %7141 = vst [vmem:[%s4 + $0x228] sm:$0xff] %v5902
      %7142 = vst [vmem:[%s4 + $0x230] sm:$0xff] %v5904
      %7143 = vst [vmem:[%s4 + $0x238] sm:$0xff] %v5906
      %7144 = vst [vmem:[%s4 + $0x240] sm:$0xff] %v5910
      %7145 = vst [vmem:[%s4 + $0x248] sm:$0xff] %v5912
      %7146 = vst [vmem:[%s4 + $0x250] sm:$0xff] %v5914
      %7147 = vst [vmem:[%s4 + $0x258] sm:$0xff] %v5916
      %7148 = vst [vmem:[%s4 + $0x260] sm:$0xff] %v5920
      %7149 = vst [vmem:[%s4 + $0x268] sm:$0xff] %v5922
      %7150 = vst [vmem:[%s4 + $0x270] sm:$0xff] %v5924
      %7151 = vst [vmem:[%s4 + $0x278] sm:$0xff] %v5926
      %7152 = vst [vmem:[%s4 + $0x280] sm:$0xff] %v5930
      %7153 = vst [vmem:[%s4 + $0x288] sm:$0xff] %v5932
      %7154 = vst [vmem:[%s4 + $0x290] sm:$0xff] %v5934
      %7155 = vst [vmem:[%s4 + $0x298] sm:$0xff] %v5936
      %7156 = vst [vmem:[%s4 + $0x2a0] sm:$0xff] %v5940
      %7157 = vst [vmem:[%s4 + $0x2a8] sm:$0xff] %v5942
      %7158 = vst [vmem:[%s4 + $0x2b0] sm:$0xff] %v5944
      %7159 = vst [vmem:[%s4 + $0x2b8] sm:$0xff] %v5946
      %7160 = vst [vmem:[%s4 + $0x2c0] sm:$0xff] %v5950
      %7161 = vst [vmem:[%s4 + $0x2c8] sm:$0xff] %v5952
      %7162 = vst [vmem:[%s4 + $0x2d0] sm:$0xff] %v5954
      %7163 = vst [vmem:[%s4 + $0x2d8] sm:$0xff] %v5956
      %7164 = vst [vmem:[%s4 + $0x2e0] sm:$0xff] %v5960
      %7165 = vst [vmem:[%s4 + $0x2e8] sm:$0xff] %v5962
      %7166 = vst [vmem:[%s4 + $0x2f0] sm:$0xff] %v5964
      %7167 = vst [vmem:[%s4 + $0x2f8] sm:$0xff] %v5966
      %7168 = vst [vmem:[%s4 + $0x300] sm:$0xff] %v5970
      %7169 = vst [vmem:[%s4 + $0x308] sm:$0xff] %v5972
      %7170 = vst [vmem:[%s4 + $0x310] sm:$0xff] %v5974
      %7171 = vst [vmem:[%s4 + $0x318] sm:$0xff] %v5976
      %7172 = vst [vmem:[%s4 + $0x320] sm:$0xff] %v5980
      %7173 = vst [vmem:[%s4 + $0x328] sm:$0xff] %v5982
      %7174 = vst [vmem:[%s4 + $0x330] sm:$0xff] %v5984
      %7175 = vst [vmem:[%s4 + $0x338] sm:$0xff] %v5986
      %7176 = vst [vmem:[%s4 + $0x340] sm:$0xff] %v5990
      %7177 = vst [vmem:[%s4 + $0x348] sm:$0xff] %v5992
      %7178 = vst [vmem:[%s4 + $0x350] sm:$0xff] %v5994
      %7179 = vst [vmem:[%s4 + $0x358] sm:$0xff] %v5996
      %7180 = vst [vmem:[%s4 + $0x360] sm:$0xff] %v6000
      %7181 = vst [vmem:[%s4 + $0x368] sm:$0xff] %v6002
      %7182 = vst [vmem:[%s4 + $0x370] sm:$0xff] %v6004
      %7183 = vst [vmem:[%s4 + $0x378] sm:$0xff] %v6006
      %7184 = vst [vmem:[%s4 + $0x380] sm:$0xff] %v6010
      %7185 = vst [vmem:[%s4 + $0x388] sm:$0xff] %v6012
      %7186 = vst [vmem:[%s4 + $0x390] sm:$0xff] %v6014
      %7187 = vst [vmem:[%s4 + $0x398] sm:$0xff] %v6016
      %7188 = vst [vmem:[%s4 + $0x3a0] sm:$0xff] %v6020
      %7189 = vst [vmem:[%s4 + $0x3a8] sm:$0xff] %v6022
      %7190 = vst [vmem:[%s4 + $0x3b0] sm:$0xff] %v6024
      %7191 = vst [vmem:[%s4 + $0x3b8] sm:$0xff] %v6026
      %7192 = vst [vmem:[%s4 + $0x3c0] sm:$0xff] %v6030
      %7193 = vst [vmem:[%s4 + $0x3c8] sm:$0xff] %v6032
      %7194 = vst [vmem:[%s4 + $0x3d0] sm:$0xff] %v6034
      %7195 = vst [vmem:[%s4 + $0x3d8] sm:$0xff] %v6036
      %7196 = vst [vmem:[%s4 + $0x3e0] sm:$0xff] %v6040
      %7197 = vst [vmem:[%s4 + $0x3e8] sm:$0xff] %v6042
      %7198 = vst [vmem:[%s4 + $0x3f0] sm:$0xff] %v6044
      %7199 = vst [vmem:[%s4 + $0x3f8] sm:$0xff] %v6046
      %7200 = vst [vmem:[%s4 + $0x400] sm:$0xff] %v6050
      %7201 = vst [vmem:[%s4 + $0x408] sm:$0xff] %v6052
      %7202 = vst [vmem:[%s4 + $0x410] sm:$0xff] %v6054
      %7203 = vst [vmem:[%s4 + $0x418] sm:$0xff] %v6056
      %7204 = vst [vmem:[%s4 + $0x420] sm:$0xff] %v6060
      %7205 = vst [vmem:[%s4 + $0x428] sm:$0xff] %v6062
      %7206 = vst [vmem:[%s4 + $0x430] sm:$0xff] %v6064
      %7207 = vst [vmem:[%s4 + $0x438] sm:$0xff] %v6066
      %7208 = vst [vmem:[%s4 + $0x440] sm:$0xff] %v6070
      %7209 = vst [vmem:[%s4 + $0x448] sm:$0xff] %v6072
      %7210 = vst [vmem:[%s4 + $0x450] sm:$0xff] %v6074
      %7211 = vst [vmem:[%s4 + $0x458] sm:$0xff] %v6076
      %7212 = vst [vmem:[%s4 + $0x460] sm:$0xff] %v6080
      %7213 = vst [vmem:[%s4 + $0x468] sm:$0xff] %v6082
      %7214 = vst [vmem:[%s4 + $0x470] sm:$0xff] %v6084
      %7215 = vst [vmem:[%s4 + $0x478] sm:$0xff] %v6086
      %7216 = vst [vmem:[%s4 + $0x480] sm:$0xff] %v6090
      %7217 = vst [vmem:[%s4 + $0x488] sm:$0xff] %v6092
      %7218 = vst [vmem:[%s4 + $0x490] sm:$0xff] %v6094
      %7219 = vst [vmem:[%s4 + $0x498] sm:$0xff] %v6096
      %7220 = vst [vmem:[%s4 + $0x4a0] sm:$0xff] %v6100
      %7221 = vst [vmem:[%s4 + $0x4a8] sm:$0xff] %v6102
      %7222 = vst [vmem:[%s4 + $0x4b0] sm:$0xff] %v6104
      %7223 = vst [vmem:[%s4 + $0x4b8] sm:$0xff] %v6106
      %7224 = vst [vmem:[%s4 + $0x4c0] sm:$0xff] %v6110
      %7225 = vst [vmem:[%s4 + $0x4c8] sm:$0xff] %v6112
      %7226 = vst [vmem:[%s4 + $0x4d0] sm:$0xff] %v6114
      %7227 = vst [vmem:[%s4 + $0x4d8] sm:$0xff] %v6116
      %7228 = vst [vmem:[%s4 + $0x4e0] sm:$0xff] %v6120
      %7229 = vst [vmem:[%s4 + $0x4e8] sm:$0xff] %v6122
      %7230 = vst [vmem:[%s4 + $0x4f0] sm:$0xff] %v6124
      %7231 = vst [vmem:[%s4 + $0x4f8] sm:$0xff] %v6126
      %7232 = vst [vmem:[%s4 + $0x500] sm:$0xff] %v6130
      %7233 = vst [vmem:[%s4 + $0x508] sm:$0xff] %v6132
      %7234 = vst [vmem:[%s4 + $0x510] sm:$0xff] %v6134
      %7235 = vst [vmem:[%s4 + $0x518] sm:$0xff] %v6136
      %7236 = vst [vmem:[%s4 + $0x520] sm:$0xff] %v6140
      %7237 = vst [vmem:[%s4 + $0x528] sm:$0xff] %v6142
      %7238 = vst [vmem:[%s4 + $0x530] sm:$0xff] %v6144
      %7239 = vst [vmem:[%s4 + $0x538] sm:$0xff] %v6146
      %7240 = vst [vmem:[%s4 + $0x540] sm:$0xff] %v6150
      %7241 = vst [vmem:[%s4 + $0x548] sm:$0xff] %v6152
      %7242 = vst [vmem:[%s4 + $0x550] sm:$0xff] %v6154
      %7243 = vst [vmem:[%s4 + $0x558] sm:$0xff] %v6156
      %7244 = vst [vmem:[%s4 + $0x560] sm:$0xff] %v6160
      %7245 = vst [vmem:[%s4 + $0x568] sm:$0xff] %v6162
      %7246 = vst [vmem:[%s4 + $0x570] sm:$0xff] %v6164
      %7247 = vst [vmem:[%s4 + $0x578] sm:$0xff] %v6166
      %7248 = vst [vmem:[%s4 + $0x580] sm:$0xff] %v6170
      %7249 = vst [vmem:[%s4 + $0x588] sm:$0xff] %v6172
      %7250 = vst [vmem:[%s4 + $0x590] sm:$0xff] %v6174
      %7251 = vst [vmem:[%s4 + $0x598] sm:$0xff] %v6176
      %7252 = vst [vmem:[%s4 + $0x5a0] sm:$0xff] %v6180
      %7253 = vst [vmem:[%s4 + $0x5a8] sm:$0xff] %v6182
      %7254 = vst [vmem:[%s4 + $0x5b0] sm:$0xff] %v6184
      %7255 = vst [vmem:[%s4 + $0x5b8] sm:$0xff] %v6186
      %7256 = vst [vmem:[%s4 + $0x5c0] sm:$0xff] %v6190
      %7257 = vst [vmem:[%s4 + $0x5c8] sm:$0xff] %v6192
      %7258 = vst [vmem:[%s4 + $0x5d0] sm:$0xff] %v6194
      %7259 = vst [vmem:[%s4 + $0x5d8] sm:$0xff] %v6196
      %7260 = vst [vmem:[%s4 + $0x5e0] sm:$0xff] %v6200
      %7261 = vst [vmem:[%s4 + $0x5e8] sm:$0xff] %v6202
      %7262 = vst [vmem:[%s4 + $0x5f0] sm:$0xff] %v6204
      %7263 = vst [vmem:[%s4 + $0x5f8] sm:$0xff] %v6206
      // Predicated region
      $region45: #{gcn_encoder_forward.3} parent=35 // pred_check
        %p7264 = pneg %p122
      $region46: #{gcn_encoder_forward.3} parent=35 // pred_check_branch
        %7266 = sbr.rel (%p7264) target = $region48
      $region47: #{gcn_encoder_forward.3} parent=35 // pred_region
        _
      $region48: #{gcn_encoder_forward.3} parent=35 // pred_fallthru
        _
      // Predicated region
      $region49: #{gcn_encoder_forward.3} parent=35 // pred_check
        %p7267 = pneg %p122
      $region50: #{gcn_encoder_forward.3} parent=35 // pred_check_branch
        %7269 = sbr.rel (%p7267) target = $region52
      $region51: #{gcn_encoder_forward.3} parent=35 // pred_region
        _
      $region52: #{gcn_encoder_forward.3} parent=35 // pred_fallthru
        _
    $region36: #{gcn_encoder_forward.3} parent=5 // pred_fallthru
      _
    %p7270 = scmp.le.s32.totalorder 2, %s10
    // Predicated region
    $region53: #{gcn_encoder_forward.3} parent=5 // pred_check
      %p7271 = pneg %p7270
    $region54: #{gcn_encoder_forward.3} parent=5 // pred_check_branch
      %7273 = sbr.rel (%p7271) target = $region56
    $region55: #{gcn_encoder_forward.3} parent=5 // pred_region
      %s7274 = ssub.s32 %s10, 2
    $region56: #{gcn_encoder_forward.3} parent=5 // pred_fallthru
      _
  $region6: #{gcn_encoder_forward.3} parent=0 // loop_footer
    %s14 = sadd.s32 1, %s10
  $region7: #{gcn_encoder_forward.3} parent=0 // loop_footer_branch
    %9 = sbr.rel target = $region3
  $region8: #{gcn_encoder_forward.3} parent=0 // loop_exit
    _

</llo_original>
